<compile_context>
chip_gen: v6e
topology: v6e:2x2x1
jax: 0.10.0
libtpu: 0.0.40
codegen_flags: <defaults>
</compile_context>

<pallas_src>
import functools

import jax
import jax.numpy as jnp
from jax import lax
from jax.experimental import pallas as pl
from jax.experimental.pallas import tpu as pltpu


# ---------------------------------------------------------------------------
# Pallas kernels
# ---------------------------------------------------------------------------
def _gemm_bias_kernel(a_ref, b_ref, c_ref, o_ref, *, relu):
    """Single-tile GEMM with fused bias epilogue: o = act(a @ b + c)."""
    y = jnp.dot(a_ref[...], b_ref[...], preferred_element_type=jnp.float32)
    y = y + c_ref[...]
    if relu:
        y = jnp.maximum(y, 0.0)
    o_ref[...] = y.astype(o_ref.dtype)


def gemm_bias(a, b, bias, *, relu=False):
    """act(a @ b + bias).  Single VMEM block: used for all (tiny) conv GEMMs and fc2.
    bias broadcasts against the (M, N) result: (M, 1) per-row or (1, N) per-column."""
    M = a.shape[0]
    N = b.shape[1]
    return pl.pallas_call(
        functools.partial(_gemm_bias_kernel, relu=relu),
        out_shape=jax.ShapeDtypeStruct((M, N), jnp.float32),
    )(a, b, bias)


def _fc1_q_kernel(x_ref, wq_ref, s_ref, b_ref, o_ref, acc_ref, *, relu):
    """K-tiled, N-parallel int8-weight linear: o = act((x @ wq) * scale + bias)."""
    @pl.when(pl.program_id(1) == 0)
    def _():
        acc_ref[...] = jnp.zeros_like(acc_ref)

    # int8 weights are exactly representable in bf16; bf16 x bf16 -> f32 accumulate.
    acc_ref[...] += jnp.dot(x_ref[...].astype(jnp.bfloat16),
                            wq_ref[...].astype(jnp.bfloat16),
                            preferred_element_type=jnp.float32)

    @pl.when(pl.program_id(1) == pl.num_programs(1) - 1)
    def _():
        y = acc_ref[...] * s_ref[...] + b_ref[...]   # per-column dequant scale + bias
        if relu:
            y = jnp.maximum(y, 0.0)
        o_ref[...] = y.astype(o_ref.dtype)


def linear_q(x, wq, scale, bias, *, relu=False, tn=512, tk=5120):
    """x:(M,K) f32 @ wq:(K,N) int8 (pre-transposed), per-column scale:(1,N), bias:(1,N)."""
    M, K = x.shape
    Kw, N = wq.shape
    assert Kw == K
    if N % tn:
        tn = N
    if K % tk:
        tk = K  # fallback: single K strip (safe for the 10240-wide classifier used here)
    nj, nk = N // tn, K // tk
    flops = 2 * M * K * N
    bytes_accessed = K * N * 1 + nj * M * K * 4 + M * N * 4 + 2 * N * 4
    return pl.pallas_call(
        functools.partial(_fc1_q_kernel, relu=relu),
        out_shape=jax.ShapeDtypeStruct((M, N), jnp.float32),
        grid_spec=pltpu.PrefetchScalarGridSpec(
            num_scalar_prefetch=0,
            grid=(nj, nk),                       # N parallel (megacore), K reduction last
            in_specs=[
                pl.BlockSpec((M, tk), lambda j, k: (0, k)),
                pl.BlockSpec((tk, tn), lambda j, k: (k, j)),
                pl.BlockSpec((1, tn), lambda j, k: (0, j)),
                pl.BlockSpec((1, tn), lambda j, k: (0, j)),
            ],
            out_specs=pl.BlockSpec((M, tn), lambda j, k: (0, j)),
            scratch_shapes=[pltpu.VMEM((M, tn), jnp.float32)],
        ),
        compiler_params=pltpu.CompilerParams(
            dimension_semantics=("parallel", "arbitrary"),
            vmem_limit_bytes=32 * 1024 * 1024),
        cost_estimate=pl.CostEstimate(
            flops=flops, transcendentals=0, bytes_accessed=bytes_accessed),
    )(x, wq, scale, bias)


def _max3_kernel(a_ref, b_ref, c_ref, o_ref):
    o_ref[...] = jnp.maximum(jnp.maximum(a_ref[...], b_ref[...]), c_ref[...])


def max3(a, b, c):
    """Elementwise max of three equal-shaped 2D arrays (MaxPool1d window reduce)."""
    return pl.pallas_call(
        _max3_kernel,
        out_shape=jax.ShapeDtypeStruct(a.shape, a.dtype),
    )(a, b, c)


# ---------------------------------------------------------------------------
# Layer wrappers (im2col / slicing glue in plain JAX, hot paths in Pallas)
# ---------------------------------------------------------------------------
def conv_block(x, w2, bias, *, k, stride, pad, relu):
    """Conv1d + folded BatchNorm1d(eval) [+ ReLU] on channel-major (Cin,B,L) -> (Cout,B,Lout)."""
    Cin, B, L = x.shape
    Cout = w2.shape[0]
    if pad:
        x = jnp.pad(x, ((0, 0), (0, 0), (pad, pad)))
        L += 2 * pad
    Lout = (L - k) // stride + 1
    lim = (Lout - 1) * stride + 1
    # Transposed im2col via static strided slices (no gather): rows = Cin*k (reduction),
    # cols = B*Lout (lane axis of the GEMM output).  XLA fuses slices/stack/reshape/cast.
    cols = [lax.slice(x, (0, 0, t), (Cin, B, t + lim), (1, 1, stride)) for t in range(k)]
    patches = jnp.stack(cols, axis=1).reshape(Cin * k, B * Lout).astype(jnp.bfloat16)
    y = gemm_bias(w2, patches, bias, relu=relu)               # (Cout, B*Lout) f32
    return y.reshape(Cout, B, Lout)


def maxpool3s2(x):
    """MaxPool1d(kernel_size=3, stride=2) on channel-major (C, B, L)."""
    C, B, L = x.shape
    Lp = (L - 3) // 2 + 1
    xr = x.reshape(C * B, L)
    a = lax.slice(xr, (0, 0), (C * B, 2 * Lp - 1), (1, 2))
    b = lax.slice(xr, (0, 1), (C * B, 2 * Lp), (1, 2))
    c = lax.slice(xr, (0, 2), (C * B, 2 * Lp + 1), (1, 2))
    return max3(a, b, c).reshape(C, B, Lp)


# ---------------------------------------------------------------------------
# Model
# ---------------------------------------------------------------------------
def cnn1d_forward(x, params):
    # x arrives in PyTorch NCL layout (B, Cin, L); switch to channel-major (Cin, B, L)
    # once so every conv GEMM output has B*Lout on the lane axis.
    h = jnp.transpose(x, (1, 0, 2))

    # convs: Conv-BN-ReLU-Pool, Conv-BN-Pool, Conv-BN, Conv-BN, Conv-BN-ReLU-Pool
    # TODO(synk): the whole conv/pool stack (<2 MiB working set) could be fused into a
    # single pallas_call to cut dispatch latency further; kept per-layer for robustness.
    h = conv_block(h, *params["conv1"], k=11, stride=5, pad=0, relu=True)
    h = maxpool3s2(h)
    h = conv_block(h, *params["conv2"], k=7, stride=3, pad=0, relu=False)
    h = maxpool3s2(h)
    h = conv_block(h, *params["conv3"], k=3, stride=1, pad=1, relu=False)
    h = conv_block(h, *params["conv4"], k=3, stride=1, pad=1, relu=False)
    h = conv_block(h, *params["conv5"], k=3, stride=1, pad=1, relu=True)
    h = maxpool3s2(h)                                            # (512, B, 20)

    C, B, Lp = h.shape
    flat = jnp.transpose(h, (1, 0, 2)).reshape(B, C * Lp)        # 'b d l -> b (d l)'

    # TODO(synk): Dropout is identity (inference); BatchNorm above uses running stats.
    wq1, s1, b1 = params["fc1"]                                  # int8 (K,N), (1,N), (1,N)
    h = linear_q(flat, wq1, s1, b1, relu=True)                   # (B, 1024) f32
    w2, b2 = params["fc2"]                                       # (K,N) f32, (1,N) f32
    return gemm_bias(h, w2, b2, relu=False)                      # (B, out_class)


def init_params(key, in_channel, out_class):
    """Random eval-mode parameters, pre-prepared for the Pallas forward:
      * conv blocks: BatchNorm(eval, eps=1e-5) folded into conv weight/bias; weight
        flattened to (Cout, Cin*k) bf16; bias f32 (Cout, 1).
      * fc1: pre-transposed (K, N), int8-quantized with per-output-column scale.
      * fc2: pre-transposed (K, N) f32, bias (1, N) f32.
    """
    eps = 1e-5

    def conv_bn(k, cin, cout, ksize):
        k1, k2, k3, k4, k5, k6 = jax.random.split(k, 6)
        w = jax.random.normal(k1, (cout, cin, ksize), jnp.float32) * 0.1
        b = jax.random.normal(k2, (cout,), jnp.float32) * 0.05
        gamma = jax.random.uniform(k3, (cout,), jnp.float32, 0.5, 1.5)
        beta = jax.random.normal(k4, (cout,), jnp.float32) * 0.05
        mean = jax.random.normal(k5, (cout,), jnp.float32) * 0.05
        var = jax.random.uniform(k6, (cout,), jnp.float32, 0.5, 1.5)
        s = gamma / jnp.sqrt(var + eps)                          # BN(eval) scale
        w2 = (w * s[:, None, None]).reshape(cout, cin * ksize).astype(jnp.bfloat16)
        bias = ((b - mean) * s + beta)[:, None].astype(jnp.float32)
        return (w2, bias)

    keys = jax.random.split(key, 7)
    params = {
        "conv1": conv_bn(keys[0], in_channel, 4, 11),
        "conv2": conv_bn(keys[1], 4, 16, 7),
        "conv3": conv_bn(keys[2], 16, 64, 3),
        "conv4": conv_bn(keys[3], 64, 64, 3),
        "conv5": conv_bn(keys[4], 64, 512, 3),
    }

    # fc1: (K=512*20, N=1024) weight, int8 per-output-column symmetric quantization.
    kw1, kb1 = jax.random.split(keys[5])
    w1 = jax.random.normal(kw1, (512 * 20, 1024), jnp.float32) * 0.01
    amax = jnp.maximum(jnp.max(jnp.abs(w1), axis=0), 1e-8)
    s1 = (amax / 127.0)[None, :].astype(jnp.float32)             # (1, N)
    wq1 = jnp.clip(jnp.round(w1 / s1), -127, 127).astype(jnp.int8)
    b1 = (jax.random.normal(kb1, (1024,), jnp.float32) * 0.01)[None, :]
    params["fc1"] = (wq1, s1, b1)

    kw2, kb2 = jax.random.split(keys[6])
    params["fc2"] = (
        jax.random.normal(kw2, (1024, out_class), jnp.float32) * 0.01,
        (jax.random.normal(kb2, (out_class,), jnp.float32) * 0.01)[None, :])
    return params


if __name__ == "__main__":
    key = jax.random.PRNGKey(0)
    in_channel, out_class = 4, 8
    # L = 2560 is the input length implied by the classifier (conv stack -> 512 x 20).
    B, L = 2, 2560
    kx, kp = jax.random.split(key)
    x = jax.random.normal(kx, (B, in_channel, L), jnp.float32)
    params = init_params(kp, in_channel, out_class)

    fwd = jax.jit(cnn1d_forward)
    out = fwd(x, params)
    out = jax.block_until_ready(out)
    assert out.shape == (B, out_class) and out.dtype == jnp.float32
    print("KERNEL_OK")
</pallas_src>

<mosaic_0001>
module attributes {stable_mosaic.version = 11 : i64} {
  func.func @_gemm_bias_kernel(%arg0: memref<4x44xbf16, #tpu.memory_space<vmem>>, %arg1: memref<44x1020xbf16, #tpu.memory_space<vmem>>, %arg2: memref<4x1xf32, #tpu.memory_space<vmem>>, %arg3: memref<4x1020xf32, #tpu.memory_space<vmem>>) attributes {dimension_semantics = [], scalar_prefetch = 0 : i64, scratch_operands = 0 : i64, tpu.core_type = #tpu.core_type<tc>} {
    %c0 = arith.constant 0 : index
    %c0_0 = arith.constant 0 : index
    %0 = vector.load %arg0[%c0, %c0_0] : memref<4x44xbf16, #tpu.memory_space<vmem>>, vector<4x44xbf16>
    %c0_1 = arith.constant 0 : index
    %c0_2 = arith.constant 0 : index
    %1 = vector.load %arg1[%c0_1, %c0_2] : memref<44x1020xbf16, #tpu.memory_space<vmem>>, vector<44x1020xbf16>
    %cst = arith.constant dense<0.000000e+00> : vector<4x1020xf32>
    %2 = tpu.matmul %0, %1, %cst {dimension_numbers = #tpu.dot_dimension_numbers<[1], [0], [0], [1], [0, 0, 1, 1], [], []>} : vector<4x44xbf16>, vector<44x1020xbf16>, vector<4x1020xf32> -> vector<4x1020xf32>
    %c0_3 = arith.constant 0 : index
    %c0_4 = arith.constant 0 : index
    %3 = vector.load %arg2[%c0_3, %c0_4] : memref<4x1xf32, #tpu.memory_space<vmem>>, vector<4x1xf32>
    %4 = vector.broadcast %3 : vector<4x1xf32> to vector<4x1020xf32>
    %5 = arith.addf %2, %4 : vector<4x1020xf32>
    %cst_5 = arith.constant 0.000000e+00 : f32
    %6 = vector.broadcast %cst_5 : f32 to vector<4x1020xf32>
    %7 = arith.maximumf %5, %6 : vector<4x1020xf32>
    %c0_6 = arith.constant 0 : index
    %c0_7 = arith.constant 0 : index
    %8 = vector.load %arg3[%c0_6, %c0_7] : memref<4x1020xf32, #tpu.memory_space<vmem>>, vector<4x1020xf32>
    tpu.vector_store %arg3[%c0_6, %c0_7], %7 {strides = array<i32>} : memref<4x1020xf32, #tpu.memory_space<vmem>>, vector<4x1020xf32>,
    return
  }
}

module attributes {stable_mosaic.version = 11 : i64} {
  func.func @_max3_kernel(%arg0: memref<8x254xf32, #tpu.memory_space<vmem>>, %arg1: memref<8x254xf32, #tpu.memory_space<vmem>>, %arg2: memref<8x254xf32, #tpu.memory_space<vmem>>, %arg3: memref<8x254xf32, #tpu.memory_space<vmem>>) attributes {dimension_semantics = [], scalar_prefetch = 0 : i64, scratch_operands = 0 : i64, tpu.core_type = #tpu.core_type<tc>} {
    %c0 = arith.constant 0 : index
    %c0_0 = arith.constant 0 : index
    %0 = vector.load %arg0[%c0, %c0_0] : memref<8x254xf32, #tpu.memory_space<vmem>>, vector<8x254xf32>
    %c0_1 = arith.constant 0 : index
    %c0_2 = arith.constant 0 : index
    %1 = vector.load %arg1[%c0_1, %c0_2] : memref<8x254xf32, #tpu.memory_space<vmem>>, vector<8x254xf32>
    %2 = arith.maximumf %0, %1 : vector<8x254xf32>
    %c0_3 = arith.constant 0 : index
    %c0_4 = arith.constant 0 : index
    %3 = vector.load %arg2[%c0_3, %c0_4] : memref<8x254xf32, #tpu.memory_space<vmem>>, vector<8x254xf32>
    %4 = arith.maximumf %2, %3 : vector<8x254xf32>
    %c0_5 = arith.constant 0 : index
    %c0_6 = arith.constant 0 : index
    %5 = vector.load %arg3[%c0_5, %c0_6] : memref<8x254xf32, #tpu.memory_space<vmem>>, vector<8x254xf32>
    tpu.vector_store %arg3[%c0_5, %c0_6], %4 {strides = array<i32>} : memref<8x254xf32, #tpu.memory_space<vmem>>, vector<8x254xf32>,
    return
  }
}

module attributes {stable_mosaic.version = 11 : i64} {
  func.func @_gemm_bias_kernel(%arg0: memref<16x28xbf16, #tpu.memory_space<vmem>>, %arg1: memref<28x166xbf16, #tpu.memory_space<vmem>>, %arg2: memref<16x1xf32, #tpu.memory_space<vmem>>, %arg3: memref<16x166xf32, #tpu.memory_space<vmem>>) attributes {dimension_semantics = [], scalar_prefetch = 0 : i64, scratch_operands = 0 : i64, tpu.core_type = #tpu.core_type<tc>} {
    %c0 = arith.constant 0 : index
    %c0_0 = arith.constant 0 : index
    %0 = vector.load %arg0[%c0, %c0_0] : memref<16x28xbf16, #tpu.memory_space<vmem>>, vector<16x28xbf16>
    %c0_1 = arith.constant 0 : index
    %c0_2 = arith.constant 0 : index
    %1 = vector.load %arg1[%c0_1, %c0_2] : memref<28x166xbf16, #tpu.memory_space<vmem>>, vector<28x166xbf16>
    %cst = arith.constant dense<0.000000e+00> : vector<16x166xf32>
    %2 = tpu.matmul %0, %1, %cst {dimension_numbers = #tpu.dot_dimension_numbers<[1], [0], [0], [1], [0, 0, 1, 1], [], []>} : vector<16x28xbf16>, vector<28x166xbf16>, vector<16x166xf32> -> vector<16x166xf32>
    %c0_3 = arith.constant 0 : index
    %c0_4 = arith.constant 0 : index
    %3 = vector.load %arg2[%c0_3, %c0_4] : memref<16x1xf32, #tpu.memory_space<vmem>>, vector<16x1xf32>
    %4 = vector.broadcast %3 : vector<16x1xf32> to vector<16x166xf32>
    %5 = arith.addf %2, %4 : vector<16x166xf32>
    %c0_5 = arith.constant 0 : index
    %c0_6 = arith.constant 0 : index
    %6 = vector.load %arg3[%c0_5, %c0_6] : memref<16x166xf32, #tpu.memory_space<vmem>>, vector<16x166xf32>
    tpu.vector_store %arg3[%c0_5, %c0_6], %5 {strides = array<i32>} : memref<16x166xf32, #tpu.memory_space<vmem>>, vector<16x166xf32>,
    return
  }
}

module attributes {stable_mosaic.version = 11 : i64} {
  func.func @_max3_kernel(%arg0: memref<32x41xf32, #tpu.memory_space<vmem>>, %arg1: memref<32x41xf32, #tpu.memory_space<vmem>>, %arg2: memref<32x41xf32, #tpu.memory_space<vmem>>, %arg3: memref<32x41xf32, #tpu.memory_space<vmem>>) attributes {dimension_semantics = [], scalar_prefetch = 0 : i64, scratch_operands = 0 : i64, tpu.core_type = #tpu.core_type<tc>} {
    %c0 = arith.constant 0 : index
    %c0_0 = arith.constant 0 : index
    %0 = vector.load %arg0[%c0, %c0_0] : memref<32x41xf32, #tpu.memory_space<vmem>>, vector<32x41xf32>
    %c0_1 = arith.constant 0 : index
    %c0_2 = arith.constant 0 : index
    %1 = vector.load %arg1[%c0_1, %c0_2] : memref<32x41xf32, #tpu.memory_space<vmem>>, vector<32x41xf32>
    %2 = arith.maximumf %0, %1 : vector<32x41xf32>
    %c0_3 = arith.constant 0 : index
    %c0_4 = arith.constant 0 : index
    %3 = vector.load %arg2[%c0_3, %c0_4] : memref<32x41xf32, #tpu.memory_space<vmem>>, vector<32x41xf32>
    %4 = arith.maximumf %2, %3 : vector<32x41xf32>
    %c0_5 = arith.constant 0 : index
    %c0_6 = arith.constant 0 : index
    %5 = vector.load %arg3[%c0_5, %c0_6] : memref<32x41xf32, #tpu.memory_space<vmem>>, vector<32x41xf32>
    tpu.vector_store %arg3[%c0_5, %c0_6], %4 {strides = array<i32>} : memref<32x41xf32, #tpu.memory_space<vmem>>, vector<32x41xf32>,
    return
  }
}

module attributes {stable_mosaic.version = 11 : i64} {
  func.func @_gemm_bias_kernel(%arg0: memref<64x48xbf16, #tpu.memory_space<vmem>>, %arg1: memref<48x82xbf16, #tpu.memory_space<vmem>>, %arg2: memref<64x1xf32, #tpu.memory_space<vmem>>, %arg3: memref<64x82xf32, #tpu.memory_space<vmem>>) attributes {dimension_semantics = [], scalar_prefetch = 0 : i64, scratch_operands = 0 : i64, tpu.core_type = #tpu.core_type<tc>} {
    %c0 = arith.constant 0 : index
    %c0_0 = arith.constant 0 : index
    %0 = vector.load %arg0[%c0, %c0_0] : memref<64x48xbf16, #tpu.memory_space<vmem>>, vector<64x48xbf16>
    %c0_1 = arith.constant 0 : index
    %c0_2 = arith.constant 0 : index
    %1 = vector.load %arg1[%c0_1, %c0_2] : memref<48x82xbf16, #tpu.memory_space<vmem>>, vector<48x82xbf16>
    %cst = arith.constant dense<0.000000e+00> : vector<64x82xf32>
    %2 = tpu.matmul %0, %1, %cst {dimension_numbers = #tpu.dot_dimension_numbers<[1], [0], [0], [1], [0, 0, 1, 1], [], []>} : vector<64x48xbf16>, vector<48x82xbf16>, vector<64x82xf32> -> vector<64x82xf32>
    %c0_3 = arith.constant 0 : index
    %c0_4 = arith.constant 0 : index
    %3 = vector.load %arg2[%c0_3, %c0_4] : memref<64x1xf32, #tpu.memory_space<vmem>>, vector<64x1xf32>
    %4 = vector.broadcast %3 : vector<64x1xf32> to vector<64x82xf32>
    %5 = arith.addf %2, %4 : vector<64x82xf32>
    %c0_5 = arith.constant 0 : index
    %c0_6 = arith.constant 0 : index
    %6 = vector.load %arg3[%c0_5, %c0_6] : memref<64x82xf32, #tpu.memory_space<vmem>>, vector<64x82xf32>
    tpu.vector_store %arg3[%c0_5, %c0_6], %5 {strides = array<i32>} : memref<64x82xf32, #tpu.memory_space<vmem>>, vector<64x82xf32>,
    return
  }
}

module attributes {stable_mosaic.version = 11 : i64} {
  func.func @_gemm_bias_kernel(%arg0: memref<64x192xbf16, #tpu.memory_space<vmem>>, %arg1: memref<192x82xbf16, #tpu.memory_space<vmem>>, %arg2: memref<64x1xf32, #tpu.memory_space<vmem>>, %arg3: memref<64x82xf32, #tpu.memory_space<vmem>>) attributes {dimension_semantics = [], scalar_prefetch = 0 : i64, scratch_operands = 0 : i64, tpu.core_type = #tpu.core_type<tc>} {
    %c0 = arith.constant 0 : index
    %c0_0 = arith.constant 0 : index
    %0 = vector.load %arg0[%c0, %c0_0] : memref<64x192xbf16, #tpu.memory_space<vmem>>, vector<64x192xbf16>
    %c0_1 = arith.constant 0 : index
    %c0_2 = arith.constant 0 : index
    %1 = vector.load %arg1[%c0_1, %c0_2] : memref<192x82xbf16, #tpu.memory_space<vmem>>, vector<192x82xbf16>
    %cst = arith.constant dense<0.000000e+00> : vector<64x82xf32>
    %2 = tpu.matmul %0, %1, %cst {dimension_numbers = #tpu.dot_dimension_numbers<[1], [0], [0], [1], [0, 0, 1, 1], [], []>} : vector<64x192xbf16>, vector<192x82xbf16>, vector<64x82xf32> -> vector<64x82xf32>
    %c0_3 = arith.constant 0 : index
    %c0_4 = arith.constant 0 : index
    %3 = vector.load %arg2[%c0_3, %c0_4] : memref<64x1xf32, #tpu.memory_space<vmem>>, vector<64x1xf32>
    %4 = vector.broadcast %3 : vector<64x1xf32> to vector<64x82xf32>
    %5 = arith.addf %2, %4 : vector<64x82xf32>
    %c0_5 = arith.constant 0 : index
    %c0_6 = arith.constant 0 : index
    %6 = vector.load %arg3[%c0_5, %c0_6] : memref<64x82xf32, #tpu.memory_space<vmem>>, vector<64x82xf32>
    tpu.vector_store %arg3[%c0_5, %c0_6], %5 {strides = array<i32>} : memref<64x82xf32, #tpu.memory_space<vmem>>, vector<64x82xf32>,
    return
  }
}

module attributes {stable_mosaic.version = 11 : i64} {
  func.func @_gemm_bias_kernel(%arg0: memref<512x192xbf16, #tpu.memory_space<vmem>>, %arg1: memref<192x82xbf16, #tpu.memory_space<vmem>>, %arg2: memref<512x1xf32, #tpu.memory_space<vmem>>, %arg3: memref<512x82xf32, #tpu.memory_space<vmem>>) attributes {dimension_semantics = [], scalar_prefetch = 0 : i64, scratch_operands = 0 : i64, tpu.core_type = #tpu.core_type<tc>} {
    %c0 = arith.constant 0 : index
    %c0_0 = arith.constant 0 : index
    %0 = vector.load %arg0[%c0, %c0_0] : memref<512x192xbf16, #tpu.memory_space<vmem>>, vector<512x192xbf16>
    %c0_1 = arith.constant 0 : index
    %c0_2 = arith.constant 0 : index
    %1 = vector.load %arg1[%c0_1, %c0_2] : memref<192x82xbf16, #tpu.memory_space<vmem>>, vector<192x82xbf16>
    %cst = arith.constant dense<0.000000e+00> : vector<512x82xf32>
    %2 = tpu.matmul %0, %1, %cst {dimension_numbers = #tpu.dot_dimension_numbers<[1], [0], [0], [1], [0, 0, 1, 1], [], []>} : vector<512x192xbf16>, vector<192x82xbf16>, vector<512x82xf32> -> vector<512x82xf32>
    %c0_3 = arith.constant 0 : index
    %c0_4 = arith.constant 0 : index
    %3 = vector.load %arg2[%c0_3, %c0_4] : memref<512x1xf32, #tpu.memory_space<vmem>>, vector<512x1xf32>
    %4 = vector.broadcast %3 : vector<512x1xf32> to vector<512x82xf32>
    %5 = arith.addf %2, %4 : vector<512x82xf32>
    %cst_5 = arith.constant 0.000000e+00 : f32
    %6 = vector.broadcast %cst_5 : f32 to vector<512x82xf32>
    %7 = arith.maximumf %5, %6 : vector<512x82xf32>
    %c0_6 = arith.constant 0 : index
    %c0_7 = arith.constant 0 : index
    %8 = vector.load %arg3[%c0_6, %c0_7] : memref<512x82xf32, #tpu.memory_space<vmem>>, vector<512x82xf32>
    tpu.vector_store %arg3[%c0_6, %c0_7], %7 {strides = array<i32>} : memref<512x82xf32, #tpu.memory_space<vmem>>, vector<512x82xf32>,
    return
  }
}

module attributes {stable_mosaic.version = 11 : i64} {
  func.func @_max3_kernel(%arg0: memref<1024x20xf32, #tpu.memory_space<vmem>>, %arg1: memref<1024x20xf32, #tpu.memory_space<vmem>>, %arg2: memref<1024x20xf32, #tpu.memory_space<vmem>>, %arg3: memref<1024x20xf32, #tpu.memory_space<vmem>>) attributes {dimension_semantics = [], scalar_prefetch = 0 : i64, scratch_operands = 0 : i64, tpu.core_type = #tpu.core_type<tc>} {
    %c0 = arith.constant 0 : index
    %c0_0 = arith.constant 0 : index
    %0 = vector.load %arg0[%c0, %c0_0] : memref<1024x20xf32, #tpu.memory_space<vmem>>, vector<1024x20xf32>
    %c0_1 = arith.constant 0 : index
    %c0_2 = arith.constant 0 : index
    %1 = vector.load %arg1[%c0_1, %c0_2] : memref<1024x20xf32, #tpu.memory_space<vmem>>, vector<1024x20xf32>
    %2 = arith.maximumf %0, %1 : vector<1024x20xf32>
    %c0_3 = arith.constant 0 : index
    %c0_4 = arith.constant 0 : index
    %3 = vector.load %arg2[%c0_3, %c0_4] : memref<1024x20xf32, #tpu.memory_space<vmem>>, vector<1024x20xf32>
    %4 = arith.maximumf %2, %3 : vector<1024x20xf32>
    %c0_5 = arith.constant 0 : index
    %c0_6 = arith.constant 0 : index
    %5 = vector.load %arg3[%c0_5, %c0_6] : memref<1024x20xf32, #tpu.memory_space<vmem>>, vector<1024x20xf32>
    tpu.vector_store %arg3[%c0_5, %c0_6], %4 {strides = array<i32>} : memref<1024x20xf32, #tpu.memory_space<vmem>>, vector<1024x20xf32>,
    return
  }
}

module attributes {stable_mosaic.version = 11 : i64} {
  func.func @_fc1_q_kernel(%arg0: i32, %arg1: i32, %arg2: memref<2x5120xf32, #tpu.memory_space<vmem>>, %arg3: memref<5120x512xi8, #tpu.memory_space<vmem>>, %arg4: memref<1x512xf32, #tpu.memory_space<vmem>>, %arg5: memref<1x512xf32, #tpu.memory_space<vmem>>, %arg6: memref<2x512xf32, #tpu.memory_space<vmem>>, %arg7: memref<2x512xf32, #tpu.memory_space<vmem>>) attributes {dimension_semantics = [#tpu.dimension_semantics<parallel>, #tpu.dimension_semantics<arbitrary>], iteration_bounds = array<i64: 2, 2>, scalar_prefetch = 0 : i64, scratch_operands = 1 : i64, tpu.core_type = #tpu.core_type<tc>, window_params = [{transform_indices = @transform_0, window_bounds = array<i64: 2, 5120>}, {transform_indices = @transform_1, window_bounds = array<i64: 5120, 512>}, {transform_indices = @transform_2, window_bounds = array<i64: 1, 512>}, {transform_indices = @transform_3, window_bounds = array<i64: 1, 512>}, {transform_indices = @transform_4, window_bounds = array<i64: 2, 512>}]} {
    %c0_i32 = arith.constant 0 : i32
    %0 = arith.cmpi eq, %arg1, %c0_i32 : i32
    %1 = arith.extui %0 : i1 to i32
    %c0_i32_0 = arith.constant 0 : i32
    %2 = arith.cmpi ne, %1, %c0_i32_0 : i32
    scf.if %2 {
      %cst_9 = arith.constant 0.000000e+00 : f32
      %14 = vector.broadcast %cst_9 : f32 to vector<2x512xf32>
      %c0_10 = arith.constant 0 : index
      %c0_11 = arith.constant 0 : index
      %15 = vector.load %arg7[%c0_10, %c0_11] : memref<2x512xf32, #tpu.memory_space<vmem>>, vector<2x512xf32>
      tpu.vector_store %arg7[%c0_10, %c0_11], %14 {strides = array<i32>} : memref<2x512xf32, #tpu.memory_space<vmem>>, vector<2x512xf32>,
    } else {
    }
    %c0 = arith.constant 0 : index
    %c0_1 = arith.constant 0 : index
    %3 = vector.load %arg7[%c0, %c0_1] : memref<2x512xf32, #tpu.memory_space<vmem>>, vector<2x512xf32>
    %c0_2 = arith.constant 0 : index
    %c0_3 = arith.constant 0 : index
    %4 = vector.load %arg2[%c0_2, %c0_3] : memref<2x5120xf32, #tpu.memory_space<vmem>>, vector<2x5120xf32>
    %5 = arith.truncf %4 : vector<2x5120xf32> to vector<2x5120xbf16>
    %c0_4 = arith.constant 0 : index
    %c0_5 = arith.constant 0 : index
    %6 = vector.load %arg3[%c0_4, %c0_5] : memref<5120x512xi8, #tpu.memory_space<vmem>>, vector<5120x512xi8>
    %7 = arith.sitofp %6 : vector<5120x512xi8> to vector<5120x512xbf16>
    %cst = arith.constant dense<0.000000e+00> : vector<2x512xf32>
    %8 = tpu.matmul %5, %7, %cst {dimension_numbers = #tpu.dot_dimension_numbers<[1], [0], [0], [1], [0, 0, 1, 1], [], []>} : vector<2x5120xbf16>, vector<5120x512xbf16>, vector<2x512xf32> -> vector<2x512xf32>
    %9 = arith.addf %3, %8 : vector<2x512xf32>
    %c0_6 = arith.constant 0 : index
    %c0_7 = arith.constant 0 : index
    %10 = vector.load %arg7[%c0_6, %c0_7] : memref<2x512xf32, #tpu.memory_space<vmem>>, vector<2x512xf32>
    tpu.vector_store %arg7[%c0_6, %c0_7], %9 {strides = array<i32>} : memref<2x512xf32, #tpu.memory_space<vmem>>, vector<2x512xf32>,
    %c1_i32 = arith.constant 1 : i32
    %11 = arith.cmpi eq, %arg1, %c1_i32 : i32
    %12 = arith.extui %11 : i1 to i32
    %c0_i32_8 = arith.constant 0 : i32
    %13 = arith.cmpi ne, %12, %c0_i32_8 : i32
    scf.if %13 {
      %c0_9 = arith.constant 0 : index
      %c0_10 = arith.constant 0 : index
      %14 = vector.load %arg7[%c0_9, %c0_10] : memref<2x512xf32, #tpu.memory_space<vmem>>, vector<2x512xf32>
      %c0_11 = arith.constant 0 : index
      %c0_12 = arith.constant 0 : index
      %15 = vector.load %arg4[%c0_11, %c0_12] : memref<1x512xf32, #tpu.memory_space<vmem>>, vector<1x512xf32>
      %16 = vector.broadcast %15 : vector<1x512xf32> to vector<2x512xf32>
      %17 = arith.mulf %14, %16 : vector<2x512xf32>
      %c0_13 = arith.constant 0 : index
      %c0_14 = arith.constant 0 : index
      %18 = vector.load %arg5[%c0_13, %c0_14] : memref<1x512xf32, #tpu.memory_space<vmem>>, vector<1x512xf32>
      %19 = vector.broadcast %18 : vector<1x512xf32> to vector<2x512xf32>
      %20 = arith.addf %17, %19 : vector<2x512xf32>
      %cst_15 = arith.constant 0.000000e+00 : f32
      %21 = vector.broadcast %cst_15 : f32 to vector<2x512xf32>
      %22 = arith.maximumf %20, %21 : vector<2x512xf32>
      %c0_16 = arith.constant 0 : index
      %c0_17 = arith.constant 0 : index
      %23 = vector.load %arg6[%c0_16, %c0_17] : memref<2x512xf32, #tpu.memory_space<vmem>>, vector<2x512xf32>
      tpu.vector_store %arg6[%c0_16, %c0_17], %22 {strides = array<i32>} : memref<2x512xf32, #tpu.memory_space<vmem>>, vector<2x512xf32>,
    } else {
    }
    return
  }
  func.func @transform_0(%arg0: i32, %arg1: i32) -> (i32, i32) {
    %c0_i32 = arith.constant 0 : i32
    %c0_i32_0 = arith.constant 0 : i32
    return %c0_i32, %arg1 : i32, i32
  }
  func.func @transform_1(%arg0: i32, %arg1: i32) -> (i32, i32) {
    %c0_i32 = arith.constant 0 : i32
    return %arg1, %arg0 : i32, i32
  }
  func.func @transform_2(%arg0: i32, %arg1: i32) -> (i32, i32) {
    %c0_i32 = arith.constant 0 : i32
    %c0_i32_0 = arith.constant 0 : i32
    return %c0_i32, %arg0 : i32, i32
  }
  func.func @transform_3(%arg0: i32, %arg1: i32) -> (i32, i32) {
    %c0_i32 = arith.constant 0 : i32
    %c0_i32_0 = arith.constant 0 : i32
    return %c0_i32, %arg0 : i32, i32
  }
  func.func @transform_4(%arg0: i32, %arg1: i32) -> (i32, i32) {
    %c0_i32 = arith.constant 0 : i32
    %c0_i32_0 = arith.constant 0 : i32
    return %c0_i32, %arg0 : i32, i32
  }
}

module attributes {stable_mosaic.version = 11 : i64} {
  func.func @_gemm_bias_kernel(%arg0: memref<2x1024xf32, #tpu.memory_space<vmem>>, %arg1: memref<1024x8xf32, #tpu.memory_space<vmem>>, %arg2: memref<1x8xf32, #tpu.memory_space<vmem>>, %arg3: memref<2x8xf32, #tpu.memory_space<vmem>>) attributes {dimension_semantics = [], scalar_prefetch = 0 : i64, scratch_operands = 0 : i64, tpu.core_type = #tpu.core_type<tc>} {
    %c0 = arith.constant 0 : index
    %c0_0 = arith.constant 0 : index
    %0 = vector.load %arg0[%c0, %c0_0] : memref<2x1024xf32, #tpu.memory_space<vmem>>, vector<2x1024xf32>
    %c0_1 = arith.constant 0 : index
    %c0_2 = arith.constant 0 : index
    %1 = vector.load %arg1[%c0_1, %c0_2] : memref<1024x8xf32, #tpu.memory_space<vmem>>, vector<1024x8xf32>
    %cst = arith.constant dense<0.000000e+00> : vector<2x8xf32>
    %2 = tpu.matmul %0, %1, %cst {dimension_numbers = #tpu.dot_dimension_numbers<[1], [0], [0], [1], [0, 0, 1, 1], [], []>} : vector<2x1024xf32>, vector<1024x8xf32>, vector<2x8xf32> -> vector<2x8xf32>
    %c0_3 = arith.constant 0 : index
    %c0_4 = arith.constant 0 : index
    %3 = vector.load %arg2[%c0_3, %c0_4] : memref<1x8xf32, #tpu.memory_space<vmem>>, vector<1x8xf32>
    %4 = vector.broadcast %3 : vector<1x8xf32> to vector<2x8xf32>
    %5 = arith.addf %2, %4 : vector<2x8xf32>
    %c0_5 = arith.constant 0 : index
    %c0_6 = arith.constant 0 : index
    %6 = vector.load %arg3[%c0_5, %c0_6] : memref<2x8xf32, #tpu.memory_space<vmem>>, vector<2x8xf32>
    tpu.vector_store %arg3[%c0_5, %c0_6], %5 {strides = array<i32>} : memref<2x8xf32, #tpu.memory_space<vmem>>, vector<2x8xf32>,
    return
  }
}

</mosaic_0001>

<llo_original>
// kernel: cnn1d_forward.10
$region0: #{cnn1d_forward.10}
  #allocation0 [shape = 'u32[]', space=smem, size = 0x4, offset = 0x4, fixed_abs, tag = 'smem constant byte address 0x4 - core index']
  #allocation1 [shape = 'u32[144,128]{1,0:T(1,128)}', space=vmem, size = 0x12000, scoped, tag = 'internal scratch']
  %s0 = inlined_call_operand.hbm [shape: bf16[4,44], index: 0, kind: input, shape index: {}]
  %s1 = inlined_call_operand.vmem [shape: bf16[44,1020], index: 1, kind: input, shape index: {}]
  %s2 = inlined_call_operand.vmem [shape: f32[4,1], index: 2, kind: input, shape index: {}]
  %s3 = inlined_call_operand.vmem [shape: f32[4,1020], index: 3, kind: output, shape index: {}]
  %s4 = sld [smem:[#allocation0]]
  $region26: #{cnn1d_forward.10} parent=0
    _
  %s6 = ssub.s32 1, %s4
  %s7 = scalar_select 0, %s6, %s4
  $region1: #{cnn1d_forward.10} parent=0
    #allocation2 [shape = 'u8[1024]{0}', space=vmem, size = 0x400, scoped, tag = 'input window, operand 0, single buffered']
    #allocation3 [shape = 's32[1]{0}', space=sflag, size = 0x4, scoped, tag = 'scoped memory for cnn1d_forward.10']
    %8 = vsyncpa [#allocation3], 0
    // Predicated region
    $region2: #{cnn1d_forward.10} parent=1 // pred_check
      _
    $region3: #{cnn1d_forward.10} parent=1 // pred_check_branch
      %10 = sbr.rel (0) target = $region5
    $region4: #{cnn1d_forward.10} parent=1 // pred_region
      %s12 = ssub.s32 32, 32
      %13 = vsyncadd [#allocation3], %s12
      %s15 = sshll.u32 [#allocation2], 4
      %s16 = int_to_ptr.vmem [resolvable:$true] %s15
      %18 = dma.hbm_to_vmem [thread:$0]  %s0, 32, %s16, [#allocation3]
    $region5: #{cnn1d_forward.10} parent=1 // pred_fallthru
      _
    // Predicated region
    $region6: #{cnn1d_forward.10} parent=1 // pred_check
      _
    $region7: #{cnn1d_forward.10} parent=1 // pred_check_branch
      %20 = sbr.rel (0) target = $region9
    $region8: #{cnn1d_forward.10} parent=1 // pred_region
      _
    $region9: #{cnn1d_forward.10} parent=1 // pred_fallthru
      _
    // Predicated region
    $region10: #{cnn1d_forward.10} parent=1 // pred_check
      _
    $region11: #{cnn1d_forward.10} parent=1 // pred_check_branch
      %22 = sbr.rel (0) target = $region13
    $region12: #{cnn1d_forward.10} parent=1 // pred_region
      _
    $region13: #{cnn1d_forward.10} parent=1 // pred_fallthru
      _
    // Predicated region
    $region14: #{cnn1d_forward.10} parent=1 // pred_check
      _
    $region15: #{cnn1d_forward.10} parent=1 // pred_check_branch
      %24 = sbr.rel (0) target = $region17
    $region16: #{cnn1d_forward.10} parent=1 // pred_region
      %25 = dma.done [#allocation3], 32
    $region17: #{cnn1d_forward.10} parent=1 // pred_fallthru
      _
    %v27 = vld [vmem:[#allocation2] sm:$0x3]
    %v28 = vld [vmem:[%s1] sm:$0xff]
    %v29 = vld [vmem:[%s1 + $0x8] sm:$0xff]
    %v30 = vld [vmem:[%s1 + $0x10] sm:$0xff]
    %v31 = vld [vmem:[%s1 + $0x18] sm:$0xff]
    %v32 = vld [vmem:[%s1 + $0x20] sm:$0xff]
    %v33 = vld [vmem:[%s1 + $0x28] sm:$0xff]
    %v34 = vld [vmem:[%s1 + $0x30] sm:$0xff]
    %v35 = vld [vmem:[%s1 + $0x38] sm:$0xff]
    %v36 = vld [vmem:[%s1 + $0x40] sm:$0xff]
    %v37 = vld [vmem:[%s1 + $0x48] sm:$0xff]
    %v38 = vld [vmem:[%s1 + $0x50] sm:$0xff]
    %v39 = vld [vmem:[%s1 + $0x58] sm:$0xff]
    %v40 = vld [vmem:[%s1 + $0x60] sm:$0xff]
    %v41 = vld [vmem:[%s1 + $0x68] sm:$0xff]
    %v42 = vld [vmem:[%s1 + $0x70] sm:$0xff]
    %v43 = vld [vmem:[%s1 + $0x78] sm:$0xff]
    %v44 = vld [vmem:[%s1 + $0x80] sm:$0xff]
    %v45 = vld [vmem:[%s1 + $0x88] sm:$0xff]
    %v46 = vld [vmem:[%s1 + $0x90] sm:$0xff]
    %v47 = vld [vmem:[%s1 + $0x98] sm:$0xff]
    %v48 = vld [vmem:[%s1 + $0xa0] sm:$0x33]
    %v49 = vld [vmem:[%s1 + $0xa8] sm:$0x33]
    %v50 = vld [vmem:[%s1 + $0xb0] sm:$0x33]
    %v51 = vld [vmem:[%s1 + $0xb8] sm:$0x33]
    %v52 = vld [vmem:[%s2] sm:$0xf]
    %54 = vset.pattern.permute.xlu0 0
    %55 = vperm.xlu0 %54, %v52
    %v56 = vpop.permute.xlu0 %55
    %v82 = vunpack.c.l.b16 %v28
    %v83 = vunpack.c.h.b16 %v28
    %v84 = vunpack.c.l.b16 %v29
    %v85 = vunpack.c.h.b16 %v29
    %v86 = vunpack.c.l.b16 %v30
    %v87 = vunpack.c.h.b16 %v30
    %v88 = vunpack.c.l.b16 %v31
    %v89 = vunpack.c.h.b16 %v31
    %v90 = vunpack.c.l.b16 %v32
    %v91 = vunpack.c.h.b16 %v32
    %v92 = vunpack.c.l.b16 %v33
    %v93 = vunpack.c.h.b16 %v33
    %v94 = vunpack.c.l.b16 %v34
    %v95 = vunpack.c.h.b16 %v34
    %v96 = vunpack.c.l.b16 %v35
    %v97 = vunpack.c.h.b16 %v35
    %v98 = vunpack.c.l.b16 %v36
    %v99 = vunpack.c.h.b16 %v36
    %v100 = vunpack.c.l.b16 %v37
    %v101 = vunpack.c.h.b16 %v37
    %v102 = vunpack.c.l.b16 %v38
    %v103 = vunpack.c.h.b16 %v38
    %v104 = vunpack.c.l.b16 %v39
    %v105 = vunpack.c.h.b16 %v39
    %v106 = vunpack.c.l.b16 %v40
    %v107 = vunpack.c.h.b16 %v40
    %v108 = vunpack.c.l.b16 %v41
    %v109 = vunpack.c.h.b16 %v41
    %v110 = vunpack.c.l.b16 %v42
    %v111 = vunpack.c.h.b16 %v42
    %v112 = vunpack.c.l.b16 %v43
    %v113 = vunpack.c.h.b16 %v43
    %v114 = vunpack.c.l.b16 %v44
    %v115 = vunpack.c.h.b16 %v44
    %v116 = vunpack.c.l.b16 %v45
    %v117 = vunpack.c.h.b16 %v45
    %v118 = vunpack.c.l.b16 %v46
    %v119 = vunpack.c.h.b16 %v46
    %v120 = vunpack.c.l.b16 %v47
    %v121 = vunpack.c.h.b16 %v47
    %v122 = vunpack.c.l.b16 %v48
    %v123 = vunpack.c.h.b16 %v48
    %v124 = vunpack.c.l.b16 %v49
    %v125 = vunpack.c.h.b16 %v49
    %v126 = vunpack.c.l.b16 %v50
    %v127 = vunpack.c.h.b16 %v50
    %v128 = vunpack.c.l.b16 %v51
    %v129 = vunpack.c.h.b16 %v51
    %v130 = vpack.c.b16 %v90, %v82
    %v131 = vpack.c.b16 %v91, %v83
    %v132 = vpack.c.b16 %v92, %v84
    %v133 = vpack.c.b16 %v93, %v85
    %v134 = vpack.c.b16 %v94, %v86
    %v135 = vpack.c.b16 %v95, %v87
    %v136 = vpack.c.b16 %v96, %v88
    %v137 = vpack.c.b16 %v97, %v89
    %v138 = vpack.c.b16 %v106, %v98
    %v139 = vpack.c.b16 %v107, %v99
    %v140 = vpack.c.b16 %v108, %v100
    %v141 = vpack.c.b16 %v109, %v101
    %v142 = vpack.c.b16 %v110, %v102
    %v143 = vpack.c.b16 %v111, %v103
    %v144 = vpack.c.b16 %v112, %v104
    %v145 = vpack.c.b16 %v113, %v105
    %v146 = vpack.c.b16 %v122, %v114
    %v147 = vpack.c.b16 %v123, %v115
    %v148 = vpack.c.b16 %v124, %v116
    %v149 = vpack.c.b16 %v125, %v117
    %v150 = vpack.c.b16 %v126, %v118
    %v151 = vpack.c.b16 %v127, %v119
    %v152 = vpack.c.b16 %v128, %v120
    %v153 = vpack.c.b16 %v129, %v121
    %vm170 = vcmask 359424
    %v172 = vsel %vm170, %v27, 0
    %vm174 = vcmask 1045504
    %v176 = vsel %vm174, %v146, 0
    %v179 = vsel %vm174, %v147, 0
    %v182 = vsel %vm174, %v148, 0
    %v185 = vsel %vm174, %v149, 0
    %v188 = vsel %vm174, %v150, 0
    %v191 = vsel %vm174, %v151, 0
    %v194 = vsel %vm174, %v152, 0
    %v197 = vsel %vm174, %v153, 0
    %199 = vmatprep.subr.bf16.mxu0 0
    %200 = vmatpush1.bf16.msra.mxu0 0
    %201 = vmatprep.subr.bf16.mxu0 0
    %202 = vmatpush1.bf16.msra.mxu0 0
    %203 = vmatprep.subr.bf16.mxu0 0
    %204 = vmatpush1.bf16.msra.mxu0 0
    %205 = vmatprep.subr.bf16.mxu0 0
    %206 = vmatpush1.bf16.msra.mxu0 0
    %207 = vmatprep.subr.bf16.mxu0 0
    %208 = vmatpush1.bf16.msra.mxu0 0
    %209 = vmatprep.subr.bf16.mxu0 %v179
    %210 = vmatpush1.bf16.msra.mxu0 %v176
    %211 = vmatprep.subr.bf16.mxu0 %v139
    %212 = vmatpush1.bf16.msra.mxu0 %v138
    %213 = vmatprep.subr.bf16.mxu0 %v131
    %214 = vmatpush1.bf16.msra.mxu0 %v130
    %215 = vmatprep.subr.bf16.mxu0 0
    %216 = vmatpush2.bf16.msra.mxu0 0
    %217 = vmatprep.subr.bf16.mxu0 0
    %218 = vmatpush2.bf16.msra.mxu0 0
    %219 = vmatprep.subr.bf16.mxu0 0
    %220 = vmatpush2.bf16.msra.mxu0 0
    %221 = vmatprep.subr.bf16.mxu0 0
    %222 = vmatpush2.bf16.msra.mxu0 0
    %223 = vmatprep.subr.bf16.mxu0 0
    %224 = vmatpush2.bf16.msra.mxu0 0
    %225 = vmatprep.subr.bf16.mxu0 0
    %226 = vmatpush2.bf16.msra.mxu0 0
    %227 = vmatprep.subr.bf16.mxu0 0
    %228 = vmatpush2.bf16.msra.mxu0 0
    %229 = vmatprep.subr.bf16.mxu0 0
    %230 = vmatpush2.bf16.msra.mxu0 0
    %231 = vmatprep.mubr.bf16.mxu0 0
    %232 = vmatmul.mubr.bf16.gmra.mxu0 %v172
    %v233 = vpop.f32.mrf.mxu0
    %v234 = vadd.f32 %v56, %v233
    %v235 = vpop.f32.mrf.mxu0
    %v236 = vadd.f32 %v56, %v235
    %v237 = vpop.f32.mrf.mxu0
    %v238 = vpop.f32.mrf.mxu0
    %239 = vdwg.mxu0
    %240 = vmatprep.subr.bf16.mxu0 0
    %241 = vmatpush1.bf16.msra.mxu0 0
    %242 = vmatprep.subr.bf16.mxu0 0
    %243 = vmatpush1.bf16.msra.mxu0 0
    %244 = vmatprep.subr.bf16.mxu0 0
    %245 = vmatpush1.bf16.msra.mxu0 0
    %246 = vmatprep.subr.bf16.mxu0 0
    %247 = vmatpush1.bf16.msra.mxu0 0
    %248 = vmatprep.subr.bf16.mxu0 0
    %249 = vmatpush1.bf16.msra.mxu0 0
    %250 = vmatprep.subr.bf16.mxu0 %v185
    %251 = vmatpush1.bf16.msra.mxu0 %v182
    %252 = vmatprep.subr.bf16.mxu0 %v141
    %253 = vmatpush1.bf16.msra.mxu0 %v140
    %254 = vmatprep.subr.bf16.mxu0 %v133
    %255 = vmatpush1.bf16.msra.mxu0 %v132
    %256 = vmatprep.subr.bf16.mxu0 0
    %257 = vmatpush2.bf16.msra.mxu0 0
    %258 = vmatprep.subr.bf16.mxu0 0
    %259 = vmatpush2.bf16.msra.mxu0 0
    %260 = vmatprep.subr.bf16.mxu0 0
    %261 = vmatpush2.bf16.msra.mxu0 0
    %262 = vmatprep.subr.bf16.mxu0 0
    %263 = vmatpush2.bf16.msra.mxu0 0
    %264 = vmatprep.subr.bf16.mxu0 0
    %265 = vmatpush2.bf16.msra.mxu0 0
    %266 = vmatprep.subr.bf16.mxu0 0
    %267 = vmatpush2.bf16.msra.mxu0 0
    %268 = vmatprep.subr.bf16.mxu0 0
    %269 = vmatpush2.bf16.msra.mxu0 0
    %270 = vmatprep.subr.bf16.mxu0 0
    %271 = vmatpush2.bf16.msra.mxu0 0
    %272 = vmatprep.mubr.bf16.mxu0 0
    %273 = vmatmul.mubr.bf16.gmra.mxu0 %v172
    %v274 = vpop.f32.mrf.mxu0
    %v275 = vadd.f32 %v56, %v274
    %v276 = vpop.f32.mrf.mxu0
    %v277 = vadd.f32 %v56, %v276
    %v278 = vpop.f32.mrf.mxu0
    %v279 = vpop.f32.mrf.mxu0
    %280 = vdwg.mxu0
    %281 = vmatprep.subr.bf16.mxu0 0
    %282 = vmatpush1.bf16.msra.mxu0 0
    %283 = vmatprep.subr.bf16.mxu0 0
    %284 = vmatpush1.bf16.msra.mxu0 0
    %285 = vmatprep.subr.bf16.mxu0 0
    %286 = vmatpush1.bf16.msra.mxu0 0
    %287 = vmatprep.subr.bf16.mxu0 0
    %288 = vmatpush1.bf16.msra.mxu0 0
    %289 = vmatprep.subr.bf16.mxu0 0
    %290 = vmatpush1.bf16.msra.mxu0 0
    %291 = vmatprep.subr.bf16.mxu0 %v191
    %292 = vmatpush1.bf16.msra.mxu0 %v188
    %293 = vmatprep.subr.bf16.mxu0 %v143
    %294 = vmatpush1.bf16.msra.mxu0 %v142
    %295 = vmatprep.subr.bf16.mxu0 %v135
    %296 = vmatpush1.bf16.msra.mxu0 %v134
    %297 = vmatprep.subr.bf16.mxu0 0
    %298 = vmatpush2.bf16.msra.mxu0 0
    %299 = vmatprep.subr.bf16.mxu0 0
    %300 = vmatpush2.bf16.msra.mxu0 0
    %301 = vmatprep.subr.bf16.mxu0 0
    %302 = vmatpush2.bf16.msra.mxu0 0
    %303 = vmatprep.subr.bf16.mxu0 0
    %304 = vmatpush2.bf16.msra.mxu0 0
    %305 = vmatprep.subr.bf16.mxu0 0
    %306 = vmatpush2.bf16.msra.mxu0 0
    %307 = vmatprep.subr.bf16.mxu0 0
    %308 = vmatpush2.bf16.msra.mxu0 0
    %309 = vmatprep.subr.bf16.mxu0 0
    %310 = vmatpush2.bf16.msra.mxu0 0
    %311 = vmatprep.subr.bf16.mxu0 0
    %312 = vmatpush2.bf16.msra.mxu0 0
    %313 = vmatprep.mubr.bf16.mxu0 0
    %314 = vmatmul.mubr.bf16.gmra.mxu0 %v172
    %v315 = vpop.f32.mrf.mxu0
    %v316 = vadd.f32 %v56, %v315
    %v317 = vpop.f32.mrf.mxu0
    %v318 = vadd.f32 %v56, %v317
    %v319 = vpop.f32.mrf.mxu0
    %v320 = vpop.f32.mrf.mxu0
    %321 = vdwg.mxu0
    %322 = vmatprep.subr.bf16.mxu0 0
    %323 = vmatpush1.bf16.msra.mxu0 0
    %324 = vmatprep.subr.bf16.mxu0 0
    %325 = vmatpush1.bf16.msra.mxu0 0
    %326 = vmatprep.subr.bf16.mxu0 0
    %327 = vmatpush1.bf16.msra.mxu0 0
    %328 = vmatprep.subr.bf16.mxu0 0
    %329 = vmatpush1.bf16.msra.mxu0 0
    %330 = vmatprep.subr.bf16.mxu0 0
    %331 = vmatpush1.bf16.msra.mxu0 0
    %332 = vmatprep.subr.bf16.mxu0 %v197
    %333 = vmatpush1.bf16.msra.mxu0 %v194
    %334 = vmatprep.subr.bf16.mxu0 %v145
    %335 = vmatpush1.bf16.msra.mxu0 %v144
    %336 = vmatprep.subr.bf16.mxu0 %v137
    %337 = vmatpush1.bf16.msra.mxu0 %v136
    %338 = vmatprep.subr.bf16.mxu0 0
    %339 = vmatpush2.bf16.msra.mxu0 0
    %340 = vmatprep.subr.bf16.mxu0 0
    %341 = vmatpush2.bf16.msra.mxu0 0
    %342 = vmatprep.subr.bf16.mxu0 0
    %343 = vmatpush2.bf16.msra.mxu0 0
    %344 = vmatprep.subr.bf16.mxu0 0
    %345 = vmatpush2.bf16.msra.mxu0 0
    %346 = vmatprep.subr.bf16.mxu0 0
    %347 = vmatpush2.bf16.msra.mxu0 0
    %348 = vmatprep.subr.bf16.mxu0 0
    %349 = vmatpush2.bf16.msra.mxu0 0
    %350 = vmatprep.subr.bf16.mxu0 0
    %351 = vmatpush2.bf16.msra.mxu0 0
    %352 = vmatprep.subr.bf16.mxu0 0
    %353 = vmatpush2.bf16.msra.mxu0 0
    %354 = vmatprep.mubr.bf16.mxu0 0
    %355 = vmatmul.mubr.bf16.gmra.mxu0 %v172
    %v356 = vpop.f32.mrf.mxu0
    %v357 = vadd.f32 %v56, %v356
    %v358 = vpop.f32.mrf.mxu0
    %v359 = vadd.f32 %v56, %v358
    %v360 = vpop.f32.mrf.mxu0
    %v361 = vpop.f32.mrf.mxu0
    %362 = vdwg.mxu0
    %v363 = vmax.f32 %v234, 0.0
    %v364 = vmax.f32 %v236, 0.0
    %v365 = vmax.f32 %v275, 0.0
    %v366 = vmax.f32 %v277, 0.0
    %v367 = vmax.f32 %v316, 0.0
    %v368 = vmax.f32 %v318, 0.0
    %v369 = vmax.f32 %v357, 0.0
    %v370 = vmax.f32 %v359, 0.0
    %v379 = vcombine.low %v363, %v364
    %v380 = vcombine.low %v365, %v366
    %v381 = vcombine.low %v367, %v368
    %v382 = vcombine.low %v369, %v370
    %387 = vst [vmem:[%s3] sm:$0xff] %v379
    %388 = vst [vmem:[%s3 + $0x8] sm:$0xff] %v380
    %389 = vst [vmem:[%s3 + $0x10] sm:$0xff] %v381
    %vm390 = vcmask 1043456
    %vm391 = vcmask 1014788
    %vm392 = vmor %vm391, %vm390
    %393 = vst.msk [vmem:[%s3 + $0x18] sm:$0xff] %vm392, %v382
    // Predicated region
    $region18: #{cnn1d_forward.10} parent=1 // pred_check
      _
    $region19: #{cnn1d_forward.10} parent=1 // pred_check_branch
      %395 = sbr.rel (0) target = $region21
    $region20: #{cnn1d_forward.10} parent=1 // pred_region
      _
    $region21: #{cnn1d_forward.10} parent=1 // pred_fallthru
      _
    // Predicated region
    $region22: #{cnn1d_forward.10} parent=1 // pred_check
      _
    $region23: #{cnn1d_forward.10} parent=1 // pred_check_branch
      %397 = sbr.rel (0) target = $region25
    $region24: #{cnn1d_forward.10} parent=1 // pred_region
      _
    $region25: #{cnn1d_forward.10} parent=1 // pred_fallthru
      _
    %398 = vsyncpa [#allocation3], 1

// kernel: cnn1d_forward.11
$region0: #{cnn1d_forward.11}
  #allocation0 [shape = 'u32[]', space=smem, size = 0x4, offset = 0x4, fixed_abs, tag = 'smem constant byte address 0x4 - core index']
  #allocation1 [shape = 'u32[144,128]{1,0:T(1,128)}', space=vmem, size = 0x12000, scoped, tag = 'internal scratch']
  %s0 = inlined_call_operand.vmem [shape: f32[8,254], index: 0, kind: input, shape index: {}]
  %s1 = inlined_call_operand.vmem [shape: f32[8,254], index: 1, kind: input, shape index: {}]
  %s2 = inlined_call_operand.vmem [shape: f32[8,254], index: 2, kind: input, shape index: {}]
  %s3 = inlined_call_operand.vmem [shape: f32[8,254], index: 3, kind: output, shape index: {}]
  %s4 = sld [smem:[#allocation0]]
  $region22: #{cnn1d_forward.11} parent=0
    _
  %s6 = ssub.s32 1, %s4
  %s7 = scalar_select 0, %s6, %s4
  // Predicated region
  $region2: #{cnn1d_forward.11} parent=0 // pred_check
    _
  $region3: #{cnn1d_forward.11} parent=0 // pred_check_branch
    %9 = sbr.rel (0) target = $region5
  $region4: #{cnn1d_forward.11} parent=0 // pred_region
    _
  $region5: #{cnn1d_forward.11} parent=0 // pred_fallthru
    _
  // Predicated region
  $region6: #{cnn1d_forward.11} parent=0 // pred_check
    _
  $region7: #{cnn1d_forward.11} parent=0 // pred_check_branch
    %11 = sbr.rel (0) target = $region9
  $region8: #{cnn1d_forward.11} parent=0 // pred_region
    _
  $region9: #{cnn1d_forward.11} parent=0 // pred_fallthru
    _
  // Predicated region
  $region10: #{cnn1d_forward.11} parent=0 // pred_check
    _
  $region11: #{cnn1d_forward.11} parent=0 // pred_check_branch
    %13 = sbr.rel (0) target = $region13
  $region12: #{cnn1d_forward.11} parent=0 // pred_region
    _
  $region13: #{cnn1d_forward.11} parent=0 // pred_fallthru
    _
  %v14 = vld [vmem:[%s0] sm:$0xff]
  %v15 = vld [vmem:[%s0 + $0x8] sm:$0xff]
  %v16 = vld [vmem:[%s1] sm:$0xff]
  %v17 = vld [vmem:[%s1 + $0x8] sm:$0xff]
  %v18 = vmax.f32 %v14, %v16
  %v19 = vmax.f32 %v15, %v17
  %v20 = vld [vmem:[%s2] sm:$0xff]
  %v21 = vld [vmem:[%s2 + $0x8] sm:$0xff]
  %v22 = vmax.f32 %v18, %v20
  %v23 = vmax.f32 %v19, %v21
  %24 = vst [vmem:[%s3] sm:$0xff] %v22
  %vm25 = vcmask 1031168
  %26 = vst.msk [vmem:[%s3 + $0x8] sm:$0xff] %vm25, %v23
  // Predicated region
  $region14: #{cnn1d_forward.11} parent=0 // pred_check
    _
  $region15: #{cnn1d_forward.11} parent=0 // pred_check_branch
    %28 = sbr.rel (0) target = $region17
  $region16: #{cnn1d_forward.11} parent=0 // pred_region
    _
  $region17: #{cnn1d_forward.11} parent=0 // pred_fallthru
    _
  // Predicated region
  $region18: #{cnn1d_forward.11} parent=0 // pred_check
    _
  $region19: #{cnn1d_forward.11} parent=0 // pred_check_branch
    %30 = sbr.rel (0) target = $region21
  $region20: #{cnn1d_forward.11} parent=0 // pred_region
    _
  $region21: #{cnn1d_forward.11} parent=0 // pred_fallthru
    _

// kernel: cnn1d_forward.12
$region0: #{cnn1d_forward.12}
  #allocation0 [shape = 'u32[]', space=smem, size = 0x4, offset = 0x4, fixed_abs, tag = 'smem constant byte address 0x4 - core index']
  #allocation1 [shape = 'u32[144,128]{1,0:T(1,128)}', space=vmem, size = 0x12000, scoped, tag = 'internal scratch']
  %s0 = inlined_call_operand.hbm [shape: bf16[16,28], index: 0, kind: input, shape index: {}]
  %s1 = inlined_call_operand.vmem [shape: bf16[28,166], index: 1, kind: input, shape index: {}]
  %s2 = inlined_call_operand.vmem [shape: f32[16,1], index: 2, kind: input, shape index: {}]
  %s3 = inlined_call_operand.vmem [shape: f32[16,166], index: 3, kind: output, shape index: {}]
  %s4 = sld [smem:[#allocation0]]
  $region26: #{cnn1d_forward.12} parent=0
    _
  %s6 = ssub.s32 1, %s4
  %s7 = scalar_select 0, %s6, %s4
  $region1: #{cnn1d_forward.12} parent=0
    #allocation2 [shape = 'u8[4096]{0}', space=vmem, size = 0x1000, scoped, tag = 'input window, operand 0, single buffered']
    #allocation3 [shape = 's32[1]{0}', space=sflag, size = 0x4, scoped, tag = 'scoped memory for cnn1d_forward.12']
    %8 = vsyncpa [#allocation3], 0
    // Predicated region
    $region2: #{cnn1d_forward.12} parent=1 // pred_check
      _
    $region3: #{cnn1d_forward.12} parent=1 // pred_check_branch
      %10 = sbr.rel (0) target = $region5
    $region4: #{cnn1d_forward.12} parent=1 // pred_region
      %s12 = ssub.s32 128, 128
      %13 = vsyncadd [#allocation3], %s12
      %s14 = sshll.u32 [#allocation2], 4
      %s15 = int_to_ptr.vmem [resolvable:$true] %s14
      %20 = dma.hbm_to_vmem [thread:$0]  %s0, 128, %s15, [#allocation3], 64, 64, 4
    $region5: #{cnn1d_forward.12} parent=1 // pred_fallthru
      _
    // Predicated region
    $region6: #{cnn1d_forward.12} parent=1 // pred_check
      _
    $region7: #{cnn1d_forward.12} parent=1 // pred_check_branch
      %22 = sbr.rel (0) target = $region9
    $region8: #{cnn1d_forward.12} parent=1 // pred_region
      _
    $region9: #{cnn1d_forward.12} parent=1 // pred_fallthru
      _
    // Predicated region
    $region10: #{cnn1d_forward.12} parent=1 // pred_check
      _
    $region11: #{cnn1d_forward.12} parent=1 // pred_check_branch
      %24 = sbr.rel (0) target = $region13
    $region12: #{cnn1d_forward.12} parent=1 // pred_region
      _
    $region13: #{cnn1d_forward.12} parent=1 // pred_fallthru
      _
    // Predicated region
    $region14: #{cnn1d_forward.12} parent=1 // pred_check
      _
    $region15: #{cnn1d_forward.12} parent=1 // pred_check_branch
      %26 = sbr.rel (0) target = $region17
    $region16: #{cnn1d_forward.12} parent=1 // pred_region
      %27 = dma.done [#allocation3], 128
    $region17: #{cnn1d_forward.12} parent=1 // pred_fallthru
      _
    %v29 = vld [vmem:[#allocation2] sm:$0xf]
    %v30 = vld [vmem:[#allocation2 + $0x4] sm:$0xf]
    %v31 = vld [vmem:[%s1] sm:$0xff]
    %v32 = vld [vmem:[%s1 + $0x8] sm:$0xff]
    %v33 = vld [vmem:[%s1 + $0x10] sm:$0xff]
    %v34 = vld [vmem:[%s1 + $0x18] sm:$0x33]
    %v35 = vld [vmem:[%s2] sm:$0xff]
    %v36 = vld [vmem:[%s2 + $0x8] sm:$0xff]
    %38 = vset.pattern.permute.xlu0 0
    %39 = vperm.xlu0 %38, %v35
    %v40 = vpop.permute.xlu0 %39
    %43 = vset.pattern.permute.xlu0 0
    %44 = vperm.xlu0 %43, %v36
    %v45 = vpop.permute.xlu0 %44
    %v49 = vunpack.c.l.b16 %v29
    %v50 = vunpack.c.l.b16 %v30
    %v51 = vpack.c.b16 %v50, %v49
    %v56 = vunpack.c.l.b16 %v31
    %v57 = vunpack.c.h.b16 %v31
    %v58 = vunpack.c.l.b16 %v32
    %v59 = vunpack.c.h.b16 %v32
    %v60 = vunpack.c.l.b16 %v33
    %v61 = vunpack.c.h.b16 %v33
    %v62 = vunpack.c.l.b16 %v34
    %v63 = vunpack.c.h.b16 %v34
    %v64 = vpack.c.b16 %v58, %v56
    %v65 = vpack.c.b16 %v59, %v57
    %v66 = vpack.c.b16 %v62, %v60
    %v67 = vpack.c.b16 %v63, %v61
    %vm70 = vcmask 228352
    %v72 = vsel %vm70, %v51, 0
    %vm74 = vcmask 1045504
    %v76 = vsel %vm74, %v66, 0
    %v79 = vsel %vm74, %v67, 0
    %81 = vmatprep.subr.bf16.mxu0 0
    %82 = vmatpush1.bf16.msra.mxu0 0
    %83 = vmatprep.subr.bf16.mxu0 0
    %84 = vmatpush1.bf16.msra.mxu0 0
    %85 = vmatprep.subr.bf16.mxu0 0
    %86 = vmatpush1.bf16.msra.mxu0 0
    %87 = vmatprep.subr.bf16.mxu0 0
    %88 = vmatpush1.bf16.msra.mxu0 0
    %89 = vmatprep.subr.bf16.mxu0 0
    %90 = vmatpush1.bf16.msra.mxu0 0
    %91 = vmatprep.subr.bf16.mxu0 0
    %92 = vmatpush1.bf16.msra.mxu0 0
    %93 = vmatprep.subr.bf16.mxu0 %v79
    %94 = vmatpush1.bf16.msra.mxu0 %v76
    %95 = vmatprep.subr.bf16.mxu0 %v65
    %96 = vmatpush1.bf16.msra.mxu0 %v64
    %97 = vmatprep.subr.bf16.mxu0 0
    %98 = vmatpush2.bf16.msra.mxu0 0
    %99 = vmatprep.subr.bf16.mxu0 0
    %100 = vmatpush2.bf16.msra.mxu0 0
    %101 = vmatprep.subr.bf16.mxu0 0
    %102 = vmatpush2.bf16.msra.mxu0 0
    %103 = vmatprep.subr.bf16.mxu0 0
    %104 = vmatpush2.bf16.msra.mxu0 0
    %105 = vmatprep.subr.bf16.mxu0 0
    %106 = vmatpush2.bf16.msra.mxu0 0
    %107 = vmatprep.subr.bf16.mxu0 0
    %108 = vmatpush2.bf16.msra.mxu0 0
    %109 = vmatprep.subr.bf16.mxu0 0
    %110 = vmatpush2.bf16.msra.mxu0 0
    %111 = vmatprep.subr.bf16.mxu0 0
    %112 = vmatpush2.bf16.msra.mxu0 0
    %113 = vmatprep.mubr.bf16.mxu0 0
    %114 = vmatmul.mubr.bf16.gmra.mxu0 %v72
    %v115 = vpop.f32.mrf.mxu0
    %v116 = vadd.f32 %v40, %v115
    %v117 = vpop.f32.mrf.mxu0
    %v118 = vadd.f32 %v40, %v117
    %v119 = vpop.f32.mrf.mxu0
    %v120 = vadd.f32 %v45, %v119
    %v121 = vpop.f32.mrf.mxu0
    %v122 = vadd.f32 %v45, %v121
    %123 = vdwg.mxu0
    %124 = vst [vmem:[%s3] sm:$0xff] %v116
    %vm125 = vcmask 310272
    %126 = vst.msk [vmem:[%s3 + $0x8] sm:$0xff] %vm125, %v118
    %127 = vst [vmem:[%s3 + $0x10] sm:$0xff] %v120
    %128 = vst.msk [vmem:[%s3 + $0x18] sm:$0xff] %vm125, %v122
    // Predicated region
    $region18: #{cnn1d_forward.12} parent=1 // pred_check
      _
    $region19: #{cnn1d_forward.12} parent=1 // pred_check_branch
      %130 = sbr.rel (0) target = $region21
    $region20: #{cnn1d_forward.12} parent=1 // pred_region
      _
    $region21: #{cnn1d_forward.12} parent=1 // pred_fallthru
      _
    // Predicated region
    $region22: #{cnn1d_forward.12} parent=1 // pred_check
      _
    $region23: #{cnn1d_forward.12} parent=1 // pred_check_branch
      %132 = sbr.rel (0) target = $region25
    $region24: #{cnn1d_forward.12} parent=1 // pred_region
      _
    $region25: #{cnn1d_forward.12} parent=1 // pred_fallthru
      _
    %133 = vsyncpa [#allocation3], 1

// kernel: cnn1d_forward.13
$region0: #{cnn1d_forward.13}
  #allocation0 [shape = 'u32[]', space=smem, size = 0x4, offset = 0x4, fixed_abs, tag = 'smem constant byte address 0x4 - core index']
  #allocation1 [shape = 'u32[144,128]{1,0:T(1,128)}', space=vmem, size = 0x12000, scoped, tag = 'internal scratch']
  %s0 = inlined_call_operand.vmem [shape: f32[32,41], index: 0, kind: input, shape index: {}]
  %s1 = inlined_call_operand.vmem [shape: f32[32,41], index: 1, kind: input, shape index: {}]
  %s2 = inlined_call_operand.vmem [shape: f32[32,41], index: 2, kind: input, shape index: {}]
  %s3 = inlined_call_operand.vmem [shape: f32[32,41], index: 3, kind: output, shape index: {}]
  %s4 = sld [smem:[#allocation0]]
  $region22: #{cnn1d_forward.13} parent=0
    _
  %s6 = ssub.s32 1, %s4
  %s7 = scalar_select 0, %s6, %s4
  // Predicated region
  $region2: #{cnn1d_forward.13} parent=0 // pred_check
    _
  $region3: #{cnn1d_forward.13} parent=0 // pred_check_branch
    %9 = sbr.rel (0) target = $region5
  $region4: #{cnn1d_forward.13} parent=0 // pred_region
    _
  $region5: #{cnn1d_forward.13} parent=0 // pred_fallthru
    _
  // Predicated region
  $region6: #{cnn1d_forward.13} parent=0 // pred_check
    _
  $region7: #{cnn1d_forward.13} parent=0 // pred_check_branch
    %11 = sbr.rel (0) target = $region9
  $region8: #{cnn1d_forward.13} parent=0 // pred_region
    _
  $region9: #{cnn1d_forward.13} parent=0 // pred_fallthru
    _
  // Predicated region
  $region10: #{cnn1d_forward.13} parent=0 // pred_check
    _
  $region11: #{cnn1d_forward.13} parent=0 // pred_check_branch
    %13 = sbr.rel (0) target = $region13
  $region12: #{cnn1d_forward.13} parent=0 // pred_region
    _
  $region13: #{cnn1d_forward.13} parent=0 // pred_fallthru
    _
  %v14 = vld [vmem:[%s0] sm:$0xff]
  %v15 = vld [vmem:[%s0 + $0x8] sm:$0xff]
  %v16 = vld [vmem:[%s0 + $0x10] sm:$0xff]
  %v17 = vld [vmem:[%s0 + $0x18] sm:$0xff]
  %v18 = vld [vmem:[%s1] sm:$0xff]
  %v19 = vld [vmem:[%s1 + $0x8] sm:$0xff]
  %v20 = vld [vmem:[%s1 + $0x10] sm:$0xff]
  %v21 = vld [vmem:[%s1 + $0x18] sm:$0xff]
  %v22 = vmax.f32 %v14, %v18
  %v23 = vmax.f32 %v15, %v19
  %v24 = vmax.f32 %v16, %v20
  %v25 = vmax.f32 %v17, %v21
  %v26 = vld [vmem:[%s2] sm:$0xff]
  %v27 = vld [vmem:[%s2 + $0x8] sm:$0xff]
  %v28 = vld [vmem:[%s2 + $0x10] sm:$0xff]
  %v29 = vld [vmem:[%s2 + $0x18] sm:$0xff]
  %v30 = vmax.f32 %v22, %v26
  %v31 = vmax.f32 %v23, %v27
  %v32 = vmax.f32 %v24, %v28
  %v33 = vmax.f32 %v25, %v29
  %vm34 = vcmask 334848
  %35 = vst.msk [vmem:[%s3] sm:$0xff] %vm34, %v30
  %36 = vst.msk [vmem:[%s3 + $0x8] sm:$0xff] %vm34, %v31
  %37 = vst.msk [vmem:[%s3 + $0x10] sm:$0xff] %vm34, %v32
  %38 = vst.msk [vmem:[%s3 + $0x18] sm:$0xff] %vm34, %v33
  // Predicated region
  $region14: #{cnn1d_forward.13} parent=0 // pred_check
    _
  $region15: #{cnn1d_forward.13} parent=0 // pred_check_branch
    %40 = sbr.rel (0) target = $region17
  $region16: #{cnn1d_forward.13} parent=0 // pred_region
    _
  $region17: #{cnn1d_forward.13} parent=0 // pred_fallthru
    _
  // Predicated region
  $region18: #{cnn1d_forward.13} parent=0 // pred_check
    _
  $region19: #{cnn1d_forward.13} parent=0 // pred_check_branch
    %42 = sbr.rel (0) target = $region21
  $region20: #{cnn1d_forward.13} parent=0 // pred_region
    _
  $region21: #{cnn1d_forward.13} parent=0 // pred_fallthru
    _

// kernel: cnn1d_forward.14
$region0: #{cnn1d_forward.14}
  #allocation0 [shape = 'u32[]', space=smem, size = 0x4, offset = 0x4, fixed_abs, tag = 'smem constant byte address 0x4 - core index']
  #allocation1 [shape = 'u32[144,128]{1,0:T(1,128)}', space=vmem, size = 0x12000, scoped, tag = 'internal scratch']
  %s0 = inlined_call_operand.vmem [shape: bf16[64,48], index: 0, kind: input, shape index: {}]
  %s1 = inlined_call_operand.vmem [shape: bf16[48,82], index: 1, kind: input, shape index: {}]
  %s2 = inlined_call_operand.vmem [shape: f32[64,1], index: 2, kind: input, shape index: {}]
  %s3 = inlined_call_operand.vmem [shape: f32[64,82], index: 3, kind: output, shape index: {}]
  %s4 = sld [smem:[#allocation0]]
  $region22: #{cnn1d_forward.14} parent=0
    _
  %s6 = ssub.s32 1, %s4
  %s7 = scalar_select 0, %s6, %s4
  // Predicated region
  $region2: #{cnn1d_forward.14} parent=0 // pred_check
    _
  $region3: #{cnn1d_forward.14} parent=0 // pred_check_branch
    %9 = sbr.rel (0) target = $region5
  $region4: #{cnn1d_forward.14} parent=0 // pred_region
    _
  $region5: #{cnn1d_forward.14} parent=0 // pred_fallthru
    _
  // Predicated region
  $region6: #{cnn1d_forward.14} parent=0 // pred_check
    _
  $region7: #{cnn1d_forward.14} parent=0 // pred_check_branch
    %11 = sbr.rel (0) target = $region9
  $region8: #{cnn1d_forward.14} parent=0 // pred_region
    _
  $region9: #{cnn1d_forward.14} parent=0 // pred_fallthru
    _
  // Predicated region
  $region10: #{cnn1d_forward.14} parent=0 // pred_check
    _
  $region11: #{cnn1d_forward.14} parent=0 // pred_check_branch
    %13 = sbr.rel (0) target = $region13
  $region12: #{cnn1d_forward.14} parent=0 // pred_region
    _
  $region13: #{cnn1d_forward.14} parent=0 // pred_fallthru
    _
  %v15 = vld [vmem:[%s0] sm:$0xf]
  %v16 = vld [vmem:[%s0 + $0x4] sm:$0xf]
  %v17 = vld [vmem:[%s0 + $0x8] sm:$0xf]
  %v18 = vld [vmem:[%s0 + $0xc] sm:$0xf]
  %v19 = vld [vmem:[%s0 + $0x10] sm:$0xf]
  %v20 = vld [vmem:[%s0 + $0x14] sm:$0xf]
  %v21 = vld [vmem:[%s0 + $0x18] sm:$0xf]
  %v22 = vld [vmem:[%s0 + $0x1c] sm:$0xf]
  %v23 = vld [vmem:[%s1] sm:$0xf]
  %v24 = vld [vmem:[%s1 + $0x4] sm:$0xf]
  %v25 = vld [vmem:[%s1 + $0x8] sm:$0xf]
  %v26 = vld [vmem:[%s1 + $0xc] sm:$0xf]
  %v27 = vld [vmem:[%s1 + $0x10] sm:$0xf]
  %v28 = vld [vmem:[%s1 + $0x14] sm:$0xf]
  %v29 = vld [vmem:[%s2] sm:$0xff]
  %v30 = vld [vmem:[%s2 + $0x8] sm:$0xff]
  %v31 = vld [vmem:[%s2 + $0x10] sm:$0xff]
  %v32 = vld [vmem:[%s2 + $0x18] sm:$0xff]
  %v33 = vld [vmem:[%s2 + $0x20] sm:$0xff]
  %v34 = vld [vmem:[%s2 + $0x28] sm:$0xff]
  %v35 = vld [vmem:[%s2 + $0x30] sm:$0xff]
  %v36 = vld [vmem:[%s2 + $0x38] sm:$0xff]
  %38 = vset.pattern.permute.xlu0 0
  %39 = vperm.xlu0 %38, %v29
  %v40 = vpop.permute.xlu0 %39
  %43 = vset.pattern.permute.xlu0 0
  %44 = vperm.xlu0 %43, %v30
  %v45 = vpop.permute.xlu0 %44
  %48 = vset.pattern.permute.xlu0 0
  %49 = vperm.xlu0 %48, %v31
  %v50 = vpop.permute.xlu0 %49
  %53 = vset.pattern.permute.xlu0 0
  %54 = vperm.xlu0 %53, %v32
  %v55 = vpop.permute.xlu0 %54
  %58 = vset.pattern.permute.xlu0 0
  %59 = vperm.xlu0 %58, %v33
  %v60 = vpop.permute.xlu0 %59
  %63 = vset.pattern.permute.xlu0 0
  %64 = vperm.xlu0 %63, %v34
  %v65 = vpop.permute.xlu0 %64
  %68 = vset.pattern.permute.xlu0 0
  %69 = vperm.xlu0 %68, %v35
  %v70 = vpop.permute.xlu0 %69
  %73 = vset.pattern.permute.xlu0 0
  %74 = vperm.xlu0 %73, %v36
  %v75 = vpop.permute.xlu0 %74
  %v85 = vunpack.c.l.b16 %v15
  %v86 = vunpack.c.l.b16 %v16
  %v87 = vunpack.c.l.b16 %v17
  %v88 = vunpack.c.l.b16 %v18
  %v89 = vunpack.c.l.b16 %v19
  %v90 = vunpack.c.l.b16 %v20
  %v91 = vunpack.c.l.b16 %v21
  %v92 = vunpack.c.l.b16 %v22
  %v93 = vpack.c.b16 %v86, %v85
  %v94 = vpack.c.b16 %v88, %v87
  %v95 = vpack.c.b16 %v90, %v89
  %v96 = vpack.c.b16 %v92, %v91
  %v103 = vunpack.c.l.b16 %v23
  %v104 = vunpack.c.l.b16 %v24
  %v105 = vunpack.c.l.b16 %v25
  %v106 = vunpack.c.l.b16 %v26
  %v107 = vunpack.c.l.b16 %v27
  %v108 = vunpack.c.l.b16 %v28
  %v109 = vpack.c.b16 %v104, %v103
  %v110 = vpack.c.b16 %v106, %v105
  %v111 = vpack.c.b16 %v108, %v107
  %vm115 = vcmask 392192
  %v117 = vsel %vm115, %v93, 0
  %v120 = vsel %vm115, %v94, 0
  %v123 = vsel %vm115, %v95, 0
  %v126 = vsel %vm115, %v96, 0
  %128 = vmatprep.subr.bf16.mxu0 0
  %129 = vmatpush1.bf16.msra.mxu0 0
  %130 = vmatprep.subr.bf16.mxu0 0
  %131 = vmatpush1.bf16.msra.mxu0 0
  %132 = vmatprep.subr.bf16.mxu0 0
  %133 = vmatpush1.bf16.msra.mxu0 0
  %134 = vmatprep.subr.bf16.mxu0 0
  %135 = vmatpush1.bf16.msra.mxu0 0
  %136 = vmatprep.subr.bf16.mxu0 0
  %137 = vmatpush1.bf16.msra.mxu0 0
  %138 = vmatprep.subr.bf16.mxu0 0
  %139 = vmatpush1.bf16.msra.mxu0 %v111
  %140 = vmatprep.subr.bf16.mxu0 0
  %141 = vmatpush1.bf16.msra.mxu0 %v110
  %142 = vmatprep.subr.bf16.mxu0 0
  %143 = vmatpush1.bf16.msra.mxu0 %v109
  %144 = vmatprep.subr.bf16.mxu0 0
  %145 = vmatpush2.bf16.msra.mxu0 0
  %146 = vmatprep.subr.bf16.mxu0 0
  %147 = vmatpush2.bf16.msra.mxu0 0
  %148 = vmatprep.subr.bf16.mxu0 0
  %149 = vmatpush2.bf16.msra.mxu0 0
  %150 = vmatprep.subr.bf16.mxu0 0
  %151 = vmatpush2.bf16.msra.mxu0 0
  %152 = vmatprep.subr.bf16.mxu0 0
  %153 = vmatpush2.bf16.msra.mxu0 0
  %154 = vmatprep.subr.bf16.mxu0 0
  %155 = vmatpush2.bf16.msra.mxu0 0
  %156 = vmatprep.subr.bf16.mxu0 0
  %157 = vmatpush2.bf16.msra.mxu0 0
  %158 = vmatprep.subr.bf16.mxu0 0
  %159 = vmatpush2.bf16.msra.mxu0 0
  %160 = vmatprep.mubr.bf16.mxu0 0
  %161 = vmatmul.mubr.bf16.gmra.mxu0 %v117
  %v162 = vpop.f32.mrf.mxu0
  %v163 = vadd.f32 %v40, %v162
  %v164 = vpop.f32.mrf.mxu0
  %v165 = vpop.f32.mrf.mxu0
  %v166 = vadd.f32 %v45, %v165
  %v167 = vpop.f32.mrf.mxu0
  %168 = vmatprep.mubr.bf16.mxu0 0
  %169 = vmatmul.mubr.bf16.gmra.mxu0 %v120
  %v170 = vpop.f32.mrf.mxu0
  %v171 = vadd.f32 %v50, %v170
  %v172 = vpop.f32.mrf.mxu0
  %v173 = vpop.f32.mrf.mxu0
  %v174 = vadd.f32 %v55, %v173
  %v175 = vpop.f32.mrf.mxu0
  %176 = vmatprep.mubr.bf16.mxu0 0
  %177 = vmatmul.mubr.bf16.gmra.mxu0 %v123
  %v178 = vpop.f32.mrf.mxu0
  %v179 = vadd.f32 %v60, %v178
  %v180 = vpop.f32.mrf.mxu0
  %v181 = vpop.f32.mrf.mxu0
  %v182 = vadd.f32 %v65, %v181
  %v183 = vpop.f32.mrf.mxu0
  %184 = vmatprep.mubr.bf16.mxu0 0
  %185 = vmatmul.mubr.bf16.gmra.mxu0 %v126
  %v186 = vpop.f32.mrf.mxu0
  %v187 = vadd.f32 %v70, %v186
  %v188 = vpop.f32.mrf.mxu0
  %v189 = vpop.f32.mrf.mxu0
  %v190 = vadd.f32 %v75, %v189
  %v191 = vpop.f32.mrf.mxu0
  %192 = vdwg.mxu0
  %vm193 = vcmask 670720
  %194 = vst.msk [vmem:[%s3] sm:$0xff] %vm193, %v163
  %195 = vst.msk [vmem:[%s3 + $0x8] sm:$0xff] %vm193, %v166
  %196 = vst.msk [vmem:[%s3 + $0x10] sm:$0xff] %vm193, %v171
  %197 = vst.msk [vmem:[%s3 + $0x18] sm:$0xff] %vm193, %v174
  %198 = vst.msk [vmem:[%s3 + $0x20] sm:$0xff] %vm193, %v179
  %199 = vst.msk [vmem:[%s3 + $0x28] sm:$0xff] %vm193, %v182
  %200 = vst.msk [vmem:[%s3 + $0x30] sm:$0xff] %vm193, %v187
  %201 = vst.msk [vmem:[%s3 + $0x38] sm:$0xff] %vm193, %v190
  // Predicated region
  $region14: #{cnn1d_forward.14} parent=0 // pred_check
    _
  $region15: #{cnn1d_forward.14} parent=0 // pred_check_branch
    %203 = sbr.rel (0) target = $region17
  $region16: #{cnn1d_forward.14} parent=0 // pred_region
    _
  $region17: #{cnn1d_forward.14} parent=0 // pred_fallthru
    _
  // Predicated region
  $region18: #{cnn1d_forward.14} parent=0 // pred_check
    _
  $region19: #{cnn1d_forward.14} parent=0 // pred_check_branch
    %205 = sbr.rel (0) target = $region21
  $region20: #{cnn1d_forward.14} parent=0 // pred_region
    _
  $region21: #{cnn1d_forward.14} parent=0 // pred_fallthru
    _

// kernel: cnn1d_forward.15
$region0: #{cnn1d_forward.15}
  #allocation0 [shape = 'u32[]', space=smem, size = 0x4, offset = 0x4, fixed_abs, tag = 'smem constant byte address 0x4 - core index']
  #allocation1 [shape = 'u32[144,128]{1,0:T(1,128)}', space=vmem, size = 0x12000, scoped, tag = 'internal scratch']
  %s0 = inlined_call_operand.hbm [shape: bf16[64,192], index: 0, kind: input, shape index: {}]
  %s1 = inlined_call_operand.vmem [shape: bf16[192,82], index: 1, kind: input, shape index: {}]
  %s2 = inlined_call_operand.vmem [shape: f32[64,1], index: 2, kind: input, shape index: {}]
  %s3 = inlined_call_operand.vmem [shape: f32[64,82], index: 3, kind: output, shape index: {}]
  %s4 = sld [smem:[#allocation0]]
  $region26: #{cnn1d_forward.15} parent=0
    _
  %s6 = ssub.s32 1, %s4
  %s7 = scalar_select 0, %s6, %s4
  $region1: #{cnn1d_forward.15} parent=0
    #allocation2 [shape = 'u8[32768]{0}', space=vmem, size = 0x8000, scoped, tag = 'input window, operand 0, single buffered']
    #allocation3 [shape = 's32[1]{0}', space=sflag, size = 0x4, scoped, tag = 'scoped memory for cnn1d_forward.15']
    %8 = vsyncpa [#allocation3], 0
    // Predicated region
    $region2: #{cnn1d_forward.15} parent=1 // pred_check
      _
    $region3: #{cnn1d_forward.15} parent=1 // pred_check_branch
      %10 = sbr.rel (0) target = $region5
    $region4: #{cnn1d_forward.15} parent=1 // pred_region
      %s12 = ssub.s32 1024, 1024
      %13 = vsyncadd [#allocation3], %s12
      %s14 = sshll.u32 [#allocation2], 4
      %s15 = int_to_ptr.vmem [resolvable:$true] %s14
      %20 = dma.hbm_to_vmem [thread:$0]  %s0, 1024, %s15, [#allocation3], 128, 128, 8
    $region5: #{cnn1d_forward.15} parent=1 // pred_fallthru
      _
    // Predicated region
    $region6: #{cnn1d_forward.15} parent=1 // pred_check
      _
    $region7: #{cnn1d_forward.15} parent=1 // pred_check_branch
      %22 = sbr.rel (0) target = $region9
    $region8: #{cnn1d_forward.15} parent=1 // pred_region
      _
    $region9: #{cnn1d_forward.15} parent=1 // pred_fallthru
      _
    // Predicated region
    $region10: #{cnn1d_forward.15} parent=1 // pred_check
      _
    $region11: #{cnn1d_forward.15} parent=1 // pred_check_branch
      %24 = sbr.rel (0) target = $region13
    $region12: #{cnn1d_forward.15} parent=1 // pred_region
      _
    $region13: #{cnn1d_forward.15} parent=1 // pred_fallthru
      _
    // Predicated region
    $region14: #{cnn1d_forward.15} parent=1 // pred_check
      _
    $region15: #{cnn1d_forward.15} parent=1 // pred_check_branch
      %26 = sbr.rel (0) target = $region17
    $region16: #{cnn1d_forward.15} parent=1 // pred_region
      %27 = dma.done [#allocation3], 1024
    $region17: #{cnn1d_forward.15} parent=1 // pred_fallthru
      _
    %v29 = vld [vmem:[#allocation2] sm:$0xff]
    %v30 = vld [vmem:[#allocation2 + $0x8] sm:$0xff]
    %v31 = vld [vmem:[#allocation2 + $0x10] sm:$0xff]
    %v32 = vld [vmem:[#allocation2 + $0x18] sm:$0xff]
    %v33 = vld [vmem:[#allocation2 + $0x20] sm:$0xff]
    %v34 = vld [vmem:[#allocation2 + $0x28] sm:$0xff]
    %v35 = vld [vmem:[#allocation2 + $0x30] sm:$0xff]
    %v36 = vld [vmem:[#allocation2 + $0x38] sm:$0xff]
    %v37 = vld [vmem:[%s1] sm:$0xf]
    %v38 = vld [vmem:[%s1 + $0x4] sm:$0xf]
    %v39 = vld [vmem:[%s1 + $0x8] sm:$0xf]
    %v40 = vld [vmem:[%s1 + $0xc] sm:$0xf]
    %v41 = vld [vmem:[%s1 + $0x10] sm:$0xf]
    %v42 = vld [vmem:[%s1 + $0x14] sm:$0xf]
    %v43 = vld [vmem:[%s1 + $0x18] sm:$0xf]
    %v44 = vld [vmem:[%s1 + $0x1c] sm:$0xf]
    %v45 = vld [vmem:[%s1 + $0x20] sm:$0xf]
    %v46 = vld [vmem:[%s1 + $0x24] sm:$0xf]
    %v47 = vld [vmem:[%s1 + $0x28] sm:$0xf]
    %v48 = vld [vmem:[%s1 + $0x2c] sm:$0xf]
    %v49 = vld [vmem:[%s1 + $0x30] sm:$0xf]
    %v50 = vld [vmem:[%s1 + $0x34] sm:$0xf]
    %v51 = vld [vmem:[%s1 + $0x38] sm:$0xf]
    %v52 = vld [vmem:[%s1 + $0x3c] sm:$0xf]
    %v53 = vld [vmem:[%s1 + $0x40] sm:$0xf]
    %v54 = vld [vmem:[%s1 + $0x44] sm:$0xf]
    %v55 = vld [vmem:[%s1 + $0x48] sm:$0xf]
    %v56 = vld [vmem:[%s1 + $0x4c] sm:$0xf]
    %v57 = vld [vmem:[%s1 + $0x50] sm:$0xf]
    %v58 = vld [vmem:[%s1 + $0x54] sm:$0xf]
    %v59 = vld [vmem:[%s1 + $0x58] sm:$0xf]
    %v60 = vld [vmem:[%s1 + $0x5c] sm:$0xf]
    %v61 = vld [vmem:[%s2] sm:$0xff]
    %v62 = vld [vmem:[%s2 + $0x8] sm:$0xff]
    %v63 = vld [vmem:[%s2 + $0x10] sm:$0xff]
    %v64 = vld [vmem:[%s2 + $0x18] sm:$0xff]
    %v65 = vld [vmem:[%s2 + $0x20] sm:$0xff]
    %v66 = vld [vmem:[%s2 + $0x28] sm:$0xff]
    %v67 = vld [vmem:[%s2 + $0x30] sm:$0xff]
    %v68 = vld [vmem:[%s2 + $0x38] sm:$0xff]
    %70 = vset.pattern.permute.xlu0 0
    %71 = vperm.xlu0 %70, %v61
    %v72 = vpop.permute.xlu0 %71
    %75 = vset.pattern.permute.xlu0 0
    %76 = vperm.xlu0 %75, %v62
    %v77 = vpop.permute.xlu0 %76
    %80 = vset.pattern.permute.xlu0 0
    %81 = vperm.xlu0 %80, %v63
    %v82 = vpop.permute.xlu0 %81
    %85 = vset.pattern.permute.xlu0 0
    %86 = vperm.xlu0 %85, %v64
    %v87 = vpop.permute.xlu0 %86
    %90 = vset.pattern.permute.xlu0 0
    %91 = vperm.xlu0 %90, %v65
    %v92 = vpop.permute.xlu0 %91
    %95 = vset.pattern.permute.xlu0 0
    %96 = vperm.xlu0 %95, %v66
    %v97 = vpop.permute.xlu0 %96
    %100 = vset.pattern.permute.xlu0 0
    %101 = vperm.xlu0 %100, %v67
    %v102 = vpop.permute.xlu0 %101
    %105 = vset.pattern.permute.xlu0 0
    %106 = vperm.xlu0 %105, %v68
    %v107 = vpop.permute.xlu0 %106
    %v117 = vunpack.c.l.b16 %v29
    %v118 = vunpack.c.h.b16 %v29
    %v119 = vunpack.c.l.b16 %v30
    %v120 = vunpack.c.h.b16 %v30
    %v121 = vunpack.c.l.b16 %v31
    %v122 = vunpack.c.h.b16 %v31
    %v123 = vunpack.c.l.b16 %v32
    %v124 = vunpack.c.h.b16 %v32
    %v125 = vunpack.c.l.b16 %v33
    %v126 = vunpack.c.h.b16 %v33
    %v127 = vunpack.c.l.b16 %v34
    %v128 = vunpack.c.h.b16 %v34
    %v129 = vunpack.c.l.b16 %v35
    %v130 = vunpack.c.h.b16 %v35
    %v131 = vunpack.c.l.b16 %v36
    %v132 = vunpack.c.h.b16 %v36
    %v133 = vpack.c.b16 %v119, %v117
    %v134 = vpack.c.b16 %v120, %v118
    %v135 = vpack.c.b16 %v123, %v121
    %v136 = vpack.c.b16 %v124, %v122
    %v137 = vpack.c.b16 %v127, %v125
    %v138 = vpack.c.b16 %v128, %v126
    %v139 = vpack.c.b16 %v131, %v129
    %v140 = vpack.c.b16 %v132, %v130
    %v169 = vunpack.c.l.b16 %v37
    %v170 = vunpack.c.l.b16 %v38
    %v171 = vunpack.c.l.b16 %v39
    %v172 = vunpack.c.l.b16 %v40
    %v173 = vunpack.c.l.b16 %v41
    %v174 = vunpack.c.l.b16 %v42
    %v175 = vunpack.c.l.b16 %v43
    %v176 = vunpack.c.l.b16 %v44
    %v177 = vunpack.c.l.b16 %v45
    %v178 = vunpack.c.l.b16 %v46
    %v179 = vunpack.c.l.b16 %v47
    %v180 = vunpack.c.l.b16 %v48
    %v181 = vunpack.c.l.b16 %v49
    %v182 = vunpack.c.l.b16 %v50
    %v183 = vunpack.c.l.b16 %v51
    %v184 = vunpack.c.l.b16 %v52
    %v185 = vunpack.c.l.b16 %v53
    %v186 = vunpack.c.l.b16 %v54
    %v187 = vunpack.c.l.b16 %v55
    %v188 = vunpack.c.l.b16 %v56
    %v189 = vunpack.c.l.b16 %v57
    %v190 = vunpack.c.l.b16 %v58
    %v191 = vunpack.c.l.b16 %v59
    %v192 = vunpack.c.l.b16 %v60
    %v193 = vpack.c.b16 %v170, %v169
    %v194 = vpack.c.b16 %v172, %v171
    %v195 = vpack.c.b16 %v174, %v173
    %v196 = vpack.c.b16 %v176, %v175
    %v197 = vpack.c.b16 %v178, %v177
    %v198 = vpack.c.b16 %v180, %v179
    %v199 = vpack.c.b16 %v182, %v181
    %v200 = vpack.c.b16 %v184, %v183
    %v201 = vpack.c.b16 %v186, %v185
    %v202 = vpack.c.b16 %v188, %v187
    %v203 = vpack.c.b16 %v190, %v189
    %v204 = vpack.c.b16 %v192, %v191
    %vm217 = vcmask 523264
    %v219 = vsel %vm217, %v134, 0
    %v222 = vsel %vm217, %v136, 0
    %v225 = vsel %vm217, %v138, 0
    %v228 = vsel %vm217, %v140, 0
    %230 = vmatprep.subr.bf16.mxu0 0
    %231 = vmatpush1.bf16.msra.mxu0 %v200
    %232 = vmatprep.subr.bf16.mxu0 0
    %233 = vmatpush1.bf16.msra.mxu0 %v199
    %234 = vmatprep.subr.bf16.mxu0 0
    %235 = vmatpush1.bf16.msra.mxu0 %v198
    %236 = vmatprep.subr.bf16.mxu0 0
    %237 = vmatpush1.bf16.msra.mxu0 %v197
    %238 = vmatprep.subr.bf16.mxu0 0
    %239 = vmatpush1.bf16.msra.mxu0 %v196
    %240 = vmatprep.subr.bf16.mxu0 0
    %241 = vmatpush1.bf16.msra.mxu0 %v195
    %242 = vmatprep.subr.bf16.mxu0 0
    %243 = vmatpush1.bf16.msra.mxu0 %v194
    %244 = vmatprep.subr.bf16.mxu0 0
    %245 = vmatpush1.bf16.msra.mxu0 %v193
    %246 = vmatprep.subr.bf16.mxu0 0
    %247 = vmatpush2.bf16.msra.mxu0 0
    %248 = vmatprep.subr.bf16.mxu0 0
    %249 = vmatpush2.bf16.msra.mxu0 0
    %250 = vmatprep.subr.bf16.mxu0 0
    %251 = vmatpush2.bf16.msra.mxu0 0
    %252 = vmatprep.subr.bf16.mxu0 0
    %253 = vmatpush2.bf16.msra.mxu0 0
    %254 = vmatprep.subr.bf16.mxu0 0
    %255 = vmatpush2.bf16.msra.mxu0 %v204
    %256 = vmatprep.subr.bf16.mxu0 0
    %257 = vmatpush2.bf16.msra.mxu0 %v203
    %258 = vmatprep.subr.bf16.mxu0 0
    %259 = vmatpush2.bf16.msra.mxu0 %v202
    %260 = vmatprep.subr.bf16.mxu0 0
    %261 = vmatpush2.bf16.msra.mxu0 %v201
    %262 = vmatprep.mubr.bf16.mxu0 %v219
    %263 = vmatmul.mubr.bf16.gmra.mxu0 %v133
    %v264 = vpop.f32.mrf.mxu0
    %v265 = vadd.f32 %v72, %v264
    %v266 = vpop.f32.mrf.mxu0
    %v267 = vpop.f32.mrf.mxu0
    %v268 = vadd.f32 %v77, %v267
    %v269 = vpop.f32.mrf.mxu0
    %270 = vmatprep.mubr.bf16.mxu0 %v222
    %271 = vmatmul.mubr.bf16.gmra.mxu0 %v135
    %v272 = vpop.f32.mrf.mxu0
    %v273 = vadd.f32 %v82, %v272
    %v274 = vpop.f32.mrf.mxu0
    %v275 = vpop.f32.mrf.mxu0
    %v276 = vadd.f32 %v87, %v275
    %v277 = vpop.f32.mrf.mxu0
    %278 = vmatprep.mubr.bf16.mxu0 %v225
    %279 = vmatmul.mubr.bf16.gmra.mxu0 %v137
    %v280 = vpop.f32.mrf.mxu0
    %v281 = vadd.f32 %v92, %v280
    %v282 = vpop.f32.mrf.mxu0
    %v283 = vpop.f32.mrf.mxu0
    %v284 = vadd.f32 %v97, %v283
    %v285 = vpop.f32.mrf.mxu0
    %286 = vmatprep.mubr.bf16.mxu0 %v228
    %287 = vmatmul.mubr.bf16.gmra.mxu0 %v139
    %v288 = vpop.f32.mrf.mxu0
    %v289 = vadd.f32 %v102, %v288
    %v290 = vpop.f32.mrf.mxu0
    %v291 = vpop.f32.mrf.mxu0
    %v292 = vadd.f32 %v107, %v291
    %v293 = vpop.f32.mrf.mxu0
    %294 = vdwg.mxu0
    %vm295 = vcmask 670720
    %296 = vst.msk [vmem:[%s3] sm:$0xff] %vm295, %v265
    %297 = vst.msk [vmem:[%s3 + $0x8] sm:$0xff] %vm295, %v268
    %298 = vst.msk [vmem:[%s3 + $0x10] sm:$0xff] %vm295, %v273
    %299 = vst.msk [vmem:[%s3 + $0x18] sm:$0xff] %vm295, %v276
    %300 = vst.msk [vmem:[%s3 + $0x20] sm:$0xff] %vm295, %v281
    %301 = vst.msk [vmem:[%s3 + $0x28] sm:$0xff] %vm295, %v284
    %302 = vst.msk [vmem:[%s3 + $0x30] sm:$0xff] %vm295, %v289
    %303 = vst.msk [vmem:[%s3 + $0x38] sm:$0xff] %vm295, %v292
    // Predicated region
    $region18: #{cnn1d_forward.15} parent=1 // pred_check
      _
    $region19: #{cnn1d_forward.15} parent=1 // pred_check_branch
      %305 = sbr.rel (0) target = $region21
    $region20: #{cnn1d_forward.15} parent=1 // pred_region
      _
    $region21: #{cnn1d_forward.15} parent=1 // pred_fallthru
      _
    // Predicated region
    $region22: #{cnn1d_forward.15} parent=1 // pred_check
      _
    $region23: #{cnn1d_forward.15} parent=1 // pred_check_branch
      %307 = sbr.rel (0) target = $region25
    $region24: #{cnn1d_forward.15} parent=1 // pred_region
      _
    $region25: #{cnn1d_forward.15} parent=1 // pred_fallthru
      _
    %308 = vsyncpa [#allocation3], 1

// kernel: cnn1d_forward.16
$region0: #{cnn1d_forward.16}
  #allocation0 [shape = 'u32[]', space=smem, size = 0x4, offset = 0x4, fixed_abs, tag = 'smem constant byte address 0x4 - core index']
  #allocation1 [shape = 'u32[144,128]{1,0:T(1,128)}', space=vmem, size = 0x12000, scoped, tag = 'internal scratch']
  %s0 = inlined_call_operand.vmem [shape: bf16[512,192], index: 0, kind: input, shape index: {}]
  %s1 = inlined_call_operand.vmem [shape: bf16[192,82], index: 1, kind: input, shape index: {}]
  %s2 = inlined_call_operand.vmem [shape: f32[512,1], index: 2, kind: input, shape index: {}]
  %s3 = inlined_call_operand.vmem [shape: f32[512,82], index: 3, kind: output, shape index: {}]
  %s4 = sld [smem:[#allocation0]]
  $region22: #{cnn1d_forward.16} parent=0
    _
  %s6 = ssub.s32 1, %s4
  %s7 = scalar_select 0, %s6, %s4
  // Predicated region
  $region2: #{cnn1d_forward.16} parent=0 // pred_check
    _
  $region3: #{cnn1d_forward.16} parent=0 // pred_check_branch
    %9 = sbr.rel (0) target = $region5
  $region4: #{cnn1d_forward.16} parent=0 // pred_region
    _
  $region5: #{cnn1d_forward.16} parent=0 // pred_fallthru
    _
  // Predicated region
  $region6: #{cnn1d_forward.16} parent=0 // pred_check
    _
  $region7: #{cnn1d_forward.16} parent=0 // pred_check_branch
    %11 = sbr.rel (0) target = $region9
  $region8: #{cnn1d_forward.16} parent=0 // pred_region
    _
  $region9: #{cnn1d_forward.16} parent=0 // pred_fallthru
    _
  // Predicated region
  $region10: #{cnn1d_forward.16} parent=0 // pred_check
    _
  $region11: #{cnn1d_forward.16} parent=0 // pred_check_branch
    %13 = sbr.rel (0) target = $region13
  $region12: #{cnn1d_forward.16} parent=0 // pred_region
    _
  $region13: #{cnn1d_forward.16} parent=0 // pred_fallthru
    _
  %v15 = vld [vmem:[%s0] sm:$0xff]
  %v16 = vld [vmem:[%s0 + $0x8] sm:$0xff]
  %v17 = vld [vmem:[%s0 + $0x10] sm:$0xff]
  %v18 = vld [vmem:[%s0 + $0x18] sm:$0xff]
  %v19 = vld [vmem:[%s0 + $0x20] sm:$0xff]
  %v20 = vld [vmem:[%s0 + $0x28] sm:$0xff]
  %v21 = vld [vmem:[%s0 + $0x30] sm:$0xff]
  %v22 = vld [vmem:[%s0 + $0x38] sm:$0xff]
  %v23 = vld [vmem:[%s0 + $0x40] sm:$0xff]
  %v24 = vld [vmem:[%s0 + $0x48] sm:$0xff]
  %v25 = vld [vmem:[%s0 + $0x50] sm:$0xff]
  %v26 = vld [vmem:[%s0 + $0x58] sm:$0xff]
  %v27 = vld [vmem:[%s0 + $0x60] sm:$0xff]
  %v28 = vld [vmem:[%s0 + $0x68] sm:$0xff]
  %v29 = vld [vmem:[%s0 + $0x70] sm:$0xff]
  %v30 = vld [vmem:[%s0 + $0x78] sm:$0xff]
  %v31 = vld [vmem:[%s0 + $0x80] sm:$0xff]
  %v32 = vld [vmem:[%s0 + $0x88] sm:$0xff]
  %v33 = vld [vmem:[%s0 + $0x90] sm:$0xff]
  %v34 = vld [vmem:[%s0 + $0x98] sm:$0xff]
  %v35 = vld [vmem:[%s0 + $0xa0] sm:$0xff]
  %v36 = vld [vmem:[%s0 + $0xa8] sm:$0xff]
  %v37 = vld [vmem:[%s0 + $0xb0] sm:$0xff]
  %v38 = vld [vmem:[%s0 + $0xb8] sm:$0xff]
  %v39 = vld [vmem:[%s0 + $0xc0] sm:$0xff]
  %v40 = vld [vmem:[%s0 + $0xc8] sm:$0xff]
  %v41 = vld [vmem:[%s0 + $0xd0] sm:$0xff]
  %v42 = vld [vmem:[%s0 + $0xd8] sm:$0xff]
  %v43 = vld [vmem:[%s0 + $0xe0] sm:$0xff]
  %v44 = vld [vmem:[%s0 + $0xe8] sm:$0xff]
  %v45 = vld [vmem:[%s0 + $0xf0] sm:$0xff]
  %v46 = vld [vmem:[%s0 + $0xf8] sm:$0xff]
  %v47 = vld [vmem:[%s0 + $0x100] sm:$0xff]
  %v48 = vld [vmem:[%s0 + $0x108] sm:$0xff]
  %v49 = vld [vmem:[%s0 + $0x110] sm:$0xff]
  %v50 = vld [vmem:[%s0 + $0x118] sm:$0xff]
  %v51 = vld [vmem:[%s0 + $0x120] sm:$0xff]
  %v52 = vld [vmem:[%s0 + $0x128] sm:$0xff]
  %v53 = vld [vmem:[%s0 + $0x130] sm:$0xff]
  %v54 = vld [vmem:[%s0 + $0x138] sm:$0xff]
  %v55 = vld [vmem:[%s0 + $0x140] sm:$0xff]
  %v56 = vld [vmem:[%s0 + $0x148] sm:$0xff]
  %v57 = vld [vmem:[%s0 + $0x150] sm:$0xff]
  %v58 = vld [vmem:[%s0 + $0x158] sm:$0xff]
  %v59 = vld [vmem:[%s0 + $0x160] sm:$0xff]
  %v60 = vld [vmem:[%s0 + $0x168] sm:$0xff]
  %v61 = vld [vmem:[%s0 + $0x170] sm:$0xff]
  %v62 = vld [vmem:[%s0 + $0x178] sm:$0xff]
  %v63 = vld [vmem:[%s0 + $0x180] sm:$0xff]
  %v64 = vld [vmem:[%s0 + $0x188] sm:$0xff]
  %v65 = vld [vmem:[%s0 + $0x190] sm:$0xff]
  %v66 = vld [vmem:[%s0 + $0x198] sm:$0xff]
  %v67 = vld [vmem:[%s0 + $0x1a0] sm:$0xff]
  %v68 = vld [vmem:[%s0 + $0x1a8] sm:$0xff]
  %v69 = vld [vmem:[%s0 + $0x1b0] sm:$0xff]
  %v70 = vld [vmem:[%s0 + $0x1b8] sm:$0xff]
  %v71 = vld [vmem:[%s0 + $0x1c0] sm:$0xff]
  %v72 = vld [vmem:[%s0 + $0x1c8] sm:$0xff]
  %v73 = vld [vmem:[%s0 + $0x1d0] sm:$0xff]
  %v74 = vld [vmem:[%s0 + $0x1d8] sm:$0xff]
  %v75 = vld [vmem:[%s0 + $0x1e0] sm:$0xff]
  %v76 = vld [vmem:[%s0 + $0x1e8] sm:$0xff]
  %v77 = vld [vmem:[%s0 + $0x1f0] sm:$0xff]
  %v78 = vld [vmem:[%s0 + $0x1f8] sm:$0xff]
  %v79 = vld [vmem:[%s1] sm:$0xf]
  %v80 = vld [vmem:[%s1 + $0x4] sm:$0xf]
  %v81 = vld [vmem:[%s1 + $0x8] sm:$0xf]
  %v82 = vld [vmem:[%s1 + $0xc] sm:$0xf]
  %v83 = vld [vmem:[%s1 + $0x10] sm:$0xf]
  %v84 = vld [vmem:[%s1 + $0x14] sm:$0xf]
  %v85 = vld [vmem:[%s1 + $0x18] sm:$0xf]
  %v86 = vld [vmem:[%s1 + $0x1c] sm:$0xf]
  %v87 = vld [vmem:[%s1 + $0x20] sm:$0xf]
  %v88 = vld [vmem:[%s1 + $0x24] sm:$0xf]
  %v89 = vld [vmem:[%s1 + $0x28] sm:$0xf]
  %v90 = vld [vmem:[%s1 + $0x2c] sm:$0xf]
  %v91 = vld [vmem:[%s1 + $0x30] sm:$0xf]
  %v92 = vld [vmem:[%s1 + $0x34] sm:$0xf]
  %v93 = vld [vmem:[%s1 + $0x38] sm:$0xf]
  %v94 = vld [vmem:[%s1 + $0x3c] sm:$0xf]
  %v95 = vld [vmem:[%s1 + $0x40] sm:$0xf]
  %v96 = vld [vmem:[%s1 + $0x44] sm:$0xf]
  %v97 = vld [vmem:[%s1 + $0x48] sm:$0xf]
  %v98 = vld [vmem:[%s1 + $0x4c] sm:$0xf]
  %v99 = vld [vmem:[%s1 + $0x50] sm:$0xf]
  %v100 = vld [vmem:[%s1 + $0x54] sm:$0xf]
  %v101 = vld [vmem:[%s1 + $0x58] sm:$0xf]
  %v102 = vld [vmem:[%s1 + $0x5c] sm:$0xf]
  %v103 = vld [vmem:[%s2] sm:$0xff]
  %v104 = vld [vmem:[%s2 + $0x8] sm:$0xff]
  %v105 = vld [vmem:[%s2 + $0x10] sm:$0xff]
  %v106 = vld [vmem:[%s2 + $0x18] sm:$0xff]
  %v107 = vld [vmem:[%s2 + $0x20] sm:$0xff]
  %v108 = vld [vmem:[%s2 + $0x28] sm:$0xff]
  %v109 = vld [vmem:[%s2 + $0x30] sm:$0xff]
  %v110 = vld [vmem:[%s2 + $0x38] sm:$0xff]
  %v111 = vld [vmem:[%s2 + $0x40] sm:$0xff]
  %v112 = vld [vmem:[%s2 + $0x48] sm:$0xff]
  %v113 = vld [vmem:[%s2 + $0x50] sm:$0xff]
  %v114 = vld [vmem:[%s2 + $0x58] sm:$0xff]
  %v115 = vld [vmem:[%s2 + $0x60] sm:$0xff]
  %v116 = vld [vmem:[%s2 + $0x68] sm:$0xff]
  %v117 = vld [vmem:[%s2 + $0x70] sm:$0xff]
  %v118 = vld [vmem:[%s2 + $0x78] sm:$0xff]
  %v119 = vld [vmem:[%s2 + $0x80] sm:$0xff]
  %v120 = vld [vmem:[%s2 + $0x88] sm:$0xff]
  %v121 = vld [vmem:[%s2 + $0x90] sm:$0xff]
  %v122 = vld [vmem:[%s2 + $0x98] sm:$0xff]
  %v123 = vld [vmem:[%s2 + $0xa0] sm:$0xff]
  %v124 = vld [vmem:[%s2 + $0xa8] sm:$0xff]
  %v125 = vld [vmem:[%s2 + $0xb0] sm:$0xff]
  %v126 = vld [vmem:[%s2 + $0xb8] sm:$0xff]
  %v127 = vld [vmem:[%s2 + $0xc0] sm:$0xff]
  %v128 = vld [vmem:[%s2 + $0xc8] sm:$0xff]
  %v129 = vld [vmem:[%s2 + $0xd0] sm:$0xff]
  %v130 = vld [vmem:[%s2 + $0xd8] sm:$0xff]
  %v131 = vld [vmem:[%s2 + $0xe0] sm:$0xff]
  %v132 = vld [vmem:[%s2 + $0xe8] sm:$0xff]
  %v133 = vld [vmem:[%s2 + $0xf0] sm:$0xff]
  %v134 = vld [vmem:[%s2 + $0xf8] sm:$0xff]
  %v135 = vld [vmem:[%s2 + $0x100] sm:$0xff]
  %v136 = vld [vmem:[%s2 + $0x108] sm:$0xff]
  %v137 = vld [vmem:[%s2 + $0x110] sm:$0xff]
  %v138 = vld [vmem:[%s2 + $0x118] sm:$0xff]
  %v139 = vld [vmem:[%s2 + $0x120] sm:$0xff]
  %v140 = vld [vmem:[%s2 + $0x128] sm:$0xff]
  %v141 = vld [vmem:[%s2 + $0x130] sm:$0xff]
  %v142 = vld [vmem:[%s2 + $0x138] sm:$0xff]
  %v143 = vld [vmem:[%s2 + $0x140] sm:$0xff]
  %v144 = vld [vmem:[%s2 + $0x148] sm:$0xff]
  %v145 = vld [vmem:[%s2 + $0x150] sm:$0xff]
  %v146 = vld [vmem:[%s2 + $0x158] sm:$0xff]
  %v147 = vld [vmem:[%s2 + $0x160] sm:$0xff]
  %v148 = vld [vmem:[%s2 + $0x168] sm:$0xff]
  %v149 = vld [vmem:[%s2 + $0x170] sm:$0xff]
  %v150 = vld [vmem:[%s2 + $0x178] sm:$0xff]
  %v151 = vld [vmem:[%s2 + $0x180] sm:$0xff]
  %v152 = vld [vmem:[%s2 + $0x188] sm:$0xff]
  %v153 = vld [vmem:[%s2 + $0x190] sm:$0xff]
  %v154 = vld [vmem:[%s2 + $0x198] sm:$0xff]
  %v155 = vld [vmem:[%s2 + $0x1a0] sm:$0xff]
  %v156 = vld [vmem:[%s2 + $0x1a8] sm:$0xff]
  %v157 = vld [vmem:[%s2 + $0x1b0] sm:$0xff]
  %v158 = vld [vmem:[%s2 + $0x1b8] sm:$0xff]
  %v159 = vld [vmem:[%s2 + $0x1c0] sm:$0xff]
  %v160 = vld [vmem:[%s2 + $0x1c8] sm:$0xff]
  %v161 = vld [vmem:[%s2 + $0x1d0] sm:$0xff]
  %v162 = vld [vmem:[%s2 + $0x1d8] sm:$0xff]
  %v163 = vld [vmem:[%s2 + $0x1e0] sm:$0xff]
  %v164 = vld [vmem:[%s2 + $0x1e8] sm:$0xff]
  %v165 = vld [vmem:[%s2 + $0x1f0] sm:$0xff]
  %v166 = vld [vmem:[%s2 + $0x1f8] sm:$0xff]
  %168 = vset.pattern.permute.xlu0 0
  %169 = vperm.xlu0 %168, %v103
  %v170 = vpop.permute.xlu0 %169
  %173 = vset.pattern.permute.xlu0 0
  %174 = vperm.xlu0 %173, %v104
  %v175 = vpop.permute.xlu0 %174
  %178 = vset.pattern.permute.xlu0 0
  %179 = vperm.xlu0 %178, %v105
  %v180 = vpop.permute.xlu0 %179
  %183 = vset.pattern.permute.xlu0 0
  %184 = vperm.xlu0 %183, %v106
  %v185 = vpop.permute.xlu0 %184
  %188 = vset.pattern.permute.xlu0 0
  %189 = vperm.xlu0 %188, %v107
  %v190 = vpop.permute.xlu0 %189
  %193 = vset.pattern.permute.xlu0 0
  %194 = vperm.xlu0 %193, %v108
  %v195 = vpop.permute.xlu0 %194
  %198 = vset.pattern.permute.xlu0 0
  %199 = vperm.xlu0 %198, %v109
  %v200 = vpop.permute.xlu0 %199
  %203 = vset.pattern.permute.xlu0 0
  %204 = vperm.xlu0 %203, %v110
  %v205 = vpop.permute.xlu0 %204
  %208 = vset.pattern.permute.xlu0 0
  %209 = vperm.xlu0 %208, %v111
  %v210 = vpop.permute.xlu0 %209
  %213 = vset.pattern.permute.xlu0 0
  %214 = vperm.xlu0 %213, %v112
  %v215 = vpop.permute.xlu0 %214
  %218 = vset.pattern.permute.xlu0 0
  %219 = vperm.xlu0 %218, %v113
  %v220 = vpop.permute.xlu0 %219
  %223 = vset.pattern.permute.xlu0 0
  %224 = vperm.xlu0 %223, %v114
  %v225 = vpop.permute.xlu0 %224
  %228 = vset.pattern.permute.xlu0 0
  %229 = vperm.xlu0 %228, %v115
  %v230 = vpop.permute.xlu0 %229
  %233 = vset.pattern.permute.xlu0 0
  %234 = vperm.xlu0 %233, %v116
  %v235 = vpop.permute.xlu0 %234
  %238 = vset.pattern.permute.xlu0 0
  %239 = vperm.xlu0 %238, %v117
  %v240 = vpop.permute.xlu0 %239
  %243 = vset.pattern.permute.xlu0 0
  %244 = vperm.xlu0 %243, %v118
  %v245 = vpop.permute.xlu0 %244
  %248 = vset.pattern.permute.xlu0 0
  %249 = vperm.xlu0 %248, %v119
  %v250 = vpop.permute.xlu0 %249
  %253 = vset.pattern.permute.xlu0 0
  %254 = vperm.xlu0 %253, %v120
  %v255 = vpop.permute.xlu0 %254
  %258 = vset.pattern.permute.xlu0 0
  %259 = vperm.xlu0 %258, %v121
  %v260 = vpop.permute.xlu0 %259
  %263 = vset.pattern.permute.xlu0 0
  %264 = vperm.xlu0 %263, %v122
  %v265 = vpop.permute.xlu0 %264
  %268 = vset.pattern.permute.xlu0 0
  %269 = vperm.xlu0 %268, %v123
  %v270 = vpop.permute.xlu0 %269
  %273 = vset.pattern.permute.xlu0 0
  %274 = vperm.xlu0 %273, %v124
  %v275 = vpop.permute.xlu0 %274
  %278 = vset.pattern.permute.xlu0 0
  %279 = vperm.xlu0 %278, %v125
  %v280 = vpop.permute.xlu0 %279
  %283 = vset.pattern.permute.xlu0 0
  %284 = vperm.xlu0 %283, %v126
  %v285 = vpop.permute.xlu0 %284
  %288 = vset.pattern.permute.xlu0 0
  %289 = vperm.xlu0 %288, %v127
  %v290 = vpop.permute.xlu0 %289
  %293 = vset.pattern.permute.xlu0 0
  %294 = vperm.xlu0 %293, %v128
  %v295 = vpop.permute.xlu0 %294
  %298 = vset.pattern.permute.xlu0 0
  %299 = vperm.xlu0 %298, %v129
  %v300 = vpop.permute.xlu0 %299
  %303 = vset.pattern.permute.xlu0 0
  %304 = vperm.xlu0 %303, %v130
  %v305 = vpop.permute.xlu0 %304
  %308 = vset.pattern.permute.xlu0 0
  %309 = vperm.xlu0 %308, %v131
  %v310 = vpop.permute.xlu0 %309
  %313 = vset.pattern.permute.xlu0 0
  %314 = vperm.xlu0 %313, %v132
  %v315 = vpop.permute.xlu0 %314
  %318 = vset.pattern.permute.xlu0 0
  %319 = vperm.xlu0 %318, %v133
  %v320 = vpop.permute.xlu0 %319
  %323 = vset.pattern.permute.xlu0 0
  %324 = vperm.xlu0 %323, %v134
  %v325 = vpop.permute.xlu0 %324
  %328 = vset.pattern.permute.xlu0 0
  %329 = vperm.xlu0 %328, %v135
  %v330 = vpop.permute.xlu0 %329
  %333 = vset.pattern.permute.xlu0 0
  %334 = vperm.xlu0 %333, %v136
  %v335 = vpop.permute.xlu0 %334
  %338 = vset.pattern.permute.xlu0 0
  %339 = vperm.xlu0 %338, %v137
  %v340 = vpop.permute.xlu0 %339
  %343 = vset.pattern.permute.xlu0 0
  %344 = vperm.xlu0 %343, %v138
  %v345 = vpop.permute.xlu0 %344
  %348 = vset.pattern.permute.xlu0 0
  %349 = vperm.xlu0 %348, %v139
  %v350 = vpop.permute.xlu0 %349
  %353 = vset.pattern.permute.xlu0 0
  %354 = vperm.xlu0 %353, %v140
  %v355 = vpop.permute.xlu0 %354
  %358 = vset.pattern.permute.xlu0 0
  %359 = vperm.xlu0 %358, %v141
  %v360 = vpop.permute.xlu0 %359
  %363 = vset.pattern.permute.xlu0 0
  %364 = vperm.xlu0 %363, %v142
  %v365 = vpop.permute.xlu0 %364
  %368 = vset.pattern.permute.xlu0 0
  %369 = vperm.xlu0 %368, %v143
  %v370 = vpop.permute.xlu0 %369
  %373 = vset.pattern.permute.xlu0 0
  %374 = vperm.xlu0 %373, %v144
  %v375 = vpop.permute.xlu0 %374
  %378 = vset.pattern.permute.xlu0 0
  %379 = vperm.xlu0 %378, %v145
  %v380 = vpop.permute.xlu0 %379
  %383 = vset.pattern.permute.xlu0 0
  %384 = vperm.xlu0 %383, %v146
  %v385 = vpop.permute.xlu0 %384
  %388 = vset.pattern.permute.xlu0 0
  %389 = vperm.xlu0 %388, %v147
  %v390 = vpop.permute.xlu0 %389
  %393 = vset.pattern.permute.xlu0 0
  %394 = vperm.xlu0 %393, %v148
  %v395 = vpop.permute.xlu0 %394
  %398 = vset.pattern.permute.xlu0 0
  %399 = vperm.xlu0 %398, %v149
  %v400 = vpop.permute.xlu0 %399
  %403 = vset.pattern.permute.xlu0 0
  %404 = vperm.xlu0 %403, %v150
  %v405 = vpop.permute.xlu0 %404
  %408 = vset.pattern.permute.xlu0 0
  %409 = vperm.xlu0 %408, %v151
  %v410 = vpop.permute.xlu0 %409
  %413 = vset.pattern.permute.xlu0 0
  %414 = vperm.xlu0 %413, %v152
  %v415 = vpop.permute.xlu0 %414
  %418 = vset.pattern.permute.xlu0 0
  %419 = vperm.xlu0 %418, %v153
  %v420 = vpop.permute.xlu0 %419
  %423 = vset.pattern.permute.xlu0 0
  %424 = vperm.xlu0 %423, %v154
  %v425 = vpop.permute.xlu0 %424
  %428 = vset.pattern.permute.xlu0 0
  %429 = vperm.xlu0 %428, %v155
  %v430 = vpop.permute.xlu0 %429
  %433 = vset.pattern.permute.xlu0 0
  %434 = vperm.xlu0 %433, %v156
  %v435 = vpop.permute.xlu0 %434
  %438 = vset.pattern.permute.xlu0 0
  %439 = vperm.xlu0 %438, %v157
  %v440 = vpop.permute.xlu0 %439
  %443 = vset.pattern.permute.xlu0 0
  %444 = vperm.xlu0 %443, %v158
  %v445 = vpop.permute.xlu0 %444
  %448 = vset.pattern.permute.xlu0 0
  %449 = vperm.xlu0 %448, %v159
  %v450 = vpop.permute.xlu0 %449
  %453 = vset.pattern.permute.xlu0 0
  %454 = vperm.xlu0 %453, %v160
  %v455 = vpop.permute.xlu0 %454
  %458 = vset.pattern.permute.xlu0 0
  %459 = vperm.xlu0 %458, %v161
  %v460 = vpop.permute.xlu0 %459
  %463 = vset.pattern.permute.xlu0 0
  %464 = vperm.xlu0 %463, %v162
  %v465 = vpop.permute.xlu0 %464
  %468 = vset.pattern.permute.xlu0 0
  %469 = vperm.xlu0 %468, %v163
  %v470 = vpop.permute.xlu0 %469
  %473 = vset.pattern.permute.xlu0 0
  %474 = vperm.xlu0 %473, %v164
  %v475 = vpop.permute.xlu0 %474
  %478 = vset.pattern.permute.xlu0 0
  %479 = vperm.xlu0 %478, %v165
  %v480 = vpop.permute.xlu0 %479
  %483 = vset.pattern.permute.xlu0 0
  %484 = vperm.xlu0 %483, %v166
  %v485 = vpop.permute.xlu0 %484
  %v551 = vunpack.c.l.b16 %v15
  %v552 = vunpack.c.h.b16 %v15
  %v553 = vunpack.c.l.b16 %v16
  %v554 = vunpack.c.h.b16 %v16
  %v555 = vunpack.c.l.b16 %v17
  %v556 = vunpack.c.h.b16 %v17
  %v557 = vunpack.c.l.b16 %v18
  %v558 = vunpack.c.h.b16 %v18
  %v559 = vunpack.c.l.b16 %v19
  %v560 = vunpack.c.h.b16 %v19
  %v561 = vunpack.c.l.b16 %v20
  %v562 = vunpack.c.h.b16 %v20
  %v563 = vunpack.c.l.b16 %v21
  %v564 = vunpack.c.h.b16 %v21
  %v565 = vunpack.c.l.b16 %v22
  %v566 = vunpack.c.h.b16 %v22
  %v567 = vunpack.c.l.b16 %v23
  %v568 = vunpack.c.h.b16 %v23
  %v569 = vunpack.c.l.b16 %v24
  %v570 = vunpack.c.h.b16 %v24
  %v571 = vunpack.c.l.b16 %v25
  %v572 = vunpack.c.h.b16 %v25
  %v573 = vunpack.c.l.b16 %v26
  %v574 = vunpack.c.h.b16 %v26
  %v575 = vunpack.c.l.b16 %v27
  %v576 = vunpack.c.h.b16 %v27
  %v577 = vunpack.c.l.b16 %v28
  %v578 = vunpack.c.h.b16 %v28
  %v579 = vunpack.c.l.b16 %v29
  %v580 = vunpack.c.h.b16 %v29
  %v581 = vunpack.c.l.b16 %v30
  %v582 = vunpack.c.h.b16 %v30
  %v583 = vunpack.c.l.b16 %v31
  %v584 = vunpack.c.h.b16 %v31
  %v585 = vunpack.c.l.b16 %v32
  %v586 = vunpack.c.h.b16 %v32
  %v587 = vunpack.c.l.b16 %v33
  %v588 = vunpack.c.h.b16 %v33
  %v589 = vunpack.c.l.b16 %v34
  %v590 = vunpack.c.h.b16 %v34
  %v591 = vunpack.c.l.b16 %v35
  %v592 = vunpack.c.h.b16 %v35
  %v593 = vunpack.c.l.b16 %v36
  %v594 = vunpack.c.h.b16 %v36
  %v595 = vunpack.c.l.b16 %v37
  %v596 = vunpack.c.h.b16 %v37
  %v597 = vunpack.c.l.b16 %v38
  %v598 = vunpack.c.h.b16 %v38
  %v599 = vunpack.c.l.b16 %v39
  %v600 = vunpack.c.h.b16 %v39
  %v601 = vunpack.c.l.b16 %v40
  %v602 = vunpack.c.h.b16 %v40
  %v603 = vunpack.c.l.b16 %v41
  %v604 = vunpack.c.h.b16 %v41
  %v605 = vunpack.c.l.b16 %v42
  %v606 = vunpack.c.h.b16 %v42
  %v607 = vunpack.c.l.b16 %v43
  %v608 = vunpack.c.h.b16 %v43
  %v609 = vunpack.c.l.b16 %v44
  %v610 = vunpack.c.h.b16 %v44
  %v611 = vunpack.c.l.b16 %v45
  %v612 = vunpack.c.h.b16 %v45
  %v613 = vunpack.c.l.b16 %v46
  %v614 = vunpack.c.h.b16 %v46
  %v615 = vunpack.c.l.b16 %v47
  %v616 = vunpack.c.h.b16 %v47
  %v617 = vunpack.c.l.b16 %v48
  %v618 = vunpack.c.h.b16 %v48
  %v619 = vunpack.c.l.b16 %v49
  %v620 = vunpack.c.h.b16 %v49
  %v621 = vunpack.c.l.b16 %v50
  %v622 = vunpack.c.h.b16 %v50
  %v623 = vunpack.c.l.b16 %v51
  %v624 = vunpack.c.h.b16 %v51
  %v625 = vunpack.c.l.b16 %v52
  %v626 = vunpack.c.h.b16 %v52
  %v627 = vunpack.c.l.b16 %v53
  %v628 = vunpack.c.h.b16 %v53
  %v629 = vunpack.c.l.b16 %v54
  %v630 = vunpack.c.h.b16 %v54
  %v631 = vunpack.c.l.b16 %v55
  %v632 = vunpack.c.h.b16 %v55
  %v633 = vunpack.c.l.b16 %v56
  %v634 = vunpack.c.h.b16 %v56
  %v635 = vunpack.c.l.b16 %v57
  %v636 = vunpack.c.h.b16 %v57
  %v637 = vunpack.c.l.b16 %v58
  %v638 = vunpack.c.h.b16 %v58
  %v639 = vunpack.c.l.b16 %v59
  %v640 = vunpack.c.h.b16 %v59
  %v641 = vunpack.c.l.b16 %v60
  %v642 = vunpack.c.h.b16 %v60
  %v643 = vunpack.c.l.b16 %v61
  %v644 = vunpack.c.h.b16 %v61
  %v645 = vunpack.c.l.b16 %v62
  %v646 = vunpack.c.h.b16 %v62
  %v647 = vunpack.c.l.b16 %v63
  %v648 = vunpack.c.h.b16 %v63
  %v649 = vunpack.c.l.b16 %v64
  %v650 = vunpack.c.h.b16 %v64
  %v651 = vunpack.c.l.b16 %v65
  %v652 = vunpack.c.h.b16 %v65
  %v653 = vunpack.c.l.b16 %v66
  %v654 = vunpack.c.h.b16 %v66
  %v655 = vunpack.c.l.b16 %v67
  %v656 = vunpack.c.h.b16 %v67
  %v657 = vunpack.c.l.b16 %v68
  %v658 = vunpack.c.h.b16 %v68
  %v659 = vunpack.c.l.b16 %v69
  %v660 = vunpack.c.h.b16 %v69
  %v661 = vunpack.c.l.b16 %v70
  %v662 = vunpack.c.h.b16 %v70
  %v663 = vunpack.c.l.b16 %v71
  %v664 = vunpack.c.h.b16 %v71
  %v665 = vunpack.c.l.b16 %v72
  %v666 = vunpack.c.h.b16 %v72
  %v667 = vunpack.c.l.b16 %v73
  %v668 = vunpack.c.h.b16 %v73
  %v669 = vunpack.c.l.b16 %v74
  %v670 = vunpack.c.h.b16 %v74
  %v671 = vunpack.c.l.b16 %v75
  %v672 = vunpack.c.h.b16 %v75
  %v673 = vunpack.c.l.b16 %v76
  %v674 = vunpack.c.h.b16 %v76
  %v675 = vunpack.c.l.b16 %v77
  %v676 = vunpack.c.h.b16 %v77
  %v677 = vunpack.c.l.b16 %v78
  %v678 = vunpack.c.h.b16 %v78
  %v679 = vpack.c.b16 %v553, %v551
  %v680 = vpack.c.b16 %v554, %v552
  %v681 = vpack.c.b16 %v557, %v555
  %v682 = vpack.c.b16 %v558, %v556
  %v683 = vpack.c.b16 %v561, %v559
  %v684 = vpack.c.b16 %v562, %v560
  %v685 = vpack.c.b16 %v565, %v563
  %v686 = vpack.c.b16 %v566, %v564
  %v687 = vpack.c.b16 %v569, %v567
  %v688 = vpack.c.b16 %v570, %v568
  %v689 = vpack.c.b16 %v573, %v571
  %v690 = vpack.c.b16 %v574, %v572
  %v691 = vpack.c.b16 %v577, %v575
  %v692 = vpack.c.b16 %v578, %v576
  %v693 = vpack.c.b16 %v581, %v579
  %v694 = vpack.c.b16 %v582, %v580
  %v695 = vpack.c.b16 %v585, %v583
  %v696 = vpack.c.b16 %v586, %v584
  %v697 = vpack.c.b16 %v589, %v587
  %v698 = vpack.c.b16 %v590, %v588
  %v699 = vpack.c.b16 %v593, %v591
  %v700 = vpack.c.b16 %v594, %v592
  %v701 = vpack.c.b16 %v597, %v595
  %v702 = vpack.c.b16 %v598, %v596
  %v703 = vpack.c.b16 %v601, %v599
  %v704 = vpack.c.b16 %v602, %v600
  %v705 = vpack.c.b16 %v605, %v603
  %v706 = vpack.c.b16 %v606, %v604
  %v707 = vpack.c.b16 %v609, %v607
  %v708 = vpack.c.b16 %v610, %v608
  %v709 = vpack.c.b16 %v613, %v611
  %v710 = vpack.c.b16 %v614, %v612
  %v711 = vpack.c.b16 %v617, %v615
  %v712 = vpack.c.b16 %v618, %v616
  %v713 = vpack.c.b16 %v621, %v619
  %v714 = vpack.c.b16 %v622, %v620
  %v715 = vpack.c.b16 %v625, %v623
  %v716 = vpack.c.b16 %v626, %v624
  %v717 = vpack.c.b16 %v629, %v627
  %v718 = vpack.c.b16 %v630, %v628
  %v719 = vpack.c.b16 %v633, %v631
  %v720 = vpack.c.b16 %v634, %v632
  %v721 = vpack.c.b16 %v637, %v635
  %v722 = vpack.c.b16 %v638, %v636
  %v723 = vpack.c.b16 %v641, %v639
  %v724 = vpack.c.b16 %v642, %v640
  %v725 = vpack.c.b16 %v645, %v643
  %v726 = vpack.c.b16 %v646, %v644
  %v727 = vpack.c.b16 %v649, %v647
  %v728 = vpack.c.b16 %v650, %v648
  %v729 = vpack.c.b16 %v653, %v651
  %v730 = vpack.c.b16 %v654, %v652
  %v731 = vpack.c.b16 %v657, %v655
  %v732 = vpack.c.b16 %v658, %v656
  %v733 = vpack.c.b16 %v661, %v659
  %v734 = vpack.c.b16 %v662, %v660
  %v735 = vpack.c.b16 %v665, %v663
  %v736 = vpack.c.b16 %v666, %v664
  %v737 = vpack.c.b16 %v669, %v667
  %v738 = vpack.c.b16 %v670, %v668
  %v739 = vpack.c.b16 %v673, %v671
  %v740 = vpack.c.b16 %v674, %v672
  %v741 = vpack.c.b16 %v677, %v675
  %v742 = vpack.c.b16 %v678, %v676
  %v799 = vunpack.c.l.b16 %v79
  %v800 = vunpack.c.l.b16 %v80
  %v801 = vunpack.c.l.b16 %v81
  %v802 = vunpack.c.l.b16 %v82
  %v803 = vunpack.c.l.b16 %v83
  %v804 = vunpack.c.l.b16 %v84
  %v805 = vunpack.c.l.b16 %v85
  %v806 = vunpack.c.l.b16 %v86
  %v807 = vunpack.c.l.b16 %v87
  %v808 = vunpack.c.l.b16 %v88
  %v809 = vunpack.c.l.b16 %v89
  %v810 = vunpack.c.l.b16 %v90
  %v811 = vunpack.c.l.b16 %v91
  %v812 = vunpack.c.l.b16 %v92
  %v813 = vunpack.c.l.b16 %v93
  %v814 = vunpack.c.l.b16 %v94
  %v815 = vunpack.c.l.b16 %v95
  %v816 = vunpack.c.l.b16 %v96
  %v817 = vunpack.c.l.b16 %v97
  %v818 = vunpack.c.l.b16 %v98
  %v819 = vunpack.c.l.b16 %v99
  %v820 = vunpack.c.l.b16 %v100
  %v821 = vunpack.c.l.b16 %v101
  %v822 = vunpack.c.l.b16 %v102
  %v823 = vpack.c.b16 %v800, %v799
  %v824 = vpack.c.b16 %v802, %v801
  %v825 = vpack.c.b16 %v804, %v803
  %v826 = vpack.c.b16 %v806, %v805
  %v827 = vpack.c.b16 %v808, %v807
  %v828 = vpack.c.b16 %v810, %v809
  %v829 = vpack.c.b16 %v812, %v811
  %v830 = vpack.c.b16 %v814, %v813
  %v831 = vpack.c.b16 %v816, %v815
  %v832 = vpack.c.b16 %v818, %v817
  %v833 = vpack.c.b16 %v820, %v819
  %v834 = vpack.c.b16 %v822, %v821
  %vm847 = vcmask 523264
  %v849 = vsel %vm847, %v680, 0
  %v852 = vsel %vm847, %v682, 0
  %v855 = vsel %vm847, %v684, 0
  %v858 = vsel %vm847, %v686, 0
  %v861 = vsel %vm847, %v688, 0
  %v864 = vsel %vm847, %v690, 0
  %v867 = vsel %vm847, %v692, 0
  %v870 = vsel %vm847, %v694, 0
  %v873 = vsel %vm847, %v696, 0
  %v876 = vsel %vm847, %v698, 0
  %v879 = vsel %vm847, %v700, 0
  %v882 = vsel %vm847, %v702, 0
  %v885 = vsel %vm847, %v704, 0
  %v888 = vsel %vm847, %v706, 0
  %v891 = vsel %vm847, %v708, 0
  %v894 = vsel %vm847, %v710, 0
  %v897 = vsel %vm847, %v712, 0
  %v900 = vsel %vm847, %v714, 0
  %v903 = vsel %vm847, %v716, 0
  %v906 = vsel %vm847, %v718, 0
  %v909 = vsel %vm847, %v720, 0
  %v912 = vsel %vm847, %v722, 0
  %v915 = vsel %vm847, %v724, 0
  %v918 = vsel %vm847, %v726, 0
  %v921 = vsel %vm847, %v728, 0
  %v924 = vsel %vm847, %v730, 0
  %v927 = vsel %vm847, %v732, 0
  %v930 = vsel %vm847, %v734, 0
  %v933 = vsel %vm847, %v736, 0
  %v936 = vsel %vm847, %v738, 0
  %v939 = vsel %vm847, %v740, 0
  %v942 = vsel %vm847, %v742, 0
  %944 = vmatprep.subr.bf16.mxu0 0
  %945 = vmatpush1.bf16.msra.mxu0 %v830
  %946 = vmatprep.subr.bf16.mxu0 0
  %947 = vmatpush1.bf16.msra.mxu0 %v829
  %948 = vmatprep.subr.bf16.mxu0 0
  %949 = vmatpush1.bf16.msra.mxu0 %v828
  %950 = vmatprep.subr.bf16.mxu0 0
  %951 = vmatpush1.bf16.msra.mxu0 %v827
  %952 = vmatprep.subr.bf16.mxu0 0
  %953 = vmatpush1.bf16.msra.mxu0 %v826
  %954 = vmatprep.subr.bf16.mxu0 0
  %955 = vmatpush1.bf16.msra.mxu0 %v825
  %956 = vmatprep.subr.bf16.mxu0 0
  %957 = vmatpush1.bf16.msra.mxu0 %v824
  %958 = vmatprep.subr.bf16.mxu0 0
  %959 = vmatpush1.bf16.msra.mxu0 %v823
  %960 = vmatprep.subr.bf16.mxu0 0
  %961 = vmatpush2.bf16.msra.mxu0 0
  %962 = vmatprep.subr.bf16.mxu0 0
  %963 = vmatpush2.bf16.msra.mxu0 0
  %964 = vmatprep.subr.bf16.mxu0 0
  %965 = vmatpush2.bf16.msra.mxu0 0
  %966 = vmatprep.subr.bf16.mxu0 0
  %967 = vmatpush2.bf16.msra.mxu0 0
  %968 = vmatprep.subr.bf16.mxu0 0
  %969 = vmatpush2.bf16.msra.mxu0 %v834
  %970 = vmatprep.subr.bf16.mxu0 0
  %971 = vmatpush2.bf16.msra.mxu0 %v833
  %972 = vmatprep.subr.bf16.mxu0 0
  %973 = vmatpush2.bf16.msra.mxu0 %v832
  %974 = vmatprep.subr.bf16.mxu0 0
  %975 = vmatpush2.bf16.msra.mxu0 %v831
  %976 = vmatprep.mubr.bf16.mxu0 %v849
  %977 = vmatmul.mubr.bf16.gmra.mxu0 %v679
  %v978 = vpop.f32.mrf.mxu0
  %v979 = vadd.f32 %v170, %v978
  %v980 = vpop.f32.mrf.mxu0
  %v981 = vpop.f32.mrf.mxu0
  %v982 = vadd.f32 %v175, %v981
  %v983 = vpop.f32.mrf.mxu0
  %984 = vmatprep.mubr.bf16.mxu0 %v852
  %985 = vmatmul.mubr.bf16.gmra.mxu0 %v681
  %v986 = vpop.f32.mrf.mxu0
  %v987 = vadd.f32 %v180, %v986
  %v988 = vpop.f32.mrf.mxu0
  %v989 = vpop.f32.mrf.mxu0
  %v990 = vadd.f32 %v185, %v989
  %v991 = vpop.f32.mrf.mxu0
  %992 = vmatprep.mubr.bf16.mxu0 %v855
  %993 = vmatmul.mubr.bf16.gmra.mxu0 %v683
  %v994 = vpop.f32.mrf.mxu0
  %v995 = vadd.f32 %v190, %v994
  %v996 = vpop.f32.mrf.mxu0
  %v997 = vpop.f32.mrf.mxu0
  %v998 = vadd.f32 %v195, %v997
  %v999 = vpop.f32.mrf.mxu0
  %1000 = vmatprep.mubr.bf16.mxu0 %v858
  %1001 = vmatmul.mubr.bf16.gmra.mxu0 %v685
  %v1002 = vpop.f32.mrf.mxu0
  %v1003 = vadd.f32 %v200, %v1002
  %v1004 = vpop.f32.mrf.mxu0
  %v1005 = vpop.f32.mrf.mxu0
  %v1006 = vadd.f32 %v205, %v1005
  %v1007 = vpop.f32.mrf.mxu0
  %1008 = vmatprep.mubr.bf16.mxu0 %v861
  %1009 = vmatmul.mubr.bf16.gmra.mxu0 %v687
  %v1010 = vpop.f32.mrf.mxu0
  %v1011 = vadd.f32 %v210, %v1010
  %v1012 = vpop.f32.mrf.mxu0
  %v1013 = vpop.f32.mrf.mxu0
  %v1014 = vadd.f32 %v215, %v1013
  %v1015 = vpop.f32.mrf.mxu0
  %1016 = vmatprep.mubr.bf16.mxu0 %v864
  %1017 = vmatmul.mubr.bf16.gmra.mxu0 %v689
  %v1018 = vpop.f32.mrf.mxu0
  %v1019 = vadd.f32 %v220, %v1018
  %v1020 = vpop.f32.mrf.mxu0
  %v1021 = vpop.f32.mrf.mxu0
  %v1022 = vadd.f32 %v225, %v1021
  %v1023 = vpop.f32.mrf.mxu0
  %1024 = vmatprep.mubr.bf16.mxu0 %v867
  %1025 = vmatmul.mubr.bf16.gmra.mxu0 %v691
  %v1026 = vpop.f32.mrf.mxu0
  %v1027 = vadd.f32 %v230, %v1026
  %v1028 = vpop.f32.mrf.mxu0
  %v1029 = vpop.f32.mrf.mxu0
  %v1030 = vadd.f32 %v235, %v1029
  %v1031 = vpop.f32.mrf.mxu0
  %1032 = vmatprep.mubr.bf16.mxu0 %v870
  %1033 = vmatmul.mubr.bf16.gmra.mxu0 %v693
  %v1034 = vpop.f32.mrf.mxu0
  %v1035 = vadd.f32 %v240, %v1034
  %v1036 = vpop.f32.mrf.mxu0
  %v1037 = vpop.f32.mrf.mxu0
  %v1038 = vadd.f32 %v245, %v1037
  %v1039 = vpop.f32.mrf.mxu0
  %1040 = vmatprep.mubr.bf16.mxu0 %v873
  %1041 = vmatmul.mubr.bf16.gmra.mxu0 %v695
  %v1042 = vpop.f32.mrf.mxu0
  %v1043 = vadd.f32 %v250, %v1042
  %v1044 = vpop.f32.mrf.mxu0
  %v1045 = vpop.f32.mrf.mxu0
  %v1046 = vadd.f32 %v255, %v1045
  %v1047 = vpop.f32.mrf.mxu0
  %1048 = vmatprep.mubr.bf16.mxu0 %v876
  %1049 = vmatmul.mubr.bf16.gmra.mxu0 %v697
  %v1050 = vpop.f32.mrf.mxu0
  %v1051 = vadd.f32 %v260, %v1050
  %v1052 = vpop.f32.mrf.mxu0
  %v1053 = vpop.f32.mrf.mxu0
  %v1054 = vadd.f32 %v265, %v1053
  %v1055 = vpop.f32.mrf.mxu0
  %1056 = vmatprep.mubr.bf16.mxu0 %v879
  %1057 = vmatmul.mubr.bf16.gmra.mxu0 %v699
  %v1058 = vpop.f32.mrf.mxu0
  %v1059 = vadd.f32 %v270, %v1058
  %v1060 = vpop.f32.mrf.mxu0
  %v1061 = vpop.f32.mrf.mxu0
  %v1062 = vadd.f32 %v275, %v1061
  %v1063 = vpop.f32.mrf.mxu0
  %1064 = vmatprep.mubr.bf16.mxu0 %v882
  %1065 = vmatmul.mubr.bf16.gmra.mxu0 %v701
  %v1066 = vpop.f32.mrf.mxu0
  %v1067 = vadd.f32 %v280, %v1066
  %v1068 = vpop.f32.mrf.mxu0
  %v1069 = vpop.f32.mrf.mxu0
  %v1070 = vadd.f32 %v285, %v1069
  %v1071 = vpop.f32.mrf.mxu0
  %1072 = vmatprep.mubr.bf16.mxu0 %v885
  %1073 = vmatmul.mubr.bf16.gmra.mxu0 %v703
  %v1074 = vpop.f32.mrf.mxu0
  %v1075 = vadd.f32 %v290, %v1074
  %v1076 = vpop.f32.mrf.mxu0
  %v1077 = vpop.f32.mrf.mxu0
  %v1078 = vadd.f32 %v295, %v1077
  %v1079 = vpop.f32.mrf.mxu0
  %1080 = vmatprep.mubr.bf16.mxu0 %v888
  %1081 = vmatmul.mubr.bf16.gmra.mxu0 %v705
  %v1082 = vpop.f32.mrf.mxu0
  %v1083 = vadd.f32 %v300, %v1082
  %v1084 = vpop.f32.mrf.mxu0
  %v1085 = vpop.f32.mrf.mxu0
  %v1086 = vadd.f32 %v305, %v1085
  %v1087 = vpop.f32.mrf.mxu0
  %1088 = vmatprep.mubr.bf16.mxu0 %v891
  %1089 = vmatmul.mubr.bf16.gmra.mxu0 %v707
  %v1090 = vpop.f32.mrf.mxu0
  %v1091 = vadd.f32 %v310, %v1090
  %v1092 = vpop.f32.mrf.mxu0
  %v1093 = vpop.f32.mrf.mxu0
  %v1094 = vadd.f32 %v315, %v1093
  %v1095 = vpop.f32.mrf.mxu0
  %1096 = vmatprep.mubr.bf16.mxu0 %v894
  %1097 = vmatmul.mubr.bf16.gmra.mxu0 %v709
  %v1098 = vpop.f32.mrf.mxu0
  %v1099 = vadd.f32 %v320, %v1098
  %v1100 = vpop.f32.mrf.mxu0
  %v1101 = vpop.f32.mrf.mxu0
  %v1102 = vadd.f32 %v325, %v1101
  %v1103 = vpop.f32.mrf.mxu0
  %1104 = vmatprep.mubr.bf16.mxu0 %v897
  %1105 = vmatmul.mubr.bf16.gmra.mxu0 %v711
  %v1106 = vpop.f32.mrf.mxu0
  %v1107 = vadd.f32 %v330, %v1106
  %v1108 = vpop.f32.mrf.mxu0
  %v1109 = vpop.f32.mrf.mxu0
  %v1110 = vadd.f32 %v335, %v1109
  %v1111 = vpop.f32.mrf.mxu0
  %1112 = vmatprep.mubr.bf16.mxu0 %v900
  %1113 = vmatmul.mubr.bf16.gmra.mxu0 %v713
  %v1114 = vpop.f32.mrf.mxu0
  %v1115 = vadd.f32 %v340, %v1114
  %v1116 = vpop.f32.mrf.mxu0
  %v1117 = vpop.f32.mrf.mxu0
  %v1118 = vadd.f32 %v345, %v1117
  %v1119 = vpop.f32.mrf.mxu0
  %1120 = vmatprep.mubr.bf16.mxu0 %v903
  %1121 = vmatmul.mubr.bf16.gmra.mxu0 %v715
  %v1122 = vpop.f32.mrf.mxu0
  %v1123 = vadd.f32 %v350, %v1122
  %v1124 = vpop.f32.mrf.mxu0
  %v1125 = vpop.f32.mrf.mxu0
  %v1126 = vadd.f32 %v355, %v1125
  %v1127 = vpop.f32.mrf.mxu0
  %1128 = vmatprep.mubr.bf16.mxu0 %v906
  %1129 = vmatmul.mubr.bf16.gmra.mxu0 %v717
  %v1130 = vpop.f32.mrf.mxu0
  %v1131 = vadd.f32 %v360, %v1130
  %v1132 = vpop.f32.mrf.mxu0
  %v1133 = vpop.f32.mrf.mxu0
  %v1134 = vadd.f32 %v365, %v1133
  %v1135 = vpop.f32.mrf.mxu0
  %1136 = vmatprep.mubr.bf16.mxu0 %v909
  %1137 = vmatmul.mubr.bf16.gmra.mxu0 %v719
  %v1138 = vpop.f32.mrf.mxu0
  %v1139 = vadd.f32 %v370, %v1138
  %v1140 = vpop.f32.mrf.mxu0
  %v1141 = vpop.f32.mrf.mxu0
  %v1142 = vadd.f32 %v375, %v1141
  %v1143 = vpop.f32.mrf.mxu0
  %1144 = vmatprep.mubr.bf16.mxu0 %v912
  %1145 = vmatmul.mubr.bf16.gmra.mxu0 %v721
  %v1146 = vpop.f32.mrf.mxu0
  %v1147 = vadd.f32 %v380, %v1146
  %v1148 = vpop.f32.mrf.mxu0
  %v1149 = vpop.f32.mrf.mxu0
  %v1150 = vadd.f32 %v385, %v1149
  %v1151 = vpop.f32.mrf.mxu0
  %1152 = vmatprep.mubr.bf16.mxu0 %v915
  %1153 = vmatmul.mubr.bf16.gmra.mxu0 %v723
  %v1154 = vpop.f32.mrf.mxu0
  %v1155 = vadd.f32 %v390, %v1154
  %v1156 = vpop.f32.mrf.mxu0
  %v1157 = vpop.f32.mrf.mxu0
  %v1158 = vadd.f32 %v395, %v1157
  %v1159 = vpop.f32.mrf.mxu0
  %1160 = vmatprep.mubr.bf16.mxu0 %v918
  %1161 = vmatmul.mubr.bf16.gmra.mxu0 %v725
  %v1162 = vpop.f32.mrf.mxu0
  %v1163 = vadd.f32 %v400, %v1162
  %v1164 = vpop.f32.mrf.mxu0
  %v1165 = vpop.f32.mrf.mxu0
  %v1166 = vadd.f32 %v405, %v1165
  %v1167 = vpop.f32.mrf.mxu0
  %1168 = vmatprep.mubr.bf16.mxu0 %v921
  %1169 = vmatmul.mubr.bf16.gmra.mxu0 %v727
  %v1170 = vpop.f32.mrf.mxu0
  %v1171 = vadd.f32 %v410, %v1170
  %v1172 = vpop.f32.mrf.mxu0
  %v1173 = vpop.f32.mrf.mxu0
  %v1174 = vadd.f32 %v415, %v1173
  %v1175 = vpop.f32.mrf.mxu0
  %1176 = vmatprep.mubr.bf16.mxu0 %v924
  %1177 = vmatmul.mubr.bf16.gmra.mxu0 %v729
  %v1178 = vpop.f32.mrf.mxu0
  %v1179 = vadd.f32 %v420, %v1178
  %v1180 = vpop.f32.mrf.mxu0
  %v1181 = vpop.f32.mrf.mxu0
  %v1182 = vadd.f32 %v425, %v1181
  %v1183 = vpop.f32.mrf.mxu0
  %1184 = vmatprep.mubr.bf16.mxu0 %v927
  %1185 = vmatmul.mubr.bf16.gmra.mxu0 %v731
  %v1186 = vpop.f32.mrf.mxu0
  %v1187 = vadd.f32 %v430, %v1186
  %v1188 = vpop.f32.mrf.mxu0
  %v1189 = vpop.f32.mrf.mxu0
  %v1190 = vadd.f32 %v435, %v1189
  %v1191 = vpop.f32.mrf.mxu0
  %1192 = vmatprep.mubr.bf16.mxu0 %v930
  %1193 = vmatmul.mubr.bf16.gmra.mxu0 %v733
  %v1194 = vpop.f32.mrf.mxu0
  %v1195 = vadd.f32 %v440, %v1194
  %v1196 = vpop.f32.mrf.mxu0
  %v1197 = vpop.f32.mrf.mxu0
  %v1198 = vadd.f32 %v445, %v1197
  %v1199 = vpop.f32.mrf.mxu0
  %1200 = vmatprep.mubr.bf16.mxu0 %v933
  %1201 = vmatmul.mubr.bf16.gmra.mxu0 %v735
  %v1202 = vpop.f32.mrf.mxu0
  %v1203 = vadd.f32 %v450, %v1202
  %v1204 = vpop.f32.mrf.mxu0
  %v1205 = vpop.f32.mrf.mxu0
  %v1206 = vadd.f32 %v455, %v1205
  %v1207 = vpop.f32.mrf.mxu0
  %1208 = vmatprep.mubr.bf16.mxu0 %v936
  %1209 = vmatmul.mubr.bf16.gmra.mxu0 %v737
  %v1210 = vpop.f32.mrf.mxu0
  %v1211 = vadd.f32 %v460, %v1210
  %v1212 = vpop.f32.mrf.mxu0
  %v1213 = vpop.f32.mrf.mxu0
  %v1214 = vadd.f32 %v465, %v1213
  %v1215 = vpop.f32.mrf.mxu0
  %1216 = vmatprep.mubr.bf16.mxu0 %v939
  %1217 = vmatmul.mubr.bf16.gmra.mxu0 %v739
  %v1218 = vpop.f32.mrf.mxu0
  %v1219 = vadd.f32 %v470, %v1218
  %v1220 = vpop.f32.mrf.mxu0
  %v1221 = vpop.f32.mrf.mxu0
  %v1222 = vadd.f32 %v475, %v1221
  %v1223 = vpop.f32.mrf.mxu0
  %1224 = vmatprep.mubr.bf16.mxu0 %v942
  %1225 = vmatmul.mubr.bf16.gmra.mxu0 %v741
  %v1226 = vpop.f32.mrf.mxu0
  %v1227 = vadd.f32 %v480, %v1226
  %v1228 = vpop.f32.mrf.mxu0
  %v1229 = vpop.f32.mrf.mxu0
  %v1230 = vadd.f32 %v485, %v1229
  %v1231 = vpop.f32.mrf.mxu0
  %1232 = vdwg.mxu0
  %v1233 = vmax.f32 %v979, 0.0
  %v1234 = vmax.f32 %v982, 0.0
  %v1235 = vmax.f32 %v987, 0.0
  %v1236 = vmax.f32 %v990, 0.0
  %v1237 = vmax.f32 %v995, 0.0
  %v1238 = vmax.f32 %v998, 0.0
  %v1239 = vmax.f32 %v1003, 0.0
  %v1240 = vmax.f32 %v1006, 0.0
  %v1241 = vmax.f32 %v1011, 0.0
  %v1242 = vmax.f32 %v1014, 0.0
  %v1243 = vmax.f32 %v1019, 0.0
  %v1244 = vmax.f32 %v1022, 0.0
  %v1245 = vmax.f32 %v1027, 0.0
  %v1246 = vmax.f32 %v1030, 0.0
  %v1247 = vmax.f32 %v1035, 0.0
  %v1248 = vmax.f32 %v1038, 0.0
  %v1249 = vmax.f32 %v1043, 0.0
  %v1250 = vmax.f32 %v1046, 0.0
  %v1251 = vmax.f32 %v1051, 0.0
  %v1252 = vmax.f32 %v1054, 0.0
  %v1253 = vmax.f32 %v1059, 0.0
  %v1254 = vmax.f32 %v1062, 0.0
  %v1255 = vmax.f32 %v1067, 0.0
  %v1256 = vmax.f32 %v1070, 0.0
  %v1257 = vmax.f32 %v1075, 0.0
  %v1258 = vmax.f32 %v1078, 0.0
  %v1259 = vmax.f32 %v1083, 0.0
  %v1260 = vmax.f32 %v1086, 0.0
  %v1261 = vmax.f32 %v1091, 0.0
  %v1262 = vmax.f32 %v1094, 0.0
  %v1263 = vmax.f32 %v1099, 0.0
  %v1264 = vmax.f32 %v1102, 0.0
  %v1265 = vmax.f32 %v1107, 0.0
  %v1266 = vmax.f32 %v1110, 0.0
  %v1267 = vmax.f32 %v1115, 0.0
  %v1268 = vmax.f32 %v1118, 0.0
  %v1269 = vmax.f32 %v1123, 0.0
  %v1270 = vmax.f32 %v1126, 0.0
  %v1271 = vmax.f32 %v1131, 0.0
  %v1272 = vmax.f32 %v1134, 0.0
  %v1273 = vmax.f32 %v1139, 0.0
  %v1274 = vmax.f32 %v1142, 0.0
  %v1275 = vmax.f32 %v1147, 0.0
  %v1276 = vmax.f32 %v1150, 0.0
  %v1277 = vmax.f32 %v1155, 0.0
  %v1278 = vmax.f32 %v1158, 0.0
  %v1279 = vmax.f32 %v1163, 0.0
  %v1280 = vmax.f32 %v1166, 0.0
  %v1281 = vmax.f32 %v1171, 0.0
  %v1282 = vmax.f32 %v1174, 0.0
  %v1283 = vmax.f32 %v1179, 0.0
  %v1284 = vmax.f32 %v1182, 0.0
  %v1285 = vmax.f32 %v1187, 0.0
  %v1286 = vmax.f32 %v1190, 0.0
  %v1287 = vmax.f32 %v1195, 0.0
  %v1288 = vmax.f32 %v1198, 0.0
  %v1289 = vmax.f32 %v1203, 0.0
  %v1290 = vmax.f32 %v1206, 0.0
  %v1291 = vmax.f32 %v1211, 0.0
  %v1292 = vmax.f32 %v1214, 0.0
  %v1293 = vmax.f32 %v1219, 0.0
  %v1294 = vmax.f32 %v1222, 0.0
  %v1295 = vmax.f32 %v1227, 0.0
  %v1296 = vmax.f32 %v1230, 0.0
  %vm1297 = vcmask 670720
  %1298 = vst.msk [vmem:[%s3] sm:$0xff] %vm1297, %v1233
  %1299 = vst.msk [vmem:[%s3 + $0x8] sm:$0xff] %vm1297, %v1234
  %1300 = vst.msk [vmem:[%s3 + $0x10] sm:$0xff] %vm1297, %v1235
  %1301 = vst.msk [vmem:[%s3 + $0x18] sm:$0xff] %vm1297, %v1236
  %1302 = vst.msk [vmem:[%s3 + $0x20] sm:$0xff] %vm1297, %v1237
  %1303 = vst.msk [vmem:[%s3 + $0x28] sm:$0xff] %vm1297, %v1238
  %1304 = vst.msk [vmem:[%s3 + $0x30] sm:$0xff] %vm1297, %v1239
  %1305 = vst.msk [vmem:[%s3 + $0x38] sm:$0xff] %vm1297, %v1240
  %1306 = vst.msk [vmem:[%s3 + $0x40] sm:$0xff] %vm1297, %v1241
  %1307 = vst.msk [vmem:[%s3 + $0x48] sm:$0xff] %vm1297, %v1242
  %1308 = vst.msk [vmem:[%s3 + $0x50] sm:$0xff] %vm1297, %v1243
  %1309 = vst.msk [vmem:[%s3 + $0x58] sm:$0xff] %vm1297, %v1244
  %1310 = vst.msk [vmem:[%s3 + $0x60] sm:$0xff] %vm1297, %v1245
  %1311 = vst.msk [vmem:[%s3 + $0x68] sm:$0xff] %vm1297, %v1246
  %1312 = vst.msk [vmem:[%s3 + $0x70] sm:$0xff] %vm1297, %v1247
  %1313 = vst.msk [vmem:[%s3 + $0x78] sm:$0xff] %vm1297, %v1248
  %1314 = vst.msk [vmem:[%s3 + $0x80] sm:$0xff] %vm1297, %v1249
  %1315 = vst.msk [vmem:[%s3 + $0x88] sm:$0xff] %vm1297, %v1250
  %1316 = vst.msk [vmem:[%s3 + $0x90] sm:$0xff] %vm1297, %v1251
  %1317 = vst.msk [vmem:[%s3 + $0x98] sm:$0xff] %vm1297, %v1252
  %1318 = vst.msk [vmem:[%s3 + $0xa0] sm:$0xff] %vm1297, %v1253
  %1319 = vst.msk [vmem:[%s3 + $0xa8] sm:$0xff] %vm1297, %v1254
  %1320 = vst.msk [vmem:[%s3 + $0xb0] sm:$0xff] %vm1297, %v1255
  %1321 = vst.msk [vmem:[%s3 + $0xb8] sm:$0xff] %vm1297, %v1256
  %1322 = vst.msk [vmem:[%s3 + $0xc0] sm:$0xff] %vm1297, %v1257
  %1323 = vst.msk [vmem:[%s3 + $0xc8] sm:$0xff] %vm1297, %v1258
  %1324 = vst.msk [vmem:[%s3 + $0xd0] sm:$0xff] %vm1297, %v1259
  %1325 = vst.msk [vmem:[%s3 + $0xd8] sm:$0xff] %vm1297, %v1260
  %1326 = vst.msk [vmem:[%s3 + $0xe0] sm:$0xff] %vm1297, %v1261
  %1327 = vst.msk [vmem:[%s3 + $0xe8] sm:$0xff] %vm1297, %v1262
  %1328 = vst.msk [vmem:[%s3 + $0xf0] sm:$0xff] %vm1297, %v1263
  %1329 = vst.msk [vmem:[%s3 + $0xf8] sm:$0xff] %vm1297, %v1264
  %1330 = vst.msk [vmem:[%s3 + $0x100] sm:$0xff] %vm1297, %v1265
  %1331 = vst.msk [vmem:[%s3 + $0x108] sm:$0xff] %vm1297, %v1266
  %1332 = vst.msk [vmem:[%s3 + $0x110] sm:$0xff] %vm1297, %v1267
  %1333 = vst.msk [vmem:[%s3 + $0x118] sm:$0xff] %vm1297, %v1268
  %1334 = vst.msk [vmem:[%s3 + $0x120] sm:$0xff] %vm1297, %v1269
  %1335 = vst.msk [vmem:[%s3 + $0x128] sm:$0xff] %vm1297, %v1270
  %1336 = vst.msk [vmem:[%s3 + $0x130] sm:$0xff] %vm1297, %v1271
  %1337 = vst.msk [vmem:[%s3 + $0x138] sm:$0xff] %vm1297, %v1272
  %1338 = vst.msk [vmem:[%s3 + $0x140] sm:$0xff] %vm1297, %v1273
  %1339 = vst.msk [vmem:[%s3 + $0x148] sm:$0xff] %vm1297, %v1274
  %1340 = vst.msk [vmem:[%s3 + $0x150] sm:$0xff] %vm1297, %v1275
  %1341 = vst.msk [vmem:[%s3 + $0x158] sm:$0xff] %vm1297, %v1276
  %1342 = vst.msk [vmem:[%s3 + $0x160] sm:$0xff] %vm1297, %v1277
  %1343 = vst.msk [vmem:[%s3 + $0x168] sm:$0xff] %vm1297, %v1278
  %1344 = vst.msk [vmem:[%s3 + $0x170] sm:$0xff] %vm1297, %v1279
  %1345 = vst.msk [vmem:[%s3 + $0x178] sm:$0xff] %vm1297, %v1280
  %1346 = vst.msk [vmem:[%s3 + $0x180] sm:$0xff] %vm1297, %v1281
  %1347 = vst.msk [vmem:[%s3 + $0x188] sm:$0xff] %vm1297, %v1282
  %1348 = vst.msk [vmem:[%s3 + $0x190] sm:$0xff] %vm1297, %v1283
  %1349 = vst.msk [vmem:[%s3 + $0x198] sm:$0xff] %vm1297, %v1284
  %1350 = vst.msk [vmem:[%s3 + $0x1a0] sm:$0xff] %vm1297, %v1285
  %1351 = vst.msk [vmem:[%s3 + $0x1a8] sm:$0xff] %vm1297, %v1286
  %1352 = vst.msk [vmem:[%s3 + $0x1b0] sm:$0xff] %vm1297, %v1287
  %1353 = vst.msk [vmem:[%s3 + $0x1b8] sm:$0xff] %vm1297, %v1288
  %1354 = vst.msk [vmem:[%s3 + $0x1c0] sm:$0xff] %vm1297, %v1289
  %1355 = vst.msk [vmem:[%s3 + $0x1c8] sm:$0xff] %vm1297, %v1290
  %1356 = vst.msk [vmem:[%s3 + $0x1d0] sm:$0xff] %vm1297, %v1291
  %1357 = vst.msk [vmem:[%s3 + $0x1d8] sm:$0xff] %vm1297, %v1292
  %1358 = vst.msk [vmem:[%s3 + $0x1e0] sm:$0xff] %vm1297, %v1293
  %1359 = vst.msk [vmem:[%s3 + $0x1e8] sm:$0xff] %vm1297, %v1294
  %1360 = vst.msk [vmem:[%s3 + $0x1f0] sm:$0xff] %vm1297, %v1295
  %1361 = vst.msk [vmem:[%s3 + $0x1f8] sm:$0xff] %vm1297, %v1296
  // Predicated region
  $region14: #{cnn1d_forward.16} parent=0 // pred_check
    _
  $region15: #{cnn1d_forward.16} parent=0 // pred_check_branch
    %1363 = sbr.rel (0) target = $region17
  $region16: #{cnn1d_forward.16} parent=0 // pred_region
    _
  $region17: #{cnn1d_forward.16} parent=0 // pred_fallthru
    _
  // Predicated region
  $region18: #{cnn1d_forward.16} parent=0 // pred_check
    _
  $region19: #{cnn1d_forward.16} parent=0 // pred_check_branch
    %1365 = sbr.rel (0) target = $region21
  $region20: #{cnn1d_forward.16} parent=0 // pred_region
    _
  $region21: #{cnn1d_forward.16} parent=0 // pred_fallthru
    _

// kernel: cnn1d_forward.17
$region0: #{cnn1d_forward.17}
  #allocation0 [shape = 'u32[]', space=smem, size = 0x4, offset = 0x4, fixed_abs, tag = 'smem constant byte address 0x4 - core index']
  #allocation1 [shape = 'u32[144,128]{1,0:T(1,128)}', space=vmem, size = 0x12000, scoped, tag = 'internal scratch']
  %s0 = inlined_call_operand.vmem [shape: f32[1024,20], index: 0, kind: input, shape index: {}]
  %s1 = inlined_call_operand.vmem [shape: f32[1024,20], index: 1, kind: input, shape index: {}]
  %s2 = inlined_call_operand.vmem [shape: f32[1024,20], index: 2, kind: input, shape index: {}]
  %s3 = inlined_call_operand.vmem [shape: f32[1024,20], index: 3, kind: output, shape index: {}]
  %s4 = sld [smem:[#allocation0]]
  $region22: #{cnn1d_forward.17} parent=0
    _
  %s6 = ssub.s32 1, %s4
  %s7 = scalar_select 0, %s6, %s4
  // Predicated region
  $region2: #{cnn1d_forward.17} parent=0 // pred_check
    _
  $region3: #{cnn1d_forward.17} parent=0 // pred_check_branch
    %9 = sbr.rel (0) target = $region5
  $region4: #{cnn1d_forward.17} parent=0 // pred_region
    _
  $region5: #{cnn1d_forward.17} parent=0 // pred_fallthru
    _
  // Predicated region
  $region6: #{cnn1d_forward.17} parent=0 // pred_check
    _
  $region7: #{cnn1d_forward.17} parent=0 // pred_check_branch
    %11 = sbr.rel (0) target = $region9
  $region8: #{cnn1d_forward.17} parent=0 // pred_region
    _
  $region9: #{cnn1d_forward.17} parent=0 // pred_fallthru
    _
  // Predicated region
  $region10: #{cnn1d_forward.17} parent=0 // pred_check
    _
  $region11: #{cnn1d_forward.17} parent=0 // pred_check_branch
    %13 = sbr.rel (0) target = $region13
  $region12: #{cnn1d_forward.17} parent=0 // pred_region
    _
  $region13: #{cnn1d_forward.17} parent=0 // pred_fallthru
    _
  %v14 = vld [vmem:[%s0] sm:$0xff]
  %v15 = vld [vmem:[%s0 + $0x8] sm:$0xff]
  %v16 = vld [vmem:[%s0 + $0x10] sm:$0xff]
  %v17 = vld [vmem:[%s0 + $0x18] sm:$0xff]
  %v18 = vld [vmem:[%s0 + $0x20] sm:$0xff]
  %v19 = vld [vmem:[%s0 + $0x28] sm:$0xff]
  %v20 = vld [vmem:[%s0 + $0x30] sm:$0xff]
  %v21 = vld [vmem:[%s0 + $0x38] sm:$0xff]
  %v22 = vld [vmem:[%s0 + $0x40] sm:$0xff]
  %v23 = vld [vmem:[%s0 + $0x48] sm:$0xff]
  %v24 = vld [vmem:[%s0 + $0x50] sm:$0xff]
  %v25 = vld [vmem:[%s0 + $0x58] sm:$0xff]
  %v26 = vld [vmem:[%s0 + $0x60] sm:$0xff]
  %v27 = vld [vmem:[%s0 + $0x68] sm:$0xff]
  %v28 = vld [vmem:[%s0 + $0x70] sm:$0xff]
  %v29 = vld [vmem:[%s0 + $0x78] sm:$0xff]
  %v30 = vld [vmem:[%s0 + $0x80] sm:$0xff]
  %v31 = vld [vmem:[%s0 + $0x88] sm:$0xff]
  %v32 = vld [vmem:[%s0 + $0x90] sm:$0xff]
  %v33 = vld [vmem:[%s0 + $0x98] sm:$0xff]
  %v34 = vld [vmem:[%s0 + $0xa0] sm:$0xff]
  %v35 = vld [vmem:[%s0 + $0xa8] sm:$0xff]
  %v36 = vld [vmem:[%s0 + $0xb0] sm:$0xff]
  %v37 = vld [vmem:[%s0 + $0xb8] sm:$0xff]
  %v38 = vld [vmem:[%s0 + $0xc0] sm:$0xff]
  %v39 = vld [vmem:[%s0 + $0xc8] sm:$0xff]
  %v40 = vld [vmem:[%s0 + $0xd0] sm:$0xff]
  %v41 = vld [vmem:[%s0 + $0xd8] sm:$0xff]
  %v42 = vld [vmem:[%s0 + $0xe0] sm:$0xff]
  %v43 = vld [vmem:[%s0 + $0xe8] sm:$0xff]
  %v44 = vld [vmem:[%s0 + $0xf0] sm:$0xff]
  %v45 = vld [vmem:[%s0 + $0xf8] sm:$0xff]
  %v46 = vld [vmem:[%s0 + $0x100] sm:$0xff]
  %v47 = vld [vmem:[%s0 + $0x108] sm:$0xff]
  %v48 = vld [vmem:[%s0 + $0x110] sm:$0xff]
  %v49 = vld [vmem:[%s0 + $0x118] sm:$0xff]
  %v50 = vld [vmem:[%s0 + $0x120] sm:$0xff]
  %v51 = vld [vmem:[%s0 + $0x128] sm:$0xff]
  %v52 = vld [vmem:[%s0 + $0x130] sm:$0xff]
  %v53 = vld [vmem:[%s0 + $0x138] sm:$0xff]
  %v54 = vld [vmem:[%s0 + $0x140] sm:$0xff]
  %v55 = vld [vmem:[%s0 + $0x148] sm:$0xff]
  %v56 = vld [vmem:[%s0 + $0x150] sm:$0xff]
  %v57 = vld [vmem:[%s0 + $0x158] sm:$0xff]
  %v58 = vld [vmem:[%s0 + $0x160] sm:$0xff]
  %v59 = vld [vmem:[%s0 + $0x168] sm:$0xff]
  %v60 = vld [vmem:[%s0 + $0x170] sm:$0xff]
  %v61 = vld [vmem:[%s0 + $0x178] sm:$0xff]
  %v62 = vld [vmem:[%s0 + $0x180] sm:$0xff]
  %v63 = vld [vmem:[%s0 + $0x188] sm:$0xff]
  %v64 = vld [vmem:[%s0 + $0x190] sm:$0xff]
  %v65 = vld [vmem:[%s0 + $0x198] sm:$0xff]
  %v66 = vld [vmem:[%s0 + $0x1a0] sm:$0xff]
  %v67 = vld [vmem:[%s0 + $0x1a8] sm:$0xff]
  %v68 = vld [vmem:[%s0 + $0x1b0] sm:$0xff]
  %v69 = vld [vmem:[%s0 + $0x1b8] sm:$0xff]
  %v70 = vld [vmem:[%s0 + $0x1c0] sm:$0xff]
  %v71 = vld [vmem:[%s0 + $0x1c8] sm:$0xff]
  %v72 = vld [vmem:[%s0 + $0x1d0] sm:$0xff]
  %v73 = vld [vmem:[%s0 + $0x1d8] sm:$0xff]
  %v74 = vld [vmem:[%s0 + $0x1e0] sm:$0xff]
  %v75 = vld [vmem:[%s0 + $0x1e8] sm:$0xff]
  %v76 = vld [vmem:[%s0 + $0x1f0] sm:$0xff]
  %v77 = vld [vmem:[%s0 + $0x1f8] sm:$0xff]
  %v78 = vld [vmem:[%s0 + $0x200] sm:$0xff]
  %v79 = vld [vmem:[%s0 + $0x208] sm:$0xff]
  %v80 = vld [vmem:[%s0 + $0x210] sm:$0xff]
  %v81 = vld [vmem:[%s0 + $0x218] sm:$0xff]
  %v82 = vld [vmem:[%s0 + $0x220] sm:$0xff]
  %v83 = vld [vmem:[%s0 + $0x228] sm:$0xff]
  %v84 = vld [vmem:[%s0 + $0x230] sm:$0xff]
  %v85 = vld [vmem:[%s0 + $0x238] sm:$0xff]
  %v86 = vld [vmem:[%s0 + $0x240] sm:$0xff]
  %v87 = vld [vmem:[%s0 + $0x248] sm:$0xff]
  %v88 = vld [vmem:[%s0 + $0x250] sm:$0xff]
  %v89 = vld [vmem:[%s0 + $0x258] sm:$0xff]
  %v90 = vld [vmem:[%s0 + $0x260] sm:$0xff]
  %v91 = vld [vmem:[%s0 + $0x268] sm:$0xff]
  %v92 = vld [vmem:[%s0 + $0x270] sm:$0xff]
  %v93 = vld [vmem:[%s0 + $0x278] sm:$0xff]
  %v94 = vld [vmem:[%s0 + $0x280] sm:$0xff]
  %v95 = vld [vmem:[%s0 + $0x288] sm:$0xff]
  %v96 = vld [vmem:[%s0 + $0x290] sm:$0xff]
  %v97 = vld [vmem:[%s0 + $0x298] sm:$0xff]
  %v98 = vld [vmem:[%s0 + $0x2a0] sm:$0xff]
  %v99 = vld [vmem:[%s0 + $0x2a8] sm:$0xff]
  %v100 = vld [vmem:[%s0 + $0x2b0] sm:$0xff]
  %v101 = vld [vmem:[%s0 + $0x2b8] sm:$0xff]
  %v102 = vld [vmem:[%s0 + $0x2c0] sm:$0xff]
  %v103 = vld [vmem:[%s0 + $0x2c8] sm:$0xff]
  %v104 = vld [vmem:[%s0 + $0x2d0] sm:$0xff]
  %v105 = vld [vmem:[%s0 + $0x2d8] sm:$0xff]
  %v106 = vld [vmem:[%s0 + $0x2e0] sm:$0xff]
  %v107 = vld [vmem:[%s0 + $0x2e8] sm:$0xff]
  %v108 = vld [vmem:[%s0 + $0x2f0] sm:$0xff]
  %v109 = vld [vmem:[%s0 + $0x2f8] sm:$0xff]
  %v110 = vld [vmem:[%s0 + $0x300] sm:$0xff]
  %v111 = vld [vmem:[%s0 + $0x308] sm:$0xff]
  %v112 = vld [vmem:[%s0 + $0x310] sm:$0xff]
  %v113 = vld [vmem:[%s0 + $0x318] sm:$0xff]
  %v114 = vld [vmem:[%s0 + $0x320] sm:$0xff]
  %v115 = vld [vmem:[%s0 + $0x328] sm:$0xff]
  %v116 = vld [vmem:[%s0 + $0x330] sm:$0xff]
  %v117 = vld [vmem:[%s0 + $0x338] sm:$0xff]
  %v118 = vld [vmem:[%s0 + $0x340] sm:$0xff]
  %v119 = vld [vmem:[%s0 + $0x348] sm:$0xff]
  %v120 = vld [vmem:[%s0 + $0x350] sm:$0xff]
  %v121 = vld [vmem:[%s0 + $0x358] sm:$0xff]
  %v122 = vld [vmem:[%s0 + $0x360] sm:$0xff]
  %v123 = vld [vmem:[%s0 + $0x368] sm:$0xff]
  %v124 = vld [vmem:[%s0 + $0x370] sm:$0xff]
  %v125 = vld [vmem:[%s0 + $0x378] sm:$0xff]
  %v126 = vld [vmem:[%s0 + $0x380] sm:$0xff]
  %v127 = vld [vmem:[%s0 + $0x388] sm:$0xff]
  %v128 = vld [vmem:[%s0 + $0x390] sm:$0xff]
  %v129 = vld [vmem:[%s0 + $0x398] sm:$0xff]
  %v130 = vld [vmem:[%s0 + $0x3a0] sm:$0xff]
  %v131 = vld [vmem:[%s0 + $0x3a8] sm:$0xff]
  %v132 = vld [vmem:[%s0 + $0x3b0] sm:$0xff]
  %v133 = vld [vmem:[%s0 + $0x3b8] sm:$0xff]
  %v134 = vld [vmem:[%s0 + $0x3c0] sm:$0xff]
  %v135 = vld [vmem:[%s0 + $0x3c8] sm:$0xff]
  %v136 = vld [vmem:[%s0 + $0x3d0] sm:$0xff]
  %v137 = vld [vmem:[%s0 + $0x3d8] sm:$0xff]
  %v138 = vld [vmem:[%s0 + $0x3e0] sm:$0xff]
  %v139 = vld [vmem:[%s0 + $0x3e8] sm:$0xff]
  %v140 = vld [vmem:[%s0 + $0x3f0] sm:$0xff]
  %v141 = vld [vmem:[%s0 + $0x3f8] sm:$0xff]
  %v142 = vld [vmem:[%s1] sm:$0xff]
  %v143 = vld [vmem:[%s1 + $0x8] sm:$0xff]
  %v144 = vld [vmem:[%s1 + $0x10] sm:$0xff]
  %v145 = vld [vmem:[%s1 + $0x18] sm:$0xff]
  %v146 = vld [vmem:[%s1 + $0x20] sm:$0xff]
  %v147 = vld [vmem:[%s1 + $0x28] sm:$0xff]
  %v148 = vld [vmem:[%s1 + $0x30] sm:$0xff]
  %v149 = vld [vmem:[%s1 + $0x38] sm:$0xff]
  %v150 = vld [vmem:[%s1 + $0x40] sm:$0xff]
  %v151 = vld [vmem:[%s1 + $0x48] sm:$0xff]
  %v152 = vld [vmem:[%s1 + $0x50] sm:$0xff]
  %v153 = vld [vmem:[%s1 + $0x58] sm:$0xff]
  %v154 = vld [vmem:[%s1 + $0x60] sm:$0xff]
  %v155 = vld [vmem:[%s1 + $0x68] sm:$0xff]
  %v156 = vld [vmem:[%s1 + $0x70] sm:$0xff]
  %v157 = vld [vmem:[%s1 + $0x78] sm:$0xff]
  %v158 = vld [vmem:[%s1 + $0x80] sm:$0xff]
  %v159 = vld [vmem:[%s1 + $0x88] sm:$0xff]
  %v160 = vld [vmem:[%s1 + $0x90] sm:$0xff]
  %v161 = vld [vmem:[%s1 + $0x98] sm:$0xff]
  %v162 = vld [vmem:[%s1 + $0xa0] sm:$0xff]
  %v163 = vld [vmem:[%s1 + $0xa8] sm:$0xff]
  %v164 = vld [vmem:[%s1 + $0xb0] sm:$0xff]
  %v165 = vld [vmem:[%s1 + $0xb8] sm:$0xff]
  %v166 = vld [vmem:[%s1 + $0xc0] sm:$0xff]
  %v167 = vld [vmem:[%s1 + $0xc8] sm:$0xff]
  %v168 = vld [vmem:[%s1 + $0xd0] sm:$0xff]
  %v169 = vld [vmem:[%s1 + $0xd8] sm:$0xff]
  %v170 = vld [vmem:[%s1 + $0xe0] sm:$0xff]
  %v171 = vld [vmem:[%s1 + $0xe8] sm:$0xff]
  %v172 = vld [vmem:[%s1 + $0xf0] sm:$0xff]
  %v173 = vld [vmem:[%s1 + $0xf8] sm:$0xff]
  %v174 = vld [vmem:[%s1 + $0x100] sm:$0xff]
  %v175 = vld [vmem:[%s1 + $0x108] sm:$0xff]
  %v176 = vld [vmem:[%s1 + $0x110] sm:$0xff]
  %v177 = vld [vmem:[%s1 + $0x118] sm:$0xff]
  %v178 = vld [vmem:[%s1 + $0x120] sm:$0xff]
  %v179 = vld [vmem:[%s1 + $0x128] sm:$0xff]
  %v180 = vld [vmem:[%s1 + $0x130] sm:$0xff]
  %v181 = vld [vmem:[%s1 + $0x138] sm:$0xff]
  %v182 = vld [vmem:[%s1 + $0x140] sm:$0xff]
  %v183 = vld [vmem:[%s1 + $0x148] sm:$0xff]
  %v184 = vld [vmem:[%s1 + $0x150] sm:$0xff]
  %v185 = vld [vmem:[%s1 + $0x158] sm:$0xff]
  %v186 = vld [vmem:[%s1 + $0x160] sm:$0xff]
  %v187 = vld [vmem:[%s1 + $0x168] sm:$0xff]
  %v188 = vld [vmem:[%s1 + $0x170] sm:$0xff]
  %v189 = vld [vmem:[%s1 + $0x178] sm:$0xff]
  %v190 = vld [vmem:[%s1 + $0x180] sm:$0xff]
  %v191 = vld [vmem:[%s1 + $0x188] sm:$0xff]
  %v192 = vld [vmem:[%s1 + $0x190] sm:$0xff]
  %v193 = vld [vmem:[%s1 + $0x198] sm:$0xff]
  %v194 = vld [vmem:[%s1 + $0x1a0] sm:$0xff]
  %v195 = vld [vmem:[%s1 + $0x1a8] sm:$0xff]
  %v196 = vld [vmem:[%s1 + $0x1b0] sm:$0xff]
  %v197 = vld [vmem:[%s1 + $0x1b8] sm:$0xff]
  %v198 = vld [vmem:[%s1 + $0x1c0] sm:$0xff]
  %v199 = vld [vmem:[%s1 + $0x1c8] sm:$0xff]
  %v200 = vld [vmem:[%s1 + $0x1d0] sm:$0xff]
  %v201 = vld [vmem:[%s1 + $0x1d8] sm:$0xff]
  %v202 = vld [vmem:[%s1 + $0x1e0] sm:$0xff]
  %v203 = vld [vmem:[%s1 + $0x1e8] sm:$0xff]
  %v204 = vld [vmem:[%s1 + $0x1f0] sm:$0xff]
  %v205 = vld [vmem:[%s1 + $0x1f8] sm:$0xff]
  %v206 = vld [vmem:[%s1 + $0x200] sm:$0xff]
  %v207 = vld [vmem:[%s1 + $0x208] sm:$0xff]
  %v208 = vld [vmem:[%s1 + $0x210] sm:$0xff]
  %v209 = vld [vmem:[%s1 + $0x218] sm:$0xff]
  %v210 = vld [vmem:[%s1 + $0x220] sm:$0xff]
  %v211 = vld [vmem:[%s1 + $0x228] sm:$0xff]
  %v212 = vld [vmem:[%s1 + $0x230] sm:$0xff]
  %v213 = vld [vmem:[%s1 + $0x238] sm:$0xff]
  %v214 = vld [vmem:[%s1 + $0x240] sm:$0xff]
  %v215 = vld [vmem:[%s1 + $0x248] sm:$0xff]
  %v216 = vld [vmem:[%s1 + $0x250] sm:$0xff]
  %v217 = vld [vmem:[%s1 + $0x258] sm:$0xff]
  %v218 = vld [vmem:[%s1 + $0x260] sm:$0xff]
  %v219 = vld [vmem:[%s1 + $0x268] sm:$0xff]
  %v220 = vld [vmem:[%s1 + $0x270] sm:$0xff]
  %v221 = vld [vmem:[%s1 + $0x278] sm:$0xff]
  %v222 = vld [vmem:[%s1 + $0x280] sm:$0xff]
  %v223 = vld [vmem:[%s1 + $0x288] sm:$0xff]
  %v224 = vld [vmem:[%s1 + $0x290] sm:$0xff]
  %v225 = vld [vmem:[%s1 + $0x298] sm:$0xff]
  %v226 = vld [vmem:[%s1 + $0x2a0] sm:$0xff]
  %v227 = vld [vmem:[%s1 + $0x2a8] sm:$0xff]
  %v228 = vld [vmem:[%s1 + $0x2b0] sm:$0xff]
  %v229 = vld [vmem:[%s1 + $0x2b8] sm:$0xff]
  %v230 = vld [vmem:[%s1 + $0x2c0] sm:$0xff]
  %v231 = vld [vmem:[%s1 + $0x2c8] sm:$0xff]
  %v232 = vld [vmem:[%s1 + $0x2d0] sm:$0xff]
  %v233 = vld [vmem:[%s1 + $0x2d8] sm:$0xff]
  %v234 = vld [vmem:[%s1 + $0x2e0] sm:$0xff]
  %v235 = vld [vmem:[%s1 + $0x2e8] sm:$0xff]
  %v236 = vld [vmem:[%s1 + $0x2f0] sm:$0xff]
  %v237 = vld [vmem:[%s1 + $0x2f8] sm:$0xff]
  %v238 = vld [vmem:[%s1 + $0x300] sm:$0xff]
  %v239 = vld [vmem:[%s1 + $0x308] sm:$0xff]
  %v240 = vld [vmem:[%s1 + $0x310] sm:$0xff]
  %v241 = vld [vmem:[%s1 + $0x318] sm:$0xff]
  %v242 = vld [vmem:[%s1 + $0x320] sm:$0xff]
  %v243 = vld [vmem:[%s1 + $0x328] sm:$0xff]
  %v244 = vld [vmem:[%s1 + $0x330] sm:$0xff]
  %v245 = vld [vmem:[%s1 + $0x338] sm:$0xff]
  %v246 = vld [vmem:[%s1 + $0x340] sm:$0xff]
  %v247 = vld [vmem:[%s1 + $0x348] sm:$0xff]
  %v248 = vld [vmem:[%s1 + $0x350] sm:$0xff]
  %v249 = vld [vmem:[%s1 + $0x358] sm:$0xff]
  %v250 = vld [vmem:[%s1 + $0x360] sm:$0xff]
  %v251 = vld [vmem:[%s1 + $0x368] sm:$0xff]
  %v252 = vld [vmem:[%s1 + $0x370] sm:$0xff]
  %v253 = vld [vmem:[%s1 + $0x378] sm:$0xff]
  %v254 = vld [vmem:[%s1 + $0x380] sm:$0xff]
  %v255 = vld [vmem:[%s1 + $0x388] sm:$0xff]
  %v256 = vld [vmem:[%s1 + $0x390] sm:$0xff]
  %v257 = vld [vmem:[%s1 + $0x398] sm:$0xff]
  %v258 = vld [vmem:[%s1 + $0x3a0] sm:$0xff]
  %v259 = vld [vmem:[%s1 + $0x3a8] sm:$0xff]
  %v260 = vld [vmem:[%s1 + $0x3b0] sm:$0xff]
  %v261 = vld [vmem:[%s1 + $0x3b8] sm:$0xff]
  %v262 = vld [vmem:[%s1 + $0x3c0] sm:$0xff]
  %v263 = vld [vmem:[%s1 + $0x3c8] sm:$0xff]
  %v264 = vld [vmem:[%s1 + $0x3d0] sm:$0xff]
  %v265 = vld [vmem:[%s1 + $0x3d8] sm:$0xff]
  %v266 = vld [vmem:[%s1 + $0x3e0] sm:$0xff]
  %v267 = vld [vmem:[%s1 + $0x3e8] sm:$0xff]
  %v268 = vld [vmem:[%s1 + $0x3f0] sm:$0xff]
  %v269 = vld [vmem:[%s1 + $0x3f8] sm:$0xff]
  %v270 = vmax.f32 %v14, %v142
  %v271 = vmax.f32 %v15, %v143
  %v272 = vmax.f32 %v16, %v144
  %v273 = vmax.f32 %v17, %v145
  %v274 = vmax.f32 %v18, %v146
  %v275 = vmax.f32 %v19, %v147
  %v276 = vmax.f32 %v20, %v148
  %v277 = vmax.f32 %v21, %v149
  %v278 = vmax.f32 %v22, %v150
  %v279 = vmax.f32 %v23, %v151
  %v280 = vmax.f32 %v24, %v152
  %v281 = vmax.f32 %v25, %v153
  %v282 = vmax.f32 %v26, %v154
  %v283 = vmax.f32 %v27, %v155
  %v284 = vmax.f32 %v28, %v156
  %v285 = vmax.f32 %v29, %v157
  %v286 = vmax.f32 %v30, %v158
  %v287 = vmax.f32 %v31, %v159
  %v288 = vmax.f32 %v32, %v160
  %v289 = vmax.f32 %v33, %v161
  %v290 = vmax.f32 %v34, %v162
  %v291 = vmax.f32 %v35, %v163
  %v292 = vmax.f32 %v36, %v164
  %v293 = vmax.f32 %v37, %v165
  %v294 = vmax.f32 %v38, %v166
  %v295 = vmax.f32 %v39, %v167
  %v296 = vmax.f32 %v40, %v168
  %v297 = vmax.f32 %v41, %v169
  %v298 = vmax.f32 %v42, %v170
  %v299 = vmax.f32 %v43, %v171
  %v300 = vmax.f32 %v44, %v172
  %v301 = vmax.f32 %v45, %v173
  %v302 = vmax.f32 %v46, %v174
  %v303 = vmax.f32 %v47, %v175
  %v304 = vmax.f32 %v48, %v176
  %v305 = vmax.f32 %v49, %v177
  %v306 = vmax.f32 %v50, %v178
  %v307 = vmax.f32 %v51, %v179
  %v308 = vmax.f32 %v52, %v180
  %v309 = vmax.f32 %v53, %v181
  %v310 = vmax.f32 %v54, %v182
  %v311 = vmax.f32 %v55, %v183
  %v312 = vmax.f32 %v56, %v184
  %v313 = vmax.f32 %v57, %v185
  %v314 = vmax.f32 %v58, %v186
  %v315 = vmax.f32 %v59, %v187
  %v316 = vmax.f32 %v60, %v188
  %v317 = vmax.f32 %v61, %v189
  %v318 = vmax.f32 %v62, %v190
  %v319 = vmax.f32 %v63, %v191
  %v320 = vmax.f32 %v64, %v192
  %v321 = vmax.f32 %v65, %v193
  %v322 = vmax.f32 %v66, %v194
  %v323 = vmax.f32 %v67, %v195
  %v324 = vmax.f32 %v68, %v196
  %v325 = vmax.f32 %v69, %v197
  %v326 = vmax.f32 %v70, %v198
  %v327 = vmax.f32 %v71, %v199
  %v328 = vmax.f32 %v72, %v200
  %v329 = vmax.f32 %v73, %v201
  %v330 = vmax.f32 %v74, %v202
  %v331 = vmax.f32 %v75, %v203
  %v332 = vmax.f32 %v76, %v204
  %v333 = vmax.f32 %v77, %v205
  %v334 = vmax.f32 %v78, %v206
  %v335 = vmax.f32 %v79, %v207
  %v336 = vmax.f32 %v80, %v208
  %v337 = vmax.f32 %v81, %v209
  %v338 = vmax.f32 %v82, %v210
  %v339 = vmax.f32 %v83, %v211
  %v340 = vmax.f32 %v84, %v212
  %v341 = vmax.f32 %v85, %v213
  %v342 = vmax.f32 %v86, %v214
  %v343 = vmax.f32 %v87, %v215
  %v344 = vmax.f32 %v88, %v216
  %v345 = vmax.f32 %v89, %v217
  %v346 = vmax.f32 %v90, %v218
  %v347 = vmax.f32 %v91, %v219
  %v348 = vmax.f32 %v92, %v220
  %v349 = vmax.f32 %v93, %v221
  %v350 = vmax.f32 %v94, %v222
  %v351 = vmax.f32 %v95, %v223
  %v352 = vmax.f32 %v96, %v224
  %v353 = vmax.f32 %v97, %v225
  %v354 = vmax.f32 %v98, %v226
  %v355 = vmax.f32 %v99, %v227
  %v356 = vmax.f32 %v100, %v228
  %v357 = vmax.f32 %v101, %v229
  %v358 = vmax.f32 %v102, %v230
  %v359 = vmax.f32 %v103, %v231
  %v360 = vmax.f32 %v104, %v232
  %v361 = vmax.f32 %v105, %v233
  %v362 = vmax.f32 %v106, %v234
  %v363 = vmax.f32 %v107, %v235
  %v364 = vmax.f32 %v108, %v236
  %v365 = vmax.f32 %v109, %v237
  %v366 = vmax.f32 %v110, %v238
  %v367 = vmax.f32 %v111, %v239
  %v368 = vmax.f32 %v112, %v240
  %v369 = vmax.f32 %v113, %v241
  %v370 = vmax.f32 %v114, %v242
  %v371 = vmax.f32 %v115, %v243
  %v372 = vmax.f32 %v116, %v244
  %v373 = vmax.f32 %v117, %v245
  %v374 = vmax.f32 %v118, %v246
  %v375 = vmax.f32 %v119, %v247
  %v376 = vmax.f32 %v120, %v248
  %v377 = vmax.f32 %v121, %v249
  %v378 = vmax.f32 %v122, %v250
  %v379 = vmax.f32 %v123, %v251
  %v380 = vmax.f32 %v124, %v252
  %v381 = vmax.f32 %v125, %v253
  %v382 = vmax.f32 %v126, %v254
  %v383 = vmax.f32 %v127, %v255
  %v384 = vmax.f32 %v128, %v256
  %v385 = vmax.f32 %v129, %v257
  %v386 = vmax.f32 %v130, %v258
  %v387 = vmax.f32 %v131, %v259
  %v388 = vmax.f32 %v132, %v260
  %v389 = vmax.f32 %v133, %v261
  %v390 = vmax.f32 %v134, %v262
  %v391 = vmax.f32 %v135, %v263
  %v392 = vmax.f32 %v136, %v264
  %v393 = vmax.f32 %v137, %v265
  %v394 = vmax.f32 %v138, %v266
  %v395 = vmax.f32 %v139, %v267
  %v396 = vmax.f32 %v140, %v268
  %v397 = vmax.f32 %v141, %v269
  %v398 = vld [vmem:[%s2] sm:$0xff]
  %v399 = vld [vmem:[%s2 + $0x8] sm:$0xff]
  %v400 = vld [vmem:[%s2 + $0x10] sm:$0xff]
  %v401 = vld [vmem:[%s2 + $0x18] sm:$0xff]
  %v402 = vld [vmem:[%s2 + $0x20] sm:$0xff]
  %v403 = vld [vmem:[%s2 + $0x28] sm:$0xff]
  %v404 = vld [vmem:[%s2 + $0x30] sm:$0xff]
  %v405 = vld [vmem:[%s2 + $0x38] sm:$0xff]
  %v406 = vld [vmem:[%s2 + $0x40] sm:$0xff]
  %v407 = vld [vmem:[%s2 + $0x48] sm:$0xff]
  %v408 = vld [vmem:[%s2 + $0x50] sm:$0xff]
  %v409 = vld [vmem:[%s2 + $0x58] sm:$0xff]
  %v410 = vld [vmem:[%s2 + $0x60] sm:$0xff]
  %v411 = vld [vmem:[%s2 + $0x68] sm:$0xff]
  %v412 = vld [vmem:[%s2 + $0x70] sm:$0xff]
  %v413 = vld [vmem:[%s2 + $0x78] sm:$0xff]
  %v414 = vld [vmem:[%s2 + $0x80] sm:$0xff]
  %v415 = vld [vmem:[%s2 + $0x88] sm:$0xff]
  %v416 = vld [vmem:[%s2 + $0x90] sm:$0xff]
  %v417 = vld [vmem:[%s2 + $0x98] sm:$0xff]
  %v418 = vld [vmem:[%s2 + $0xa0] sm:$0xff]
  %v419 = vld [vmem:[%s2 + $0xa8] sm:$0xff]
  %v420 = vld [vmem:[%s2 + $0xb0] sm:$0xff]
  %v421 = vld [vmem:[%s2 + $0xb8] sm:$0xff]
  %v422 = vld [vmem:[%s2 + $0xc0] sm:$0xff]
  %v423 = vld [vmem:[%s2 + $0xc8] sm:$0xff]
  %v424 = vld [vmem:[%s2 + $0xd0] sm:$0xff]
  %v425 = vld [vmem:[%s2 + $0xd8] sm:$0xff]
  %v426 = vld [vmem:[%s2 + $0xe0] sm:$0xff]
  %v427 = vld [vmem:[%s2 + $0xe8] sm:$0xff]
  %v428 = vld [vmem:[%s2 + $0xf0] sm:$0xff]
  %v429 = vld [vmem:[%s2 + $0xf8] sm:$0xff]
  %v430 = vld [vmem:[%s2 + $0x100] sm:$0xff]
  %v431 = vld [vmem:[%s2 + $0x108] sm:$0xff]
  %v432 = vld [vmem:[%s2 + $0x110] sm:$0xff]
  %v433 = vld [vmem:[%s2 + $0x118] sm:$0xff]
  %v434 = vld [vmem:[%s2 + $0x120] sm:$0xff]
  %v435 = vld [vmem:[%s2 + $0x128] sm:$0xff]
  %v436 = vld [vmem:[%s2 + $0x130] sm:$0xff]
  %v437 = vld [vmem:[%s2 + $0x138] sm:$0xff]
  %v438 = vld [vmem:[%s2 + $0x140] sm:$0xff]
  %v439 = vld [vmem:[%s2 + $0x148] sm:$0xff]
  %v440 = vld [vmem:[%s2 + $0x150] sm:$0xff]
  %v441 = vld [vmem:[%s2 + $0x158] sm:$0xff]
  %v442 = vld [vmem:[%s2 + $0x160] sm:$0xff]
  %v443 = vld [vmem:[%s2 + $0x168] sm:$0xff]
  %v444 = vld [vmem:[%s2 + $0x170] sm:$0xff]
  %v445 = vld [vmem:[%s2 + $0x178] sm:$0xff]
  %v446 = vld [vmem:[%s2 + $0x180] sm:$0xff]
  %v447 = vld [vmem:[%s2 + $0x188] sm:$0xff]
  %v448 = vld [vmem:[%s2 + $0x190] sm:$0xff]
  %v449 = vld [vmem:[%s2 + $0x198] sm:$0xff]
  %v450 = vld [vmem:[%s2 + $0x1a0] sm:$0xff]
  %v451 = vld [vmem:[%s2 + $0x1a8] sm:$0xff]
  %v452 = vld [vmem:[%s2 + $0x1b0] sm:$0xff]
  %v453 = vld [vmem:[%s2 + $0x1b8] sm:$0xff]
  %v454 = vld [vmem:[%s2 + $0x1c0] sm:$0xff]
  %v455 = vld [vmem:[%s2 + $0x1c8] sm:$0xff]
  %v456 = vld [vmem:[%s2 + $0x1d0] sm:$0xff]
  %v457 = vld [vmem:[%s2 + $0x1d8] sm:$0xff]
  %v458 = vld [vmem:[%s2 + $0x1e0] sm:$0xff]
  %v459 = vld [vmem:[%s2 + $0x1e8] sm:$0xff]
  %v460 = vld [vmem:[%s2 + $0x1f0] sm:$0xff]
  %v461 = vld [vmem:[%s2 + $0x1f8] sm:$0xff]
  %v462 = vld [vmem:[%s2 + $0x200] sm:$0xff]
  %v463 = vld [vmem:[%s2 + $0x208] sm:$0xff]
  %v464 = vld [vmem:[%s2 + $0x210] sm:$0xff]
  %v465 = vld [vmem:[%s2 + $0x218] sm:$0xff]
  %v466 = vld [vmem:[%s2 + $0x220] sm:$0xff]
  %v467 = vld [vmem:[%s2 + $0x228] sm:$0xff]
  %v468 = vld [vmem:[%s2 + $0x230] sm:$0xff]
  %v469 = vld [vmem:[%s2 + $0x238] sm:$0xff]
  %v470 = vld [vmem:[%s2 + $0x240] sm:$0xff]
  %v471 = vld [vmem:[%s2 + $0x248] sm:$0xff]
  %v472 = vld [vmem:[%s2 + $0x250] sm:$0xff]
  %v473 = vld [vmem:[%s2 + $0x258] sm:$0xff]
  %v474 = vld [vmem:[%s2 + $0x260] sm:$0xff]
  %v475 = vld [vmem:[%s2 + $0x268] sm:$0xff]
  %v476 = vld [vmem:[%s2 + $0x270] sm:$0xff]
  %v477 = vld [vmem:[%s2 + $0x278] sm:$0xff]
  %v478 = vld [vmem:[%s2 + $0x280] sm:$0xff]
  %v479 = vld [vmem:[%s2 + $0x288] sm:$0xff]
  %v480 = vld [vmem:[%s2 + $0x290] sm:$0xff]
  %v481 = vld [vmem:[%s2 + $0x298] sm:$0xff]
  %v482 = vld [vmem:[%s2 + $0x2a0] sm:$0xff]
  %v483 = vld [vmem:[%s2 + $0x2a8] sm:$0xff]
  %v484 = vld [vmem:[%s2 + $0x2b0] sm:$0xff]
  %v485 = vld [vmem:[%s2 + $0x2b8] sm:$0xff]
  %v486 = vld [vmem:[%s2 + $0x2c0] sm:$0xff]
  %v487 = vld [vmem:[%s2 + $0x2c8] sm:$0xff]
  %v488 = vld [vmem:[%s2 + $0x2d0] sm:$0xff]
  %v489 = vld [vmem:[%s2 + $0x2d8] sm:$0xff]
  %v490 = vld [vmem:[%s2 + $0x2e0] sm:$0xff]
  %v491 = vld [vmem:[%s2 + $0x2e8] sm:$0xff]
  %v492 = vld [vmem:[%s2 + $0x2f0] sm:$0xff]
  %v493 = vld [vmem:[%s2 + $0x2f8] sm:$0xff]
  %v494 = vld [vmem:[%s2 + $0x300] sm:$0xff]
  %v495 = vld [vmem:[%s2 + $0x308] sm:$0xff]
  %v496 = vld [vmem:[%s2 + $0x310] sm:$0xff]
  %v497 = vld [vmem:[%s2 + $0x318] sm:$0xff]
  %v498 = vld [vmem:[%s2 + $0x320] sm:$0xff]
  %v499 = vld [vmem:[%s2 + $0x328] sm:$0xff]
  %v500 = vld [vmem:[%s2 + $0x330] sm:$0xff]
  %v501 = vld [vmem:[%s2 + $0x338] sm:$0xff]
  %v502 = vld [vmem:[%s2 + $0x340] sm:$0xff]
  %v503 = vld [vmem:[%s2 + $0x348] sm:$0xff]
  %v504 = vld [vmem:[%s2 + $0x350] sm:$0xff]
  %v505 = vld [vmem:[%s2 + $0x358] sm:$0xff]
  %v506 = vld [vmem:[%s2 + $0x360] sm:$0xff]
  %v507 = vld [vmem:[%s2 + $0x368] sm:$0xff]
  %v508 = vld [vmem:[%s2 + $0x370] sm:$0xff]
  %v509 = vld [vmem:[%s2 + $0x378] sm:$0xff]
  %v510 = vld [vmem:[%s2 + $0x380] sm:$0xff]
  %v511 = vld [vmem:[%s2 + $0x388] sm:$0xff]
  %v512 = vld [vmem:[%s2 + $0x390] sm:$0xff]
  %v513 = vld [vmem:[%s2 + $0x398] sm:$0xff]
  %v514 = vld [vmem:[%s2 + $0x3a0] sm:$0xff]
  %v515 = vld [vmem:[%s2 + $0x3a8] sm:$0xff]
  %v516 = vld [vmem:[%s2 + $0x3b0] sm:$0xff]
  %v517 = vld [vmem:[%s2 + $0x3b8] sm:$0xff]
  %v518 = vld [vmem:[%s2 + $0x3c0] sm:$0xff]
  %v519 = vld [vmem:[%s2 + $0x3c8] sm:$0xff]
  %v520 = vld [vmem:[%s2 + $0x3d0] sm:$0xff]
  %v521 = vld [vmem:[%s2 + $0x3d8] sm:$0xff]
  %v522 = vld [vmem:[%s2 + $0x3e0] sm:$0xff]
  %v523 = vld [vmem:[%s2 + $0x3e8] sm:$0xff]
  %v524 = vld [vmem:[%s2 + $0x3f0] sm:$0xff]
  %v525 = vld [vmem:[%s2 + $0x3f8] sm:$0xff]
  %v526 = vmax.f32 %v270, %v398
  %v527 = vmax.f32 %v271, %v399
  %v528 = vmax.f32 %v272, %v400
  %v529 = vmax.f32 %v273, %v401
  %v530 = vmax.f32 %v274, %v402
  %v531 = vmax.f32 %v275, %v403
  %v532 = vmax.f32 %v276, %v404
  %v533 = vmax.f32 %v277, %v405
  %v534 = vmax.f32 %v278, %v406
  %v535 = vmax.f32 %v279, %v407
  %v536 = vmax.f32 %v280, %v408
  %v537 = vmax.f32 %v281, %v409
  %v538 = vmax.f32 %v282, %v410
  %v539 = vmax.f32 %v283, %v411
  %v540 = vmax.f32 %v284, %v412
  %v541 = vmax.f32 %v285, %v413
  %v542 = vmax.f32 %v286, %v414
  %v543 = vmax.f32 %v287, %v415
  %v544 = vmax.f32 %v288, %v416
  %v545 = vmax.f32 %v289, %v417
  %v546 = vmax.f32 %v290, %v418
  %v547 = vmax.f32 %v291, %v419
  %v548 = vmax.f32 %v292, %v420
  %v549 = vmax.f32 %v293, %v421
  %v550 = vmax.f32 %v294, %v422
  %v551 = vmax.f32 %v295, %v423
  %v552 = vmax.f32 %v296, %v424
  %v553 = vmax.f32 %v297, %v425
  %v554 = vmax.f32 %v298, %v426
  %v555 = vmax.f32 %v299, %v427
  %v556 = vmax.f32 %v300, %v428
  %v557 = vmax.f32 %v301, %v429
  %v558 = vmax.f32 %v302, %v430
  %v559 = vmax.f32 %v303, %v431
  %v560 = vmax.f32 %v304, %v432
  %v561 = vmax.f32 %v305, %v433
  %v562 = vmax.f32 %v306, %v434
  %v563 = vmax.f32 %v307, %v435
  %v564 = vmax.f32 %v308, %v436
  %v565 = vmax.f32 %v309, %v437
  %v566 = vmax.f32 %v310, %v438
  %v567 = vmax.f32 %v311, %v439
  %v568 = vmax.f32 %v312, %v440
  %v569 = vmax.f32 %v313, %v441
  %v570 = vmax.f32 %v314, %v442
  %v571 = vmax.f32 %v315, %v443
  %v572 = vmax.f32 %v316, %v444
  %v573 = vmax.f32 %v317, %v445
  %v574 = vmax.f32 %v318, %v446
  %v575 = vmax.f32 %v319, %v447
  %v576 = vmax.f32 %v320, %v448
  %v577 = vmax.f32 %v321, %v449
  %v578 = vmax.f32 %v322, %v450
  %v579 = vmax.f32 %v323, %v451
  %v580 = vmax.f32 %v324, %v452
  %v581 = vmax.f32 %v325, %v453
  %v582 = vmax.f32 %v326, %v454
  %v583 = vmax.f32 %v327, %v455
  %v584 = vmax.f32 %v328, %v456
  %v585 = vmax.f32 %v329, %v457
  %v586 = vmax.f32 %v330, %v458
  %v587 = vmax.f32 %v331, %v459
  %v588 = vmax.f32 %v332, %v460
  %v589 = vmax.f32 %v333, %v461
  %v590 = vmax.f32 %v334, %v462
  %v591 = vmax.f32 %v335, %v463
  %v592 = vmax.f32 %v336, %v464
  %v593 = vmax.f32 %v337, %v465
  %v594 = vmax.f32 %v338, %v466
  %v595 = vmax.f32 %v339, %v467
  %v596 = vmax.f32 %v340, %v468
  %v597 = vmax.f32 %v341, %v469
  %v598 = vmax.f32 %v342, %v470
  %v599 = vmax.f32 %v343, %v471
  %v600 = vmax.f32 %v344, %v472
  %v601 = vmax.f32 %v345, %v473
  %v602 = vmax.f32 %v346, %v474
  %v603 = vmax.f32 %v347, %v475
  %v604 = vmax.f32 %v348, %v476
  %v605 = vmax.f32 %v349, %v477
  %v606 = vmax.f32 %v350, %v478
  %v607 = vmax.f32 %v351, %v479
  %v608 = vmax.f32 %v352, %v480
  %v609 = vmax.f32 %v353, %v481
  %v610 = vmax.f32 %v354, %v482
  %v611 = vmax.f32 %v355, %v483
  %v612 = vmax.f32 %v356, %v484
  %v613 = vmax.f32 %v357, %v485
  %v614 = vmax.f32 %v358, %v486
  %v615 = vmax.f32 %v359, %v487
  %v616 = vmax.f32 %v360, %v488
  %v617 = vmax.f32 %v361, %v489
  %v618 = vmax.f32 %v362, %v490
  %v619 = vmax.f32 %v363, %v491
  %v620 = vmax.f32 %v364, %v492
  %v621 = vmax.f32 %v365, %v493
  %v622 = vmax.f32 %v366, %v494
  %v623 = vmax.f32 %v367, %v495
  %v624 = vmax.f32 %v368, %v496
  %v625 = vmax.f32 %v369, %v497
  %v626 = vmax.f32 %v370, %v498
  %v627 = vmax.f32 %v371, %v499
  %v628 = vmax.f32 %v372, %v500
  %v629 = vmax.f32 %v373, %v501
  %v630 = vmax.f32 %v374, %v502
  %v631 = vmax.f32 %v375, %v503
  %v632 = vmax.f32 %v376, %v504
  %v633 = vmax.f32 %v377, %v505
  %v634 = vmax.f32 %v378, %v506
  %v635 = vmax.f32 %v379, %v507
  %v636 = vmax.f32 %v380, %v508
  %v637 = vmax.f32 %v381, %v509
  %v638 = vmax.f32 %v382, %v510
  %v639 = vmax.f32 %v383, %v511
  %v640 = vmax.f32 %v384, %v512
  %v641 = vmax.f32 %v385, %v513
  %v642 = vmax.f32 %v386, %v514
  %v643 = vmax.f32 %v387, %v515
  %v644 = vmax.f32 %v388, %v516
  %v645 = vmax.f32 %v389, %v517
  %v646 = vmax.f32 %v390, %v518
  %v647 = vmax.f32 %v391, %v519
  %v648 = vmax.f32 %v392, %v520
  %v649 = vmax.f32 %v393, %v521
  %v650 = vmax.f32 %v394, %v522
  %v651 = vmax.f32 %v395, %v523
  %v652 = vmax.f32 %v396, %v524
  %v653 = vmax.f32 %v397, %v525
  %vm654 = vcmask 162816
  %655 = vst.msk [vmem:[%s3] sm:$0xff] %vm654, %v526
  %656 = vst.msk [vmem:[%s3 + $0x8] sm:$0xff] %vm654, %v527
  %657 = vst.msk [vmem:[%s3 + $0x10] sm:$0xff] %vm654, %v528
  %658 = vst.msk [vmem:[%s3 + $0x18] sm:$0xff] %vm654, %v529
  %659 = vst.msk [vmem:[%s3 + $0x20] sm:$0xff] %vm654, %v530
  %660 = vst.msk [vmem:[%s3 + $0x28] sm:$0xff] %vm654, %v531
  %661 = vst.msk [vmem:[%s3 + $0x30] sm:$0xff] %vm654, %v532
  %662 = vst.msk [vmem:[%s3 + $0x38] sm:$0xff] %vm654, %v533
  %663 = vst.msk [vmem:[%s3 + $0x40] sm:$0xff] %vm654, %v534
  %664 = vst.msk [vmem:[%s3 + $0x48] sm:$0xff] %vm654, %v535
  %665 = vst.msk [vmem:[%s3 + $0x50] sm:$0xff] %vm654, %v536
  %666 = vst.msk [vmem:[%s3 + $0x58] sm:$0xff] %vm654, %v537
  %667 = vst.msk [vmem:[%s3 + $0x60] sm:$0xff] %vm654, %v538
  %668 = vst.msk [vmem:[%s3 + $0x68] sm:$0xff] %vm654, %v539
  %669 = vst.msk [vmem:[%s3 + $0x70] sm:$0xff] %vm654, %v540
  %670 = vst.msk [vmem:[%s3 + $0x78] sm:$0xff] %vm654, %v541
  %671 = vst.msk [vmem:[%s3 + $0x80] sm:$0xff] %vm654, %v542
  %672 = vst.msk [vmem:[%s3 + $0x88] sm:$0xff] %vm654, %v543
  %673 = vst.msk [vmem:[%s3 + $0x90] sm:$0xff] %vm654, %v544
  %674 = vst.msk [vmem:[%s3 + $0x98] sm:$0xff] %vm654, %v545
  %675 = vst.msk [vmem:[%s3 + $0xa0] sm:$0xff] %vm654, %v546
  %676 = vst.msk [vmem:[%s3 + $0xa8] sm:$0xff] %vm654, %v547
  %677 = vst.msk [vmem:[%s3 + $0xb0] sm:$0xff] %vm654, %v548
  %678 = vst.msk [vmem:[%s3 + $0xb8] sm:$0xff] %vm654, %v549
  %679 = vst.msk [vmem:[%s3 + $0xc0] sm:$0xff] %vm654, %v550
  %680 = vst.msk [vmem:[%s3 + $0xc8] sm:$0xff] %vm654, %v551
  %681 = vst.msk [vmem:[%s3 + $0xd0] sm:$0xff] %vm654, %v552
  %682 = vst.msk [vmem:[%s3 + $0xd8] sm:$0xff] %vm654, %v553
  %683 = vst.msk [vmem:[%s3 + $0xe0] sm:$0xff] %vm654, %v554
  %684 = vst.msk [vmem:[%s3 + $0xe8] sm:$0xff] %vm654, %v555
  %685 = vst.msk [vmem:[%s3 + $0xf0] sm:$0xff] %vm654, %v556
  %686 = vst.msk [vmem:[%s3 + $0xf8] sm:$0xff] %vm654, %v557
  %687 = vst.msk [vmem:[%s3 + $0x100] sm:$0xff] %vm654, %v558
  %688 = vst.msk [vmem:[%s3 + $0x108] sm:$0xff] %vm654, %v559
  %689 = vst.msk [vmem:[%s3 + $0x110] sm:$0xff] %vm654, %v560
  %690 = vst.msk [vmem:[%s3 + $0x118] sm:$0xff] %vm654, %v561
  %691 = vst.msk [vmem:[%s3 + $0x120] sm:$0xff] %vm654, %v562
  %692 = vst.msk [vmem:[%s3 + $0x128] sm:$0xff] %vm654, %v563
  %693 = vst.msk [vmem:[%s3 + $0x130] sm:$0xff] %vm654, %v564
  %694 = vst.msk [vmem:[%s3 + $0x138] sm:$0xff] %vm654, %v565
  %695 = vst.msk [vmem:[%s3 + $0x140] sm:$0xff] %vm654, %v566
  %696 = vst.msk [vmem:[%s3 + $0x148] sm:$0xff] %vm654, %v567
  %697 = vst.msk [vmem:[%s3 + $0x150] sm:$0xff] %vm654, %v568
  %698 = vst.msk [vmem:[%s3 + $0x158] sm:$0xff] %vm654, %v569
  %699 = vst.msk [vmem:[%s3 + $0x160] sm:$0xff] %vm654, %v570
  %700 = vst.msk [vmem:[%s3 + $0x168] sm:$0xff] %vm654, %v571
  %701 = vst.msk [vmem:[%s3 + $0x170] sm:$0xff] %vm654, %v572
  %702 = vst.msk [vmem:[%s3 + $0x178] sm:$0xff] %vm654, %v573
  %703 = vst.msk [vmem:[%s3 + $0x180] sm:$0xff] %vm654, %v574
  %704 = vst.msk [vmem:[%s3 + $0x188] sm:$0xff] %vm654, %v575
  %705 = vst.msk [vmem:[%s3 + $0x190] sm:$0xff] %vm654, %v576
  %706 = vst.msk [vmem:[%s3 + $0x198] sm:$0xff] %vm654, %v577
  %707 = vst.msk [vmem:[%s3 + $0x1a0] sm:$0xff] %vm654, %v578
  %708 = vst.msk [vmem:[%s3 + $0x1a8] sm:$0xff] %vm654, %v579
  %709 = vst.msk [vmem:[%s3 + $0x1b0] sm:$0xff] %vm654, %v580
  %710 = vst.msk [vmem:[%s3 + $0x1b8] sm:$0xff] %vm654, %v581
  %711 = vst.msk [vmem:[%s3 + $0x1c0] sm:$0xff] %vm654, %v582
  %712 = vst.msk [vmem:[%s3 + $0x1c8] sm:$0xff] %vm654, %v583
  %713 = vst.msk [vmem:[%s3 + $0x1d0] sm:$0xff] %vm654, %v584
  %714 = vst.msk [vmem:[%s3 + $0x1d8] sm:$0xff] %vm654, %v585
  %715 = vst.msk [vmem:[%s3 + $0x1e0] sm:$0xff] %vm654, %v586
  %716 = vst.msk [vmem:[%s3 + $0x1e8] sm:$0xff] %vm654, %v587
  %717 = vst.msk [vmem:[%s3 + $0x1f0] sm:$0xff] %vm654, %v588
  %718 = vst.msk [vmem:[%s3 + $0x1f8] sm:$0xff] %vm654, %v589
  %719 = vst.msk [vmem:[%s3 + $0x200] sm:$0xff] %vm654, %v590
  %720 = vst.msk [vmem:[%s3 + $0x208] sm:$0xff] %vm654, %v591
  %721 = vst.msk [vmem:[%s3 + $0x210] sm:$0xff] %vm654, %v592
  %722 = vst.msk [vmem:[%s3 + $0x218] sm:$0xff] %vm654, %v593
  %723 = vst.msk [vmem:[%s3 + $0x220] sm:$0xff] %vm654, %v594
  %724 = vst.msk [vmem:[%s3 + $0x228] sm:$0xff] %vm654, %v595
  %725 = vst.msk [vmem:[%s3 + $0x230] sm:$0xff] %vm654, %v596
  %726 = vst.msk [vmem:[%s3 + $0x238] sm:$0xff] %vm654, %v597
  %727 = vst.msk [vmem:[%s3 + $0x240] sm:$0xff] %vm654, %v598
  %728 = vst.msk [vmem:[%s3 + $0x248] sm:$0xff] %vm654, %v599
  %729 = vst.msk [vmem:[%s3 + $0x250] sm:$0xff] %vm654, %v600
  %730 = vst.msk [vmem:[%s3 + $0x258] sm:$0xff] %vm654, %v601
  %731 = vst.msk [vmem:[%s3 + $0x260] sm:$0xff] %vm654, %v602
  %732 = vst.msk [vmem:[%s3 + $0x268] sm:$0xff] %vm654, %v603
  %733 = vst.msk [vmem:[%s3 + $0x270] sm:$0xff] %vm654, %v604
  %734 = vst.msk [vmem:[%s3 + $0x278] sm:$0xff] %vm654, %v605
  %735 = vst.msk [vmem:[%s3 + $0x280] sm:$0xff] %vm654, %v606
  %736 = vst.msk [vmem:[%s3 + $0x288] sm:$0xff] %vm654, %v607
  %737 = vst.msk [vmem:[%s3 + $0x290] sm:$0xff] %vm654, %v608
  %738 = vst.msk [vmem:[%s3 + $0x298] sm:$0xff] %vm654, %v609
  %739 = vst.msk [vmem:[%s3 + $0x2a0] sm:$0xff] %vm654, %v610
  %740 = vst.msk [vmem:[%s3 + $0x2a8] sm:$0xff] %vm654, %v611
  %741 = vst.msk [vmem:[%s3 + $0x2b0] sm:$0xff] %vm654, %v612
  %742 = vst.msk [vmem:[%s3 + $0x2b8] sm:$0xff] %vm654, %v613
  %743 = vst.msk [vmem:[%s3 + $0x2c0] sm:$0xff] %vm654, %v614
  %744 = vst.msk [vmem:[%s3 + $0x2c8] sm:$0xff] %vm654, %v615
  %745 = vst.msk [vmem:[%s3 + $0x2d0] sm:$0xff] %vm654, %v616
  %746 = vst.msk [vmem:[%s3 + $0x2d8] sm:$0xff] %vm654, %v617
  %747 = vst.msk [vmem:[%s3 + $0x2e0] sm:$0xff] %vm654, %v618
  %748 = vst.msk [vmem:[%s3 + $0x2e8] sm:$0xff] %vm654, %v619
  %749 = vst.msk [vmem:[%s3 + $0x2f0] sm:$0xff] %vm654, %v620
  %750 = vst.msk [vmem:[%s3 + $0x2f8] sm:$0xff] %vm654, %v621
  %751 = vst.msk [vmem:[%s3 + $0x300] sm:$0xff] %vm654, %v622
  %752 = vst.msk [vmem:[%s3 + $0x308] sm:$0xff] %vm654, %v623
  %753 = vst.msk [vmem:[%s3 + $0x310] sm:$0xff] %vm654, %v624
  %754 = vst.msk [vmem:[%s3 + $0x318] sm:$0xff] %vm654, %v625
  %755 = vst.msk [vmem:[%s3 + $0x320] sm:$0xff] %vm654, %v626
  %756 = vst.msk [vmem:[%s3 + $0x328] sm:$0xff] %vm654, %v627
  %757 = vst.msk [vmem:[%s3 + $0x330] sm:$0xff] %vm654, %v628
  %758 = vst.msk [vmem:[%s3 + $0x338] sm:$0xff] %vm654, %v629
  %759 = vst.msk [vmem:[%s3 + $0x340] sm:$0xff] %vm654, %v630
  %760 = vst.msk [vmem:[%s3 + $0x348] sm:$0xff] %vm654, %v631
  %761 = vst.msk [vmem:[%s3 + $0x350] sm:$0xff] %vm654, %v632
  %762 = vst.msk [vmem:[%s3 + $0x358] sm:$0xff] %vm654, %v633
  %763 = vst.msk [vmem:[%s3 + $0x360] sm:$0xff] %vm654, %v634
  %764 = vst.msk [vmem:[%s3 + $0x368] sm:$0xff] %vm654, %v635
  %765 = vst.msk [vmem:[%s3 + $0x370] sm:$0xff] %vm654, %v636
  %766 = vst.msk [vmem:[%s3 + $0x378] sm:$0xff] %vm654, %v637
  %767 = vst.msk [vmem:[%s3 + $0x380] sm:$0xff] %vm654, %v638
  %768 = vst.msk [vmem:[%s3 + $0x388] sm:$0xff] %vm654, %v639
  %769 = vst.msk [vmem:[%s3 + $0x390] sm:$0xff] %vm654, %v640
  %770 = vst.msk [vmem:[%s3 + $0x398] sm:$0xff] %vm654, %v641
  %771 = vst.msk [vmem:[%s3 + $0x3a0] sm:$0xff] %vm654, %v642
  %772 = vst.msk [vmem:[%s3 + $0x3a8] sm:$0xff] %vm654, %v643
  %773 = vst.msk [vmem:[%s3 + $0x3b0] sm:$0xff] %vm654, %v644
  %774 = vst.msk [vmem:[%s3 + $0x3b8] sm:$0xff] %vm654, %v645
  %775 = vst.msk [vmem:[%s3 + $0x3c0] sm:$0xff] %vm654, %v646
  %776 = vst.msk [vmem:[%s3 + $0x3c8] sm:$0xff] %vm654, %v647
  %777 = vst.msk [vmem:[%s3 + $0x3d0] sm:$0xff] %vm654, %v648
  %778 = vst.msk [vmem:[%s3 + $0x3d8] sm:$0xff] %vm654, %v649
  %779 = vst.msk [vmem:[%s3 + $0x3e0] sm:$0xff] %vm654, %v650
  %780 = vst.msk [vmem:[%s3 + $0x3e8] sm:$0xff] %vm654, %v651
  %781 = vst.msk [vmem:[%s3 + $0x3f0] sm:$0xff] %vm654, %v652
  %782 = vst.msk [vmem:[%s3 + $0x3f8] sm:$0xff] %vm654, %v653
  // Predicated region
  $region14: #{cnn1d_forward.17} parent=0 // pred_check
    _
  $region15: #{cnn1d_forward.17} parent=0 // pred_check_branch
    %784 = sbr.rel (0) target = $region17
  $region16: #{cnn1d_forward.17} parent=0 // pred_region
    _
  $region17: #{cnn1d_forward.17} parent=0 // pred_fallthru
    _
  // Predicated region
  $region18: #{cnn1d_forward.17} parent=0 // pred_check
    _
  $region19: #{cnn1d_forward.17} parent=0 // pred_check_branch
    %786 = sbr.rel (0) target = $region21
  $region20: #{cnn1d_forward.17} parent=0 // pred_region
    _
  $region21: #{cnn1d_forward.17} parent=0 // pred_fallthru
    _

// kernel: cnn1d_forward.19
$region0: #{cnn1d_forward.19}
  #allocation0 [shape = 'u32[]', space=smem, size = 0x4, offset = 0x4, fixed_abs, tag = 'smem constant byte address 0x4 - core index']
  #allocation1 [shape = 'u32[144,128]{1,0:T(1,128)}', space=vmem, size = 0x12000, scoped, tag = 'internal scratch']
  %s0 = inlined_call_operand.vmem [shape: f32[2,1024], index: 0, kind: input, shape index: {}]
  %s1 = inlined_call_operand.vmem [shape: f32[1024,8], index: 1, kind: input, shape index: {}]
  %s2 = inlined_call_operand.vmem [shape: f32[1,8], index: 2, kind: input, shape index: {}]
  %s3 = inlined_call_operand.hbm [shape: f32[2,8], index: 3, kind: output, shape index: {}]
  %s4 = sld [smem:[#allocation0]]
  $region22: #{cnn1d_forward.19} parent=0
    _
  %s6 = ssub.s32 1, %s4
  %s7 = scalar_select 0, %s6, %s4
  $region1: #{cnn1d_forward.19} parent=0
    #allocation2 [shape = 'u8[1024]{0}', space=vmem, size = 0x400, scoped, tag = 'output window, operand 0, single buffered']
    #allocation3 [shape = 's32[1]{0}', space=sflag, size = 0x4, scoped, tag = 'scoped memory for cnn1d_forward.19']
    %8 = vsyncpa [#allocation3], 0
    // Predicated region
    $region2: #{cnn1d_forward.19} parent=1 // pred_check
      _
    $region3: #{cnn1d_forward.19} parent=1 // pred_check_branch
      %10 = sbr.rel (0) target = $region5
    $region4: #{cnn1d_forward.19} parent=1 // pred_region
      _
    $region5: #{cnn1d_forward.19} parent=1 // pred_fallthru
      _
    // Predicated region
    $region6: #{cnn1d_forward.19} parent=1 // pred_check
      _
    $region7: #{cnn1d_forward.19} parent=1 // pred_check_branch
      %12 = sbr.rel (0) target = $region9
    $region8: #{cnn1d_forward.19} parent=1 // pred_region
      _
    $region9: #{cnn1d_forward.19} parent=1 // pred_fallthru
      _
    // Predicated region
    $region10: #{cnn1d_forward.19} parent=1 // pred_check
      _
    $region11: #{cnn1d_forward.19} parent=1 // pred_check_branch
      %14 = sbr.rel (0) target = $region13
    $region12: #{cnn1d_forward.19} parent=1 // pred_region
      _
    $region13: #{cnn1d_forward.19} parent=1 // pred_fallthru
      _
    %v15 = vld [vmem:[%s0] sm:$0xff]
    %v16 = vld [vmem:[%s0 + $0x8] sm:$0xff]
    %v17 = vld [vmem:[%s1] sm:$0xff]
    %v18 = vld [vmem:[%s1 + $0x8] sm:$0xff]
    %v19 = vld [vmem:[%s1 + $0x10] sm:$0xff]
    %v20 = vld [vmem:[%s1 + $0x18] sm:$0xff]
    %v21 = vld [vmem:[%s1 + $0x20] sm:$0xff]
    %v22 = vld [vmem:[%s1 + $0x28] sm:$0xff]
    %v23 = vld [vmem:[%s1 + $0x30] sm:$0xff]
    %v24 = vld [vmem:[%s1 + $0x38] sm:$0xff]
    %v25 = vld [vmem:[%s1 + $0x40] sm:$0xff]
    %v26 = vld [vmem:[%s1 + $0x48] sm:$0xff]
    %v27 = vld [vmem:[%s1 + $0x50] sm:$0xff]
    %v28 = vld [vmem:[%s1 + $0x58] sm:$0xff]
    %v29 = vld [vmem:[%s1 + $0x60] sm:$0xff]
    %v30 = vld [vmem:[%s1 + $0x68] sm:$0xff]
    %v31 = vld [vmem:[%s1 + $0x70] sm:$0xff]
    %v32 = vld [vmem:[%s1 + $0x78] sm:$0xff]
    %v33 = vld [vmem:[%s1 + $0x80] sm:$0xff]
    %v34 = vld [vmem:[%s1 + $0x88] sm:$0xff]
    %v35 = vld [vmem:[%s1 + $0x90] sm:$0xff]
    %v36 = vld [vmem:[%s1 + $0x98] sm:$0xff]
    %v37 = vld [vmem:[%s1 + $0xa0] sm:$0xff]
    %v38 = vld [vmem:[%s1 + $0xa8] sm:$0xff]
    %v39 = vld [vmem:[%s1 + $0xb0] sm:$0xff]
    %v40 = vld [vmem:[%s1 + $0xb8] sm:$0xff]
    %v41 = vld [vmem:[%s1 + $0xc0] sm:$0xff]
    %v42 = vld [vmem:[%s1 + $0xc8] sm:$0xff]
    %v43 = vld [vmem:[%s1 + $0xd0] sm:$0xff]
    %v44 = vld [vmem:[%s1 + $0xd8] sm:$0xff]
    %v45 = vld [vmem:[%s1 + $0xe0] sm:$0xff]
    %v46 = vld [vmem:[%s1 + $0xe8] sm:$0xff]
    %v47 = vld [vmem:[%s1 + $0xf0] sm:$0xff]
    %v48 = vld [vmem:[%s1 + $0xf8] sm:$0xff]
    %v49 = vld [vmem:[%s1 + $0x100] sm:$0xff]
    %v50 = vld [vmem:[%s1 + $0x108] sm:$0xff]
    %v51 = vld [vmem:[%s1 + $0x110] sm:$0xff]
    %v52 = vld [vmem:[%s1 + $0x118] sm:$0xff]
    %v53 = vld [vmem:[%s1 + $0x120] sm:$0xff]
    %v54 = vld [vmem:[%s1 + $0x128] sm:$0xff]
    %v55 = vld [vmem:[%s1 + $0x130] sm:$0xff]
    %v56 = vld [vmem:[%s1 + $0x138] sm:$0xff]
    %v57 = vld [vmem:[%s1 + $0x140] sm:$0xff]
    %v58 = vld [vmem:[%s1 + $0x148] sm:$0xff]
    %v59 = vld [vmem:[%s1 + $0x150] sm:$0xff]
    %v60 = vld [vmem:[%s1 + $0x158] sm:$0xff]
    %v61 = vld [vmem:[%s1 + $0x160] sm:$0xff]
    %v62 = vld [vmem:[%s1 + $0x168] sm:$0xff]
    %v63 = vld [vmem:[%s1 + $0x170] sm:$0xff]
    %v64 = vld [vmem:[%s1 + $0x178] sm:$0xff]
    %v65 = vld [vmem:[%s1 + $0x180] sm:$0xff]
    %v66 = vld [vmem:[%s1 + $0x188] sm:$0xff]
    %v67 = vld [vmem:[%s1 + $0x190] sm:$0xff]
    %v68 = vld [vmem:[%s1 + $0x198] sm:$0xff]
    %v69 = vld [vmem:[%s1 + $0x1a0] sm:$0xff]
    %v70 = vld [vmem:[%s1 + $0x1a8] sm:$0xff]
    %v71 = vld [vmem:[%s1 + $0x1b0] sm:$0xff]
    %v72 = vld [vmem:[%s1 + $0x1b8] sm:$0xff]
    %v73 = vld [vmem:[%s1 + $0x1c0] sm:$0xff]
    %v74 = vld [vmem:[%s1 + $0x1c8] sm:$0xff]
    %v75 = vld [vmem:[%s1 + $0x1d0] sm:$0xff]
    %v76 = vld [vmem:[%s1 + $0x1d8] sm:$0xff]
    %v77 = vld [vmem:[%s1 + $0x1e0] sm:$0xff]
    %v78 = vld [vmem:[%s1 + $0x1e8] sm:$0xff]
    %v79 = vld [vmem:[%s1 + $0x1f0] sm:$0xff]
    %v80 = vld [vmem:[%s1 + $0x1f8] sm:$0xff]
    %v81 = vld [vmem:[%s1 + $0x200] sm:$0xff]
    %v82 = vld [vmem:[%s1 + $0x208] sm:$0xff]
    %v83 = vld [vmem:[%s1 + $0x210] sm:$0xff]
    %v84 = vld [vmem:[%s1 + $0x218] sm:$0xff]
    %v85 = vld [vmem:[%s1 + $0x220] sm:$0xff]
    %v86 = vld [vmem:[%s1 + $0x228] sm:$0xff]
    %v87 = vld [vmem:[%s1 + $0x230] sm:$0xff]
    %v88 = vld [vmem:[%s1 + $0x238] sm:$0xff]
    %v89 = vld [vmem:[%s1 + $0x240] sm:$0xff]
    %v90 = vld [vmem:[%s1 + $0x248] sm:$0xff]
    %v91 = vld [vmem:[%s1 + $0x250] sm:$0xff]
    %v92 = vld [vmem:[%s1 + $0x258] sm:$0xff]
    %v93 = vld [vmem:[%s1 + $0x260] sm:$0xff]
    %v94 = vld [vmem:[%s1 + $0x268] sm:$0xff]
    %v95 = vld [vmem:[%s1 + $0x270] sm:$0xff]
    %v96 = vld [vmem:[%s1 + $0x278] sm:$0xff]
    %v97 = vld [vmem:[%s1 + $0x280] sm:$0xff]
    %v98 = vld [vmem:[%s1 + $0x288] sm:$0xff]
    %v99 = vld [vmem:[%s1 + $0x290] sm:$0xff]
    %v100 = vld [vmem:[%s1 + $0x298] sm:$0xff]
    %v101 = vld [vmem:[%s1 + $0x2a0] sm:$0xff]
    %v102 = vld [vmem:[%s1 + $0x2a8] sm:$0xff]
    %v103 = vld [vmem:[%s1 + $0x2b0] sm:$0xff]
    %v104 = vld [vmem:[%s1 + $0x2b8] sm:$0xff]
    %v105 = vld [vmem:[%s1 + $0x2c0] sm:$0xff]
    %v106 = vld [vmem:[%s1 + $0x2c8] sm:$0xff]
    %v107 = vld [vmem:[%s1 + $0x2d0] sm:$0xff]
    %v108 = vld [vmem:[%s1 + $0x2d8] sm:$0xff]
    %v109 = vld [vmem:[%s1 + $0x2e0] sm:$0xff]
    %v110 = vld [vmem:[%s1 + $0x2e8] sm:$0xff]
    %v111 = vld [vmem:[%s1 + $0x2f0] sm:$0xff]
    %v112 = vld [vmem:[%s1 + $0x2f8] sm:$0xff]
    %v113 = vld [vmem:[%s1 + $0x300] sm:$0xff]
    %v114 = vld [vmem:[%s1 + $0x308] sm:$0xff]
    %v115 = vld [vmem:[%s1 + $0x310] sm:$0xff]
    %v116 = vld [vmem:[%s1 + $0x318] sm:$0xff]
    %v117 = vld [vmem:[%s1 + $0x320] sm:$0xff]
    %v118 = vld [vmem:[%s1 + $0x328] sm:$0xff]
    %v119 = vld [vmem:[%s1 + $0x330] sm:$0xff]
    %v120 = vld [vmem:[%s1 + $0x338] sm:$0xff]
    %v121 = vld [vmem:[%s1 + $0x340] sm:$0xff]
    %v122 = vld [vmem:[%s1 + $0x348] sm:$0xff]
    %v123 = vld [vmem:[%s1 + $0x350] sm:$0xff]
    %v124 = vld [vmem:[%s1 + $0x358] sm:$0xff]
    %v125 = vld [vmem:[%s1 + $0x360] sm:$0xff]
    %v126 = vld [vmem:[%s1 + $0x368] sm:$0xff]
    %v127 = vld [vmem:[%s1 + $0x370] sm:$0xff]
    %v128 = vld [vmem:[%s1 + $0x378] sm:$0xff]
    %v129 = vld [vmem:[%s1 + $0x380] sm:$0xff]
    %v130 = vld [vmem:[%s1 + $0x388] sm:$0xff]
    %v131 = vld [vmem:[%s1 + $0x390] sm:$0xff]
    %v132 = vld [vmem:[%s1 + $0x398] sm:$0xff]
    %v133 = vld [vmem:[%s1 + $0x3a0] sm:$0xff]
    %v134 = vld [vmem:[%s1 + $0x3a8] sm:$0xff]
    %v135 = vld [vmem:[%s1 + $0x3b0] sm:$0xff]
    %v136 = vld [vmem:[%s1 + $0x3b8] sm:$0xff]
    %v137 = vld [vmem:[%s1 + $0x3c0] sm:$0xff]
    %v138 = vld [vmem:[%s1 + $0x3c8] sm:$0xff]
    %v139 = vld [vmem:[%s1 + $0x3d0] sm:$0xff]
    %v140 = vld [vmem:[%s1 + $0x3d8] sm:$0xff]
    %v141 = vld [vmem:[%s1 + $0x3e0] sm:$0xff]
    %v142 = vld [vmem:[%s1 + $0x3e8] sm:$0xff]
    %v143 = vld [vmem:[%s1 + $0x3f0] sm:$0xff]
    %v144 = vld [vmem:[%s1 + $0x3f8] sm:$0xff]
    %v145 = vld [vmem:[%s2] sm:$0x1]
    %v147 = vlaneseq
    %v148 = vshrl.u32 %v147, 7
    %v149 = vsub.s32 0, %v148
    %v150 = vrot.slane %v145, %v149
    %v154 = vcombine.high %v15, %v15
    %v156 = vunpack.c.l.s4 1983009808
    %v157 = vunpack.c.0.s8 %v156
    %v158 = vlaneseq
    %v159 = vshrl.u32 %v158, 7
    %v160 = vsub.s32 %v157, %v159
    %v161 = vrot.slane %v15, %v160
    %v163 = vunpack.c.l.s4 1983009808
    %v164 = vunpack.c.0.s8 %v163
    %v165 = vlaneseq
    %v166 = vshrl.u32 %v165, 7
    %v167 = vsub.s32 %v164, %v166
    %v168 = vrot.slane %v154, %v167
    %v169 = vcombine.high %v161, %v161
    %v170 = vcombine.high %v168, %v168
    %v171 = vcombine.high %v16, %v16
    %v173 = vunpack.c.l.s4 1983009808
    %v174 = vunpack.c.0.s8 %v173
    %v175 = vlaneseq
    %v176 = vshrl.u32 %v175, 7
    %v177 = vsub.s32 %v174, %v176
    %v178 = vrot.slane %v16, %v177
    %v180 = vunpack.c.l.s4 1983009808
    %v181 = vunpack.c.0.s8 %v180
    %v182 = vlaneseq
    %v183 = vshrl.u32 %v182, 7
    %v184 = vsub.s32 %v181, %v183
    %v185 = vrot.slane %v171, %v184
    %v186 = vcombine.high %v178, %v178
    %v187 = vcombine.high %v185, %v185
    %196 = vmatprep.subr.mxu0 0.0
    %197 = vmatpush1.msra.mxu0 %v32
    %198 = vmatprep.subr.mxu0 0.0
    %199 = vmatpush1.msra.mxu0 %v31
    %200 = vmatprep.subr.mxu0 0.0
    %201 = vmatpush1.msra.mxu0 %v30
    %202 = vmatprep.subr.mxu0 0.0
    %203 = vmatpush1.msra.mxu0 %v29
    %204 = vmatprep.subr.mxu0 0.0
    %205 = vmatpush1.msra.mxu0 %v28
    %206 = vmatprep.subr.mxu0 0.0
    %207 = vmatpush1.msra.mxu0 %v27
    %208 = vmatprep.subr.mxu0 0.0
    %209 = vmatpush1.msra.mxu0 %v26
    %210 = vmatprep.subr.mxu0 0.0
    %211 = vmatpush1.msra.mxu0 %v25
    %212 = vmatprep.subr.mxu0 0.0
    %213 = vmatpush1.msra.mxu0 %v24
    %214 = vmatprep.subr.mxu0 0.0
    %215 = vmatpush1.msra.mxu0 %v23
    %216 = vmatprep.subr.mxu0 0.0
    %217 = vmatpush1.msra.mxu0 %v22
    %218 = vmatprep.subr.mxu0 0.0
    %219 = vmatpush1.msra.mxu0 %v21
    %220 = vmatprep.subr.mxu0 0.0
    %221 = vmatpush1.msra.mxu0 %v20
    %222 = vmatprep.subr.mxu0 0.0
    %223 = vmatpush1.msra.mxu0 %v19
    %224 = vmatprep.subr.mxu0 0.0
    %225 = vmatpush1.msra.mxu0 %v18
    %226 = vmatprep.subr.mxu0 0.0
    %227 = vmatpush1.msra.mxu0 %v17
    %228 = vmatprep.subr.mxu0 0.0
    %229 = vmatpush2.msra.mxu0 %v48
    %230 = vmatprep.subr.mxu0 0.0
    %231 = vmatpush2.msra.mxu0 %v47
    %232 = vmatprep.subr.mxu0 0.0
    %233 = vmatpush2.msra.mxu0 %v46
    %234 = vmatprep.subr.mxu0 0.0
    %235 = vmatpush2.msra.mxu0 %v45
    %236 = vmatprep.subr.mxu0 0.0
    %237 = vmatpush2.msra.mxu0 %v44
    %238 = vmatprep.subr.mxu0 0.0
    %239 = vmatpush2.msra.mxu0 %v43
    %240 = vmatprep.subr.mxu0 0.0
    %241 = vmatpush2.msra.mxu0 %v42
    %242 = vmatprep.subr.mxu0 0.0
    %243 = vmatpush2.msra.mxu0 %v41
    %244 = vmatprep.subr.mxu0 0.0
    %245 = vmatpush2.msra.mxu0 %v40
    %246 = vmatprep.subr.mxu0 0.0
    %247 = vmatpush2.msra.mxu0 %v39
    %248 = vmatprep.subr.mxu0 0.0
    %249 = vmatpush2.msra.mxu0 %v38
    %250 = vmatprep.subr.mxu0 0.0
    %251 = vmatpush2.msra.mxu0 %v37
    %252 = vmatprep.subr.mxu0 0.0
    %253 = vmatpush2.msra.mxu0 %v36
    %254 = vmatprep.subr.mxu0 0.0
    %255 = vmatpush2.msra.mxu0 %v35
    %256 = vmatprep.subr.mxu0 0.0
    %257 = vmatpush2.msra.mxu0 %v34
    %258 = vmatprep.subr.mxu0 0.0
    %259 = vmatpush2.msra.mxu0 %v33
    %260 = vmatprep.mubr.f32.mxu0 %v169
    %261 = vmatmul.mubr.f32.gmra.mxu0 %v161
    %v262 = vpop.f32.mrf.mxu0
    %v263 = vadd.f32 %v150, %v262
    %v264 = vpop.f32.mrf.mxu0
    %265 = vdwg.mxu0
    %266 = vmatprep.subr.mxu0 0.0
    %267 = vmatpush1.msra.mxu0 %v64
    %268 = vmatprep.subr.mxu0 0.0
    %269 = vmatpush1.msra.mxu0 %v63
    %270 = vmatprep.subr.mxu0 0.0
    %271 = vmatpush1.msra.mxu0 %v62
    %272 = vmatprep.subr.mxu0 0.0
    %273 = vmatpush1.msra.mxu0 %v61
    %274 = vmatprep.subr.mxu0 0.0
    %275 = vmatpush1.msra.mxu0 %v60
    %276 = vmatprep.subr.mxu0 0.0
    %277 = vmatpush1.msra.mxu0 %v59
    %278 = vmatprep.subr.mxu0 0.0
    %279 = vmatpush1.msra.mxu0 %v58
    %280 = vmatprep.subr.mxu0 0.0
    %281 = vmatpush1.msra.mxu0 %v57
    %282 = vmatprep.subr.mxu0 0.0
    %283 = vmatpush1.msra.mxu0 %v56
    %284 = vmatprep.subr.mxu0 0.0
    %285 = vmatpush1.msra.mxu0 %v55
    %286 = vmatprep.subr.mxu0 0.0
    %287 = vmatpush1.msra.mxu0 %v54
    %288 = vmatprep.subr.mxu0 0.0
    %289 = vmatpush1.msra.mxu0 %v53
    %290 = vmatprep.subr.mxu0 0.0
    %291 = vmatpush1.msra.mxu0 %v52
    %292 = vmatprep.subr.mxu0 0.0
    %293 = vmatpush1.msra.mxu0 %v51
    %294 = vmatprep.subr.mxu0 0.0
    %295 = vmatpush1.msra.mxu0 %v50
    %296 = vmatprep.subr.mxu0 0.0
    %297 = vmatpush1.msra.mxu0 %v49
    %298 = vmatprep.subr.mxu0 0.0
    %299 = vmatpush2.msra.mxu0 %v80
    %300 = vmatprep.subr.mxu0 0.0
    %301 = vmatpush2.msra.mxu0 %v79
    %302 = vmatprep.subr.mxu0 0.0
    %303 = vmatpush2.msra.mxu0 %v78
    %304 = vmatprep.subr.mxu0 0.0
    %305 = vmatpush2.msra.mxu0 %v77
    %306 = vmatprep.subr.mxu0 0.0
    %307 = vmatpush2.msra.mxu0 %v76
    %308 = vmatprep.subr.mxu0 0.0
    %309 = vmatpush2.msra.mxu0 %v75
    %310 = vmatprep.subr.mxu0 0.0
    %311 = vmatpush2.msra.mxu0 %v74
    %312 = vmatprep.subr.mxu0 0.0
    %313 = vmatpush2.msra.mxu0 %v73
    %314 = vmatprep.subr.mxu0 0.0
    %315 = vmatpush2.msra.mxu0 %v72
    %316 = vmatprep.subr.mxu0 0.0
    %317 = vmatpush2.msra.mxu0 %v71
    %318 = vmatprep.subr.mxu0 0.0
    %319 = vmatpush2.msra.mxu0 %v70
    %320 = vmatprep.subr.mxu0 0.0
    %321 = vmatpush2.msra.mxu0 %v69
    %322 = vmatprep.subr.mxu0 0.0
    %323 = vmatpush2.msra.mxu0 %v68
    %324 = vmatprep.subr.mxu0 0.0
    %325 = vmatpush2.msra.mxu0 %v67
    %326 = vmatprep.subr.mxu0 0.0
    %327 = vmatpush2.msra.mxu0 %v66
    %328 = vmatprep.subr.mxu0 0.0
    %329 = vmatpush2.msra.mxu0 %v65
    %330 = vmatprep.mubr.f32.mxu0 %v170
    %331 = vmatmul.mubr.f32.gmra.mxu0 %v168
    %v332 = vpop.f32.mrf.mxu0
    %v333 = vadd.f32 %v263, %v332
    %v334 = vpop.f32.mrf.mxu0
    %335 = vdwg.mxu0
    %336 = vmatprep.subr.mxu0 0.0
    %337 = vmatpush1.msra.mxu0 %v96
    %338 = vmatprep.subr.mxu0 0.0
    %339 = vmatpush1.msra.mxu0 %v95
    %340 = vmatprep.subr.mxu0 0.0
    %341 = vmatpush1.msra.mxu0 %v94
    %342 = vmatprep.subr.mxu0 0.0
    %343 = vmatpush1.msra.mxu0 %v93
    %344 = vmatprep.subr.mxu0 0.0
    %345 = vmatpush1.msra.mxu0 %v92
    %346 = vmatprep.subr.mxu0 0.0
    %347 = vmatpush1.msra.mxu0 %v91
    %348 = vmatprep.subr.mxu0 0.0
    %349 = vmatpush1.msra.mxu0 %v90
    %350 = vmatprep.subr.mxu0 0.0
    %351 = vmatpush1.msra.mxu0 %v89
    %352 = vmatprep.subr.mxu0 0.0
    %353 = vmatpush1.msra.mxu0 %v88
    %354 = vmatprep.subr.mxu0 0.0
    %355 = vmatpush1.msra.mxu0 %v87
    %356 = vmatprep.subr.mxu0 0.0
    %357 = vmatpush1.msra.mxu0 %v86
    %358 = vmatprep.subr.mxu0 0.0
    %359 = vmatpush1.msra.mxu0 %v85
    %360 = vmatprep.subr.mxu0 0.0
    %361 = vmatpush1.msra.mxu0 %v84
    %362 = vmatprep.subr.mxu0 0.0
    %363 = vmatpush1.msra.mxu0 %v83
    %364 = vmatprep.subr.mxu0 0.0
    %365 = vmatpush1.msra.mxu0 %v82
    %366 = vmatprep.subr.mxu0 0.0
    %367 = vmatpush1.msra.mxu0 %v81
    %368 = vmatprep.subr.mxu0 0.0
    %369 = vmatpush2.msra.mxu0 %v112
    %370 = vmatprep.subr.mxu0 0.0
    %371 = vmatpush2.msra.mxu0 %v111
    %372 = vmatprep.subr.mxu0 0.0
    %373 = vmatpush2.msra.mxu0 %v110
    %374 = vmatprep.subr.mxu0 0.0
    %375 = vmatpush2.msra.mxu0 %v109
    %376 = vmatprep.subr.mxu0 0.0
    %377 = vmatpush2.msra.mxu0 %v108
    %378 = vmatprep.subr.mxu0 0.0
    %379 = vmatpush2.msra.mxu0 %v107
    %380 = vmatprep.subr.mxu0 0.0
    %381 = vmatpush2.msra.mxu0 %v106
    %382 = vmatprep.subr.mxu0 0.0
    %383 = vmatpush2.msra.mxu0 %v105
    %384 = vmatprep.subr.mxu0 0.0
    %385 = vmatpush2.msra.mxu0 %v104
    %386 = vmatprep.subr.mxu0 0.0
    %387 = vmatpush2.msra.mxu0 %v103
    %388 = vmatprep.subr.mxu0 0.0
    %389 = vmatpush2.msra.mxu0 %v102
    %390 = vmatprep.subr.mxu0 0.0
    %391 = vmatpush2.msra.mxu0 %v101
    %392 = vmatprep.subr.mxu0 0.0
    %393 = vmatpush2.msra.mxu0 %v100
    %394 = vmatprep.subr.mxu0 0.0
    %395 = vmatpush2.msra.mxu0 %v99
    %396 = vmatprep.subr.mxu0 0.0
    %397 = vmatpush2.msra.mxu0 %v98
    %398 = vmatprep.subr.mxu0 0.0
    %399 = vmatpush2.msra.mxu0 %v97
    %400 = vmatprep.mubr.f32.mxu0 %v186
    %401 = vmatmul.mubr.f32.gmra.mxu0 %v178
    %v402 = vpop.f32.mrf.mxu0
    %v403 = vadd.f32 %v333, %v402
    %v404 = vpop.f32.mrf.mxu0
    %405 = vdwg.mxu0
    %406 = vmatprep.subr.mxu0 0.0
    %407 = vmatpush1.msra.mxu0 %v128
    %408 = vmatprep.subr.mxu0 0.0
    %409 = vmatpush1.msra.mxu0 %v127
    %410 = vmatprep.subr.mxu0 0.0
    %411 = vmatpush1.msra.mxu0 %v126
    %412 = vmatprep.subr.mxu0 0.0
    %413 = vmatpush1.msra.mxu0 %v125
    %414 = vmatprep.subr.mxu0 0.0
    %415 = vmatpush1.msra.mxu0 %v124
    %416 = vmatprep.subr.mxu0 0.0
    %417 = vmatpush1.msra.mxu0 %v123
    %418 = vmatprep.subr.mxu0 0.0
    %419 = vmatpush1.msra.mxu0 %v122
    %420 = vmatprep.subr.mxu0 0.0
    %421 = vmatpush1.msra.mxu0 %v121
    %422 = vmatprep.subr.mxu0 0.0
    %423 = vmatpush1.msra.mxu0 %v120
    %424 = vmatprep.subr.mxu0 0.0
    %425 = vmatpush1.msra.mxu0 %v119
    %426 = vmatprep.subr.mxu0 0.0
    %427 = vmatpush1.msra.mxu0 %v118
    %428 = vmatprep.subr.mxu0 0.0
    %429 = vmatpush1.msra.mxu0 %v117
    %430 = vmatprep.subr.mxu0 0.0
    %431 = vmatpush1.msra.mxu0 %v116
    %432 = vmatprep.subr.mxu0 0.0
    %433 = vmatpush1.msra.mxu0 %v115
    %434 = vmatprep.subr.mxu0 0.0
    %435 = vmatpush1.msra.mxu0 %v114
    %436 = vmatprep.subr.mxu0 0.0
    %437 = vmatpush1.msra.mxu0 %v113
    %438 = vmatprep.subr.mxu0 0.0
    %439 = vmatpush2.msra.mxu0 %v144
    %440 = vmatprep.subr.mxu0 0.0
    %441 = vmatpush2.msra.mxu0 %v143
    %442 = vmatprep.subr.mxu0 0.0
    %443 = vmatpush2.msra.mxu0 %v142
    %444 = vmatprep.subr.mxu0 0.0
    %445 = vmatpush2.msra.mxu0 %v141
    %446 = vmatprep.subr.mxu0 0.0
    %447 = vmatpush2.msra.mxu0 %v140
    %448 = vmatprep.subr.mxu0 0.0
    %449 = vmatpush2.msra.mxu0 %v139
    %450 = vmatprep.subr.mxu0 0.0
    %451 = vmatpush2.msra.mxu0 %v138
    %452 = vmatprep.subr.mxu0 0.0
    %453 = vmatpush2.msra.mxu0 %v137
    %454 = vmatprep.subr.mxu0 0.0
    %455 = vmatpush2.msra.mxu0 %v136
    %456 = vmatprep.subr.mxu0 0.0
    %457 = vmatpush2.msra.mxu0 %v135
    %458 = vmatprep.subr.mxu0 0.0
    %459 = vmatpush2.msra.mxu0 %v134
    %460 = vmatprep.subr.mxu0 0.0
    %461 = vmatpush2.msra.mxu0 %v133
    %462 = vmatprep.subr.mxu0 0.0
    %463 = vmatpush2.msra.mxu0 %v132
    %464 = vmatprep.subr.mxu0 0.0
    %465 = vmatpush2.msra.mxu0 %v131
    %466 = vmatprep.subr.mxu0 0.0
    %467 = vmatpush2.msra.mxu0 %v130
    %468 = vmatprep.subr.mxu0 0.0
    %469 = vmatpush2.msra.mxu0 %v129
    %470 = vmatprep.mubr.f32.mxu0 %v187
    %471 = vmatmul.mubr.f32.gmra.mxu0 %v185
    %v472 = vpop.f32.mrf.mxu0
    %v473 = vadd.f32 %v403, %v472
    %v474 = vpop.f32.mrf.mxu0
    %475 = vdwg.mxu0
    %vm476 = vcmask 58368
    %477 = vst.msk [vmem:[#allocation2] sm:$0x3] %vm476, %v473
    // Predicated region
    $region14: #{cnn1d_forward.19} parent=1 // pred_check
      _
    $region15: #{cnn1d_forward.19} parent=1 // pred_check_branch
      %479 = sbr.rel (0) target = $region17
    $region16: #{cnn1d_forward.19} parent=1 // pred_region
      %s481 = ssub.s32 32, 32
      %482 = vsyncadd [#allocation3], %s481
      %s484 = sshll.u32 [#allocation2], 4
      %s485 = int_to_ptr.vmem [resolvable:$true] %s484
      %487 = dma.vmem_to_hbm [thread:$0]  %s485, 32, %s3, [#allocation3]
    $region17: #{cnn1d_forward.19} parent=1 // pred_fallthru
      _
    // Predicated region
    $region18: #{cnn1d_forward.19} parent=1 // pred_check
      _
    $region19: #{cnn1d_forward.19} parent=1 // pred_check_branch
      %489 = sbr.rel (0) target = $region21
    $region20: #{cnn1d_forward.19} parent=1 // pred_region
      %490 = dma.done [#allocation3], 32
    $region21: #{cnn1d_forward.19} parent=1 // pred_fallthru
      _
    %491 = vsyncpa [#allocation3], 1

// kernel: cnn1d_forward.18
$region0: #{cnn1d_forward.18}
  #allocation0 [shape = 'u32[]', space=smem, size = 0x4, offset = 0x4, fixed_abs, tag = 'smem constant byte address 0x4 - core index']
  #allocation1 [shape = 'u32[144,128]{1,0:T(1,128)}', space=vmem, size = 0x12000, scoped, tag = 'internal scratch']
  #allocation2 [shape = 'f32[2,512]{1,0:T(2,128)}', space=vmem, size = 0x1000, scoped, tag = 'scratch operand']
  %s0 = inlined_call_operand.vmem [shape: f32[2,10240], index: 0, kind: input, shape index: {}]
  %s1 = inlined_call_operand.vmem [shape: s8[10240,1024], index: 1, kind: input, shape index: {}]
  %s2 = inlined_call_operand.vmem [shape: f32[1,1024], index: 2, kind: input, shape index: {}]
  %s3 = inlined_call_operand.vmem [shape: f32[1,1024], index: 3, kind: input, shape index: {}]
  %s4 = inlined_call_operand.vmem [shape: f32[2,1024], index: 4, kind: output, shape index: {}]
  %s5 = sld [smem:[#allocation0]]
  $region80: #{cnn1d_forward.18} parent=0
    _
  %s7 = ssub.s32 1, %s5
  %s8 = scalar_select 0, %s7, %s5
  $region1: #{cnn1d_forward.18} parent=0
    #allocation3 [shape = 'u8[5242880]{0}', space=vmem, size = 0x500000, scoped, tag = 'input window, operand 1']
    loop: start=0, step=1, limit=6
    $region2: #{cnn1d_forward.18} parent=1 // loop_pre_header
      _
    $region3: #{cnn1d_forward.18} parent=1 // loop_header
      %s10 = sphi 0, %s14
      %p11 = scmp.ge.s32.totalorder %s10, 6
      %s17 = sphi 0, %s29
      %s18 = sphi 0, %s25
      %s19 = sphi 0, %s17
      %s20 = sphi 0, %s18
      %s21 = sphi 0, %s19
      %s22 = sphi 0, %s20
      %s32 = sphi 0, %s34
      %s35 = sphi 0, %s32
      %s36 = sphi 0, %s35
      %s52 = sphi 0, %s36
      %s60 = sphi 0, %s62
      %s63 = sphi 0, %s60
      %s64 = sphi 0, %s63
      %s80 = sphi 0, %s64
      %s86 = sphi 0, %s88
      %s89 = sphi 0, %s86
      %s90 = sphi 0, %s89
      %s106 = sphi 0, %s90
      %s112 = sphi 0, %s114
      %s115 = sphi 0, %s112
      %s116 = sphi 0, %s115
      %s132 = sphi 0, %s116
      %s138 = sphi 0, %s140
      %s141 = sphi 0, %s138
      %s142 = sphi 0, %s141
      %s158 = sphi 0, %s142
    $region4: #{cnn1d_forward.18} parent=1 // loop_header_branch
      %13 = sbr.rel (%p11) target = $region8
    $region5: #{cnn1d_forward.18} parent=1 // loop_body
      %s15 = ssub.s32 %s10, 1
      %s16 = ssub.s32 %s10, 2
      %s23 = sadd.s32 1, %s18
      %p24 = scmp.ge.s32.totalorder %s23, 2
      %s25 = scalar_select %p24, 0, %s23
      %s26 = sadd.s32 1, %s17
      %s27 = scalar_select %p24, %s26, %s17
      %p28 = scmp.ge.s32.totalorder %s27, 2
      %s29 = scalar_select %p28, 0, %s27
      %s30 = ssub.s32 %s18, %s25
      %p31 = scmp.eq.s32.totalorder %s30, 0
      %s33 = sadd.s32 %s32, 1
      %s34 = scalar_select %p31, %s32, %s33
      %p37 = pneg %p31
      %p38 = scmp.eq.s32.totalorder %s10, 3
      %p39 = por %p37, %p38
      %p40 = scmp.ne.s32.totalorder %s32, %s35
      %p41 = scmp.eq.s32.totalorder %s10, 0
      %p42 = por %p40, %p41
      %p43 = scmp.ne.s32.totalorder %s32, %s35
      %p44 = scmp.eq.s32.totalorder %s15, 3
      %p45 = por %p43, %p44
      %p46 = scmp.ne.s32.totalorder %s35, %s36
      %p47 = scmp.eq.s32.totalorder %s15, 0
      %p48 = por %p46, %p47
      %p49 = scmp.ne.s32.totalorder %s35, %s36
      %p50 = scmp.eq.s32.totalorder %s16, 3
      %p51 = por %p49, %p50
      %p53 = scmp.ne.s32.totalorder %s36, %s52
      %p54 = scmp.eq.s32.totalorder %s16, 0
      %p55 = por %p53, %p54
      %s56 = ssub.s32 %s18, %s25
      %s57 = ssub.s32 %s17, %s29
      %s58 = sor.u32 %s56, %s57
      %p59 = scmp.eq.s32.totalorder %s58, 0
      %s61 = sadd.s32 %s60, 1
      %s62 = scalar_select %p59, %s60, %s61
      %p65 = pneg %p59
      %p66 = scmp.eq.s32.totalorder %s10, 3
      %p67 = por %p65, %p66
      %p68 = scmp.ne.s32.totalorder %s60, %s63
      %p69 = scmp.eq.s32.totalorder %s10, 0
      %p70 = por %p68, %p69
      %p71 = scmp.ne.s32.totalorder %s60, %s63
      %p72 = scmp.eq.s32.totalorder %s15, 3
      %p73 = por %p71, %p72
      %p74 = scmp.ne.s32.totalorder %s63, %s64
      %p75 = scmp.eq.s32.totalorder %s15, 0
      %p76 = por %p74, %p75
      %p77 = scmp.ne.s32.totalorder %s63, %s64
      %p78 = scmp.eq.s32.totalorder %s16, 3
      %p79 = por %p77, %p78
      %p81 = scmp.ne.s32.totalorder %s64, %s80
      %p82 = scmp.eq.s32.totalorder %s16, 0
      %p83 = por %p81, %p82
      %s84 = ssub.s32 %s17, %s29
      %p85 = scmp.eq.s32.totalorder %s84, 0
      %s87 = sadd.s32 %s86, 1
      %s88 = scalar_select %p85, %s86, %s87
      %p91 = pneg %p85
      %p92 = scmp.eq.s32.totalorder %s10, 3
      %p93 = por %p91, %p92
      %p94 = scmp.ne.s32.totalorder %s86, %s89
      %p95 = scmp.eq.s32.totalorder %s10, 0
      %p96 = por %p94, %p95
      %p97 = scmp.ne.s32.totalorder %s86, %s89
      %p98 = scmp.eq.s32.totalorder %s15, 3
      %p99 = por %p97, %p98
      %p100 = scmp.ne.s32.totalorder %s89, %s90
      %p101 = scmp.eq.s32.totalorder %s15, 0
      %p102 = por %p100, %p101
      %p103 = scmp.ne.s32.totalorder %s89, %s90
      %p104 = scmp.eq.s32.totalorder %s16, 3
      %p105 = por %p103, %p104
      %p107 = scmp.ne.s32.totalorder %s90, %s106
      %p108 = scmp.eq.s32.totalorder %s16, 0
      %p109 = por %p107, %p108
      %s110 = ssub.s32 %s17, %s29
      %p111 = scmp.eq.s32.totalorder %s110, 0
      %s113 = sadd.s32 %s112, 1
      %s114 = scalar_select %p111, %s112, %s113
      %p117 = pneg %p111
      %p118 = scmp.eq.s32.totalorder %s10, 3
      %p119 = por %p117, %p118
      %p120 = scmp.ne.s32.totalorder %s112, %s115
      %p121 = scmp.eq.s32.totalorder %s10, 0
      %p122 = por %p120, %p121
      %p123 = scmp.ne.s32.totalorder %s112, %s115
      %p124 = scmp.eq.s32.totalorder %s15, 3
      %p125 = por %p123, %p124
      %p126 = scmp.ne.s32.totalorder %s115, %s116
      %p127 = scmp.eq.s32.totalorder %s15, 0
      %p128 = por %p126, %p127
      %p129 = scmp.ne.s32.totalorder %s115, %s116
      %p130 = scmp.eq.s32.totalorder %s16, 3
      %p131 = por %p129, %p130
      %p133 = scmp.ne.s32.totalorder %s116, %s132
      %p134 = scmp.eq.s32.totalorder %s16, 0
      %p135 = por %p133, %p134
      %s136 = ssub.s32 %s17, %s29
      %p137 = scmp.eq.s32.totalorder %s136, 0
      %s139 = sadd.s32 %s138, 1
      %s140 = scalar_select %p137, %s138, %s139
      %p143 = pneg %p137
      %p144 = scmp.eq.s32.totalorder %s10, 3
      %p145 = por %p143, %p144
      %p146 = scmp.ne.s32.totalorder %s138, %s141
      %p147 = scmp.eq.s32.totalorder %s10, 0
      %p148 = por %p146, %p147
      %p149 = scmp.ne.s32.totalorder %s138, %s141
      %p150 = scmp.eq.s32.totalorder %s15, 3
      %p151 = por %p149, %p150
      %p152 = scmp.ne.s32.totalorder %s141, %s142
      %p153 = scmp.eq.s32.totalorder %s15, 0
      %p154 = por %p152, %p153
      %p155 = scmp.ne.s32.totalorder %s141, %s142
      %p156 = scmp.eq.s32.totalorder %s16, 3
      %p157 = por %p155, %p156
      %p159 = scmp.ne.s32.totalorder %s142, %s158
      %p160 = scmp.eq.s32.totalorder %s16, 0
      %p161 = por %p159, %p160
      %p162 = scmp.le.s32.totalorder 1, %s10
      %p163 = scmp.lt.s32.totalorder %s10, 5
      %p164 = pnand %p162, %p163
      %p165 = pneg %p164
      // Predicated region
      $region9: #{cnn1d_forward.18} parent=5 // pred_check
        _
      $region10: #{cnn1d_forward.18} parent=5 // pred_check_branch
        %167 = sbr.rel (%p164) target = $region12
      $region11: #{cnn1d_forward.18} parent=5 // pred_region
        %s168 = ssub.s32 %s10, 1
      $region12: #{cnn1d_forward.18} parent=5 // pred_fallthru
        _
      %p169 = scmp.lt.s32.totalorder %s10, 4
      // Predicated region
      $region13: #{cnn1d_forward.18} parent=5 // pred_check
        %p170 = pneg %p169
      $region14: #{cnn1d_forward.18} parent=5 // pred_check_branch
        %172 = sbr.rel (%p170) target = $region16
      $region15: #{cnn1d_forward.18} parent=5 // pred_region
        // Predicated region
        $region17: #{cnn1d_forward.18} parent=15 // pred_check
          %p173 = pneg %p42
        $region18: #{cnn1d_forward.18} parent=15 // pred_check_branch
          %175 = sbr.rel (%p173) target = $region20
        $region19: #{cnn1d_forward.18} parent=15 // pred_region
          %s176 = smul.u32 40, %s18
          %p177 = scmp.lt.s32.totalorder %s176, 79
          %s178 = scalar_select %p177, %s176, 79
          %s179 = smul.addr %s178, 2
          %s180 = scalar_lea.vmem %s0, %s179
          %s181 = smul.u32 40, %s18
        $region20: #{cnn1d_forward.18} parent=15 // pred_fallthru
          _
        // Predicated region
        $region21: #{cnn1d_forward.18} parent=15 // pred_check
          %p182 = pneg %p70
        $region22: #{cnn1d_forward.18} parent=15 // pred_check_branch
          %184 = sbr.rel (%p182) target = $region24
        $region23: #{cnn1d_forward.18} parent=15 // pred_region
          %s185 = sand.u32 %s60, 1
          %s186 = sand.u32 %s60, 1
          %s187 = smul.addr %s186, 5120
          %s188 = scalar_lea.vmem [#allocation3], %s187
          %s189 = smul.u32 160, %s18
          %s190 = smul.u32 4, %s17
          %s191 = smul.addr %s189, 8
          %s192 = sadd.s32 %s190, %s191
          %s193 = smul.addr %s192, 8
          %s194 = scalar_lea.vmem %s1, %s193
          // Predicated region
          $region25: #{cnn1d_forward.18} parent=23 // pred_check
            _
          $region26: #{cnn1d_forward.18} parent=23 // pred_check_branch
            %196 = sbr.rel (0) target = $region28
          $region27: #{cnn1d_forward.18} parent=23 // pred_region
            // Predicated region
            $region29: #{cnn1d_forward.18} parent=27 // pred_check
              _
            $region30: #{cnn1d_forward.18} parent=27 // pred_check_branch
              %198 = sbr.rel (0) target = $region32
            $region31: #{cnn1d_forward.18} parent=27 // pred_region
              loop: start=0, step=1, limit=1
              $region33: #{cnn1d_forward.18} parent=31 // loop_pre_header
                _
              $region34: #{cnn1d_forward.18} parent=31 // loop_header
                %s200 = sphi 0, %s204
                %p201 = scmp.ge.s32.totalorder %s200, 1
                %s205 = sphi %s194, %s194
                %s206 = sphi %s188, %s188
              $region35: #{cnn1d_forward.18} parent=31 // loop_header_branch
                %203 = sbr.rel (%p201) target = $region39
              $region36: #{cnn1d_forward.18} parent=31 // loop_body
                %v207 = vld [vmem:[%s205] sm:$0xff]
                %208 = vst [vmem:[%s206] sm:$0xff] %v207
                %v209 = vld [vmem:[%s205 + $0x8] sm:$0xff]
                %210 = vst [vmem:[%s206 + $0x8] sm:$0xff] %v209
                %v211 = vld [vmem:[%s205 + $0x10] sm:$0xff]
                %212 = vst [vmem:[%s206 + $0x10] sm:$0xff] %v211
                %v213 = vld [vmem:[%s205 + $0x18] sm:$0xff]
                %214 = vst [vmem:[%s206 + $0x18] sm:$0xff] %v213
                %v215 = vld [vmem:[%s205 + $0x40] sm:$0xff]
                %216 = vst [vmem:[%s206 + $0x20] sm:$0xff] %v215
                %v217 = vld [vmem:[%s205 + $0x48] sm:$0xff]
                %218 = vst [vmem:[%s206 + $0x28] sm:$0xff] %v217
                %v219 = vld [vmem:[%s205 + $0x50] sm:$0xff]
                %220 = vst [vmem:[%s206 + $0x30] sm:$0xff] %v219
                %v221 = vld [vmem:[%s205 + $0x58] sm:$0xff]
                %222 = vst [vmem:[%s206 + $0x38] sm:$0xff] %v221
                %v223 = vld [vmem:[%s205 + $0x80] sm:$0xff]
                %224 = vst [vmem:[%s206 + $0x40] sm:$0xff] %v223
                %v225 = vld [vmem:[%s205 + $0x88] sm:$0xff]
                %226 = vst [vmem:[%s206 + $0x48] sm:$0xff] %v225
                %v227 = vld [vmem:[%s205 + $0x90] sm:$0xff]
                %228 = vst [vmem:[%s206 + $0x50] sm:$0xff] %v227
                %v229 = vld [vmem:[%s205 + $0x98] sm:$0xff]
                %230 = vst [vmem:[%s206 + $0x58] sm:$0xff] %v229
                %v231 = vld [vmem:[%s205 + $0xc0] sm:$0xff]
                %232 = vst [vmem:[%s206 + $0x60] sm:$0xff] %v231
                %v233 = vld [vmem:[%s205 + $0xc8] sm:$0xff]
                %234 = vst [vmem:[%s206 + $0x68] sm:$0xff] %v233
                %v235 = vld [vmem:[%s205 + $0xd0] sm:$0xff]
                %236 = vst [vmem:[%s206 + $0x70] sm:$0xff] %v235
                %v237 = vld [vmem:[%s205 + $0xd8] sm:$0xff]
                %238 = vst [vmem:[%s206 + $0x78] sm:$0xff] %v237
                %v239 = vld [vmem:[%s205 + $0x100] sm:$0xff]
                %240 = vst [vmem:[%s206 + $0x80] sm:$0xff] %v239
                %v241 = vld [vmem:[%s205 + $0x108] sm:$0xff]
                %242 = vst [vmem:[%s206 + $0x88] sm:$0xff] %v241
                %v243 = vld [vmem:[%s205 + $0x110] sm:$0xff]
                %244 = vst [vmem:[%s206 + $0x90] sm:$0xff] %v243
                %v245 = vld [vmem:[%s205 + $0x118] sm:$0xff]
                %246 = vst [vmem:[%s206 + $0x98] sm:$0xff] %v245
                %v247 = vld [vmem:[%s205 + $0x140] sm:$0xff]
                %248 = vst [vmem:[%s206 + $0xa0] sm:$0xff] %v247
                %v249 = vld [vmem:[%s205 + $0x148] sm:$0xff]
                %250 = vst [vmem:[%s206 + $0xa8] sm:$0xff] %v249
                %v251 = vld [vmem:[%s205 + $0x150] sm:$0xff]
                %252 = vst [vmem:[%s206 + $0xb0] sm:$0xff] %v251
                %v253 = vld [vmem:[%s205 + $0x158] sm:$0xff]
                %254 = vst [vmem:[%s206 + $0xb8] sm:$0xff] %v253
                %v255 = vld [vmem:[%s205 + $0x180] sm:$0xff]
                %256 = vst [vmem:[%s206 + $0xc0] sm:$0xff] %v255
                %v257 = vld [vmem:[%s205 + $0x188] sm:$0xff]
                %258 = vst [vmem:[%s206 + $0xc8] sm:$0xff] %v257
                %v259 = vld [vmem:[%s205 + $0x190] sm:$0xff]
                %260 = vst [vmem:[%s206 + $0xd0] sm:$0xff] %v259
                %v261 = vld [vmem:[%s205 + $0x198] sm:$0xff]
                %262 = vst [vmem:[%s206 + $0xd8] sm:$0xff] %v261
                %v263 = vld [vmem:[%s205 + $0x1c0] sm:$0xff]
                %264 = vst [vmem:[%s206 + $0xe0] sm:$0xff] %v263
                %v265 = vld [vmem:[%s205 + $0x1c8] sm:$0xff]
                %266 = vst [vmem:[%s206 + $0xe8] sm:$0xff] %v265
                %v267 = vld [vmem:[%s205 + $0x1d0] sm:$0xff]
                %268 = vst [vmem:[%s206 + $0xf0] sm:$0xff] %v267
                %v269 = vld [vmem:[%s205 + $0x1d8] sm:$0xff]
                %270 = vst [vmem:[%s206 + $0xf8] sm:$0xff] %v269
                %v271 = vld [vmem:[%s205 + $0x200] sm:$0xff]
                %272 = vst [vmem:[%s206 + $0x100] sm:$0xff] %v271
                %v273 = vld [vmem:[%s205 + $0x208] sm:$0xff]
                %274 = vst [vmem:[%s206 + $0x108] sm:$0xff] %v273
                %v275 = vld [vmem:[%s205 + $0x210] sm:$0xff]
                %276 = vst [vmem:[%s206 + $0x110] sm:$0xff] %v275
                %v277 = vld [vmem:[%s205 + $0x218] sm:$0xff]
                %278 = vst [vmem:[%s206 + $0x118] sm:$0xff] %v277
                %v279 = vld [vmem:[%s205 + $0x240] sm:$0xff]
                %280 = vst [vmem:[%s206 + $0x120] sm:$0xff] %v279
                %v281 = vld [vmem:[%s205 + $0x248] sm:$0xff]
                %282 = vst [vmem:[%s206 + $0x128] sm:$0xff] %v281
                %v283 = vld [vmem:[%s205 + $0x250] sm:$0xff]
                %284 = vst [vmem:[%s206 + $0x130] sm:$0xff] %v283
                %v285 = vld [vmem:[%s205 + $0x258] sm:$0xff]
                %286 = vst [vmem:[%s206 + $0x138] sm:$0xff] %v285
                %v287 = vld [vmem:[%s205 + $0x280] sm:$0xff]
                %288 = vst [vmem:[%s206 + $0x140] sm:$0xff] %v287
                %v289 = vld [vmem:[%s205 + $0x288] sm:$0xff]
                %290 = vst [vmem:[%s206 + $0x148] sm:$0xff] %v289
                %v291 = vld [vmem:[%s205 + $0x290] sm:$0xff]
                %292 = vst [vmem:[%s206 + $0x150] sm:$0xff] %v291
                %v293 = vld [vmem:[%s205 + $0x298] sm:$0xff]
                %294 = vst [vmem:[%s206 + $0x158] sm:$0xff] %v293
                %v295 = vld [vmem:[%s205 + $0x2c0] sm:$0xff]
                %296 = vst [vmem:[%s206 + $0x160] sm:$0xff] %v295
                %v297 = vld [vmem:[%s205 + $0x2c8] sm:$0xff]
                %298 = vst [vmem:[%s206 + $0x168] sm:$0xff] %v297
                %v299 = vld [vmem:[%s205 + $0x2d0] sm:$0xff]
                %300 = vst [vmem:[%s206 + $0x170] sm:$0xff] %v299
                %v301 = vld [vmem:[%s205 + $0x2d8] sm:$0xff]
                %302 = vst [vmem:[%s206 + $0x178] sm:$0xff] %v301
                %v303 = vld [vmem:[%s205 + $0x300] sm:$0xff]
                %304 = vst [vmem:[%s206 + $0x180] sm:$0xff] %v303
                %v305 = vld [vmem:[%s205 + $0x308] sm:$0xff]
                %306 = vst [vmem:[%s206 + $0x188] sm:$0xff] %v305
                %v307 = vld [vmem:[%s205 + $0x310] sm:$0xff]
                %308 = vst [vmem:[%s206 + $0x190] sm:$0xff] %v307
                %v309 = vld [vmem:[%s205 + $0x318] sm:$0xff]
                %310 = vst [vmem:[%s206 + $0x198] sm:$0xff] %v309
                %v311 = vld [vmem:[%s205 + $0x340] sm:$0xff]
                %312 = vst [vmem:[%s206 + $0x1a0] sm:$0xff] %v311
                %v313 = vld [vmem:[%s205 + $0x348] sm:$0xff]
                %314 = vst [vmem:[%s206 + $0x1a8] sm:$0xff] %v313
                %v315 = vld [vmem:[%s205 + $0x350] sm:$0xff]
                %316 = vst [vmem:[%s206 + $0x1b0] sm:$0xff] %v315
                %v317 = vld [vmem:[%s205 + $0x358] sm:$0xff]
                %318 = vst [vmem:[%s206 + $0x1b8] sm:$0xff] %v317
                %v319 = vld [vmem:[%s205 + $0x380] sm:$0xff]
                %320 = vst [vmem:[%s206 + $0x1c0] sm:$0xff] %v319
                %v321 = vld [vmem:[%s205 + $0x388] sm:$0xff]
                %322 = vst [vmem:[%s206 + $0x1c8] sm:$0xff] %v321
                %v323 = vld [vmem:[%s205 + $0x390] sm:$0xff]
                %324 = vst [vmem:[%s206 + $0x1d0] sm:$0xff] %v323
                %v325 = vld [vmem:[%s205 + $0x398] sm:$0xff]
                %326 = vst [vmem:[%s206 + $0x1d8] sm:$0xff] %v325
                %v327 = vld [vmem:[%s205 + $0x3c0] sm:$0xff]
                %328 = vst [vmem:[%s206 + $0x1e0] sm:$0xff] %v327
                %v329 = vld [vmem:[%s205 + $0x3c8] sm:$0xff]
                %330 = vst [vmem:[%s206 + $0x1e8] sm:$0xff] %v329
                %v331 = vld [vmem:[%s205 + $0x3d0] sm:$0xff]
                %332 = vst [vmem:[%s206 + $0x1f0] sm:$0xff] %v331
                %v333 = vld [vmem:[%s205 + $0x3d8] sm:$0xff]
                %334 = vst [vmem:[%s206 + $0x1f8] sm:$0xff] %v333
                %v335 = vld [vmem:[%s205 + $0x400] sm:$0xff]
                %336 = vst [vmem:[%s206 + $0x200] sm:$0xff] %v335
                %v337 = vld [vmem:[%s205 + $0x408] sm:$0xff]
                %338 = vst [vmem:[%s206 + $0x208] sm:$0xff] %v337
                %v339 = vld [vmem:[%s205 + $0x410] sm:$0xff]
                %340 = vst [vmem:[%s206 + $0x210] sm:$0xff] %v339
                %v341 = vld [vmem:[%s205 + $0x418] sm:$0xff]
                %342 = vst [vmem:[%s206 + $0x218] sm:$0xff] %v341
                %v343 = vld [vmem:[%s205 + $0x440] sm:$0xff]
                %344 = vst [vmem:[%s206 + $0x220] sm:$0xff] %v343
                %v345 = vld [vmem:[%s205 + $0x448] sm:$0xff]
                %346 = vst [vmem:[%s206 + $0x228] sm:$0xff] %v345
                %v347 = vld [vmem:[%s205 + $0x450] sm:$0xff]
                %348 = vst [vmem:[%s206 + $0x230] sm:$0xff] %v347
                %v349 = vld [vmem:[%s205 + $0x458] sm:$0xff]
                %350 = vst [vmem:[%s206 + $0x238] sm:$0xff] %v349
                %v351 = vld [vmem:[%s205 + $0x480] sm:$0xff]
                %352 = vst [vmem:[%s206 + $0x240] sm:$0xff] %v351
                %v353 = vld [vmem:[%s205 + $0x488] sm:$0xff]
                %354 = vst [vmem:[%s206 + $0x248] sm:$0xff] %v353
                %v355 = vld [vmem:[%s205 + $0x490] sm:$0xff]
                %356 = vst [vmem:[%s206 + $0x250] sm:$0xff] %v355
                %v357 = vld [vmem:[%s205 + $0x498] sm:$0xff]
                %358 = vst [vmem:[%s206 + $0x258] sm:$0xff] %v357
                %v359 = vld [vmem:[%s205 + $0x4c0] sm:$0xff]
                %360 = vst [vmem:[%s206 + $0x260] sm:$0xff] %v359
                %v361 = vld [vmem:[%s205 + $0x4c8] sm:$0xff]
                %362 = vst [vmem:[%s206 + $0x268] sm:$0xff] %v361
                %v363 = vld [vmem:[%s205 + $0x4d0] sm:$0xff]
                %364 = vst [vmem:[%s206 + $0x270] sm:$0xff] %v363
                %v365 = vld [vmem:[%s205 + $0x4d8] sm:$0xff]
                %366 = vst [vmem:[%s206 + $0x278] sm:$0xff] %v365
                %v367 = vld [vmem:[%s205 + $0x500] sm:$0xff]
                %368 = vst [vmem:[%s206 + $0x280] sm:$0xff] %v367
                %v369 = vld [vmem:[%s205 + $0x508] sm:$0xff]
                %370 = vst [vmem:[%s206 + $0x288] sm:$0xff] %v369
                %v371 = vld [vmem:[%s205 + $0x510] sm:$0xff]
                %372 = vst [vmem:[%s206 + $0x290] sm:$0xff] %v371
                %v373 = vld [vmem:[%s205 + $0x518] sm:$0xff]
                %374 = vst [vmem:[%s206 + $0x298] sm:$0xff] %v373
                %v375 = vld [vmem:[%s205 + $0x540] sm:$0xff]
                %376 = vst [vmem:[%s206 + $0x2a0] sm:$0xff] %v375
                %v377 = vld [vmem:[%s205 + $0x548] sm:$0xff]
                %378 = vst [vmem:[%s206 + $0x2a8] sm:$0xff] %v377
                %v379 = vld [vmem:[%s205 + $0x550] sm:$0xff]
                %380 = vst [vmem:[%s206 + $0x2b0] sm:$0xff] %v379
                %v381 = vld [vmem:[%s205 + $0x558] sm:$0xff]
                %382 = vst [vmem:[%s206 + $0x2b8] sm:$0xff] %v381
                %v383 = vld [vmem:[%s205 + $0x580] sm:$0xff]
                %384 = vst [vmem:[%s206 + $0x2c0] sm:$0xff] %v383
                %v385 = vld [vmem:[%s205 + $0x588] sm:$0xff]
                %386 = vst [vmem:[%s206 + $0x2c8] sm:$0xff] %v385
                %v387 = vld [vmem:[%s205 + $0x590] sm:$0xff]
                %388 = vst [vmem:[%s206 + $0x2d0] sm:$0xff] %v387
                %v389 = vld [vmem:[%s205 + $0x598] sm:$0xff]
                %390 = vst [vmem:[%s206 + $0x2d8] sm:$0xff] %v389
                %v391 = vld [vmem:[%s205 + $0x5c0] sm:$0xff]
                %392 = vst [vmem:[%s206 + $0x2e0] sm:$0xff] %v391
                %v393 = vld [vmem:[%s205 + $0x5c8] sm:$0xff]
                %394 = vst [vmem:[%s206 + $0x2e8] sm:$0xff] %v393
                %v395 = vld [vmem:[%s205 + $0x5d0] sm:$0xff]
                %396 = vst [vmem:[%s206 + $0x2f0] sm:$0xff] %v395
                %v397 = vld [vmem:[%s205 + $0x5d8] sm:$0xff]
                %398 = vst [vmem:[%s206 + $0x2f8] sm:$0xff] %v397
                %v399 = vld [vmem:[%s205 + $0x600] sm:$0xff]
                %400 = vst [vmem:[%s206 + $0x300] sm:$0xff] %v399
                %v401 = vld [vmem:[%s205 + $0x608] sm:$0xff]
                %402 = vst [vmem:[%s206 + $0x308] sm:$0xff] %v401
                %v403 = vld [vmem:[%s205 + $0x610] sm:$0xff]
                %404 = vst [vmem:[%s206 + $0x310] sm:$0xff] %v403
                %v405 = vld [vmem:[%s205 + $0x618] sm:$0xff]
                %406 = vst [vmem:[%s206 + $0x318] sm:$0xff] %v405
                %v407 = vld [vmem:[%s205 + $0x640] sm:$0xff]
                %408 = vst [vmem:[%s206 + $0x320] sm:$0xff] %v407
                %v409 = vld [vmem:[%s205 + $0x648] sm:$0xff]
                %410 = vst [vmem:[%s206 + $0x328] sm:$0xff] %v409
                %v411 = vld [vmem:[%s205 + $0x650] sm:$0xff]
                %412 = vst [vmem:[%s206 + $0x330] sm:$0xff] %v411
                %v413 = vld [vmem:[%s205 + $0x658] sm:$0xff]
                %414 = vst [vmem:[%s206 + $0x338] sm:$0xff] %v413
                %v415 = vld [vmem:[%s205 + $0x680] sm:$0xff]
                %416 = vst [vmem:[%s206 + $0x340] sm:$0xff] %v415
                %v417 = vld [vmem:[%s205 + $0x688] sm:$0xff]
                %418 = vst [vmem:[%s206 + $0x348] sm:$0xff] %v417
                %v419 = vld [vmem:[%s205 + $0x690] sm:$0xff]
                %420 = vst [vmem:[%s206 + $0x350] sm:$0xff] %v419
                %v421 = vld [vmem:[%s205 + $0x698] sm:$0xff]
                %422 = vst [vmem:[%s206 + $0x358] sm:$0xff] %v421
                %v423 = vld [vmem:[%s205 + $0x6c0] sm:$0xff]
                %424 = vst [vmem:[%s206 + $0x360] sm:$0xff] %v423
                %v425 = vld [vmem:[%s205 + $0x6c8] sm:$0xff]
                %426 = vst [vmem:[%s206 + $0x368] sm:$0xff] %v425
                %v427 = vld [vmem:[%s205 + $0x6d0] sm:$0xff]
                %428 = vst [vmem:[%s206 + $0x370] sm:$0xff] %v427
                %v429 = vld [vmem:[%s205 + $0x6d8] sm:$0xff]
                %430 = vst [vmem:[%s206 + $0x378] sm:$0xff] %v429
                %v431 = vld [vmem:[%s205 + $0x700] sm:$0xff]
                %432 = vst [vmem:[%s206 + $0x380] sm:$0xff] %v431
                %v433 = vld [vmem:[%s205 + $0x708] sm:$0xff]
                %434 = vst [vmem:[%s206 + $0x388] sm:$0xff] %v433
                %v435 = vld [vmem:[%s205 + $0x710] sm:$0xff]
                %436 = vst [vmem:[%s206 + $0x390] sm:$0xff] %v435
                %v437 = vld [vmem:[%s205 + $0x718] sm:$0xff]
                %438 = vst [vmem:[%s206 + $0x398] sm:$0xff] %v437
                %v439 = vld [vmem:[%s205 + $0x740] sm:$0xff]
                %440 = vst [vmem:[%s206 + $0x3a0] sm:$0xff] %v439
                %v441 = vld [vmem:[%s205 + $0x748] sm:$0xff]
                %442 = vst [vmem:[%s206 + $0x3a8] sm:$0xff] %v441
                %v443 = vld [vmem:[%s205 + $0x750] sm:$0xff]
                %444 = vst [vmem:[%s206 + $0x3b0] sm:$0xff] %v443
                %v445 = vld [vmem:[%s205 + $0x758] sm:$0xff]
                %446 = vst [vmem:[%s206 + $0x3b8] sm:$0xff] %v445
                %v447 = vld [vmem:[%s205 + $0x780] sm:$0xff]
                %448 = vst [vmem:[%s206 + $0x3c0] sm:$0xff] %v447
                %v449 = vld [vmem:[%s205 + $0x788] sm:$0xff]
                %450 = vst [vmem:[%s206 + $0x3c8] sm:$0xff] %v449
                %v451 = vld [vmem:[%s205 + $0x790] sm:$0xff]
                %452 = vst [vmem:[%s206 + $0x3d0] sm:$0xff] %v451
                %v453 = vld [vmem:[%s205 + $0x798] sm:$0xff]
                %454 = vst [vmem:[%s206 + $0x3d8] sm:$0xff] %v453
                %v455 = vld [vmem:[%s205 + $0x7c0] sm:$0xff]
                %456 = vst [vmem:[%s206 + $0x3e0] sm:$0xff] %v455
                %v457 = vld [vmem:[%s205 + $0x7c8] sm:$0xff]
                %458 = vst [vmem:[%s206 + $0x3e8] sm:$0xff] %v457
                %v459 = vld [vmem:[%s205 + $0x7d0] sm:$0xff]
                %460 = vst [vmem:[%s206 + $0x3f0] sm:$0xff] %v459
                %v461 = vld [vmem:[%s205 + $0x7d8] sm:$0xff]
                %462 = vst [vmem:[%s206 + $0x3f8] sm:$0xff] %v461
                %v463 = vld [vmem:[%s205 + $0x800] sm:$0xff]
                %464 = vst [vmem:[%s206 + $0x400] sm:$0xff] %v463
                %v465 = vld [vmem:[%s205 + $0x808] sm:$0xff]
                %466 = vst [vmem:[%s206 + $0x408] sm:$0xff] %v465
                %v467 = vld [vmem:[%s205 + $0x810] sm:$0xff]
                %468 = vst [vmem:[%s206 + $0x410] sm:$0xff] %v467
                %v469 = vld [vmem:[%s205 + $0x818] sm:$0xff]
                %470 = vst [vmem:[%s206 + $0x418] sm:$0xff] %v469
                %v471 = vld [vmem:[%s205 + $0x840] sm:$0xff]
                %472 = vst [vmem:[%s206 + $0x420] sm:$0xff] %v471
                %v473 = vld [vmem:[%s205 + $0x848] sm:$0xff]
                %474 = vst [vmem:[%s206 + $0x428] sm:$0xff] %v473
                %v475 = vld [vmem:[%s205 + $0x850] sm:$0xff]
                %476 = vst [vmem:[%s206 + $0x430] sm:$0xff] %v475
                %v477 = vld [vmem:[%s205 + $0x858] sm:$0xff]
                %478 = vst [vmem:[%s206 + $0x438] sm:$0xff] %v477
                %v479 = vld [vmem:[%s205 + $0x880] sm:$0xff]
                %480 = vst [vmem:[%s206 + $0x440] sm:$0xff] %v479
                %v481 = vld [vmem:[%s205 + $0x888] sm:$0xff]
                %482 = vst [vmem:[%s206 + $0x448] sm:$0xff] %v481
                %v483 = vld [vmem:[%s205 + $0x890] sm:$0xff]
                %484 = vst [vmem:[%s206 + $0x450] sm:$0xff] %v483
                %v485 = vld [vmem:[%s205 + $0x898] sm:$0xff]
                %486 = vst [vmem:[%s206 + $0x458] sm:$0xff] %v485
                %v487 = vld [vmem:[%s205 + $0x8c0] sm:$0xff]
                %488 = vst [vmem:[%s206 + $0x460] sm:$0xff] %v487
                %v489 = vld [vmem:[%s205 + $0x8c8] sm:$0xff]
                %490 = vst [vmem:[%s206 + $0x468] sm:$0xff] %v489
                %v491 = vld [vmem:[%s205 + $0x8d0] sm:$0xff]
                %492 = vst [vmem:[%s206 + $0x470] sm:$0xff] %v491
                %v493 = vld [vmem:[%s205 + $0x8d8] sm:$0xff]
                %494 = vst [vmem:[%s206 + $0x478] sm:$0xff] %v493
                %v495 = vld [vmem:[%s205 + $0x900] sm:$0xff]
                %496 = vst [vmem:[%s206 + $0x480] sm:$0xff] %v495
                %v497 = vld [vmem:[%s205 + $0x908] sm:$0xff]
                %498 = vst [vmem:[%s206 + $0x488] sm:$0xff] %v497
                %v499 = vld [vmem:[%s205 + $0x910] sm:$0xff]
                %500 = vst [vmem:[%s206 + $0x490] sm:$0xff] %v499
                %v501 = vld [vmem:[%s205 + $0x918] sm:$0xff]
                %502 = vst [vmem:[%s206 + $0x498] sm:$0xff] %v501
                %v503 = vld [vmem:[%s205 + $0x940] sm:$0xff]
                %504 = vst [vmem:[%s206 + $0x4a0] sm:$0xff] %v503
                %v505 = vld [vmem:[%s205 + $0x948] sm:$0xff]
                %506 = vst [vmem:[%s206 + $0x4a8] sm:$0xff] %v505
                %v507 = vld [vmem:[%s205 + $0x950] sm:$0xff]
                %508 = vst [vmem:[%s206 + $0x4b0] sm:$0xff] %v507
                %v509 = vld [vmem:[%s205 + $0x958] sm:$0xff]
                %510 = vst [vmem:[%s206 + $0x4b8] sm:$0xff] %v509
                %v511 = vld [vmem:[%s205 + $0x980] sm:$0xff]
                %512 = vst [vmem:[%s206 + $0x4c0] sm:$0xff] %v511
                %v513 = vld [vmem:[%s205 + $0x988] sm:$0xff]
                %514 = vst [vmem:[%s206 + $0x4c8] sm:$0xff] %v513
                %v515 = vld [vmem:[%s205 + $0x990] sm:$0xff]
                %516 = vst [vmem:[%s206 + $0x4d0] sm:$0xff] %v515
                %v517 = vld [vmem:[%s205 + $0x998] sm:$0xff]
                %518 = vst [vmem:[%s206 + $0x4d8] sm:$0xff] %v517
                %v519 = vld [vmem:[%s205 + $0x9c0] sm:$0xff]
                %520 = vst [vmem:[%s206 + $0x4e0] sm:$0xff] %v519
                %v521 = vld [vmem:[%s205 + $0x9c8] sm:$0xff]
                %522 = vst [vmem:[%s206 + $0x4e8] sm:$0xff] %v521
                %v523 = vld [vmem:[%s205 + $0x9d0] sm:$0xff]
                %524 = vst [vmem:[%s206 + $0x4f0] sm:$0xff] %v523
                %v525 = vld [vmem:[%s205 + $0x9d8] sm:$0xff]
                %526 = vst [vmem:[%s206 + $0x4f8] sm:$0xff] %v525
                %v527 = vld [vmem:[%s205 + $0xa00] sm:$0xff]
                %528 = vst [vmem:[%s206 + $0x500] sm:$0xff] %v527
                %v529 = vld [vmem:[%s205 + $0xa08] sm:$0xff]
                %530 = vst [vmem:[%s206 + $0x508] sm:$0xff] %v529
                %v531 = vld [vmem:[%s205 + $0xa10] sm:$0xff]
                %532 = vst [vmem:[%s206 + $0x510] sm:$0xff] %v531
                %v533 = vld [vmem:[%s205 + $0xa18] sm:$0xff]
                %534 = vst [vmem:[%s206 + $0x518] sm:$0xff] %v533
                %v535 = vld [vmem:[%s205 + $0xa40] sm:$0xff]
                %536 = vst [vmem:[%s206 + $0x520] sm:$0xff] %v535
                %v537 = vld [vmem:[%s205 + $0xa48] sm:$0xff]
                %538 = vst [vmem:[%s206 + $0x528] sm:$0xff] %v537
                %v539 = vld [vmem:[%s205 + $0xa50] sm:$0xff]
                %540 = vst [vmem:[%s206 + $0x530] sm:$0xff] %v539
                %v541 = vld [vmem:[%s205 + $0xa58] sm:$0xff]
                %542 = vst [vmem:[%s206 + $0x538] sm:$0xff] %v541
                %v543 = vld [vmem:[%s205 + $0xa80] sm:$0xff]
                %544 = vst [vmem:[%s206 + $0x540] sm:$0xff] %v543
                %v545 = vld [vmem:[%s205 + $0xa88] sm:$0xff]
                %546 = vst [vmem:[%s206 + $0x548] sm:$0xff] %v545
                %v547 = vld [vmem:[%s205 + $0xa90] sm:$0xff]
                %548 = vst [vmem:[%s206 + $0x550] sm:$0xff] %v547
                %v549 = vld [vmem:[%s205 + $0xa98] sm:$0xff]
                %550 = vst [vmem:[%s206 + $0x558] sm:$0xff] %v549
                %v551 = vld [vmem:[%s205 + $0xac0] sm:$0xff]
                %552 = vst [vmem:[%s206 + $0x560] sm:$0xff] %v551
                %v553 = vld [vmem:[%s205 + $0xac8] sm:$0xff]
                %554 = vst [vmem:[%s206 + $0x568] sm:$0xff] %v553
                %v555 = vld [vmem:[%s205 + $0xad0] sm:$0xff]
                %556 = vst [vmem:[%s206 + $0x570] sm:$0xff] %v555
                %v557 = vld [vmem:[%s205 + $0xad8] sm:$0xff]
                %558 = vst [vmem:[%s206 + $0x578] sm:$0xff] %v557
                %v559 = vld [vmem:[%s205 + $0xb00] sm:$0xff]
                %560 = vst [vmem:[%s206 + $0x580] sm:$0xff] %v559
                %v561 = vld [vmem:[%s205 + $0xb08] sm:$0xff]
                %562 = vst [vmem:[%s206 + $0x588] sm:$0xff] %v561
                %v563 = vld [vmem:[%s205 + $0xb10] sm:$0xff]
                %564 = vst [vmem:[%s206 + $0x590] sm:$0xff] %v563
                %v565 = vld [vmem:[%s205 + $0xb18] sm:$0xff]
                %566 = vst [vmem:[%s206 + $0x598] sm:$0xff] %v565
                %v567 = vld [vmem:[%s205 + $0xb40] sm:$0xff]
                %568 = vst [vmem:[%s206 + $0x5a0] sm:$0xff] %v567
                %v569 = vld [vmem:[%s205 + $0xb48] sm:$0xff]
                %570 = vst [vmem:[%s206 + $0x5a8] sm:$0xff] %v569
                %v571 = vld [vmem:[%s205 + $0xb50] sm:$0xff]
                %572 = vst [vmem:[%s206 + $0x5b0] sm:$0xff] %v571
                %v573 = vld [vmem:[%s205 + $0xb58] sm:$0xff]
                %574 = vst [vmem:[%s206 + $0x5b8] sm:$0xff] %v573
                %v575 = vld [vmem:[%s205 + $0xb80] sm:$0xff]
                %576 = vst [vmem:[%s206 + $0x5c0] sm:$0xff] %v575
                %v577 = vld [vmem:[%s205 + $0xb88] sm:$0xff]
                %578 = vst [vmem:[%s206 + $0x5c8] sm:$0xff] %v577
                %v579 = vld [vmem:[%s205 + $0xb90] sm:$0xff]
                %580 = vst [vmem:[%s206 + $0x5d0] sm:$0xff] %v579
                %v581 = vld [vmem:[%s205 + $0xb98] sm:$0xff]
                %582 = vst [vmem:[%s206 + $0x5d8] sm:$0xff] %v581
                %v583 = vld [vmem:[%s205 + $0xbc0] sm:$0xff]
                %584 = vst [vmem:[%s206 + $0x5e0] sm:$0xff] %v583
                %v585 = vld [vmem:[%s205 + $0xbc8] sm:$0xff]
                %586 = vst [vmem:[%s206 + $0x5e8] sm:$0xff] %v585
                %v587 = vld [vmem:[%s205 + $0xbd0] sm:$0xff]
                %588 = vst [vmem:[%s206 + $0x5f0] sm:$0xff] %v587
                %v589 = vld [vmem:[%s205 + $0xbd8] sm:$0xff]
                %590 = vst [vmem:[%s206 + $0x5f8] sm:$0xff] %v589
                %v591 = vld [vmem:[%s205 + $0xc00] sm:$0xff]
                %592 = vst [vmem:[%s206 + $0x600] sm:$0xff] %v591
                %v593 = vld [vmem:[%s205 + $0xc08] sm:$0xff]
                %594 = vst [vmem:[%s206 + $0x608] sm:$0xff] %v593
                %v595 = vld [vmem:[%s205 + $0xc10] sm:$0xff]
                %596 = vst [vmem:[%s206 + $0x610] sm:$0xff] %v595
                %v597 = vld [vmem:[%s205 + $0xc18] sm:$0xff]
                %598 = vst [vmem:[%s206 + $0x618] sm:$0xff] %v597
                %v599 = vld [vmem:[%s205 + $0xc40] sm:$0xff]
                %600 = vst [vmem:[%s206 + $0x620] sm:$0xff] %v599
                %v601 = vld [vmem:[%s205 + $0xc48] sm:$0xff]
                %602 = vst [vmem:[%s206 + $0x628] sm:$0xff] %v601
                %v603 = vld [vmem:[%s205 + $0xc50] sm:$0xff]
                %604 = vst [vmem:[%s206 + $0x630] sm:$0xff] %v603
                %v605 = vld [vmem:[%s205 + $0xc58] sm:$0xff]
                %606 = vst [vmem:[%s206 + $0x638] sm:$0xff] %v605
                %v607 = vld [vmem:[%s205 + $0xc80] sm:$0xff]
                %608 = vst [vmem:[%s206 + $0x640] sm:$0xff] %v607
                %v609 = vld [vmem:[%s205 + $0xc88] sm:$0xff]
                %610 = vst [vmem:[%s206 + $0x648] sm:$0xff] %v609
                %v611 = vld [vmem:[%s205 + $0xc90] sm:$0xff]
                %612 = vst [vmem:[%s206 + $0x650] sm:$0xff] %v611
                %v613 = vld [vmem:[%s205 + $0xc98] sm:$0xff]
                %614 = vst [vmem:[%s206 + $0x658] sm:$0xff] %v613
                %v615 = vld [vmem:[%s205 + $0xcc0] sm:$0xff]
                %616 = vst [vmem:[%s206 + $0x660] sm:$0xff] %v615
                %v617 = vld [vmem:[%s205 + $0xcc8] sm:$0xff]
                %618 = vst [vmem:[%s206 + $0x668] sm:$0xff] %v617
                %v619 = vld [vmem:[%s205 + $0xcd0] sm:$0xff]
                %620 = vst [vmem:[%s206 + $0x670] sm:$0xff] %v619
                %v621 = vld [vmem:[%s205 + $0xcd8] sm:$0xff]
                %622 = vst [vmem:[%s206 + $0x678] sm:$0xff] %v621
                %v623 = vld [vmem:[%s205 + $0xd00] sm:$0xff]
                %624 = vst [vmem:[%s206 + $0x680] sm:$0xff] %v623
                %v625 = vld [vmem:[%s205 + $0xd08] sm:$0xff]
                %626 = vst [vmem:[%s206 + $0x688] sm:$0xff] %v625
                %v627 = vld [vmem:[%s205 + $0xd10] sm:$0xff]
                %628 = vst [vmem:[%s206 + $0x690] sm:$0xff] %v627
                %v629 = vld [vmem:[%s205 + $0xd18] sm:$0xff]
                %630 = vst [vmem:[%s206 + $0x698] sm:$0xff] %v629
                %v631 = vld [vmem:[%s205 + $0xd40] sm:$0xff]
                %632 = vst [vmem:[%s206 + $0x6a0] sm:$0xff] %v631
                %v633 = vld [vmem:[%s205 + $0xd48] sm:$0xff]
                %634 = vst [vmem:[%s206 + $0x6a8] sm:$0xff] %v633
                %v635 = vld [vmem:[%s205 + $0xd50] sm:$0xff]
                %636 = vst [vmem:[%s206 + $0x6b0] sm:$0xff] %v635
                %v637 = vld [vmem:[%s205 + $0xd58] sm:$0xff]
                %638 = vst [vmem:[%s206 + $0x6b8] sm:$0xff] %v637
                %v639 = vld [vmem:[%s205 + $0xd80] sm:$0xff]
                %640 = vst [vmem:[%s206 + $0x6c0] sm:$0xff] %v639
                %v641 = vld [vmem:[%s205 + $0xd88] sm:$0xff]
                %642 = vst [vmem:[%s206 + $0x6c8] sm:$0xff] %v641
                %v643 = vld [vmem:[%s205 + $0xd90] sm:$0xff]
                %644 = vst [vmem:[%s206 + $0x6d0] sm:$0xff] %v643
                %v645 = vld [vmem:[%s205 + $0xd98] sm:$0xff]
                %646 = vst [vmem:[%s206 + $0x6d8] sm:$0xff] %v645
                %v647 = vld [vmem:[%s205 + $0xdc0] sm:$0xff]
                %648 = vst [vmem:[%s206 + $0x6e0] sm:$0xff] %v647
                %v649 = vld [vmem:[%s205 + $0xdc8] sm:$0xff]
                %650 = vst [vmem:[%s206 + $0x6e8] sm:$0xff] %v649
                %v651 = vld [vmem:[%s205 + $0xdd0] sm:$0xff]
                %652 = vst [vmem:[%s206 + $0x6f0] sm:$0xff] %v651
                %v653 = vld [vmem:[%s205 + $0xdd8] sm:$0xff]
                %654 = vst [vmem:[%s206 + $0x6f8] sm:$0xff] %v653
                %v655 = vld [vmem:[%s205 + $0xe00] sm:$0xff]
                %656 = vst [vmem:[%s206 + $0x700] sm:$0xff] %v655
                %v657 = vld [vmem:[%s205 + $0xe08] sm:$0xff]
                %658 = vst [vmem:[%s206 + $0x708] sm:$0xff] %v657
                %v659 = vld [vmem:[%s205 + $0xe10] sm:$0xff]
                %660 = vst [vmem:[%s206 + $0x710] sm:$0xff] %v659
                %v661 = vld [vmem:[%s205 + $0xe18] sm:$0xff]
                %662 = vst [vmem:[%s206 + $0x718] sm:$0xff] %v661
                %v663 = vld [vmem:[%s205 + $0xe40] sm:$0xff]
                %664 = vst [vmem:[%s206 + $0x720] sm:$0xff] %v663
                %v665 = vld [vmem:[%s205 + $0xe48] sm:$0xff]
                %666 = vst [vmem:[%s206 + $0x728] sm:$0xff] %v665
                %v667 = vld [vmem:[%s205 + $0xe50] sm:$0xff]
                %668 = vst [vmem:[%s206 + $0x730] sm:$0xff] %v667
                %v669 = vld [vmem:[%s205 + $0xe58] sm:$0xff]
                %670 = vst [vmem:[%s206 + $0x738] sm:$0xff] %v669
                %v671 = vld [vmem:[%s205 + $0xe80] sm:$0xff]
                %672 = vst [vmem:[%s206 + $0x740] sm:$0xff] %v671
                %v673 = vld [vmem:[%s205 + $0xe88] sm:$0xff]
                %674 = vst [vmem:[%s206 + $0x748] sm:$0xff] %v673
                %v675 = vld [vmem:[%s205 + $0xe90] sm:$0xff]
                %676 = vst [vmem:[%s206 + $0x750] sm:$0xff] %v675
                %v677 = vld [vmem:[%s205 + $0xe98] sm:$0xff]
                %678 = vst [vmem:[%s206 + $0x758] sm:$0xff] %v677
                %v679 = vld [vmem:[%s205 + $0xec0] sm:$0xff]
                %680 = vst [vmem:[%s206 + $0x760] sm:$0xff] %v679
                %v681 = vld [vmem:[%s205 + $0xec8] sm:$0xff]
                %682 = vst [vmem:[%s206 + $0x768] sm:$0xff] %v681
                %v683 = vld [vmem:[%s205 + $0xed0] sm:$0xff]
                %684 = vst [vmem:[%s206 + $0x770] sm:$0xff] %v683
                %v685 = vld [vmem:[%s205 + $0xed8] sm:$0xff]
                %686 = vst [vmem:[%s206 + $0x778] sm:$0xff] %v685
                %v687 = vld [vmem:[%s205 + $0xf00] sm:$0xff]
                %688 = vst [vmem:[%s206 + $0x780] sm:$0xff] %v687
                %v689 = vld [vmem:[%s205 + $0xf08] sm:$0xff]
                %690 = vst [vmem:[%s206 + $0x788] sm:$0xff] %v689
                %v691 = vld [vmem:[%s205 + $0xf10] sm:$0xff]
                %692 = vst [vmem:[%s206 + $0x790] sm:$0xff] %v691
                %v693 = vld [vmem:[%s205 + $0xf18] sm:$0xff]
                %694 = vst [vmem:[%s206 + $0x798] sm:$0xff] %v693
                %v695 = vld [vmem:[%s205 + $0xf40] sm:$0xff]
                %696 = vst [vmem:[%s206 + $0x7a0] sm:$0xff] %v695
                %v697 = vld [vmem:[%s205 + $0xf48] sm:$0xff]
                %698 = vst [vmem:[%s206 + $0x7a8] sm:$0xff] %v697
                %v699 = vld [vmem:[%s205 + $0xf50] sm:$0xff]
                %700 = vst [vmem:[%s206 + $0x7b0] sm:$0xff] %v699
                %v701 = vld [vmem:[%s205 + $0xf58] sm:$0xff]
                %702 = vst [vmem:[%s206 + $0x7b8] sm:$0xff] %v701
                %v703 = vld [vmem:[%s205 + $0xf80] sm:$0xff]
                %704 = vst [vmem:[%s206 + $0x7c0] sm:$0xff] %v703
                %v705 = vld [vmem:[%s205 + $0xf88] sm:$0xff]
                %706 = vst [vmem:[%s206 + $0x7c8] sm:$0xff] %v705
                %v707 = vld [vmem:[%s205 + $0xf90] sm:$0xff]
                %708 = vst [vmem:[%s206 + $0x7d0] sm:$0xff] %v707
                %v709 = vld [vmem:[%s205 + $0xf98] sm:$0xff]
                %710 = vst [vmem:[%s206 + $0x7d8] sm:$0xff] %v709
                %v711 = vld [vmem:[%s205 + $0xfc0] sm:$0xff]
                %712 = vst [vmem:[%s206 + $0x7e0] sm:$0xff] %v711
                %v713 = vld [vmem:[%s205 + $0xfc8] sm:$0xff]
                %714 = vst [vmem:[%s206 + $0x7e8] sm:$0xff] %v713
                %v715 = vld [vmem:[%s205 + $0xfd0] sm:$0xff]
                %716 = vst [vmem:[%s206 + $0x7f0] sm:$0xff] %v715
                %v717 = vld [vmem:[%s205 + $0xfd8] sm:$0xff]
                %718 = vst [vmem:[%s206 + $0x7f8] sm:$0xff] %v717
                %v719 = vld [vmem:[%s205 + $0x1000] sm:$0xff]
                %720 = vst [vmem:[%s206 + $0x800] sm:$0xff] %v719
                %v721 = vld [vmem:[%s205 + $0x1008] sm:$0xff]
                %722 = vst [vmem:[%s206 + $0x808] sm:$0xff] %v721
                %v723 = vld [vmem:[%s205 + $0x1010] sm:$0xff]
                %724 = vst [vmem:[%s206 + $0x810] sm:$0xff] %v723
                %v725 = vld [vmem:[%s205 + $0x1018] sm:$0xff]
                %726 = vst [vmem:[%s206 + $0x818] sm:$0xff] %v725
                %v727 = vld [vmem:[%s205 + $0x1040] sm:$0xff]
                %728 = vst [vmem:[%s206 + $0x820] sm:$0xff] %v727
                %v729 = vld [vmem:[%s205 + $0x1048] sm:$0xff]
                %730 = vst [vmem:[%s206 + $0x828] sm:$0xff] %v729
                %v731 = vld [vmem:[%s205 + $0x1050] sm:$0xff]
                %732 = vst [vmem:[%s206 + $0x830] sm:$0xff] %v731
                %v733 = vld [vmem:[%s205 + $0x1058] sm:$0xff]
                %734 = vst [vmem:[%s206 + $0x838] sm:$0xff] %v733
                %v735 = vld [vmem:[%s205 + $0x1080] sm:$0xff]
                %736 = vst [vmem:[%s206 + $0x840] sm:$0xff] %v735
                %v737 = vld [vmem:[%s205 + $0x1088] sm:$0xff]
                %738 = vst [vmem:[%s206 + $0x848] sm:$0xff] %v737
                %v739 = vld [vmem:[%s205 + $0x1090] sm:$0xff]
                %740 = vst [vmem:[%s206 + $0x850] sm:$0xff] %v739
                %v741 = vld [vmem:[%s205 + $0x1098] sm:$0xff]
                %742 = vst [vmem:[%s206 + $0x858] sm:$0xff] %v741
                %v743 = vld [vmem:[%s205 + $0x10c0] sm:$0xff]
                %744 = vst [vmem:[%s206 + $0x860] sm:$0xff] %v743
                %v745 = vld [vmem:[%s205 + $0x10c8] sm:$0xff]
                %746 = vst [vmem:[%s206 + $0x868] sm:$0xff] %v745
                %v747 = vld [vmem:[%s205 + $0x10d0] sm:$0xff]
                %748 = vst [vmem:[%s206 + $0x870] sm:$0xff] %v747
                %v749 = vld [vmem:[%s205 + $0x10d8] sm:$0xff]
                %750 = vst [vmem:[%s206 + $0x878] sm:$0xff] %v749
                %v751 = vld [vmem:[%s205 + $0x1100] sm:$0xff]
                %752 = vst [vmem:[%s206 + $0x880] sm:$0xff] %v751
                %v753 = vld [vmem:[%s205 + $0x1108] sm:$0xff]
                %754 = vst [vmem:[%s206 + $0x888] sm:$0xff] %v753
                %v755 = vld [vmem:[%s205 + $0x1110] sm:$0xff]
                %756 = vst [vmem:[%s206 + $0x890] sm:$0xff] %v755
                %v757 = vld [vmem:[%s205 + $0x1118] sm:$0xff]
                %758 = vst [vmem:[%s206 + $0x898] sm:$0xff] %v757
                %v759 = vld [vmem:[%s205 + $0x1140] sm:$0xff]
                %760 = vst [vmem:[%s206 + $0x8a0] sm:$0xff] %v759
                %v761 = vld [vmem:[%s205 + $0x1148] sm:$0xff]
                %762 = vst [vmem:[%s206 + $0x8a8] sm:$0xff] %v761
                %v763 = vld [vmem:[%s205 + $0x1150] sm:$0xff]
                %764 = vst [vmem:[%s206 + $0x8b0] sm:$0xff] %v763
                %v765 = vld [vmem:[%s205 + $0x1158] sm:$0xff]
                %766 = vst [vmem:[%s206 + $0x8b8] sm:$0xff] %v765
                %v767 = vld [vmem:[%s205 + $0x1180] sm:$0xff]
                %768 = vst [vmem:[%s206 + $0x8c0] sm:$0xff] %v767
                %v769 = vld [vmem:[%s205 + $0x1188] sm:$0xff]
                %770 = vst [vmem:[%s206 + $0x8c8] sm:$0xff] %v769
                %v771 = vld [vmem:[%s205 + $0x1190] sm:$0xff]
                %772 = vst [vmem:[%s206 + $0x8d0] sm:$0xff] %v771
                %v773 = vld [vmem:[%s205 + $0x1198] sm:$0xff]
                %774 = vst [vmem:[%s206 + $0x8d8] sm:$0xff] %v773
                %v775 = vld [vmem:[%s205 + $0x11c0] sm:$0xff]
                %776 = vst [vmem:[%s206 + $0x8e0] sm:$0xff] %v775
                %v777 = vld [vmem:[%s205 + $0x11c8] sm:$0xff]
                %778 = vst [vmem:[%s206 + $0x8e8] sm:$0xff] %v777
                %v779 = vld [vmem:[%s205 + $0x11d0] sm:$0xff]
                %780 = vst [vmem:[%s206 + $0x8f0] sm:$0xff] %v779
                %v781 = vld [vmem:[%s205 + $0x11d8] sm:$0xff]
                %782 = vst [vmem:[%s206 + $0x8f8] sm:$0xff] %v781
                %v783 = vld [vmem:[%s205 + $0x1200] sm:$0xff]
                %784 = vst [vmem:[%s206 + $0x900] sm:$0xff] %v783
                %v785 = vld [vmem:[%s205 + $0x1208] sm:$0xff]
                %786 = vst [vmem:[%s206 + $0x908] sm:$0xff] %v785
                %v787 = vld [vmem:[%s205 + $0x1210] sm:$0xff]
                %788 = vst [vmem:[%s206 + $0x910] sm:$0xff] %v787
                %v789 = vld [vmem:[%s205 + $0x1218] sm:$0xff]
                %790 = vst [vmem:[%s206 + $0x918] sm:$0xff] %v789
                %v791 = vld [vmem:[%s205 + $0x1240] sm:$0xff]
                %792 = vst [vmem:[%s206 + $0x920] sm:$0xff] %v791
                %v793 = vld [vmem:[%s205 + $0x1248] sm:$0xff]
                %794 = vst [vmem:[%s206 + $0x928] sm:$0xff] %v793
                %v795 = vld [vmem:[%s205 + $0x1250] sm:$0xff]
                %796 = vst [vmem:[%s206 + $0x930] sm:$0xff] %v795
                %v797 = vld [vmem:[%s205 + $0x1258] sm:$0xff]
                %798 = vst [vmem:[%s206 + $0x938] sm:$0xff] %v797
                %v799 = vld [vmem:[%s205 + $0x1280] sm:$0xff]
                %800 = vst [vmem:[%s206 + $0x940] sm:$0xff] %v799
                %v801 = vld [vmem:[%s205 + $0x1288] sm:$0xff]
                %802 = vst [vmem:[%s206 + $0x948] sm:$0xff] %v801
                %v803 = vld [vmem:[%s205 + $0x1290] sm:$0xff]
                %804 = vst [vmem:[%s206 + $0x950] sm:$0xff] %v803
                %v805 = vld [vmem:[%s205 + $0x1298] sm:$0xff]
                %806 = vst [vmem:[%s206 + $0x958] sm:$0xff] %v805
                %v807 = vld [vmem:[%s205 + $0x12c0] sm:$0xff]
                %808 = vst [vmem:[%s206 + $0x960] sm:$0xff] %v807
                %v809 = vld [vmem:[%s205 + $0x12c8] sm:$0xff]
                %810 = vst [vmem:[%s206 + $0x968] sm:$0xff] %v809
                %v811 = vld [vmem:[%s205 + $0x12d0] sm:$0xff]
                %812 = vst [vmem:[%s206 + $0x970] sm:$0xff] %v811
                %v813 = vld [vmem:[%s205 + $0x12d8] sm:$0xff]
                %814 = vst [vmem:[%s206 + $0x978] sm:$0xff] %v813
                %v815 = vld [vmem:[%s205 + $0x1300] sm:$0xff]
                %816 = vst [vmem:[%s206 + $0x980] sm:$0xff] %v815
                %v817 = vld [vmem:[%s205 + $0x1308] sm:$0xff]
                %818 = vst [vmem:[%s206 + $0x988] sm:$0xff] %v817
                %v819 = vld [vmem:[%s205 + $0x1310] sm:$0xff]
                %820 = vst [vmem:[%s206 + $0x990] sm:$0xff] %v819
                %v821 = vld [vmem:[%s205 + $0x1318] sm:$0xff]
                %822 = vst [vmem:[%s206 + $0x998] sm:$0xff] %v821
                %v823 = vld [vmem:[%s205 + $0x1340] sm:$0xff]
                %824 = vst [vmem:[%s206 + $0x9a0] sm:$0xff] %v823
                %v825 = vld [vmem:[%s205 + $0x1348] sm:$0xff]
                %826 = vst [vmem:[%s206 + $0x9a8] sm:$0xff] %v825
                %v827 = vld [vmem:[%s205 + $0x1350] sm:$0xff]
                %828 = vst [vmem:[%s206 + $0x9b0] sm:$0xff] %v827
                %v829 = vld [vmem:[%s205 + $0x1358] sm:$0xff]
                %830 = vst [vmem:[%s206 + $0x9b8] sm:$0xff] %v829
                %v831 = vld [vmem:[%s205 + $0x1380] sm:$0xff]
                %832 = vst [vmem:[%s206 + $0x9c0] sm:$0xff] %v831
                %v833 = vld [vmem:[%s205 + $0x1388] sm:$0xff]
                %834 = vst [vmem:[%s206 + $0x9c8] sm:$0xff] %v833
                %v835 = vld [vmem:[%s205 + $0x1390] sm:$0xff]
                %836 = vst [vmem:[%s206 + $0x9d0] sm:$0xff] %v835
                %v837 = vld [vmem:[%s205 + $0x1398] sm:$0xff]
                %838 = vst [vmem:[%s206 + $0x9d8] sm:$0xff] %v837
                %v839 = vld [vmem:[%s205 + $0x13c0] sm:$0xff]
                %840 = vst [vmem:[%s206 + $0x9e0] sm:$0xff] %v839
                %v841 = vld [vmem:[%s205 + $0x13c8] sm:$0xff]
                %842 = vst [vmem:[%s206 + $0x9e8] sm:$0xff] %v841
                %v843 = vld [vmem:[%s205 + $0x13d0] sm:$0xff]
                %844 = vst [vmem:[%s206 + $0x9f0] sm:$0xff] %v843
                %v845 = vld [vmem:[%s205 + $0x13d8] sm:$0xff]
                %846 = vst [vmem:[%s206 + $0x9f8] sm:$0xff] %v845
                %v847 = vld [vmem:[%s205 + $0x1400] sm:$0xff]
                %848 = vst [vmem:[%s206 + $0xa00] sm:$0xff] %v847
                %v849 = vld [vmem:[%s205 + $0x1408] sm:$0xff]
                %850 = vst [vmem:[%s206 + $0xa08] sm:$0xff] %v849
                %v851 = vld [vmem:[%s205 + $0x1410] sm:$0xff]
                %852 = vst [vmem:[%s206 + $0xa10] sm:$0xff] %v851
                %v853 = vld [vmem:[%s205 + $0x1418] sm:$0xff]
                %854 = vst [vmem:[%s206 + $0xa18] sm:$0xff] %v853
                %v855 = vld [vmem:[%s205 + $0x1440] sm:$0xff]
                %856 = vst [vmem:[%s206 + $0xa20] sm:$0xff] %v855
                %v857 = vld [vmem:[%s205 + $0x1448] sm:$0xff]
                %858 = vst [vmem:[%s206 + $0xa28] sm:$0xff] %v857
                %v859 = vld [vmem:[%s205 + $0x1450] sm:$0xff]
                %860 = vst [vmem:[%s206 + $0xa30] sm:$0xff] %v859
                %v861 = vld [vmem:[%s205 + $0x1458] sm:$0xff]
                %862 = vst [vmem:[%s206 + $0xa38] sm:$0xff] %v861
                %v863 = vld [vmem:[%s205 + $0x1480] sm:$0xff]
                %864 = vst [vmem:[%s206 + $0xa40] sm:$0xff] %v863
                %v865 = vld [vmem:[%s205 + $0x1488] sm:$0xff]
                %866 = vst [vmem:[%s206 + $0xa48] sm:$0xff] %v865
                %v867 = vld [vmem:[%s205 + $0x1490] sm:$0xff]
                %868 = vst [vmem:[%s206 + $0xa50] sm:$0xff] %v867
                %v869 = vld [vmem:[%s205 + $0x1498] sm:$0xff]
                %870 = vst [vmem:[%s206 + $0xa58] sm:$0xff] %v869
                %v871 = vld [vmem:[%s205 + $0x14c0] sm:$0xff]
                %872 = vst [vmem:[%s206 + $0xa60] sm:$0xff] %v871
                %v873 = vld [vmem:[%s205 + $0x14c8] sm:$0xff]
                %874 = vst [vmem:[%s206 + $0xa68] sm:$0xff] %v873
                %v875 = vld [vmem:[%s205 + $0x14d0] sm:$0xff]
                %876 = vst [vmem:[%s206 + $0xa70] sm:$0xff] %v875
                %v877 = vld [vmem:[%s205 + $0x14d8] sm:$0xff]
                %878 = vst [vmem:[%s206 + $0xa78] sm:$0xff] %v877
                %v879 = vld [vmem:[%s205 + $0x1500] sm:$0xff]
                %880 = vst [vmem:[%s206 + $0xa80] sm:$0xff] %v879
                %v881 = vld [vmem:[%s205 + $0x1508] sm:$0xff]
                %882 = vst [vmem:[%s206 + $0xa88] sm:$0xff] %v881
                %v883 = vld [vmem:[%s205 + $0x1510] sm:$0xff]
                %884 = vst [vmem:[%s206 + $0xa90] sm:$0xff] %v883
                %v885 = vld [vmem:[%s205 + $0x1518] sm:$0xff]
                %886 = vst [vmem:[%s206 + $0xa98] sm:$0xff] %v885
                %v887 = vld [vmem:[%s205 + $0x1540] sm:$0xff]
                %888 = vst [vmem:[%s206 + $0xaa0] sm:$0xff] %v887
                %v889 = vld [vmem:[%s205 + $0x1548] sm:$0xff]
                %890 = vst [vmem:[%s206 + $0xaa8] sm:$0xff] %v889
                %v891 = vld [vmem:[%s205 + $0x1550] sm:$0xff]
                %892 = vst [vmem:[%s206 + $0xab0] sm:$0xff] %v891
                %v893 = vld [vmem:[%s205 + $0x1558] sm:$0xff]
                %894 = vst [vmem:[%s206 + $0xab8] sm:$0xff] %v893
                %v895 = vld [vmem:[%s205 + $0x1580] sm:$0xff]
                %896 = vst [vmem:[%s206 + $0xac0] sm:$0xff] %v895
                %v897 = vld [vmem:[%s205 + $0x1588] sm:$0xff]
                %898 = vst [vmem:[%s206 + $0xac8] sm:$0xff] %v897
                %v899 = vld [vmem:[%s205 + $0x1590] sm:$0xff]
                %900 = vst [vmem:[%s206 + $0xad0] sm:$0xff] %v899
                %v901 = vld [vmem:[%s205 + $0x1598] sm:$0xff]
                %902 = vst [vmem:[%s206 + $0xad8] sm:$0xff] %v901
                %v903 = vld [vmem:[%s205 + $0x15c0] sm:$0xff]
                %904 = vst [vmem:[%s206 + $0xae0] sm:$0xff] %v903
                %v905 = vld [vmem:[%s205 + $0x15c8] sm:$0xff]
                %906 = vst [vmem:[%s206 + $0xae8] sm:$0xff] %v905
                %v907 = vld [vmem:[%s205 + $0x15d0] sm:$0xff]
                %908 = vst [vmem:[%s206 + $0xaf0] sm:$0xff] %v907
                %v909 = vld [vmem:[%s205 + $0x15d8] sm:$0xff]
                %910 = vst [vmem:[%s206 + $0xaf8] sm:$0xff] %v909
                %v911 = vld [vmem:[%s205 + $0x1600] sm:$0xff]
                %912 = vst [vmem:[%s206 + $0xb00] sm:$0xff] %v911
                %v913 = vld [vmem:[%s205 + $0x1608] sm:$0xff]
                %914 = vst [vmem:[%s206 + $0xb08] sm:$0xff] %v913
                %v915 = vld [vmem:[%s205 + $0x1610] sm:$0xff]
                %916 = vst [vmem:[%s206 + $0xb10] sm:$0xff] %v915
                %v917 = vld [vmem:[%s205 + $0x1618] sm:$0xff]
                %918 = vst [vmem:[%s206 + $0xb18] sm:$0xff] %v917
                %v919 = vld [vmem:[%s205 + $0x1640] sm:$0xff]
                %920 = vst [vmem:[%s206 + $0xb20] sm:$0xff] %v919
                %v921 = vld [vmem:[%s205 + $0x1648] sm:$0xff]
                %922 = vst [vmem:[%s206 + $0xb28] sm:$0xff] %v921
                %v923 = vld [vmem:[%s205 + $0x1650] sm:$0xff]
                %924 = vst [vmem:[%s206 + $0xb30] sm:$0xff] %v923
                %v925 = vld [vmem:[%s205 + $0x1658] sm:$0xff]
                %926 = vst [vmem:[%s206 + $0xb38] sm:$0xff] %v925
                %v927 = vld [vmem:[%s205 + $0x1680] sm:$0xff]
                %928 = vst [vmem:[%s206 + $0xb40] sm:$0xff] %v927
                %v929 = vld [vmem:[%s205 + $0x1688] sm:$0xff]
                %930 = vst [vmem:[%s206 + $0xb48] sm:$0xff] %v929
                %v931 = vld [vmem:[%s205 + $0x1690] sm:$0xff]
                %932 = vst [vmem:[%s206 + $0xb50] sm:$0xff] %v931
                %v933 = vld [vmem:[%s205 + $0x1698] sm:$0xff]
                %934 = vst [vmem:[%s206 + $0xb58] sm:$0xff] %v933
                %v935 = vld [vmem:[%s205 + $0x16c0] sm:$0xff]
                %936 = vst [vmem:[%s206 + $0xb60] sm:$0xff] %v935
                %v937 = vld [vmem:[%s205 + $0x16c8] sm:$0xff]
                %938 = vst [vmem:[%s206 + $0xb68] sm:$0xff] %v937
                %v939 = vld [vmem:[%s205 + $0x16d0] sm:$0xff]
                %940 = vst [vmem:[%s206 + $0xb70] sm:$0xff] %v939
                %v941 = vld [vmem:[%s205 + $0x16d8] sm:$0xff]
                %942 = vst [vmem:[%s206 + $0xb78] sm:$0xff] %v941
                %v943 = vld [vmem:[%s205 + $0x1700] sm:$0xff]
                %944 = vst [vmem:[%s206 + $0xb80] sm:$0xff] %v943
                %v945 = vld [vmem:[%s205 + $0x1708] sm:$0xff]
                %946 = vst [vmem:[%s206 + $0xb88] sm:$0xff] %v945
                %v947 = vld [vmem:[%s205 + $0x1710] sm:$0xff]
                %948 = vst [vmem:[%s206 + $0xb90] sm:$0xff] %v947
                %v949 = vld [vmem:[%s205 + $0x1718] sm:$0xff]
                %950 = vst [vmem:[%s206 + $0xb98] sm:$0xff] %v949
                %v951 = vld [vmem:[%s205 + $0x1740] sm:$0xff]
                %952 = vst [vmem:[%s206 + $0xba0] sm:$0xff] %v951
                %v953 = vld [vmem:[%s205 + $0x1748] sm:$0xff]
                %954 = vst [vmem:[%s206 + $0xba8] sm:$0xff] %v953
                %v955 = vld [vmem:[%s205 + $0x1750] sm:$0xff]
                %956 = vst [vmem:[%s206 + $0xbb0] sm:$0xff] %v955
                %v957 = vld [vmem:[%s205 + $0x1758] sm:$0xff]
                %958 = vst [vmem:[%s206 + $0xbb8] sm:$0xff] %v957
                %v959 = vld [vmem:[%s205 + $0x1780] sm:$0xff]
                %960 = vst [vmem:[%s206 + $0xbc0] sm:$0xff] %v959
                %v961 = vld [vmem:[%s205 + $0x1788] sm:$0xff]
                %962 = vst [vmem:[%s206 + $0xbc8] sm:$0xff] %v961
                %v963 = vld [vmem:[%s205 + $0x1790] sm:$0xff]
                %964 = vst [vmem:[%s206 + $0xbd0] sm:$0xff] %v963
                %v965 = vld [vmem:[%s205 + $0x1798] sm:$0xff]
                %966 = vst [vmem:[%s206 + $0xbd8] sm:$0xff] %v965
                %v967 = vld [vmem:[%s205 + $0x17c0] sm:$0xff]
                %968 = vst [vmem:[%s206 + $0xbe0] sm:$0xff] %v967
                %v969 = vld [vmem:[%s205 + $0x17c8] sm:$0xff]
                %970 = vst [vmem:[%s206 + $0xbe8] sm:$0xff] %v969
                %v971 = vld [vmem:[%s205 + $0x17d0] sm:$0xff]
                %972 = vst [vmem:[%s206 + $0xbf0] sm:$0xff] %v971
                %v973 = vld [vmem:[%s205 + $0x17d8] sm:$0xff]
                %974 = vst [vmem:[%s206 + $0xbf8] sm:$0xff] %v973
                %v975 = vld [vmem:[%s205 + $0x1800] sm:$0xff]
                %976 = vst [vmem:[%s206 + $0xc00] sm:$0xff] %v975
                %v977 = vld [vmem:[%s205 + $0x1808] sm:$0xff]
                %978 = vst [vmem:[%s206 + $0xc08] sm:$0xff] %v977
                %v979 = vld [vmem:[%s205 + $0x1810] sm:$0xff]
                %980 = vst [vmem:[%s206 + $0xc10] sm:$0xff] %v979
                %v981 = vld [vmem:[%s205 + $0x1818] sm:$0xff]
                %982 = vst [vmem:[%s206 + $0xc18] sm:$0xff] %v981
                %v983 = vld [vmem:[%s205 + $0x1840] sm:$0xff]
                %984 = vst [vmem:[%s206 + $0xc20] sm:$0xff] %v983
                %v985 = vld [vmem:[%s205 + $0x1848] sm:$0xff]
                %986 = vst [vmem:[%s206 + $0xc28] sm:$0xff] %v985
                %v987 = vld [vmem:[%s205 + $0x1850] sm:$0xff]
                %988 = vst [vmem:[%s206 + $0xc30] sm:$0xff] %v987
                %v989 = vld [vmem:[%s205 + $0x1858] sm:$0xff]
                %990 = vst [vmem:[%s206 + $0xc38] sm:$0xff] %v989
                %v991 = vld [vmem:[%s205 + $0x1880] sm:$0xff]
                %992 = vst [vmem:[%s206 + $0xc40] sm:$0xff] %v991
                %v993 = vld [vmem:[%s205 + $0x1888] sm:$0xff]
                %994 = vst [vmem:[%s206 + $0xc48] sm:$0xff] %v993
                %v995 = vld [vmem:[%s205 + $0x1890] sm:$0xff]
                %996 = vst [vmem:[%s206 + $0xc50] sm:$0xff] %v995
                %v997 = vld [vmem:[%s205 + $0x1898] sm:$0xff]
                %998 = vst [vmem:[%s206 + $0xc58] sm:$0xff] %v997
                %v999 = vld [vmem:[%s205 + $0x18c0] sm:$0xff]
                %1000 = vst [vmem:[%s206 + $0xc60] sm:$0xff] %v999
                %v1001 = vld [vmem:[%s205 + $0x18c8] sm:$0xff]
                %1002 = vst [vmem:[%s206 + $0xc68] sm:$0xff] %v1001
                %v1003 = vld [vmem:[%s205 + $0x18d0] sm:$0xff]
                %1004 = vst [vmem:[%s206 + $0xc70] sm:$0xff] %v1003
                %v1005 = vld [vmem:[%s205 + $0x18d8] sm:$0xff]
                %1006 = vst [vmem:[%s206 + $0xc78] sm:$0xff] %v1005
                %v1007 = vld [vmem:[%s205 + $0x1900] sm:$0xff]
                %1008 = vst [vmem:[%s206 + $0xc80] sm:$0xff] %v1007
                %v1009 = vld [vmem:[%s205 + $0x1908] sm:$0xff]
                %1010 = vst [vmem:[%s206 + $0xc88] sm:$0xff] %v1009
                %v1011 = vld [vmem:[%s205 + $0x1910] sm:$0xff]
                %1012 = vst [vmem:[%s206 + $0xc90] sm:$0xff] %v1011
                %v1013 = vld [vmem:[%s205 + $0x1918] sm:$0xff]
                %1014 = vst [vmem:[%s206 + $0xc98] sm:$0xff] %v1013
                %v1015 = vld [vmem:[%s205 + $0x1940] sm:$0xff]
                %1016 = vst [vmem:[%s206 + $0xca0] sm:$0xff] %v1015
                %v1017 = vld [vmem:[%s205 + $0x1948] sm:$0xff]
                %1018 = vst [vmem:[%s206 + $0xca8] sm:$0xff] %v1017
                %v1019 = vld [vmem:[%s205 + $0x1950] sm:$0xff]
                %1020 = vst [vmem:[%s206 + $0xcb0] sm:$0xff] %v1019
                %v1021 = vld [vmem:[%s205 + $0x1958] sm:$0xff]
                %1022 = vst [vmem:[%s206 + $0xcb8] sm:$0xff] %v1021
                %v1023 = vld [vmem:[%s205 + $0x1980] sm:$0xff]
                %1024 = vst [vmem:[%s206 + $0xcc0] sm:$0xff] %v1023
                %v1025 = vld [vmem:[%s205 + $0x1988] sm:$0xff]
                %1026 = vst [vmem:[%s206 + $0xcc8] sm:$0xff] %v1025
                %v1027 = vld [vmem:[%s205 + $0x1990] sm:$0xff]
                %1028 = vst [vmem:[%s206 + $0xcd0] sm:$0xff] %v1027
                %v1029 = vld [vmem:[%s205 + $0x1998] sm:$0xff]
                %1030 = vst [vmem:[%s206 + $0xcd8] sm:$0xff] %v1029
                %v1031 = vld [vmem:[%s205 + $0x19c0] sm:$0xff]
                %1032 = vst [vmem:[%s206 + $0xce0] sm:$0xff] %v1031
                %v1033 = vld [vmem:[%s205 + $0x19c8] sm:$0xff]
                %1034 = vst [vmem:[%s206 + $0xce8] sm:$0xff] %v1033
                %v1035 = vld [vmem:[%s205 + $0x19d0] sm:$0xff]
                %1036 = vst [vmem:[%s206 + $0xcf0] sm:$0xff] %v1035
                %v1037 = vld [vmem:[%s205 + $0x19d8] sm:$0xff]
                %1038 = vst [vmem:[%s206 + $0xcf8] sm:$0xff] %v1037
                %v1039 = vld [vmem:[%s205 + $0x1a00] sm:$0xff]
                %1040 = vst [vmem:[%s206 + $0xd00] sm:$0xff] %v1039
                %v1041 = vld [vmem:[%s205 + $0x1a08] sm:$0xff]
                %1042 = vst [vmem:[%s206 + $0xd08] sm:$0xff] %v1041
                %v1043 = vld [vmem:[%s205 + $0x1a10] sm:$0xff]
                %1044 = vst [vmem:[%s206 + $0xd10] sm:$0xff] %v1043
                %v1045 = vld [vmem:[%s205 + $0x1a18] sm:$0xff]
                %1046 = vst [vmem:[%s206 + $0xd18] sm:$0xff] %v1045
                %v1047 = vld [vmem:[%s205 + $0x1a40] sm:$0xff]
                %1048 = vst [vmem:[%s206 + $0xd20] sm:$0xff] %v1047
                %v1049 = vld [vmem:[%s205 + $0x1a48] sm:$0xff]
                %1050 = vst [vmem:[%s206 + $0xd28] sm:$0xff] %v1049
                %v1051 = vld [vmem:[%s205 + $0x1a50] sm:$0xff]
                %1052 = vst [vmem:[%s206 + $0xd30] sm:$0xff] %v1051
                %v1053 = vld [vmem:[%s205 + $0x1a58] sm:$0xff]
                %1054 = vst [vmem:[%s206 + $0xd38] sm:$0xff] %v1053
                %v1055 = vld [vmem:[%s205 + $0x1a80] sm:$0xff]
                %1056 = vst [vmem:[%s206 + $0xd40] sm:$0xff] %v1055
                %v1057 = vld [vmem:[%s205 + $0x1a88] sm:$0xff]
                %1058 = vst [vmem:[%s206 + $0xd48] sm:$0xff] %v1057
                %v1059 = vld [vmem:[%s205 + $0x1a90] sm:$0xff]
                %1060 = vst [vmem:[%s206 + $0xd50] sm:$0xff] %v1059
                %v1061 = vld [vmem:[%s205 + $0x1a98] sm:$0xff]
                %1062 = vst [vmem:[%s206 + $0xd58] sm:$0xff] %v1061
                %v1063 = vld [vmem:[%s205 + $0x1ac0] sm:$0xff]
                %1064 = vst [vmem:[%s206 + $0xd60] sm:$0xff] %v1063
                %v1065 = vld [vmem:[%s205 + $0x1ac8] sm:$0xff]
                %1066 = vst [vmem:[%s206 + $0xd68] sm:$0xff] %v1065
                %v1067 = vld [vmem:[%s205 + $0x1ad0] sm:$0xff]
                %1068 = vst [vmem:[%s206 + $0xd70] sm:$0xff] %v1067
                %v1069 = vld [vmem:[%s205 + $0x1ad8] sm:$0xff]
                %1070 = vst [vmem:[%s206 + $0xd78] sm:$0xff] %v1069
                %v1071 = vld [vmem:[%s205 + $0x1b00] sm:$0xff]
                %1072 = vst [vmem:[%s206 + $0xd80] sm:$0xff] %v1071
                %v1073 = vld [vmem:[%s205 + $0x1b08] sm:$0xff]
                %1074 = vst [vmem:[%s206 + $0xd88] sm:$0xff] %v1073
                %v1075 = vld [vmem:[%s205 + $0x1b10] sm:$0xff]
                %1076 = vst [vmem:[%s206 + $0xd90] sm:$0xff] %v1075
                %v1077 = vld [vmem:[%s205 + $0x1b18] sm:$0xff]
                %1078 = vst [vmem:[%s206 + $0xd98] sm:$0xff] %v1077
                %v1079 = vld [vmem:[%s205 + $0x1b40] sm:$0xff]
                %1080 = vst [vmem:[%s206 + $0xda0] sm:$0xff] %v1079
                %v1081 = vld [vmem:[%s205 + $0x1b48] sm:$0xff]
                %1082 = vst [vmem:[%s206 + $0xda8] sm:$0xff] %v1081
                %v1083 = vld [vmem:[%s205 + $0x1b50] sm:$0xff]
                %1084 = vst [vmem:[%s206 + $0xdb0] sm:$0xff] %v1083
                %v1085 = vld [vmem:[%s205 + $0x1b58] sm:$0xff]
                %1086 = vst [vmem:[%s206 + $0xdb8] sm:$0xff] %v1085
                %v1087 = vld [vmem:[%s205 + $0x1b80] sm:$0xff]
                %1088 = vst [vmem:[%s206 + $0xdc0] sm:$0xff] %v1087
                %v1089 = vld [vmem:[%s205 + $0x1b88] sm:$0xff]
                %1090 = vst [vmem:[%s206 + $0xdc8] sm:$0xff] %v1089
                %v1091 = vld [vmem:[%s205 + $0x1b90] sm:$0xff]
                %1092 = vst [vmem:[%s206 + $0xdd0] sm:$0xff] %v1091
                %v1093 = vld [vmem:[%s205 + $0x1b98] sm:$0xff]
                %1094 = vst [vmem:[%s206 + $0xdd8] sm:$0xff] %v1093
                %v1095 = vld [vmem:[%s205 + $0x1bc0] sm:$0xff]
                %1096 = vst [vmem:[%s206 + $0xde0] sm:$0xff] %v1095
                %v1097 = vld [vmem:[%s205 + $0x1bc8] sm:$0xff]
                %1098 = vst [vmem:[%s206 + $0xde8] sm:$0xff] %v1097
                %v1099 = vld [vmem:[%s205 + $0x1bd0] sm:$0xff]
                %1100 = vst [vmem:[%s206 + $0xdf0] sm:$0xff] %v1099
                %v1101 = vld [vmem:[%s205 + $0x1bd8] sm:$0xff]
                %1102 = vst [vmem:[%s206 + $0xdf8] sm:$0xff] %v1101
                %v1103 = vld [vmem:[%s205 + $0x1c00] sm:$0xff]
                %1104 = vst [vmem:[%s206 + $0xe00] sm:$0xff] %v1103
                %v1105 = vld [vmem:[%s205 + $0x1c08] sm:$0xff]
                %1106 = vst [vmem:[%s206 + $0xe08] sm:$0xff] %v1105
                %v1107 = vld [vmem:[%s205 + $0x1c10] sm:$0xff]
                %1108 = vst [vmem:[%s206 + $0xe10] sm:$0xff] %v1107
                %v1109 = vld [vmem:[%s205 + $0x1c18] sm:$0xff]
                %1110 = vst [vmem:[%s206 + $0xe18] sm:$0xff] %v1109
                %v1111 = vld [vmem:[%s205 + $0x1c40] sm:$0xff]
                %1112 = vst [vmem:[%s206 + $0xe20] sm:$0xff] %v1111
                %v1113 = vld [vmem:[%s205 + $0x1c48] sm:$0xff]
                %1114 = vst [vmem:[%s206 + $0xe28] sm:$0xff] %v1113
                %v1115 = vld [vmem:[%s205 + $0x1c50] sm:$0xff]
                %1116 = vst [vmem:[%s206 + $0xe30] sm:$0xff] %v1115
                %v1117 = vld [vmem:[%s205 + $0x1c58] sm:$0xff]
                %1118 = vst [vmem:[%s206 + $0xe38] sm:$0xff] %v1117
                %v1119 = vld [vmem:[%s205 + $0x1c80] sm:$0xff]
                %1120 = vst [vmem:[%s206 + $0xe40] sm:$0xff] %v1119
                %v1121 = vld [vmem:[%s205 + $0x1c88] sm:$0xff]
                %1122 = vst [vmem:[%s206 + $0xe48] sm:$0xff] %v1121
                %v1123 = vld [vmem:[%s205 + $0x1c90] sm:$0xff]
                %1124 = vst [vmem:[%s206 + $0xe50] sm:$0xff] %v1123
                %v1125 = vld [vmem:[%s205 + $0x1c98] sm:$0xff]
                %1126 = vst [vmem:[%s206 + $0xe58] sm:$0xff] %v1125
                %v1127 = vld [vmem:[%s205 + $0x1cc0] sm:$0xff]
                %1128 = vst [vmem:[%s206 + $0xe60] sm:$0xff] %v1127
                %v1129 = vld [vmem:[%s205 + $0x1cc8] sm:$0xff]
                %1130 = vst [vmem:[%s206 + $0xe68] sm:$0xff] %v1129
                %v1131 = vld [vmem:[%s205 + $0x1cd0] sm:$0xff]
                %1132 = vst [vmem:[%s206 + $0xe70] sm:$0xff] %v1131
                %v1133 = vld [vmem:[%s205 + $0x1cd8] sm:$0xff]
                %1134 = vst [vmem:[%s206 + $0xe78] sm:$0xff] %v1133
                %v1135 = vld [vmem:[%s205 + $0x1d00] sm:$0xff]
                %1136 = vst [vmem:[%s206 + $0xe80] sm:$0xff] %v1135
                %v1137 = vld [vmem:[%s205 + $0x1d08] sm:$0xff]
                %1138 = vst [vmem:[%s206 + $0xe88] sm:$0xff] %v1137
                %v1139 = vld [vmem:[%s205 + $0x1d10] sm:$0xff]
                %1140 = vst [vmem:[%s206 + $0xe90] sm:$0xff] %v1139
                %v1141 = vld [vmem:[%s205 + $0x1d18] sm:$0xff]
                %1142 = vst [vmem:[%s206 + $0xe98] sm:$0xff] %v1141
                %v1143 = vld [vmem:[%s205 + $0x1d40] sm:$0xff]
                %1144 = vst [vmem:[%s206 + $0xea0] sm:$0xff] %v1143
                %v1145 = vld [vmem:[%s205 + $0x1d48] sm:$0xff]
                %1146 = vst [vmem:[%s206 + $0xea8] sm:$0xff] %v1145
                %v1147 = vld [vmem:[%s205 + $0x1d50] sm:$0xff]
                %1148 = vst [vmem:[%s206 + $0xeb0] sm:$0xff] %v1147
                %v1149 = vld [vmem:[%s205 + $0x1d58] sm:$0xff]
                %1150 = vst [vmem:[%s206 + $0xeb8] sm:$0xff] %v1149
                %v1151 = vld [vmem:[%s205 + $0x1d80] sm:$0xff]
                %1152 = vst [vmem:[%s206 + $0xec0] sm:$0xff] %v1151
                %v1153 = vld [vmem:[%s205 + $0x1d88] sm:$0xff]
                %1154 = vst [vmem:[%s206 + $0xec8] sm:$0xff] %v1153
                %v1155 = vld [vmem:[%s205 + $0x1d90] sm:$0xff]
                %1156 = vst [vmem:[%s206 + $0xed0] sm:$0xff] %v1155
                %v1157 = vld [vmem:[%s205 + $0x1d98] sm:$0xff]
                %1158 = vst [vmem:[%s206 + $0xed8] sm:$0xff] %v1157
                %v1159 = vld [vmem:[%s205 + $0x1dc0] sm:$0xff]
                %1160 = vst [vmem:[%s206 + $0xee0] sm:$0xff] %v1159
                %v1161 = vld [vmem:[%s205 + $0x1dc8] sm:$0xff]
                %1162 = vst [vmem:[%s206 + $0xee8] sm:$0xff] %v1161
                %v1163 = vld [vmem:[%s205 + $0x1dd0] sm:$0xff]
                %1164 = vst [vmem:[%s206 + $0xef0] sm:$0xff] %v1163
                %v1165 = vld [vmem:[%s205 + $0x1dd8] sm:$0xff]
                %1166 = vst [vmem:[%s206 + $0xef8] sm:$0xff] %v1165
                %v1167 = vld [vmem:[%s205 + $0x1e00] sm:$0xff]
                %1168 = vst [vmem:[%s206 + $0xf00] sm:$0xff] %v1167
                %v1169 = vld [vmem:[%s205 + $0x1e08] sm:$0xff]
                %1170 = vst [vmem:[%s206 + $0xf08] sm:$0xff] %v1169
                %v1171 = vld [vmem:[%s205 + $0x1e10] sm:$0xff]
                %1172 = vst [vmem:[%s206 + $0xf10] sm:$0xff] %v1171
                %v1173 = vld [vmem:[%s205 + $0x1e18] sm:$0xff]
                %1174 = vst [vmem:[%s206 + $0xf18] sm:$0xff] %v1173
                %v1175 = vld [vmem:[%s205 + $0x1e40] sm:$0xff]
                %1176 = vst [vmem:[%s206 + $0xf20] sm:$0xff] %v1175
                %v1177 = vld [vmem:[%s205 + $0x1e48] sm:$0xff]
                %1178 = vst [vmem:[%s206 + $0xf28] sm:$0xff] %v1177
                %v1179 = vld [vmem:[%s205 + $0x1e50] sm:$0xff]
                %1180 = vst [vmem:[%s206 + $0xf30] sm:$0xff] %v1179
                %v1181 = vld [vmem:[%s205 + $0x1e58] sm:$0xff]
                %1182 = vst [vmem:[%s206 + $0xf38] sm:$0xff] %v1181
                %v1183 = vld [vmem:[%s205 + $0x1e80] sm:$0xff]
                %1184 = vst [vmem:[%s206 + $0xf40] sm:$0xff] %v1183
                %v1185 = vld [vmem:[%s205 + $0x1e88] sm:$0xff]
                %1186 = vst [vmem:[%s206 + $0xf48] sm:$0xff] %v1185
                %v1187 = vld [vmem:[%s205 + $0x1e90] sm:$0xff]
                %1188 = vst [vmem:[%s206 + $0xf50] sm:$0xff] %v1187
                %v1189 = vld [vmem:[%s205 + $0x1e98] sm:$0xff]
                %1190 = vst [vmem:[%s206 + $0xf58] sm:$0xff] %v1189
                %v1191 = vld [vmem:[%s205 + $0x1ec0] sm:$0xff]
                %1192 = vst [vmem:[%s206 + $0xf60] sm:$0xff] %v1191
                %v1193 = vld [vmem:[%s205 + $0x1ec8] sm:$0xff]
                %1194 = vst [vmem:[%s206 + $0xf68] sm:$0xff] %v1193
                %v1195 = vld [vmem:[%s205 + $0x1ed0] sm:$0xff]
                %1196 = vst [vmem:[%s206 + $0xf70] sm:$0xff] %v1195
                %v1197 = vld [vmem:[%s205 + $0x1ed8] sm:$0xff]
                %1198 = vst [vmem:[%s206 + $0xf78] sm:$0xff] %v1197
                %v1199 = vld [vmem:[%s205 + $0x1f00] sm:$0xff]
                %1200 = vst [vmem:[%s206 + $0xf80] sm:$0xff] %v1199
                %v1201 = vld [vmem:[%s205 + $0x1f08] sm:$0xff]
                %1202 = vst [vmem:[%s206 + $0xf88] sm:$0xff] %v1201
                %v1203 = vld [vmem:[%s205 + $0x1f10] sm:$0xff]
                %1204 = vst [vmem:[%s206 + $0xf90] sm:$0xff] %v1203
                %v1205 = vld [vmem:[%s205 + $0x1f18] sm:$0xff]
                %1206 = vst [vmem:[%s206 + $0xf98] sm:$0xff] %v1205
                %v1207 = vld [vmem:[%s205 + $0x1f40] sm:$0xff]
                %1208 = vst [vmem:[%s206 + $0xfa0] sm:$0xff] %v1207
                %v1209 = vld [vmem:[%s205 + $0x1f48] sm:$0xff]
                %1210 = vst [vmem:[%s206 + $0xfa8] sm:$0xff] %v1209
                %v1211 = vld [vmem:[%s205 + $0x1f50] sm:$0xff]
                %1212 = vst [vmem:[%s206 + $0xfb0] sm:$0xff] %v1211
                %v1213 = vld [vmem:[%s205 + $0x1f58] sm:$0xff]
                %1214 = vst [vmem:[%s206 + $0xfb8] sm:$0xff] %v1213
                %v1215 = vld [vmem:[%s205 + $0x1f80] sm:$0xff]
                %1216 = vst [vmem:[%s206 + $0xfc0] sm:$0xff] %v1215
                %v1217 = vld [vmem:[%s205 + $0x1f88] sm:$0xff]
                %1218 = vst [vmem:[%s206 + $0xfc8] sm:$0xff] %v1217
                %v1219 = vld [vmem:[%s205 + $0x1f90] sm:$0xff]
                %1220 = vst [vmem:[%s206 + $0xfd0] sm:$0xff] %v1219
                %v1221 = vld [vmem:[%s205 + $0x1f98] sm:$0xff]
                %1222 = vst [vmem:[%s206 + $0xfd8] sm:$0xff] %v1221
                %v1223 = vld [vmem:[%s205 + $0x1fc0] sm:$0xff]
                %1224 = vst [vmem:[%s206 + $0xfe0] sm:$0xff] %v1223
                %v1225 = vld [vmem:[%s205 + $0x1fc8] sm:$0xff]
                %1226 = vst [vmem:[%s206 + $0xfe8] sm:$0xff] %v1225
                %v1227 = vld [vmem:[%s205 + $0x1fd0] sm:$0xff]
                %1228 = vst [vmem:[%s206 + $0xff0] sm:$0xff] %v1227
                %v1229 = vld [vmem:[%s205 + $0x1fd8] sm:$0xff]
                %1230 = vst [vmem:[%s206 + $0xff8] sm:$0xff] %v1229
                %v1231 = vld [vmem:[%s205 + $0x2000] sm:$0xff]
                %1232 = vst [vmem:[%s206 + $0x1000] sm:$0xff] %v1231
                %v1233 = vld [vmem:[%s205 + $0x2008] sm:$0xff]
                %1234 = vst [vmem:[%s206 + $0x1008] sm:$0xff] %v1233
                %v1235 = vld [vmem:[%s205 + $0x2010] sm:$0xff]
                %1236 = vst [vmem:[%s206 + $0x1010] sm:$0xff] %v1235
                %v1237 = vld [vmem:[%s205 + $0x2018] sm:$0xff]
                %1238 = vst [vmem:[%s206 + $0x1018] sm:$0xff] %v1237
                %v1239 = vld [vmem:[%s205 + $0x2040] sm:$0xff]
                %1240 = vst [vmem:[%s206 + $0x1020] sm:$0xff] %v1239
                %v1241 = vld [vmem:[%s205 + $0x2048] sm:$0xff]
                %1242 = vst [vmem:[%s206 + $0x1028] sm:$0xff] %v1241
                %v1243 = vld [vmem:[%s205 + $0x2050] sm:$0xff]
                %1244 = vst [vmem:[%s206 + $0x1030] sm:$0xff] %v1243
                %v1245 = vld [vmem:[%s205 + $0x2058] sm:$0xff]
                %1246 = vst [vmem:[%s206 + $0x1038] sm:$0xff] %v1245
                %v1247 = vld [vmem:[%s205 + $0x2080] sm:$0xff]
                %1248 = vst [vmem:[%s206 + $0x1040] sm:$0xff] %v1247
                %v1249 = vld [vmem:[%s205 + $0x2088] sm:$0xff]
                %1250 = vst [vmem:[%s206 + $0x1048] sm:$0xff] %v1249
                %v1251 = vld [vmem:[%s205 + $0x2090] sm:$0xff]
                %1252 = vst [vmem:[%s206 + $0x1050] sm:$0xff] %v1251
                %v1253 = vld [vmem:[%s205 + $0x2098] sm:$0xff]
                %1254 = vst [vmem:[%s206 + $0x1058] sm:$0xff] %v1253
                %v1255 = vld [vmem:[%s205 + $0x20c0] sm:$0xff]
                %1256 = vst [vmem:[%s206 + $0x1060] sm:$0xff] %v1255
                %v1257 = vld [vmem:[%s205 + $0x20c8] sm:$0xff]
                %1258 = vst [vmem:[%s206 + $0x1068] sm:$0xff] %v1257
                %v1259 = vld [vmem:[%s205 + $0x20d0] sm:$0xff]
                %1260 = vst [vmem:[%s206 + $0x1070] sm:$0xff] %v1259
                %v1261 = vld [vmem:[%s205 + $0x20d8] sm:$0xff]
                %1262 = vst [vmem:[%s206 + $0x1078] sm:$0xff] %v1261
                %v1263 = vld [vmem:[%s205 + $0x2100] sm:$0xff]
                %1264 = vst [vmem:[%s206 + $0x1080] sm:$0xff] %v1263
                %v1265 = vld [vmem:[%s205 + $0x2108] sm:$0xff]
                %1266 = vst [vmem:[%s206 + $0x1088] sm:$0xff] %v1265
                %v1267 = vld [vmem:[%s205 + $0x2110] sm:$0xff]
                %1268 = vst [vmem:[%s206 + $0x1090] sm:$0xff] %v1267
                %v1269 = vld [vmem:[%s205 + $0x2118] sm:$0xff]
                %1270 = vst [vmem:[%s206 + $0x1098] sm:$0xff] %v1269
                %v1271 = vld [vmem:[%s205 + $0x2140] sm:$0xff]
                %1272 = vst [vmem:[%s206 + $0x10a0] sm:$0xff] %v1271
                %v1273 = vld [vmem:[%s205 + $0x2148] sm:$0xff]
                %1274 = vst [vmem:[%s206 + $0x10a8] sm:$0xff] %v1273
                %v1275 = vld [vmem:[%s205 + $0x2150] sm:$0xff]
                %1276 = vst [vmem:[%s206 + $0x10b0] sm:$0xff] %v1275
                %v1277 = vld [vmem:[%s205 + $0x2158] sm:$0xff]
                %1278 = vst [vmem:[%s206 + $0x10b8] sm:$0xff] %v1277
                %v1279 = vld [vmem:[%s205 + $0x2180] sm:$0xff]
                %1280 = vst [vmem:[%s206 + $0x10c0] sm:$0xff] %v1279
                %v1281 = vld [vmem:[%s205 + $0x2188] sm:$0xff]
                %1282 = vst [vmem:[%s206 + $0x10c8] sm:$0xff] %v1281
                %v1283 = vld [vmem:[%s205 + $0x2190] sm:$0xff]
                %1284 = vst [vmem:[%s206 + $0x10d0] sm:$0xff] %v1283
                %v1285 = vld [vmem:[%s205 + $0x2198] sm:$0xff]
                %1286 = vst [vmem:[%s206 + $0x10d8] sm:$0xff] %v1285
                %v1287 = vld [vmem:[%s205 + $0x21c0] sm:$0xff]
                %1288 = vst [vmem:[%s206 + $0x10e0] sm:$0xff] %v1287
                %v1289 = vld [vmem:[%s205 + $0x21c8] sm:$0xff]
                %1290 = vst [vmem:[%s206 + $0x10e8] sm:$0xff] %v1289
                %v1291 = vld [vmem:[%s205 + $0x21d0] sm:$0xff]
                %1292 = vst [vmem:[%s206 + $0x10f0] sm:$0xff] %v1291
                %v1293 = vld [vmem:[%s205 + $0x21d8] sm:$0xff]
                %1294 = vst [vmem:[%s206 + $0x10f8] sm:$0xff] %v1293
                %v1295 = vld [vmem:[%s205 + $0x2200] sm:$0xff]
                %1296 = vst [vmem:[%s206 + $0x1100] sm:$0xff] %v1295
                %v1297 = vld [vmem:[%s205 + $0x2208] sm:$0xff]
                %1298 = vst [vmem:[%s206 + $0x1108] sm:$0xff] %v1297
                %v1299 = vld [vmem:[%s205 + $0x2210] sm:$0xff]
                %1300 = vst [vmem:[%s206 + $0x1110] sm:$0xff] %v1299
                %v1301 = vld [vmem:[%s205 + $0x2218] sm:$0xff]
                %1302 = vst [vmem:[%s206 + $0x1118] sm:$0xff] %v1301
                %v1303 = vld [vmem:[%s205 + $0x2240] sm:$0xff]
                %1304 = vst [vmem:[%s206 + $0x1120] sm:$0xff] %v1303
                %v1305 = vld [vmem:[%s205 + $0x2248] sm:$0xff]
                %1306 = vst [vmem:[%s206 + $0x1128] sm:$0xff] %v1305
                %v1307 = vld [vmem:[%s205 + $0x2250] sm:$0xff]
                %1308 = vst [vmem:[%s206 + $0x1130] sm:$0xff] %v1307
                %v1309 = vld [vmem:[%s205 + $0x2258] sm:$0xff]
                %1310 = vst [vmem:[%s206 + $0x1138] sm:$0xff] %v1309
                %v1311 = vld [vmem:[%s205 + $0x2280] sm:$0xff]
                %1312 = vst [vmem:[%s206 + $0x1140] sm:$0xff] %v1311
                %v1313 = vld [vmem:[%s205 + $0x2288] sm:$0xff]
                %1314 = vst [vmem:[%s206 + $0x1148] sm:$0xff] %v1313
                %v1315 = vld [vmem:[%s205 + $0x2290] sm:$0xff]
                %1316 = vst [vmem:[%s206 + $0x1150] sm:$0xff] %v1315
                %v1317 = vld [vmem:[%s205 + $0x2298] sm:$0xff]
                %1318 = vst [vmem:[%s206 + $0x1158] sm:$0xff] %v1317
                %v1319 = vld [vmem:[%s205 + $0x22c0] sm:$0xff]
                %1320 = vst [vmem:[%s206 + $0x1160] sm:$0xff] %v1319
                %v1321 = vld [vmem:[%s205 + $0x22c8] sm:$0xff]
                %1322 = vst [vmem:[%s206 + $0x1168] sm:$0xff] %v1321
                %v1323 = vld [vmem:[%s205 + $0x22d0] sm:$0xff]
                %1324 = vst [vmem:[%s206 + $0x1170] sm:$0xff] %v1323
                %v1325 = vld [vmem:[%s205 + $0x22d8] sm:$0xff]
                %1326 = vst [vmem:[%s206 + $0x1178] sm:$0xff] %v1325
                %v1327 = vld [vmem:[%s205 + $0x2300] sm:$0xff]
                %1328 = vst [vmem:[%s206 + $0x1180] sm:$0xff] %v1327
                %v1329 = vld [vmem:[%s205 + $0x2308] sm:$0xff]
                %1330 = vst [vmem:[%s206 + $0x1188] sm:$0xff] %v1329
                %v1331 = vld [vmem:[%s205 + $0x2310] sm:$0xff]
                %1332 = vst [vmem:[%s206 + $0x1190] sm:$0xff] %v1331
                %v1333 = vld [vmem:[%s205 + $0x2318] sm:$0xff]
                %1334 = vst [vmem:[%s206 + $0x1198] sm:$0xff] %v1333
                %v1335 = vld [vmem:[%s205 + $0x2340] sm:$0xff]
                %1336 = vst [vmem:[%s206 + $0x11a0] sm:$0xff] %v1335
                %v1337 = vld [vmem:[%s205 + $0x2348] sm:$0xff]
                %1338 = vst [vmem:[%s206 + $0x11a8] sm:$0xff] %v1337
                %v1339 = vld [vmem:[%s205 + $0x2350] sm:$0xff]
                %1340 = vst [vmem:[%s206 + $0x11b0] sm:$0xff] %v1339
                %v1341 = vld [vmem:[%s205 + $0x2358] sm:$0xff]
                %1342 = vst [vmem:[%s206 + $0x11b8] sm:$0xff] %v1341
                %v1343 = vld [vmem:[%s205 + $0x2380] sm:$0xff]
                %1344 = vst [vmem:[%s206 + $0x11c0] sm:$0xff] %v1343
                %v1345 = vld [vmem:[%s205 + $0x2388] sm:$0xff]
                %1346 = vst [vmem:[%s206 + $0x11c8] sm:$0xff] %v1345
                %v1347 = vld [vmem:[%s205 + $0x2390] sm:$0xff]
                %1348 = vst [vmem:[%s206 + $0x11d0] sm:$0xff] %v1347
                %v1349 = vld [vmem:[%s205 + $0x2398] sm:$0xff]
                %1350 = vst [vmem:[%s206 + $0x11d8] sm:$0xff] %v1349
                %v1351 = vld [vmem:[%s205 + $0x23c0] sm:$0xff]
                %1352 = vst [vmem:[%s206 + $0x11e0] sm:$0xff] %v1351
                %v1353 = vld [vmem:[%s205 + $0x23c8] sm:$0xff]
                %1354 = vst [vmem:[%s206 + $0x11e8] sm:$0xff] %v1353
                %v1355 = vld [vmem:[%s205 + $0x23d0] sm:$0xff]
                %1356 = vst [vmem:[%s206 + $0x11f0] sm:$0xff] %v1355
                %v1357 = vld [vmem:[%s205 + $0x23d8] sm:$0xff]
                %1358 = vst [vmem:[%s206 + $0x11f8] sm:$0xff] %v1357
                %v1359 = vld [vmem:[%s205 + $0x2400] sm:$0xff]
                %1360 = vst [vmem:[%s206 + $0x1200] sm:$0xff] %v1359
                %v1361 = vld [vmem:[%s205 + $0x2408] sm:$0xff]
                %1362 = vst [vmem:[%s206 + $0x1208] sm:$0xff] %v1361
                %v1363 = vld [vmem:[%s205 + $0x2410] sm:$0xff]
                %1364 = vst [vmem:[%s206 + $0x1210] sm:$0xff] %v1363
                %v1365 = vld [vmem:[%s205 + $0x2418] sm:$0xff]
                %1366 = vst [vmem:[%s206 + $0x1218] sm:$0xff] %v1365
                %v1367 = vld [vmem:[%s205 + $0x2440] sm:$0xff]
                %1368 = vst [vmem:[%s206 + $0x1220] sm:$0xff] %v1367
                %v1369 = vld [vmem:[%s205 + $0x2448] sm:$0xff]
                %1370 = vst [vmem:[%s206 + $0x1228] sm:$0xff] %v1369
                %v1371 = vld [vmem:[%s205 + $0x2450] sm:$0xff]
                %1372 = vst [vmem:[%s206 + $0x1230] sm:$0xff] %v1371
                %v1373 = vld [vmem:[%s205 + $0x2458] sm:$0xff]
                %1374 = vst [vmem:[%s206 + $0x1238] sm:$0xff] %v1373
                %v1375 = vld [vmem:[%s205 + $0x2480] sm:$0xff]
                %1376 = vst [vmem:[%s206 + $0x1240] sm:$0xff] %v1375
                %v1377 = vld [vmem:[%s205 + $0x2488] sm:$0xff]
                %1378 = vst [vmem:[%s206 + $0x1248] sm:$0xff] %v1377
                %v1379 = vld [vmem:[%s205 + $0x2490] sm:$0xff]
                %1380 = vst [vmem:[%s206 + $0x1250] sm:$0xff] %v1379
                %v1381 = vld [vmem:[%s205 + $0x2498] sm:$0xff]
                %1382 = vst [vmem:[%s206 + $0x1258] sm:$0xff] %v1381
                %v1383 = vld [vmem:[%s205 + $0x24c0] sm:$0xff]
                %1384 = vst [vmem:[%s206 + $0x1260] sm:$0xff] %v1383
                %v1385 = vld [vmem:[%s205 + $0x24c8] sm:$0xff]
                %1386 = vst [vmem:[%s206 + $0x1268] sm:$0xff] %v1385
                %v1387 = vld [vmem:[%s205 + $0x24d0] sm:$0xff]
                %1388 = vst [vmem:[%s206 + $0x1270] sm:$0xff] %v1387
                %v1389 = vld [vmem:[%s205 + $0x24d8] sm:$0xff]
                %1390 = vst [vmem:[%s206 + $0x1278] sm:$0xff] %v1389
                %v1391 = vld [vmem:[%s205 + $0x2500] sm:$0xff]
                %1392 = vst [vmem:[%s206 + $0x1280] sm:$0xff] %v1391
                %v1393 = vld [vmem:[%s205 + $0x2508] sm:$0xff]
                %1394 = vst [vmem:[%s206 + $0x1288] sm:$0xff] %v1393
                %v1395 = vld [vmem:[%s205 + $0x2510] sm:$0xff]
                %1396 = vst [vmem:[%s206 + $0x1290] sm:$0xff] %v1395
                %v1397 = vld [vmem:[%s205 + $0x2518] sm:$0xff]
                %1398 = vst [vmem:[%s206 + $0x1298] sm:$0xff] %v1397
                %v1399 = vld [vmem:[%s205 + $0x2540] sm:$0xff]
                %1400 = vst [vmem:[%s206 + $0x12a0] sm:$0xff] %v1399
                %v1401 = vld [vmem:[%s205 + $0x2548] sm:$0xff]
                %1402 = vst [vmem:[%s206 + $0x12a8] sm:$0xff] %v1401
                %v1403 = vld [vmem:[%s205 + $0x2550] sm:$0xff]
                %1404 = vst [vmem:[%s206 + $0x12b0] sm:$0xff] %v1403
                %v1405 = vld [vmem:[%s205 + $0x2558] sm:$0xff]
                %1406 = vst [vmem:[%s206 + $0x12b8] sm:$0xff] %v1405
                %v1407 = vld [vmem:[%s205 + $0x2580] sm:$0xff]
                %1408 = vst [vmem:[%s206 + $0x12c0] sm:$0xff] %v1407
                %v1409 = vld [vmem:[%s205 + $0x2588] sm:$0xff]
                %1410 = vst [vmem:[%s206 + $0x12c8] sm:$0xff] %v1409
                %v1411 = vld [vmem:[%s205 + $0x2590] sm:$0xff]
                %1412 = vst [vmem:[%s206 + $0x12d0] sm:$0xff] %v1411
                %v1413 = vld [vmem:[%s205 + $0x2598] sm:$0xff]
                %1414 = vst [vmem:[%s206 + $0x12d8] sm:$0xff] %v1413
                %v1415 = vld [vmem:[%s205 + $0x25c0] sm:$0xff]
                %1416 = vst [vmem:[%s206 + $0x12e0] sm:$0xff] %v1415
                %v1417 = vld [vmem:[%s205 + $0x25c8] sm:$0xff]
                %1418 = vst [vmem:[%s206 + $0x12e8] sm:$0xff] %v1417
                %v1419 = vld [vmem:[%s205 + $0x25d0] sm:$0xff]
                %1420 = vst [vmem:[%s206 + $0x12f0] sm:$0xff] %v1419
                %v1421 = vld [vmem:[%s205 + $0x25d8] sm:$0xff]
                %1422 = vst [vmem:[%s206 + $0x12f8] sm:$0xff] %v1421
                %v1423 = vld [vmem:[%s205 + $0x2600] sm:$0xff]
                %1424 = vst [vmem:[%s206 + $0x1300] sm:$0xff] %v1423
                %v1425 = vld [vmem:[%s205 + $0x2608] sm:$0xff]
                %1426 = vst [vmem:[%s206 + $0x1308] sm:$0xff] %v1425
                %v1427 = vld [vmem:[%s205 + $0x2610] sm:$0xff]
                %1428 = vst [vmem:[%s206 + $0x1310] sm:$0xff] %v1427
                %v1429 = vld [vmem:[%s205 + $0x2618] sm:$0xff]
                %1430 = vst [vmem:[%s206 + $0x1318] sm:$0xff] %v1429
                %v1431 = vld [vmem:[%s205 + $0x2640] sm:$0xff]
                %1432 = vst [vmem:[%s206 + $0x1320] sm:$0xff] %v1431
                %v1433 = vld [vmem:[%s205 + $0x2648] sm:$0xff]
                %1434 = vst [vmem:[%s206 + $0x1328] sm:$0xff] %v1433
                %v1435 = vld [vmem:[%s205 + $0x2650] sm:$0xff]
                %1436 = vst [vmem:[%s206 + $0x1330] sm:$0xff] %v1435
                %v1437 = vld [vmem:[%s205 + $0x2658] sm:$0xff]
                %1438 = vst [vmem:[%s206 + $0x1338] sm:$0xff] %v1437
                %v1439 = vld [vmem:[%s205 + $0x2680] sm:$0xff]
                %1440 = vst [vmem:[%s206 + $0x1340] sm:$0xff] %v1439
                %v1441 = vld [vmem:[%s205 + $0x2688] sm:$0xff]
                %1442 = vst [vmem:[%s206 + $0x1348] sm:$0xff] %v1441
                %v1443 = vld [vmem:[%s205 + $0x2690] sm:$0xff]
                %1444 = vst [vmem:[%s206 + $0x1350] sm:$0xff] %v1443
                %v1445 = vld [vmem:[%s205 + $0x2698] sm:$0xff]
                %1446 = vst [vmem:[%s206 + $0x1358] sm:$0xff] %v1445
                %v1447 = vld [vmem:[%s205 + $0x26c0] sm:$0xff]
                %1448 = vst [vmem:[%s206 + $0x1360] sm:$0xff] %v1447
                %v1449 = vld [vmem:[%s205 + $0x26c8] sm:$0xff]
                %1450 = vst [vmem:[%s206 + $0x1368] sm:$0xff] %v1449
                %v1451 = vld [vmem:[%s205 + $0x26d0] sm:$0xff]
                %1452 = vst [vmem:[%s206 + $0x1370] sm:$0xff] %v1451
                %v1453 = vld [vmem:[%s205 + $0x26d8] sm:$0xff]
                %1454 = vst [vmem:[%s206 + $0x1378] sm:$0xff] %v1453
                %v1455 = vld [vmem:[%s205 + $0x2700] sm:$0xff]
                %1456 = vst [vmem:[%s206 + $0x1380] sm:$0xff] %v1455
                %v1457 = vld [vmem:[%s205 + $0x2708] sm:$0xff]
                %1458 = vst [vmem:[%s206 + $0x1388] sm:$0xff] %v1457
                %v1459 = vld [vmem:[%s205 + $0x2710] sm:$0xff]
                %1460 = vst [vmem:[%s206 + $0x1390] sm:$0xff] %v1459
                %v1461 = vld [vmem:[%s205 + $0x2718] sm:$0xff]
                %1462 = vst [vmem:[%s206 + $0x1398] sm:$0xff] %v1461
                %v1463 = vld [vmem:[%s205 + $0x2740] sm:$0xff]
                %1464 = vst [vmem:[%s206 + $0x13a0] sm:$0xff] %v1463
                %v1465 = vld [vmem:[%s205 + $0x2748] sm:$0xff]
                %1466 = vst [vmem:[%s206 + $0x13a8] sm:$0xff] %v1465
                %v1467 = vld [vmem:[%s205 + $0x2750] sm:$0xff]
                %1468 = vst [vmem:[%s206 + $0x13b0] sm:$0xff] %v1467
                %v1469 = vld [vmem:[%s205 + $0x2758] sm:$0xff]
                %1470 = vst [vmem:[%s206 + $0x13b8] sm:$0xff] %v1469
                %v1471 = vld [vmem:[%s205 + $0x2780] sm:$0xff]
                %1472 = vst [vmem:[%s206 + $0x13c0] sm:$0xff] %v1471
                %v1473 = vld [vmem:[%s205 + $0x2788] sm:$0xff]
                %1474 = vst [vmem:[%s206 + $0x13c8] sm:$0xff] %v1473
                %v1475 = vld [vmem:[%s205 + $0x2790] sm:$0xff]
                %1476 = vst [vmem:[%s206 + $0x13d0] sm:$0xff] %v1475
                %v1477 = vld [vmem:[%s205 + $0x2798] sm:$0xff]
                %1478 = vst [vmem:[%s206 + $0x13d8] sm:$0xff] %v1477
                %v1479 = vld [vmem:[%s205 + $0x27c0] sm:$0xff]
                %1480 = vst [vmem:[%s206 + $0x13e0] sm:$0xff] %v1479
                %v1481 = vld [vmem:[%s205 + $0x27c8] sm:$0xff]
                %1482 = vst [vmem:[%s206 + $0x13e8] sm:$0xff] %v1481
                %v1483 = vld [vmem:[%s205 + $0x27d0] sm:$0xff]
                %1484 = vst [vmem:[%s206 + $0x13f0] sm:$0xff] %v1483
                %v1485 = vld [vmem:[%s205 + $0x27d8] sm:$0xff]
                %1486 = vst [vmem:[%s206 + $0x13f8] sm:$0xff] %v1485
              $region37: #{cnn1d_forward.18} parent=31 // loop_footer
                %s204 = sadd.s32 1, %s200
              $region38: #{cnn1d_forward.18} parent=31 // loop_footer_branch
                %199 = sbr.rel target = $region34
              $region39: #{cnn1d_forward.18} parent=31 // loop_exit
                _
            $region32: #{cnn1d_forward.18} parent=27 // pred_fallthru
              _
            // Predicated region
            $region40: #{cnn1d_forward.18} parent=27 // pred_check
              _
            $region41: #{cnn1d_forward.18} parent=27 // pred_check_branch
              %1488 = sbr.rel target = $region43
            $region42: #{cnn1d_forward.18} parent=27 // pred_region
              _
            $region43: #{cnn1d_forward.18} parent=27 // pred_fallthru
              _
          $region28: #{cnn1d_forward.18} parent=23 // pred_fallthru
            _
          %1489 = vnop
        $region24: #{cnn1d_forward.18} parent=15 // pred_fallthru
          _
        // Predicated region
        $region44: #{cnn1d_forward.18} parent=15 // pred_check
          %p1490 = pneg %p96
        $region45: #{cnn1d_forward.18} parent=15 // pred_check_branch
          %1492 = sbr.rel (%p1490) target = $region47
        $region46: #{cnn1d_forward.18} parent=15 // pred_region
          %s1493 = smul.u32 4, %s17
          %p1494 = scmp.lt.s32.totalorder %s1493, 7
          %s1495 = scalar_select %p1494, %s1493, 7
          %s1496 = scalar_lea.vmem %s2, %s1495
          %s1497 = smul.u32 4, %s17
        $region47: #{cnn1d_forward.18} parent=15 // pred_fallthru
          _
        // Predicated region
        $region48: #{cnn1d_forward.18} parent=15 // pred_check
          %p1498 = pneg %p122
        $region49: #{cnn1d_forward.18} parent=15 // pred_check_branch
          %1500 = sbr.rel (%p1498) target = $region51
        $region50: #{cnn1d_forward.18} parent=15 // pred_region
          %s1501 = smul.u32 4, %s17
          %p1502 = scmp.lt.s32.totalorder %s1501, 7
          %s1503 = scalar_select %p1502, %s1501, 7
          %s1504 = scalar_lea.vmem %s3, %s1503
          %s1505 = smul.u32 4, %s17
        $region51: #{cnn1d_forward.18} parent=15 // pred_fallthru
          _
      $region16: #{cnn1d_forward.18} parent=5 // pred_fallthru
        _
      %p1506 = scmp.le.s32.totalorder 1, %s10
      %p1507 = scmp.lt.s32.totalorder %s10, 5
      %p1508 = pnand %p1506, %p1507
      %p1509 = pneg %p1508
      // Predicated region
      $region52: #{cnn1d_forward.18} parent=5 // pred_check
        _
      $region53: #{cnn1d_forward.18} parent=5 // pred_check_branch
        %1511 = sbr.rel (%p1508) target = $region55
      $region54: #{cnn1d_forward.18} parent=5 // pred_region
        %s1512 = ssub.s32 %s10, 1
        %s1513 = sand.u32 %s63, 1
        %s1514 = sand.u32 %s63, 1
        %s1515 = smul.addr %s1514, 5120
        %s1516 = scalar_lea.vmem [#allocation3], %s1515
        // Predicated region
        $region56: #{cnn1d_forward.18} parent=54 // pred_check
          %p1517 = pneg %p76
        $region57: #{cnn1d_forward.18} parent=54 // pred_check_branch
          %1519 = sbr.rel (%p1517) target = $region59
        $region58: #{cnn1d_forward.18} parent=54 // pred_region
          _
        $region59: #{cnn1d_forward.18} parent=54 // pred_fallthru
          _
        %s1520 = smul.u32 40, %s20
        %p1521 = scmp.lt.s32.totalorder %s1520, 79
        %s1522 = scalar_select %p1521, %s1520, 79
        %s1523 = smul.addr %s1522, 2
        %s1524 = scalar_lea.vmem %s0, %s1523
        %p1525 = pneg %p48
        %p1526 = pneg %p45
        %s1527 = sand.u32 %s63, 1
        %s1528 = sand.u32 %s63, 1
        %s1529 = smul.addr %s1528, 5120
        %s1530 = scalar_lea.vmem [#allocation3], %s1529
        %p1531 = pneg %p76
        %p1532 = pneg %p73
        %s1533 = smul.u32 4, %s19
        %p1534 = scmp.lt.s32.totalorder %s1533, 7
        %s1535 = scalar_select %p1534, %s1533, 7
        %s1536 = scalar_lea.vmem %s2, %s1535
        %p1537 = pneg %p102
        %p1538 = pneg %p99
        %s1539 = smul.u32 4, %s19
        %p1540 = scmp.lt.s32.totalorder %s1539, 7
        %s1541 = scalar_select %p1540, %s1539, 7
        %s1542 = scalar_lea.vmem %s3, %s1541
        %p1543 = pneg %p128
        %p1544 = pneg %p125
        %p1545 = pneg %p154
        %p1546 = pneg %p151
        %s1547 = smul.u32 4, %s19
        %p1548 = scmp.lt.s32.totalorder %s1547, 7
        %s1549 = scalar_select %p1548, %s1547, 7
        %s1550 = smul.addr %s1549, 2
        %s1551 = scalar_lea.vmem %s4, %s1550
        %s1552 = smul.u32 40, %s20
        %p1553 = scmp.lt.s32.totalorder %s1552, 79
        %s1554 = scalar_select %p1553, %s1552, 79
        %s1555 = smul.addr %s1554, 2
        %s1556 = scalar_lea.vmem %s0, %s1555
        %s1557 = smul.u32 40, %s20
        %s1558 = smul.u32 160, %s20
        %s1559 = smul.u32 4, %s19
        %s1560 = smul.u32 4, %s19
        %p1561 = scmp.lt.s32.totalorder %s1560, 7
        %s1562 = scalar_select %p1561, %s1560, 7
        %s1563 = scalar_lea.vmem %s2, %s1562
        %s1564 = smul.u32 4, %s19
        %s1565 = smul.u32 4, %s19
        %p1566 = scmp.lt.s32.totalorder %s1565, 7
        %s1567 = scalar_select %p1566, %s1565, 7
        %s1568 = scalar_lea.vmem %s3, %s1567
        %s1569 = smul.u32 4, %s19
        %s1570 = smul.u32 4, %s19
        %p1571 = scmp.lt.s32.totalorder %s1570, 7
        %s1572 = scalar_select %p1571, %s1570, 7
        %s1573 = smul.addr %s1572, 2
        %s1574 = scalar_lea.vmem %s4, %s1573
        %s1575 = smul.u32 4, %s19
        %p1576 = scmp.eq.s32.totalorder %s20, 0
        // Predicated region
        $region60: #{cnn1d_forward.18} parent=54 // pred_check
          %p1577 = pneg %p1576
        $region61: #{cnn1d_forward.18} parent=54 // pred_check_branch
          %1579 = sbr.rel (%p1577) target = $region63
        $region62: #{cnn1d_forward.18} parent=54 // pred_region
          %1580 = vst [vmem:[#allocation2] sm:$0xff] 0.0
        $region63: #{cnn1d_forward.18} parent=54 // pred_fallthru
          _
        %v1581 = vld [vmem:[#allocation2] sm:$0xff]
        %v1582 = vld [vmem:[%s1556] sm:$0xff]
        %v1583 = vld [vmem:[%s1556 + $0x8] sm:$0xff]
        %v1584 = vld [vmem:[%s1556 + $0x10] sm:$0xff]
        %v1585 = vld [vmem:[%s1556 + $0x18] sm:$0xff]
        %v1586 = vld [vmem:[%s1556 + $0x20] sm:$0xff]
        %v1587 = vld [vmem:[%s1556 + $0x28] sm:$0xff]
        %v1588 = vld [vmem:[%s1556 + $0x30] sm:$0xff]
        %v1589 = vld [vmem:[%s1556 + $0x38] sm:$0xff]
        %v1590 = vld [vmem:[%s1556 + $0x40] sm:$0xff]
        %v1591 = vld [vmem:[%s1556 + $0x48] sm:$0xff]
        %v1602 = vcombine.high %v1582, %v1582
        %v1604 = vunpack.c.l.s4 1983009808
        %v1605 = vunpack.c.0.s8 %v1604
        %v1606 = vlaneseq
        %v1607 = vshrl.u32 %v1606, 7
        %v1608 = vsub.s32 %v1605, %v1607
        %v1609 = vrot.slane %v1582, %v1608
        %v1611 = vunpack.c.l.s4 1983009808
        %v1612 = vunpack.c.0.s8 %v1611
        %v1613 = vlaneseq
        %v1614 = vshrl.u32 %v1613, 7
        %v1615 = vsub.s32 %v1612, %v1614
        %v1616 = vrot.slane %v1602, %v1615
        %v1617 = vcombine.high %v1609, %v1609
        %v1618 = vcombine.high %v1616, %v1616
        %v1619 = vcombine.high %v1583, %v1583
        %v1621 = vunpack.c.l.s4 1983009808
        %v1622 = vunpack.c.0.s8 %v1621
        %v1623 = vlaneseq
        %v1624 = vshrl.u32 %v1623, 7
        %v1625 = vsub.s32 %v1622, %v1624
        %v1626 = vrot.slane %v1583, %v1625
        %v1628 = vunpack.c.l.s4 1983009808
        %v1629 = vunpack.c.0.s8 %v1628
        %v1630 = vlaneseq
        %v1631 = vshrl.u32 %v1630, 7
        %v1632 = vsub.s32 %v1629, %v1631
        %v1633 = vrot.slane %v1619, %v1632
        %v1634 = vcombine.high %v1626, %v1626
        %v1635 = vcombine.high %v1633, %v1633
        %v1636 = vcombine.high %v1584, %v1584
        %v1638 = vunpack.c.l.s4 1983009808
        %v1639 = vunpack.c.0.s8 %v1638
        %v1640 = vlaneseq
        %v1641 = vshrl.u32 %v1640, 7
        %v1642 = vsub.s32 %v1639, %v1641
        %v1643 = vrot.slane %v1584, %v1642
        %v1645 = vunpack.c.l.s4 1983009808
        %v1646 = vunpack.c.0.s8 %v1645
        %v1647 = vlaneseq
        %v1648 = vshrl.u32 %v1647, 7
        %v1649 = vsub.s32 %v1646, %v1648
        %v1650 = vrot.slane %v1636, %v1649
        %v1651 = vcombine.high %v1643, %v1643
        %v1652 = vcombine.high %v1650, %v1650
        %v1653 = vcombine.high %v1585, %v1585
        %v1655 = vunpack.c.l.s4 1983009808
        %v1656 = vunpack.c.0.s8 %v1655
        %v1657 = vlaneseq
        %v1658 = vshrl.u32 %v1657, 7
        %v1659 = vsub.s32 %v1656, %v1658
        %v1660 = vrot.slane %v1585, %v1659
        %v1662 = vunpack.c.l.s4 1983009808
        %v1663 = vunpack.c.0.s8 %v1662
        %v1664 = vlaneseq
        %v1665 = vshrl.u32 %v1664, 7
        %v1666 = vsub.s32 %v1663, %v1665
        %v1667 = vrot.slane %v1653, %v1666
        %v1668 = vcombine.high %v1660, %v1660
        %v1669 = vcombine.high %v1667, %v1667
        %v1670 = vcombine.high %v1586, %v1586
        %v1672 = vunpack.c.l.s4 1983009808
        %v1673 = vunpack.c.0.s8 %v1672
        %v1674 = vlaneseq
        %v1675 = vshrl.u32 %v1674, 7
        %v1676 = vsub.s32 %v1673, %v1675
        %v1677 = vrot.slane %v1586, %v1676
        %v1679 = vunpack.c.l.s4 1983009808
        %v1680 = vunpack.c.0.s8 %v1679
        %v1681 = vlaneseq
        %v1682 = vshrl.u32 %v1681, 7
        %v1683 = vsub.s32 %v1680, %v1682
        %v1684 = vrot.slane %v1670, %v1683
        %v1685 = vcombine.high %v1677, %v1677
        %v1686 = vcombine.high %v1684, %v1684
        %v1687 = vcombine.high %v1587, %v1587
        %v1689 = vunpack.c.l.s4 1983009808
        %v1690 = vunpack.c.0.s8 %v1689
        %v1691 = vlaneseq
        %v1692 = vshrl.u32 %v1691, 7
        %v1693 = vsub.s32 %v1690, %v1692
        %v1694 = vrot.slane %v1587, %v1693
        %v1696 = vunpack.c.l.s4 1983009808
        %v1697 = vunpack.c.0.s8 %v1696
        %v1698 = vlaneseq
        %v1699 = vshrl.u32 %v1698, 7
        %v1700 = vsub.s32 %v1697, %v1699
        %v1701 = vrot.slane %v1687, %v1700
        %v1702 = vcombine.high %v1694, %v1694
        %v1703 = vcombine.high %v1701, %v1701
        %v1704 = vcombine.high %v1588, %v1588
        %v1706 = vunpack.c.l.s4 1983009808
        %v1707 = vunpack.c.0.s8 %v1706
        %v1708 = vlaneseq
        %v1709 = vshrl.u32 %v1708, 7
        %v1710 = vsub.s32 %v1707, %v1709
        %v1711 = vrot.slane %v1588, %v1710
        %v1713 = vunpack.c.l.s4 1983009808
        %v1714 = vunpack.c.0.s8 %v1713
        %v1715 = vlaneseq
        %v1716 = vshrl.u32 %v1715, 7
        %v1717 = vsub.s32 %v1714, %v1716
        %v1718 = vrot.slane %v1704, %v1717
        %v1719 = vcombine.high %v1711, %v1711
        %v1720 = vcombine.high %v1718, %v1718
        %v1721 = vcombine.high %v1589, %v1589
        %v1723 = vunpack.c.l.s4 1983009808
        %v1724 = vunpack.c.0.s8 %v1723
        %v1725 = vlaneseq
        %v1726 = vshrl.u32 %v1725, 7
        %v1727 = vsub.s32 %v1724, %v1726
        %v1728 = vrot.slane %v1589, %v1727
        %v1730 = vunpack.c.l.s4 1983009808
        %v1731 = vunpack.c.0.s8 %v1730
        %v1732 = vlaneseq
        %v1733 = vshrl.u32 %v1732, 7
        %v1734 = vsub.s32 %v1731, %v1733
        %v1735 = vrot.slane %v1721, %v1734
        %v1736 = vcombine.high %v1728, %v1728
        %v1737 = vcombine.high %v1735, %v1735
        %v1738 = vcombine.high %v1590, %v1590
        %v1740 = vunpack.c.l.s4 1983009808
        %v1741 = vunpack.c.0.s8 %v1740
        %v1742 = vlaneseq
        %v1743 = vshrl.u32 %v1742, 7
        %v1744 = vsub.s32 %v1741, %v1743
        %v1745 = vrot.slane %v1590, %v1744
        %v1747 = vunpack.c.l.s4 1983009808
        %v1748 = vunpack.c.0.s8 %v1747
        %v1749 = vlaneseq
        %v1750 = vshrl.u32 %v1749, 7
        %v1751 = vsub.s32 %v1748, %v1750
        %v1752 = vrot.slane %v1738, %v1751
        %v1753 = vcombine.high %v1745, %v1745
        %v1754 = vcombine.high %v1752, %v1752
        %v1755 = vcombine.high %v1591, %v1591
        %v1757 = vunpack.c.l.s4 1983009808
        %v1758 = vunpack.c.0.s8 %v1757
        %v1759 = vlaneseq
        %v1760 = vshrl.u32 %v1759, 7
        %v1761 = vsub.s32 %v1758, %v1760
        %v1762 = vrot.slane %v1591, %v1761
        %v1764 = vunpack.c.l.s4 1983009808
        %v1765 = vunpack.c.0.s8 %v1764
        %v1766 = vlaneseq
        %v1767 = vshrl.u32 %v1766, 7
        %v1768 = vsub.s32 %v1765, %v1767
        %v1769 = vrot.slane %v1755, %v1768
        %v1770 = vcombine.high %v1762, %v1762
        %v1771 = vcombine.high %v1769, %v1769
        %v1812 = vpack.c.bf16 %v1609, %v1609
        %v1813 = vpack.c.bf16 %v1617, %v1617
        %v1814 = vpack.c.bf16 %v1616, %v1616
        %v1815 = vpack.c.bf16 %v1618, %v1618
        %v1816 = vpack.c.bf16 %v1626, %v1626
        %v1817 = vpack.c.bf16 %v1634, %v1634
        %v1818 = vpack.c.bf16 %v1633, %v1633
        %v1819 = vpack.c.bf16 %v1635, %v1635
        %v1820 = vpack.c.bf16 %v1643, %v1643
        %v1821 = vpack.c.bf16 %v1651, %v1651
        %v1822 = vpack.c.bf16 %v1650, %v1650
        %v1823 = vpack.c.bf16 %v1652, %v1652
        %v1824 = vpack.c.bf16 %v1660, %v1660
        %v1825 = vpack.c.bf16 %v1668, %v1668
        %v1826 = vpack.c.bf16 %v1667, %v1667
        %v1827 = vpack.c.bf16 %v1669, %v1669
        %v1828 = vpack.c.bf16 %v1677, %v1677
        %v1829 = vpack.c.bf16 %v1685, %v1685
        %v1830 = vpack.c.bf16 %v1684, %v1684
        %v1831 = vpack.c.bf16 %v1686, %v1686
        %v1832 = vpack.c.bf16 %v1694, %v1694
        %v1833 = vpack.c.bf16 %v1702, %v1702
        %v1834 = vpack.c.bf16 %v1701, %v1701
        %v1835 = vpack.c.bf16 %v1703, %v1703
        %v1836 = vpack.c.bf16 %v1711, %v1711
        %v1837 = vpack.c.bf16 %v1719, %v1719
        %v1838 = vpack.c.bf16 %v1718, %v1718
        %v1839 = vpack.c.bf16 %v1720, %v1720
        %v1840 = vpack.c.bf16 %v1728, %v1728
        %v1841 = vpack.c.bf16 %v1736, %v1736
        %v1842 = vpack.c.bf16 %v1735, %v1735
        %v1843 = vpack.c.bf16 %v1737, %v1737
        %v1844 = vpack.c.bf16 %v1745, %v1745
        %v1845 = vpack.c.bf16 %v1753, %v1753
        %v1846 = vpack.c.bf16 %v1752, %v1752
        %v1847 = vpack.c.bf16 %v1754, %v1754
        %v1848 = vpack.c.bf16 %v1762, %v1762
        %v1849 = vpack.c.bf16 %v1770, %v1770
        %v1850 = vpack.c.bf16 %v1769, %v1769
        %v1851 = vpack.c.bf16 %v1771, %v1771
        %v1852 = vld [vmem:[%s1516] sm:$0xff]
        %v1853 = vld [vmem:[%s1516 + $0x8] sm:$0xff]
        %v1854 = vld [vmem:[%s1516 + $0x10] sm:$0xff]
        %v1855 = vld [vmem:[%s1516 + $0x18] sm:$0xff]
        %v1856 = vld [vmem:[%s1516 + $0x20] sm:$0xff]
        %v1857 = vld [vmem:[%s1516 + $0x28] sm:$0xff]
        %v1858 = vld [vmem:[%s1516 + $0x30] sm:$0xff]
        %v1859 = vld [vmem:[%s1516 + $0x38] sm:$0xff]
        %v1860 = vld [vmem:[%s1516 + $0x40] sm:$0xff]
        %v1861 = vld [vmem:[%s1516 + $0x48] sm:$0xff]
        %v1862 = vld [vmem:[%s1516 + $0x50] sm:$0xff]
        %v1863 = vld [vmem:[%s1516 + $0x58] sm:$0xff]
        %v1864 = vld [vmem:[%s1516 + $0x60] sm:$0xff]
        %v1865 = vld [vmem:[%s1516 + $0x68] sm:$0xff]
        %v1866 = vld [vmem:[%s1516 + $0x70] sm:$0xff]
        %v1867 = vld [vmem:[%s1516 + $0x78] sm:$0xff]
        %v1868 = vld [vmem:[%s1516 + $0x80] sm:$0xff]
        %v1869 = vld [vmem:[%s1516 + $0x88] sm:$0xff]
        %v1870 = vld [vmem:[%s1516 + $0x90] sm:$0xff]
        %v1871 = vld [vmem:[%s1516 + $0x98] sm:$0xff]
        %v1872 = vld [vmem:[%s1516 + $0xa0] sm:$0xff]
        %v1873 = vld [vmem:[%s1516 + $0xa8] sm:$0xff]
        %v1874 = vld [vmem:[%s1516 + $0xb0] sm:$0xff]
        %v1875 = vld [vmem:[%s1516 + $0xb8] sm:$0xff]
        %v1876 = vld [vmem:[%s1516 + $0xc0] sm:$0xff]
        %v1877 = vld [vmem:[%s1516 + $0xc8] sm:$0xff]
        %v1878 = vld [vmem:[%s1516 + $0xd0] sm:$0xff]
        %v1879 = vld [vmem:[%s1516 + $0xd8] sm:$0xff]
        %v1880 = vld [vmem:[%s1516 + $0xe0] sm:$0xff]
        %v1881 = vld [vmem:[%s1516 + $0xe8] sm:$0xff]
        %v1882 = vld [vmem:[%s1516 + $0xf0] sm:$0xff]
        %v1883 = vld [vmem:[%s1516 + $0xf8] sm:$0xff]
        %v1884 = vld [vmem:[%s1516 + $0x100] sm:$0xff]
        %v1885 = vld [vmem:[%s1516 + $0x108] sm:$0xff]
        %v1886 = vld [vmem:[%s1516 + $0x110] sm:$0xff]
        %v1887 = vld [vmem:[%s1516 + $0x118] sm:$0xff]
        %v1888 = vld [vmem:[%s1516 + $0x120] sm:$0xff]
        %v1889 = vld [vmem:[%s1516 + $0x128] sm:$0xff]
        %v1890 = vld [vmem:[%s1516 + $0x130] sm:$0xff]
        %v1891 = vld [vmem:[%s1516 + $0x138] sm:$0xff]
        %v1892 = vld [vmem:[%s1516 + $0x140] sm:$0xff]
        %v1893 = vld [vmem:[%s1516 + $0x148] sm:$0xff]
        %v1894 = vld [vmem:[%s1516 + $0x150] sm:$0xff]
        %v1895 = vld [vmem:[%s1516 + $0x158] sm:$0xff]
        %v1896 = vld [vmem:[%s1516 + $0x160] sm:$0xff]
        %v1897 = vld [vmem:[%s1516 + $0x168] sm:$0xff]
        %v1898 = vld [vmem:[%s1516 + $0x170] sm:$0xff]
        %v1899 = vld [vmem:[%s1516 + $0x178] sm:$0xff]
        %v1900 = vld [vmem:[%s1516 + $0x180] sm:$0xff]
        %v1901 = vld [vmem:[%s1516 + $0x188] sm:$0xff]
        %v1902 = vld [vmem:[%s1516 + $0x190] sm:$0xff]
        %v1903 = vld [vmem:[%s1516 + $0x198] sm:$0xff]
        %v1904 = vld [vmem:[%s1516 + $0x1a0] sm:$0xff]
        %v1905 = vld [vmem:[%s1516 + $0x1a8] sm:$0xff]
        %v1906 = vld [vmem:[%s1516 + $0x1b0] sm:$0xff]
        %v1907 = vld [vmem:[%s1516 + $0x1b8] sm:$0xff]
        %v1908 = vld [vmem:[%s1516 + $0x1c0] sm:$0xff]
        %v1909 = vld [vmem:[%s1516 + $0x1c8] sm:$0xff]
        %v1910 = vld [vmem:[%s1516 + $0x1d0] sm:$0xff]
        %v1911 = vld [vmem:[%s1516 + $0x1d8] sm:$0xff]
        %v1912 = vld [vmem:[%s1516 + $0x1e0] sm:$0xff]
        %v1913 = vld [vmem:[%s1516 + $0x1e8] sm:$0xff]
        %v1914 = vld [vmem:[%s1516 + $0x1f0] sm:$0xff]
        %v1915 = vld [vmem:[%s1516 + $0x1f8] sm:$0xff]
        %v1916 = vld [vmem:[%s1516 + $0x200] sm:$0xff]
        %v1917 = vld [vmem:[%s1516 + $0x208] sm:$0xff]
        %v1918 = vld [vmem:[%s1516 + $0x210] sm:$0xff]
        %v1919 = vld [vmem:[%s1516 + $0x218] sm:$0xff]
        %v1920 = vld [vmem:[%s1516 + $0x220] sm:$0xff]
        %v1921 = vld [vmem:[%s1516 + $0x228] sm:$0xff]
        %v1922 = vld [vmem:[%s1516 + $0x230] sm:$0xff]
        %v1923 = vld [vmem:[%s1516 + $0x238] sm:$0xff]
        %v1924 = vld [vmem:[%s1516 + $0x240] sm:$0xff]
        %v1925 = vld [vmem:[%s1516 + $0x248] sm:$0xff]
        %v1926 = vld [vmem:[%s1516 + $0x250] sm:$0xff]
        %v1927 = vld [vmem:[%s1516 + $0x258] sm:$0xff]
        %v1928 = vld [vmem:[%s1516 + $0x260] sm:$0xff]
        %v1929 = vld [vmem:[%s1516 + $0x268] sm:$0xff]
        %v1930 = vld [vmem:[%s1516 + $0x270] sm:$0xff]
        %v1931 = vld [vmem:[%s1516 + $0x278] sm:$0xff]
        %v1932 = vld [vmem:[%s1516 + $0x280] sm:$0xff]
        %v1933 = vld [vmem:[%s1516 + $0x288] sm:$0xff]
        %v1934 = vld [vmem:[%s1516 + $0x290] sm:$0xff]
        %v1935 = vld [vmem:[%s1516 + $0x298] sm:$0xff]
        %v1936 = vld [vmem:[%s1516 + $0x2a0] sm:$0xff]
        %v1937 = vld [vmem:[%s1516 + $0x2a8] sm:$0xff]
        %v1938 = vld [vmem:[%s1516 + $0x2b0] sm:$0xff]
        %v1939 = vld [vmem:[%s1516 + $0x2b8] sm:$0xff]
        %v1940 = vld [vmem:[%s1516 + $0x2c0] sm:$0xff]
        %v1941 = vld [vmem:[%s1516 + $0x2c8] sm:$0xff]
        %v1942 = vld [vmem:[%s1516 + $0x2d0] sm:$0xff]
        %v1943 = vld [vmem:[%s1516 + $0x2d8] sm:$0xff]
        %v1944 = vld [vmem:[%s1516 + $0x2e0] sm:$0xff]
        %v1945 = vld [vmem:[%s1516 + $0x2e8] sm:$0xff]
        %v1946 = vld [vmem:[%s1516 + $0x2f0] sm:$0xff]
        %v1947 = vld [vmem:[%s1516 + $0x2f8] sm:$0xff]
        %v1948 = vld [vmem:[%s1516 + $0x300] sm:$0xff]
        %v1949 = vld [vmem:[%s1516 + $0x308] sm:$0xff]
        %v1950 = vld [vmem:[%s1516 + $0x310] sm:$0xff]
        %v1951 = vld [vmem:[%s1516 + $0x318] sm:$0xff]
        %v1952 = vld [vmem:[%s1516 + $0x320] sm:$0xff]
        %v1953 = vld [vmem:[%s1516 + $0x328] sm:$0xff]
        %v1954 = vld [vmem:[%s1516 + $0x330] sm:$0xff]
        %v1955 = vld [vmem:[%s1516 + $0x338] sm:$0xff]
        %v1956 = vld [vmem:[%s1516 + $0x340] sm:$0xff]
        %v1957 = vld [vmem:[%s1516 + $0x348] sm:$0xff]
        %v1958 = vld [vmem:[%s1516 + $0x350] sm:$0xff]
        %v1959 = vld [vmem:[%s1516 + $0x358] sm:$0xff]
        %v1960 = vld [vmem:[%s1516 + $0x360] sm:$0xff]
        %v1961 = vld [vmem:[%s1516 + $0x368] sm:$0xff]
        %v1962 = vld [vmem:[%s1516 + $0x370] sm:$0xff]
        %v1963 = vld [vmem:[%s1516 + $0x378] sm:$0xff]
        %v1964 = vld [vmem:[%s1516 + $0x380] sm:$0xff]
        %v1965 = vld [vmem:[%s1516 + $0x388] sm:$0xff]
        %v1966 = vld [vmem:[%s1516 + $0x390] sm:$0xff]
        %v1967 = vld [vmem:[%s1516 + $0x398] sm:$0xff]
        %v1968 = vld [vmem:[%s1516 + $0x3a0] sm:$0xff]
        %v1969 = vld [vmem:[%s1516 + $0x3a8] sm:$0xff]
        %v1970 = vld [vmem:[%s1516 + $0x3b0] sm:$0xff]
        %v1971 = vld [vmem:[%s1516 + $0x3b8] sm:$0xff]
        %v1972 = vld [vmem:[%s1516 + $0x3c0] sm:$0xff]
        %v1973 = vld [vmem:[%s1516 + $0x3c8] sm:$0xff]
        %v1974 = vld [vmem:[%s1516 + $0x3d0] sm:$0xff]
        %v1975 = vld [vmem:[%s1516 + $0x3d8] sm:$0xff]
        %v1976 = vld [vmem:[%s1516 + $0x3e0] sm:$0xff]
        %v1977 = vld [vmem:[%s1516 + $0x3e8] sm:$0xff]
        %v1978 = vld [vmem:[%s1516 + $0x3f0] sm:$0xff]
        %v1979 = vld [vmem:[%s1516 + $0x3f8] sm:$0xff]
        %v1980 = vld [vmem:[%s1516 + $0x400] sm:$0xff]
        %v1981 = vld [vmem:[%s1516 + $0x408] sm:$0xff]
        %v1982 = vld [vmem:[%s1516 + $0x410] sm:$0xff]
        %v1983 = vld [vmem:[%s1516 + $0x418] sm:$0xff]
        %v1984 = vld [vmem:[%s1516 + $0x420] sm:$0xff]
        %v1985 = vld [vmem:[%s1516 + $0x428] sm:$0xff]
        %v1986 = vld [vmem:[%s1516 + $0x430] sm:$0xff]
        %v1987 = vld [vmem:[%s1516 + $0x438] sm:$0xff]
        %v1988 = vld [vmem:[%s1516 + $0x440] sm:$0xff]
        %v1989 = vld [vmem:[%s1516 + $0x448] sm:$0xff]
        %v1990 = vld [vmem:[%s1516 + $0x450] sm:$0xff]
        %v1991 = vld [vmem:[%s1516 + $0x458] sm:$0xff]
        %v1992 = vld [vmem:[%s1516 + $0x460] sm:$0xff]
        %v1993 = vld [vmem:[%s1516 + $0x468] sm:$0xff]
        %v1994 = vld [vmem:[%s1516 + $0x470] sm:$0xff]
        %v1995 = vld [vmem:[%s1516 + $0x478] sm:$0xff]
        %v1996 = vld [vmem:[%s1516 + $0x480] sm:$0xff]
        %v1997 = vld [vmem:[%s1516 + $0x488] sm:$0xff]
        %v1998 = vld [vmem:[%s1516 + $0x490] sm:$0xff]
        %v1999 = vld [vmem:[%s1516 + $0x498] sm:$0xff]
        %v2000 = vld [vmem:[%s1516 + $0x4a0] sm:$0xff]
        %v2001 = vld [vmem:[%s1516 + $0x4a8] sm:$0xff]
        %v2002 = vld [vmem:[%s1516 + $0x4b0] sm:$0xff]
        %v2003 = vld [vmem:[%s1516 + $0x4b8] sm:$0xff]
        %v2004 = vld [vmem:[%s1516 + $0x4c0] sm:$0xff]
        %v2005 = vld [vmem:[%s1516 + $0x4c8] sm:$0xff]
        %v2006 = vld [vmem:[%s1516 + $0x4d0] sm:$0xff]
        %v2007 = vld [vmem:[%s1516 + $0x4d8] sm:$0xff]
        %v2008 = vld [vmem:[%s1516 + $0x4e0] sm:$0xff]
        %v2009 = vld [vmem:[%s1516 + $0x4e8] sm:$0xff]
        %v2010 = vld [vmem:[%s1516 + $0x4f0] sm:$0xff]
        %v2011 = vld [vmem:[%s1516 + $0x4f8] sm:$0xff]
        %v2012 = vld [vmem:[%s1516 + $0x500] sm:$0xff]
        %v2013 = vld [vmem:[%s1516 + $0x508] sm:$0xff]
        %v2014 = vld [vmem:[%s1516 + $0x510] sm:$0xff]
        %v2015 = vld [vmem:[%s1516 + $0x518] sm:$0xff]
        %v2016 = vld [vmem:[%s1516 + $0x520] sm:$0xff]
        %v2017 = vld [vmem:[%s1516 + $0x528] sm:$0xff]
        %v2018 = vld [vmem:[%s1516 + $0x530] sm:$0xff]
        %v2019 = vld [vmem:[%s1516 + $0x538] sm:$0xff]
        %v2020 = vld [vmem:[%s1516 + $0x540] sm:$0xff]
        %v2021 = vld [vmem:[%s1516 + $0x548] sm:$0xff]
        %v2022 = vld [vmem:[%s1516 + $0x550] sm:$0xff]
        %v2023 = vld [vmem:[%s1516 + $0x558] sm:$0xff]
        %v2024 = vld [vmem:[%s1516 + $0x560] sm:$0xff]
        %v2025 = vld [vmem:[%s1516 + $0x568] sm:$0xff]
        %v2026 = vld [vmem:[%s1516 + $0x570] sm:$0xff]
        %v2027 = vld [vmem:[%s1516 + $0x578] sm:$0xff]
        %v2028 = vld [vmem:[%s1516 + $0x580] sm:$0xff]
        %v2029 = vld [vmem:[%s1516 + $0x588] sm:$0xff]
        %v2030 = vld [vmem:[%s1516 + $0x590] sm:$0xff]
        %v2031 = vld [vmem:[%s1516 + $0x598] sm:$0xff]
        %v2032 = vld [vmem:[%s1516 + $0x5a0] sm:$0xff]
        %v2033 = vld [vmem:[%s1516 + $0x5a8] sm:$0xff]
        %v2034 = vld [vmem:[%s1516 + $0x5b0] sm:$0xff]
        %v2035 = vld [vmem:[%s1516 + $0x5b8] sm:$0xff]
        %v2036 = vld [vmem:[%s1516 + $0x5c0] sm:$0xff]
        %v2037 = vld [vmem:[%s1516 + $0x5c8] sm:$0xff]
        %v2038 = vld [vmem:[%s1516 + $0x5d0] sm:$0xff]
        %v2039 = vld [vmem:[%s1516 + $0x5d8] sm:$0xff]
        %v2040 = vld [vmem:[%s1516 + $0x5e0] sm:$0xff]
        %v2041 = vld [vmem:[%s1516 + $0x5e8] sm:$0xff]
        %v2042 = vld [vmem:[%s1516 + $0x5f0] sm:$0xff]
        %v2043 = vld [vmem:[%s1516 + $0x5f8] sm:$0xff]
        %v2044 = vld [vmem:[%s1516 + $0x600] sm:$0xff]
        %v2045 = vld [vmem:[%s1516 + $0x608] sm:$0xff]
        %v2046 = vld [vmem:[%s1516 + $0x610] sm:$0xff]
        %v2047 = vld [vmem:[%s1516 + $0x618] sm:$0xff]
        %v2048 = vld [vmem:[%s1516 + $0x620] sm:$0xff]
        %v2049 = vld [vmem:[%s1516 + $0x628] sm:$0xff]
        %v2050 = vld [vmem:[%s1516 + $0x630] sm:$0xff]
        %v2051 = vld [vmem:[%s1516 + $0x638] sm:$0xff]
        %v2052 = vld [vmem:[%s1516 + $0x640] sm:$0xff]
        %v2053 = vld [vmem:[%s1516 + $0x648] sm:$0xff]
        %v2054 = vld [vmem:[%s1516 + $0x650] sm:$0xff]
        %v2055 = vld [vmem:[%s1516 + $0x658] sm:$0xff]
        %v2056 = vld [vmem:[%s1516 + $0x660] sm:$0xff]
        %v2057 = vld [vmem:[%s1516 + $0x668] sm:$0xff]
        %v2058 = vld [vmem:[%s1516 + $0x670] sm:$0xff]
        %v2059 = vld [vmem:[%s1516 + $0x678] sm:$0xff]
        %v2060 = vld [vmem:[%s1516 + $0x680] sm:$0xff]
        %v2061 = vld [vmem:[%s1516 + $0x688] sm:$0xff]
        %v2062 = vld [vmem:[%s1516 + $0x690] sm:$0xff]
        %v2063 = vld [vmem:[%s1516 + $0x698] sm:$0xff]
        %v2064 = vld [vmem:[%s1516 + $0x6a0] sm:$0xff]
        %v2065 = vld [vmem:[%s1516 + $0x6a8] sm:$0xff]
        %v2066 = vld [vmem:[%s1516 + $0x6b0] sm:$0xff]
        %v2067 = vld [vmem:[%s1516 + $0x6b8] sm:$0xff]
        %v2068 = vld [vmem:[%s1516 + $0x6c0] sm:$0xff]
        %v2069 = vld [vmem:[%s1516 + $0x6c8] sm:$0xff]
        %v2070 = vld [vmem:[%s1516 + $0x6d0] sm:$0xff]
        %v2071 = vld [vmem:[%s1516 + $0x6d8] sm:$0xff]
        %v2072 = vld [vmem:[%s1516 + $0x6e0] sm:$0xff]
        %v2073 = vld [vmem:[%s1516 + $0x6e8] sm:$0xff]
        %v2074 = vld [vmem:[%s1516 + $0x6f0] sm:$0xff]
        %v2075 = vld [vmem:[%s1516 + $0x6f8] sm:$0xff]
        %v2076 = vld [vmem:[%s1516 + $0x700] sm:$0xff]
        %v2077 = vld [vmem:[%s1516 + $0x708] sm:$0xff]
        %v2078 = vld [vmem:[%s1516 + $0x710] sm:$0xff]
        %v2079 = vld [vmem:[%s1516 + $0x718] sm:$0xff]
        %v2080 = vld [vmem:[%s1516 + $0x720] sm:$0xff]
        %v2081 = vld [vmem:[%s1516 + $0x728] sm:$0xff]
        %v2082 = vld [vmem:[%s1516 + $0x730] sm:$0xff]
        %v2083 = vld [vmem:[%s1516 + $0x738] sm:$0xff]
        %v2084 = vld [vmem:[%s1516 + $0x740] sm:$0xff]
        %v2085 = vld [vmem:[%s1516 + $0x748] sm:$0xff]
        %v2086 = vld [vmem:[%s1516 + $0x750] sm:$0xff]
        %v2087 = vld [vmem:[%s1516 + $0x758] sm:$0xff]
        %v2088 = vld [vmem:[%s1516 + $0x760] sm:$0xff]
        %v2089 = vld [vmem:[%s1516 + $0x768] sm:$0xff]
        %v2090 = vld [vmem:[%s1516 + $0x770] sm:$0xff]
        %v2091 = vld [vmem:[%s1516 + $0x778] sm:$0xff]
        %v2092 = vld [vmem:[%s1516 + $0x780] sm:$0xff]
        %v2093 = vld [vmem:[%s1516 + $0x788] sm:$0xff]
        %v2094 = vld [vmem:[%s1516 + $0x790] sm:$0xff]
        %v2095 = vld [vmem:[%s1516 + $0x798] sm:$0xff]
        %v2096 = vld [vmem:[%s1516 + $0x7a0] sm:$0xff]
        %v2097 = vld [vmem:[%s1516 + $0x7a8] sm:$0xff]
        %v2098 = vld [vmem:[%s1516 + $0x7b0] sm:$0xff]
        %v2099 = vld [vmem:[%s1516 + $0x7b8] sm:$0xff]
        %v2100 = vld [vmem:[%s1516 + $0x7c0] sm:$0xff]
        %v2101 = vld [vmem:[%s1516 + $0x7c8] sm:$0xff]
        %v2102 = vld [vmem:[%s1516 + $0x7d0] sm:$0xff]
        %v2103 = vld [vmem:[%s1516 + $0x7d8] sm:$0xff]
        %v2104 = vld [vmem:[%s1516 + $0x7e0] sm:$0xff]
        %v2105 = vld [vmem:[%s1516 + $0x7e8] sm:$0xff]
        %v2106 = vld [vmem:[%s1516 + $0x7f0] sm:$0xff]
        %v2107 = vld [vmem:[%s1516 + $0x7f8] sm:$0xff]
        %v2108 = vld [vmem:[%s1516 + $0x800] sm:$0xff]
        %v2109 = vld [vmem:[%s1516 + $0x808] sm:$0xff]
        %v2110 = vld [vmem:[%s1516 + $0x810] sm:$0xff]
        %v2111 = vld [vmem:[%s1516 + $0x818] sm:$0xff]
        %v2112 = vld [vmem:[%s1516 + $0x820] sm:$0xff]
        %v2113 = vld [vmem:[%s1516 + $0x828] sm:$0xff]
        %v2114 = vld [vmem:[%s1516 + $0x830] sm:$0xff]
        %v2115 = vld [vmem:[%s1516 + $0x838] sm:$0xff]
        %v2116 = vld [vmem:[%s1516 + $0x840] sm:$0xff]
        %v2117 = vld [vmem:[%s1516 + $0x848] sm:$0xff]
        %v2118 = vld [vmem:[%s1516 + $0x850] sm:$0xff]
        %v2119 = vld [vmem:[%s1516 + $0x858] sm:$0xff]
        %v2120 = vld [vmem:[%s1516 + $0x860] sm:$0xff]
        %v2121 = vld [vmem:[%s1516 + $0x868] sm:$0xff]
        %v2122 = vld [vmem:[%s1516 + $0x870] sm:$0xff]
        %v2123 = vld [vmem:[%s1516 + $0x878] sm:$0xff]
        %v2124 = vld [vmem:[%s1516 + $0x880] sm:$0xff]
        %v2125 = vld [vmem:[%s1516 + $0x888] sm:$0xff]
        %v2126 = vld [vmem:[%s1516 + $0x890] sm:$0xff]
        %v2127 = vld [vmem:[%s1516 + $0x898] sm:$0xff]
        %v2128 = vld [vmem:[%s1516 + $0x8a0] sm:$0xff]
        %v2129 = vld [vmem:[%s1516 + $0x8a8] sm:$0xff]
        %v2130 = vld [vmem:[%s1516 + $0x8b0] sm:$0xff]
        %v2131 = vld [vmem:[%s1516 + $0x8b8] sm:$0xff]
        %v2132 = vld [vmem:[%s1516 + $0x8c0] sm:$0xff]
        %v2133 = vld [vmem:[%s1516 + $0x8c8] sm:$0xff]
        %v2134 = vld [vmem:[%s1516 + $0x8d0] sm:$0xff]
        %v2135 = vld [vmem:[%s1516 + $0x8d8] sm:$0xff]
        %v2136 = vld [vmem:[%s1516 + $0x8e0] sm:$0xff]
        %v2137 = vld [vmem:[%s1516 + $0x8e8] sm:$0xff]
        %v2138 = vld [vmem:[%s1516 + $0x8f0] sm:$0xff]
        %v2139 = vld [vmem:[%s1516 + $0x8f8] sm:$0xff]
        %v2140 = vld [vmem:[%s1516 + $0x900] sm:$0xff]
        %v2141 = vld [vmem:[%s1516 + $0x908] sm:$0xff]
        %v2142 = vld [vmem:[%s1516 + $0x910] sm:$0xff]
        %v2143 = vld [vmem:[%s1516 + $0x918] sm:$0xff]
        %v2144 = vld [vmem:[%s1516 + $0x920] sm:$0xff]
        %v2145 = vld [vmem:[%s1516 + $0x928] sm:$0xff]
        %v2146 = vld [vmem:[%s1516 + $0x930] sm:$0xff]
        %v2147 = vld [vmem:[%s1516 + $0x938] sm:$0xff]
        %v2148 = vld [vmem:[%s1516 + $0x940] sm:$0xff]
        %v2149 = vld [vmem:[%s1516 + $0x948] sm:$0xff]
        %v2150 = vld [vmem:[%s1516 + $0x950] sm:$0xff]
        %v2151 = vld [vmem:[%s1516 + $0x958] sm:$0xff]
        %v2152 = vld [vmem:[%s1516 + $0x960] sm:$0xff]
        %v2153 = vld [vmem:[%s1516 + $0x968] sm:$0xff]
        %v2154 = vld [vmem:[%s1516 + $0x970] sm:$0xff]
        %v2155 = vld [vmem:[%s1516 + $0x978] sm:$0xff]
        %v2156 = vld [vmem:[%s1516 + $0x980] sm:$0xff]
        %v2157 = vld [vmem:[%s1516 + $0x988] sm:$0xff]
        %v2158 = vld [vmem:[%s1516 + $0x990] sm:$0xff]
        %v2159 = vld [vmem:[%s1516 + $0x998] sm:$0xff]
        %v2160 = vld [vmem:[%s1516 + $0x9a0] sm:$0xff]
        %v2161 = vld [vmem:[%s1516 + $0x9a8] sm:$0xff]
        %v2162 = vld [vmem:[%s1516 + $0x9b0] sm:$0xff]
        %v2163 = vld [vmem:[%s1516 + $0x9b8] sm:$0xff]
        %v2164 = vld [vmem:[%s1516 + $0x9c0] sm:$0xff]
        %v2165 = vld [vmem:[%s1516 + $0x9c8] sm:$0xff]
        %v2166 = vld [vmem:[%s1516 + $0x9d0] sm:$0xff]
        %v2167 = vld [vmem:[%s1516 + $0x9d8] sm:$0xff]
        %v2168 = vld [vmem:[%s1516 + $0x9e0] sm:$0xff]
        %v2169 = vld [vmem:[%s1516 + $0x9e8] sm:$0xff]
        %v2170 = vld [vmem:[%s1516 + $0x9f0] sm:$0xff]
        %v2171 = vld [vmem:[%s1516 + $0x9f8] sm:$0xff]
        %v2172 = vld [vmem:[%s1516 + $0xa00] sm:$0xff]
        %v2173 = vld [vmem:[%s1516 + $0xa08] sm:$0xff]
        %v2174 = vld [vmem:[%s1516 + $0xa10] sm:$0xff]
        %v2175 = vld [vmem:[%s1516 + $0xa18] sm:$0xff]
        %v2176 = vld [vmem:[%s1516 + $0xa20] sm:$0xff]
        %v2177 = vld [vmem:[%s1516 + $0xa28] sm:$0xff]
        %v2178 = vld [vmem:[%s1516 + $0xa30] sm:$0xff]
        %v2179 = vld [vmem:[%s1516 + $0xa38] sm:$0xff]
        %v2180 = vld [vmem:[%s1516 + $0xa40] sm:$0xff]
        %v2181 = vld [vmem:[%s1516 + $0xa48] sm:$0xff]
        %v2182 = vld [vmem:[%s1516 + $0xa50] sm:$0xff]
        %v2183 = vld [vmem:[%s1516 + $0xa58] sm:$0xff]
        %v2184 = vld [vmem:[%s1516 + $0xa60] sm:$0xff]
        %v2185 = vld [vmem:[%s1516 + $0xa68] sm:$0xff]
        %v2186 = vld [vmem:[%s1516 + $0xa70] sm:$0xff]
        %v2187 = vld [vmem:[%s1516 + $0xa78] sm:$0xff]
        %v2188 = vld [vmem:[%s1516 + $0xa80] sm:$0xff]
        %v2189 = vld [vmem:[%s1516 + $0xa88] sm:$0xff]
        %v2190 = vld [vmem:[%s1516 + $0xa90] sm:$0xff]
        %v2191 = vld [vmem:[%s1516 + $0xa98] sm:$0xff]
        %v2192 = vld [vmem:[%s1516 + $0xaa0] sm:$0xff]
        %v2193 = vld [vmem:[%s1516 + $0xaa8] sm:$0xff]
        %v2194 = vld [vmem:[%s1516 + $0xab0] sm:$0xff]
        %v2195 = vld [vmem:[%s1516 + $0xab8] sm:$0xff]
        %v2196 = vld [vmem:[%s1516 + $0xac0] sm:$0xff]
        %v2197 = vld [vmem:[%s1516 + $0xac8] sm:$0xff]
        %v2198 = vld [vmem:[%s1516 + $0xad0] sm:$0xff]
        %v2199 = vld [vmem:[%s1516 + $0xad8] sm:$0xff]
        %v2200 = vld [vmem:[%s1516 + $0xae0] sm:$0xff]
        %v2201 = vld [vmem:[%s1516 + $0xae8] sm:$0xff]
        %v2202 = vld [vmem:[%s1516 + $0xaf0] sm:$0xff]
        %v2203 = vld [vmem:[%s1516 + $0xaf8] sm:$0xff]
        %v2204 = vld [vmem:[%s1516 + $0xb00] sm:$0xff]
        %v2205 = vld [vmem:[%s1516 + $0xb08] sm:$0xff]
        %v2206 = vld [vmem:[%s1516 + $0xb10] sm:$0xff]
        %v2207 = vld [vmem:[%s1516 + $0xb18] sm:$0xff]
        %v2208 = vld [vmem:[%s1516 + $0xb20] sm:$0xff]
        %v2209 = vld [vmem:[%s1516 + $0xb28] sm:$0xff]
        %v2210 = vld [vmem:[%s1516 + $0xb30] sm:$0xff]
        %v2211 = vld [vmem:[%s1516 + $0xb38] sm:$0xff]
        %v2212 = vld [vmem:[%s1516 + $0xb40] sm:$0xff]
        %v2213 = vld [vmem:[%s1516 + $0xb48] sm:$0xff]
        %v2214 = vld [vmem:[%s1516 + $0xb50] sm:$0xff]
        %v2215 = vld [vmem:[%s1516 + $0xb58] sm:$0xff]
        %v2216 = vld [vmem:[%s1516 + $0xb60] sm:$0xff]
        %v2217 = vld [vmem:[%s1516 + $0xb68] sm:$0xff]
        %v2218 = vld [vmem:[%s1516 + $0xb70] sm:$0xff]
        %v2219 = vld [vmem:[%s1516 + $0xb78] sm:$0xff]
        %v2220 = vld [vmem:[%s1516 + $0xb80] sm:$0xff]
        %v2221 = vld [vmem:[%s1516 + $0xb88] sm:$0xff]
        %v2222 = vld [vmem:[%s1516 + $0xb90] sm:$0xff]
        %v2223 = vld [vmem:[%s1516 + $0xb98] sm:$0xff]
        %v2224 = vld [vmem:[%s1516 + $0xba0] sm:$0xff]
        %v2225 = vld [vmem:[%s1516 + $0xba8] sm:$0xff]
        %v2226 = vld [vmem:[%s1516 + $0xbb0] sm:$0xff]
        %v2227 = vld [vmem:[%s1516 + $0xbb8] sm:$0xff]
        %v2228 = vld [vmem:[%s1516 + $0xbc0] sm:$0xff]
        %v2229 = vld [vmem:[%s1516 + $0xbc8] sm:$0xff]
        %v2230 = vld [vmem:[%s1516 + $0xbd0] sm:$0xff]
        %v2231 = vld [vmem:[%s1516 + $0xbd8] sm:$0xff]
        %v2232 = vld [vmem:[%s1516 + $0xbe0] sm:$0xff]
        %v2233 = vld [vmem:[%s1516 + $0xbe8] sm:$0xff]
        %v2234 = vld [vmem:[%s1516 + $0xbf0] sm:$0xff]
        %v2235 = vld [vmem:[%s1516 + $0xbf8] sm:$0xff]
        %v2236 = vld [vmem:[%s1516 + $0xc00] sm:$0xff]
        %v2237 = vld [vmem:[%s1516 + $0xc08] sm:$0xff]
        %v2238 = vld [vmem:[%s1516 + $0xc10] sm:$0xff]
        %v2239 = vld [vmem:[%s1516 + $0xc18] sm:$0xff]
        %v2240 = vld [vmem:[%s1516 + $0xc20] sm:$0xff]
        %v2241 = vld [vmem:[%s1516 + $0xc28] sm:$0xff]
        %v2242 = vld [vmem:[%s1516 + $0xc30] sm:$0xff]
        %v2243 = vld [vmem:[%s1516 + $0xc38] sm:$0xff]
        %v2244 = vld [vmem:[%s1516 + $0xc40] sm:$0xff]
        %v2245 = vld [vmem:[%s1516 + $0xc48] sm:$0xff]
        %v2246 = vld [vmem:[%s1516 + $0xc50] sm:$0xff]
        %v2247 = vld [vmem:[%s1516 + $0xc58] sm:$0xff]
        %v2248 = vld [vmem:[%s1516 + $0xc60] sm:$0xff]
        %v2249 = vld [vmem:[%s1516 + $0xc68] sm:$0xff]
        %v2250 = vld [vmem:[%s1516 + $0xc70] sm:$0xff]
        %v2251 = vld [vmem:[%s1516 + $0xc78] sm:$0xff]
        %v2252 = vld [vmem:[%s1516 + $0xc80] sm:$0xff]
        %v2253 = vld [vmem:[%s1516 + $0xc88] sm:$0xff]
        %v2254 = vld [vmem:[%s1516 + $0xc90] sm:$0xff]
        %v2255 = vld [vmem:[%s1516 + $0xc98] sm:$0xff]
        %v2256 = vld [vmem:[%s1516 + $0xca0] sm:$0xff]
        %v2257 = vld [vmem:[%s1516 + $0xca8] sm:$0xff]
        %v2258 = vld [vmem:[%s1516 + $0xcb0] sm:$0xff]
        %v2259 = vld [vmem:[%s1516 + $0xcb8] sm:$0xff]
        %v2260 = vld [vmem:[%s1516 + $0xcc0] sm:$0xff]
        %v2261 = vld [vmem:[%s1516 + $0xcc8] sm:$0xff]
        %v2262 = vld [vmem:[%s1516 + $0xcd0] sm:$0xff]
        %v2263 = vld [vmem:[%s1516 + $0xcd8] sm:$0xff]
        %v2264 = vld [vmem:[%s1516 + $0xce0] sm:$0xff]
        %v2265 = vld [vmem:[%s1516 + $0xce8] sm:$0xff]
        %v2266 = vld [vmem:[%s1516 + $0xcf0] sm:$0xff]
        %v2267 = vld [vmem:[%s1516 + $0xcf8] sm:$0xff]
        %v2268 = vld [vmem:[%s1516 + $0xd00] sm:$0xff]
        %v2269 = vld [vmem:[%s1516 + $0xd08] sm:$0xff]
        %v2270 = vld [vmem:[%s1516 + $0xd10] sm:$0xff]
        %v2271 = vld [vmem:[%s1516 + $0xd18] sm:$0xff]
        %v2272 = vld [vmem:[%s1516 + $0xd20] sm:$0xff]
        %v2273 = vld [vmem:[%s1516 + $0xd28] sm:$0xff]
        %v2274 = vld [vmem:[%s1516 + $0xd30] sm:$0xff]
        %v2275 = vld [vmem:[%s1516 + $0xd38] sm:$0xff]
        %v2276 = vld [vmem:[%s1516 + $0xd40] sm:$0xff]
        %v2277 = vld [vmem:[%s1516 + $0xd48] sm:$0xff]
        %v2278 = vld [vmem:[%s1516 + $0xd50] sm:$0xff]
        %v2279 = vld [vmem:[%s1516 + $0xd58] sm:$0xff]
        %v2280 = vld [vmem:[%s1516 + $0xd60] sm:$0xff]
        %v2281 = vld [vmem:[%s1516 + $0xd68] sm:$0xff]
        %v2282 = vld [vmem:[%s1516 + $0xd70] sm:$0xff]
        %v2283 = vld [vmem:[%s1516 + $0xd78] sm:$0xff]
        %v2284 = vld [vmem:[%s1516 + $0xd80] sm:$0xff]
        %v2285 = vld [vmem:[%s1516 + $0xd88] sm:$0xff]
        %v2286 = vld [vmem:[%s1516 + $0xd90] sm:$0xff]
        %v2287 = vld [vmem:[%s1516 + $0xd98] sm:$0xff]
        %v2288 = vld [vmem:[%s1516 + $0xda0] sm:$0xff]
        %v2289 = vld [vmem:[%s1516 + $0xda8] sm:$0xff]
        %v2290 = vld [vmem:[%s1516 + $0xdb0] sm:$0xff]
        %v2291 = vld [vmem:[%s1516 + $0xdb8] sm:$0xff]
        %v2292 = vld [vmem:[%s1516 + $0xdc0] sm:$0xff]
        %v2293 = vld [vmem:[%s1516 + $0xdc8] sm:$0xff]
        %v2294 = vld [vmem:[%s1516 + $0xdd0] sm:$0xff]
        %v2295 = vld [vmem:[%s1516 + $0xdd8] sm:$0xff]
        %v2296 = vld [vmem:[%s1516 + $0xde0] sm:$0xff]
        %v2297 = vld [vmem:[%s1516 + $0xde8] sm:$0xff]
        %v2298 = vld [vmem:[%s1516 + $0xdf0] sm:$0xff]
        %v2299 = vld [vmem:[%s1516 + $0xdf8] sm:$0xff]
        %v2300 = vld [vmem:[%s1516 + $0xe00] sm:$0xff]
        %v2301 = vld [vmem:[%s1516 + $0xe08] sm:$0xff]
        %v2302 = vld [vmem:[%s1516 + $0xe10] sm:$0xff]
        %v2303 = vld [vmem:[%s1516 + $0xe18] sm:$0xff]
        %v2304 = vld [vmem:[%s1516 + $0xe20] sm:$0xff]
        %v2305 = vld [vmem:[%s1516 + $0xe28] sm:$0xff]
        %v2306 = vld [vmem:[%s1516 + $0xe30] sm:$0xff]
        %v2307 = vld [vmem:[%s1516 + $0xe38] sm:$0xff]
        %v2308 = vld [vmem:[%s1516 + $0xe40] sm:$0xff]
        %v2309 = vld [vmem:[%s1516 + $0xe48] sm:$0xff]
        %v2310 = vld [vmem:[%s1516 + $0xe50] sm:$0xff]
        %v2311 = vld [vmem:[%s1516 + $0xe58] sm:$0xff]
        %v2312 = vld [vmem:[%s1516 + $0xe60] sm:$0xff]
        %v2313 = vld [vmem:[%s1516 + $0xe68] sm:$0xff]
        %v2314 = vld [vmem:[%s1516 + $0xe70] sm:$0xff]
        %v2315 = vld [vmem:[%s1516 + $0xe78] sm:$0xff]
        %v2316 = vld [vmem:[%s1516 + $0xe80] sm:$0xff]
        %v2317 = vld [vmem:[%s1516 + $0xe88] sm:$0xff]
        %v2318 = vld [vmem:[%s1516 + $0xe90] sm:$0xff]
        %v2319 = vld [vmem:[%s1516 + $0xe98] sm:$0xff]
        %v2320 = vld [vmem:[%s1516 + $0xea0] sm:$0xff]
        %v2321 = vld [vmem:[%s1516 + $0xea8] sm:$0xff]
        %v2322 = vld [vmem:[%s1516 + $0xeb0] sm:$0xff]
        %v2323 = vld [vmem:[%s1516 + $0xeb8] sm:$0xff]
        %v2324 = vld [vmem:[%s1516 + $0xec0] sm:$0xff]
        %v2325 = vld [vmem:[%s1516 + $0xec8] sm:$0xff]
        %v2326 = vld [vmem:[%s1516 + $0xed0] sm:$0xff]
        %v2327 = vld [vmem:[%s1516 + $0xed8] sm:$0xff]
        %v2328 = vld [vmem:[%s1516 + $0xee0] sm:$0xff]
        %v2329 = vld [vmem:[%s1516 + $0xee8] sm:$0xff]
        %v2330 = vld [vmem:[%s1516 + $0xef0] sm:$0xff]
        %v2331 = vld [vmem:[%s1516 + $0xef8] sm:$0xff]
        %v2332 = vld [vmem:[%s1516 + $0xf00] sm:$0xff]
        %v2333 = vld [vmem:[%s1516 + $0xf08] sm:$0xff]
        %v2334 = vld [vmem:[%s1516 + $0xf10] sm:$0xff]
        %v2335 = vld [vmem:[%s1516 + $0xf18] sm:$0xff]
        %v2336 = vld [vmem:[%s1516 + $0xf20] sm:$0xff]
        %v2337 = vld [vmem:[%s1516 + $0xf28] sm:$0xff]
        %v2338 = vld [vmem:[%s1516 + $0xf30] sm:$0xff]
        %v2339 = vld [vmem:[%s1516 + $0xf38] sm:$0xff]
        %v2340 = vld [vmem:[%s1516 + $0xf40] sm:$0xff]
        %v2341 = vld [vmem:[%s1516 + $0xf48] sm:$0xff]
        %v2342 = vld [vmem:[%s1516 + $0xf50] sm:$0xff]
        %v2343 = vld [vmem:[%s1516 + $0xf58] sm:$0xff]
        %v2344 = vld [vmem:[%s1516 + $0xf60] sm:$0xff]
        %v2345 = vld [vmem:[%s1516 + $0xf68] sm:$0xff]
        %v2346 = vld [vmem:[%s1516 + $0xf70] sm:$0xff]
        %v2347 = vld [vmem:[%s1516 + $0xf78] sm:$0xff]
        %v2348 = vld [vmem:[%s1516 + $0xf80] sm:$0xff]
        %v2349 = vld [vmem:[%s1516 + $0xf88] sm:$0xff]
        %v2350 = vld [vmem:[%s1516 + $0xf90] sm:$0xff]
        %v2351 = vld [vmem:[%s1516 + $0xf98] sm:$0xff]
        %v2352 = vld [vmem:[%s1516 + $0xfa0] sm:$0xff]
        %v2353 = vld [vmem:[%s1516 + $0xfa8] sm:$0xff]
        %v2354 = vld [vmem:[%s1516 + $0xfb0] sm:$0xff]
        %v2355 = vld [vmem:[%s1516 + $0xfb8] sm:$0xff]
        %v2356 = vld [vmem:[%s1516 + $0xfc0] sm:$0xff]
        %v2357 = vld [vmem:[%s1516 + $0xfc8] sm:$0xff]
        %v2358 = vld [vmem:[%s1516 + $0xfd0] sm:$0xff]
        %v2359 = vld [vmem:[%s1516 + $0xfd8] sm:$0xff]
        %v2360 = vld [vmem:[%s1516 + $0xfe0] sm:$0xff]
        %v2361 = vld [vmem:[%s1516 + $0xfe8] sm:$0xff]
        %v2362 = vld [vmem:[%s1516 + $0xff0] sm:$0xff]
        %v2363 = vld [vmem:[%s1516 + $0xff8] sm:$0xff]
        %v2364 = vld [vmem:[%s1516 + $0x1000] sm:$0xff]
        %v2365 = vld [vmem:[%s1516 + $0x1008] sm:$0xff]
        %v2366 = vld [vmem:[%s1516 + $0x1010] sm:$0xff]
        %v2367 = vld [vmem:[%s1516 + $0x1018] sm:$0xff]
        %v2368 = vld [vmem:[%s1516 + $0x1020] sm:$0xff]
        %v2369 = vld [vmem:[%s1516 + $0x1028] sm:$0xff]
        %v2370 = vld [vmem:[%s1516 + $0x1030] sm:$0xff]
        %v2371 = vld [vmem:[%s1516 + $0x1038] sm:$0xff]
        %v2372 = vld [vmem:[%s1516 + $0x1040] sm:$0xff]
        %v2373 = vld [vmem:[%s1516 + $0x1048] sm:$0xff]
        %v2374 = vld [vmem:[%s1516 + $0x1050] sm:$0xff]
        %v2375 = vld [vmem:[%s1516 + $0x1058] sm:$0xff]
        %v2376 = vld [vmem:[%s1516 + $0x1060] sm:$0xff]
        %v2377 = vld [vmem:[%s1516 + $0x1068] sm:$0xff]
        %v2378 = vld [vmem:[%s1516 + $0x1070] sm:$0xff]
        %v2379 = vld [vmem:[%s1516 + $0x1078] sm:$0xff]
        %v2380 = vld [vmem:[%s1516 + $0x1080] sm:$0xff]
        %v2381 = vld [vmem:[%s1516 + $0x1088] sm:$0xff]
        %v2382 = vld [vmem:[%s1516 + $0x1090] sm:$0xff]
        %v2383 = vld [vmem:[%s1516 + $0x1098] sm:$0xff]
        %v2384 = vld [vmem:[%s1516 + $0x10a0] sm:$0xff]
        %v2385 = vld [vmem:[%s1516 + $0x10a8] sm:$0xff]
        %v2386 = vld [vmem:[%s1516 + $0x10b0] sm:$0xff]
        %v2387 = vld [vmem:[%s1516 + $0x10b8] sm:$0xff]
        %v2388 = vld [vmem:[%s1516 + $0x10c0] sm:$0xff]
        %v2389 = vld [vmem:[%s1516 + $0x10c8] sm:$0xff]
        %v2390 = vld [vmem:[%s1516 + $0x10d0] sm:$0xff]
        %v2391 = vld [vmem:[%s1516 + $0x10d8] sm:$0xff]
        %v2392 = vld [vmem:[%s1516 + $0x10e0] sm:$0xff]
        %v2393 = vld [vmem:[%s1516 + $0x10e8] sm:$0xff]
        %v2394 = vld [vmem:[%s1516 + $0x10f0] sm:$0xff]
        %v2395 = vld [vmem:[%s1516 + $0x10f8] sm:$0xff]
        %v2396 = vld [vmem:[%s1516 + $0x1100] sm:$0xff]
        %v2397 = vld [vmem:[%s1516 + $0x1108] sm:$0xff]
        %v2398 = vld [vmem:[%s1516 + $0x1110] sm:$0xff]
        %v2399 = vld [vmem:[%s1516 + $0x1118] sm:$0xff]
        %v2400 = vld [vmem:[%s1516 + $0x1120] sm:$0xff]
        %v2401 = vld [vmem:[%s1516 + $0x1128] sm:$0xff]
        %v2402 = vld [vmem:[%s1516 + $0x1130] sm:$0xff]
        %v2403 = vld [vmem:[%s1516 + $0x1138] sm:$0xff]
        %v2404 = vld [vmem:[%s1516 + $0x1140] sm:$0xff]
        %v2405 = vld [vmem:[%s1516 + $0x1148] sm:$0xff]
        %v2406 = vld [vmem:[%s1516 + $0x1150] sm:$0xff]
        %v2407 = vld [vmem:[%s1516 + $0x1158] sm:$0xff]
        %v2408 = vld [vmem:[%s1516 + $0x1160] sm:$0xff]
        %v2409 = vld [vmem:[%s1516 + $0x1168] sm:$0xff]
        %v2410 = vld [vmem:[%s1516 + $0x1170] sm:$0xff]
        %v2411 = vld [vmem:[%s1516 + $0x1178] sm:$0xff]
        %v2412 = vld [vmem:[%s1516 + $0x1180] sm:$0xff]
        %v2413 = vld [vmem:[%s1516 + $0x1188] sm:$0xff]
        %v2414 = vld [vmem:[%s1516 + $0x1190] sm:$0xff]
        %v2415 = vld [vmem:[%s1516 + $0x1198] sm:$0xff]
        %v2416 = vld [vmem:[%s1516 + $0x11a0] sm:$0xff]
        %v2417 = vld [vmem:[%s1516 + $0x11a8] sm:$0xff]
        %v2418 = vld [vmem:[%s1516 + $0x11b0] sm:$0xff]
        %v2419 = vld [vmem:[%s1516 + $0x11b8] sm:$0xff]
        %v2420 = vld [vmem:[%s1516 + $0x11c0] sm:$0xff]
        %v2421 = vld [vmem:[%s1516 + $0x11c8] sm:$0xff]
        %v2422 = vld [vmem:[%s1516 + $0x11d0] sm:$0xff]
        %v2423 = vld [vmem:[%s1516 + $0x11d8] sm:$0xff]
        %v2424 = vld [vmem:[%s1516 + $0x11e0] sm:$0xff]
        %v2425 = vld [vmem:[%s1516 + $0x11e8] sm:$0xff]
        %v2426 = vld [vmem:[%s1516 + $0x11f0] sm:$0xff]
        %v2427 = vld [vmem:[%s1516 + $0x11f8] sm:$0xff]
        %v2428 = vld [vmem:[%s1516 + $0x1200] sm:$0xff]
        %v2429 = vld [vmem:[%s1516 + $0x1208] sm:$0xff]
        %v2430 = vld [vmem:[%s1516 + $0x1210] sm:$0xff]
        %v2431 = vld [vmem:[%s1516 + $0x1218] sm:$0xff]
        %v2432 = vld [vmem:[%s1516 + $0x1220] sm:$0xff]
        %v2433 = vld [vmem:[%s1516 + $0x1228] sm:$0xff]
        %v2434 = vld [vmem:[%s1516 + $0x1230] sm:$0xff]
        %v2435 = vld [vmem:[%s1516 + $0x1238] sm:$0xff]
        %v2436 = vld [vmem:[%s1516 + $0x1240] sm:$0xff]
        %v2437 = vld [vmem:[%s1516 + $0x1248] sm:$0xff]
        %v2438 = vld [vmem:[%s1516 + $0x1250] sm:$0xff]
        %v2439 = vld [vmem:[%s1516 + $0x1258] sm:$0xff]
        %v2440 = vld [vmem:[%s1516 + $0x1260] sm:$0xff]
        %v2441 = vld [vmem:[%s1516 + $0x1268] sm:$0xff]
        %v2442 = vld [vmem:[%s1516 + $0x1270] sm:$0xff]
        %v2443 = vld [vmem:[%s1516 + $0x1278] sm:$0xff]
        %v2444 = vld [vmem:[%s1516 + $0x1280] sm:$0xff]
        %v2445 = vld [vmem:[%s1516 + $0x1288] sm:$0xff]
        %v2446 = vld [vmem:[%s1516 + $0x1290] sm:$0xff]
        %v2447 = vld [vmem:[%s1516 + $0x1298] sm:$0xff]
        %v2448 = vld [vmem:[%s1516 + $0x12a0] sm:$0xff]
        %v2449 = vld [vmem:[%s1516 + $0x12a8] sm:$0xff]
        %v2450 = vld [vmem:[%s1516 + $0x12b0] sm:$0xff]
        %v2451 = vld [vmem:[%s1516 + $0x12b8] sm:$0xff]
        %v2452 = vld [vmem:[%s1516 + $0x12c0] sm:$0xff]
        %v2453 = vld [vmem:[%s1516 + $0x12c8] sm:$0xff]
        %v2454 = vld [vmem:[%s1516 + $0x12d0] sm:$0xff]
        %v2455 = vld [vmem:[%s1516 + $0x12d8] sm:$0xff]
        %v2456 = vld [vmem:[%s1516 + $0x12e0] sm:$0xff]
        %v2457 = vld [vmem:[%s1516 + $0x12e8] sm:$0xff]
        %v2458 = vld [vmem:[%s1516 + $0x12f0] sm:$0xff]
        %v2459 = vld [vmem:[%s1516 + $0x12f8] sm:$0xff]
        %v2460 = vld [vmem:[%s1516 + $0x1300] sm:$0xff]
        %v2461 = vld [vmem:[%s1516 + $0x1308] sm:$0xff]
        %v2462 = vld [vmem:[%s1516 + $0x1310] sm:$0xff]
        %v2463 = vld [vmem:[%s1516 + $0x1318] sm:$0xff]
        %v2464 = vld [vmem:[%s1516 + $0x1320] sm:$0xff]
        %v2465 = vld [vmem:[%s1516 + $0x1328] sm:$0xff]
        %v2466 = vld [vmem:[%s1516 + $0x1330] sm:$0xff]
        %v2467 = vld [vmem:[%s1516 + $0x1338] sm:$0xff]
        %v2468 = vld [vmem:[%s1516 + $0x1340] sm:$0xff]
        %v2469 = vld [vmem:[%s1516 + $0x1348] sm:$0xff]
        %v2470 = vld [vmem:[%s1516 + $0x1350] sm:$0xff]
        %v2471 = vld [vmem:[%s1516 + $0x1358] sm:$0xff]
        %v2472 = vld [vmem:[%s1516 + $0x1360] sm:$0xff]
        %v2473 = vld [vmem:[%s1516 + $0x1368] sm:$0xff]
        %v2474 = vld [vmem:[%s1516 + $0x1370] sm:$0xff]
        %v2475 = vld [vmem:[%s1516 + $0x1378] sm:$0xff]
        %v2476 = vld [vmem:[%s1516 + $0x1380] sm:$0xff]
        %v2477 = vld [vmem:[%s1516 + $0x1388] sm:$0xff]
        %v2478 = vld [vmem:[%s1516 + $0x1390] sm:$0xff]
        %v2479 = vld [vmem:[%s1516 + $0x1398] sm:$0xff]
        %v2480 = vld [vmem:[%s1516 + $0x13a0] sm:$0xff]
        %v2481 = vld [vmem:[%s1516 + $0x13a8] sm:$0xff]
        %v2482 = vld [vmem:[%s1516 + $0x13b0] sm:$0xff]
        %v2483 = vld [vmem:[%s1516 + $0x13b8] sm:$0xff]
        %v2484 = vld [vmem:[%s1516 + $0x13c0] sm:$0xff]
        %v2485 = vld [vmem:[%s1516 + $0x13c8] sm:$0xff]
        %v2486 = vld [vmem:[%s1516 + $0x13d0] sm:$0xff]
        %v2487 = vld [vmem:[%s1516 + $0x13d8] sm:$0xff]
        %v2488 = vld [vmem:[%s1516 + $0x13e0] sm:$0xff]
        %v2489 = vld [vmem:[%s1516 + $0x13e8] sm:$0xff]
        %v2490 = vld [vmem:[%s1516 + $0x13f0] sm:$0xff]
        %v2491 = vld [vmem:[%s1516 + $0x13f8] sm:$0xff]
        %v2492 = vunpack.c.l.s8.bf16 %v1852
        %v2493 = vunpack.c.l.s8.bf16 %v1853
        %v2494 = vunpack.c.l.s8.bf16 %v1854
        %v2495 = vunpack.c.l.s8.bf16 %v1855
        %v2496 = vunpack.c.h.s8.bf16 %v1852
        %v2497 = vunpack.c.h.s8.bf16 %v1853
        %v2498 = vunpack.c.h.s8.bf16 %v1854
        %v2499 = vunpack.c.h.s8.bf16 %v1855
        %v2500 = vunpack.c.l.s8.bf16 %v1856
        %v2501 = vunpack.c.l.s8.bf16 %v1857
        %v2502 = vunpack.c.l.s8.bf16 %v1858
        %v2503 = vunpack.c.l.s8.bf16 %v1859
        %v2504 = vunpack.c.h.s8.bf16 %v1856
        %v2505 = vunpack.c.h.s8.bf16 %v1857
        %v2506 = vunpack.c.h.s8.bf16 %v1858
        %v2507 = vunpack.c.h.s8.bf16 %v1859
        %v2508 = vunpack.c.l.s8.bf16 %v1860
        %v2509 = vunpack.c.l.s8.bf16 %v1861
        %v2510 = vunpack.c.l.s8.bf16 %v1862
        %v2511 = vunpack.c.l.s8.bf16 %v1863
        %v2512 = vunpack.c.h.s8.bf16 %v1860
        %v2513 = vunpack.c.h.s8.bf16 %v1861
        %v2514 = vunpack.c.h.s8.bf16 %v1862
        %v2515 = vunpack.c.h.s8.bf16 %v1863
        %v2516 = vunpack.c.l.s8.bf16 %v1864
        %v2517 = vunpack.c.l.s8.bf16 %v1865
        %v2518 = vunpack.c.l.s8.bf16 %v1866
        %v2519 = vunpack.c.l.s8.bf16 %v1867
        %v2520 = vunpack.c.h.s8.bf16 %v1864
        %v2521 = vunpack.c.h.s8.bf16 %v1865
        %v2522 = vunpack.c.h.s8.bf16 %v1866
        %v2523 = vunpack.c.h.s8.bf16 %v1867
        %v2524 = vunpack.c.l.s8.bf16 %v1868
        %v2525 = vunpack.c.l.s8.bf16 %v1869
        %v2526 = vunpack.c.l.s8.bf16 %v1870
        %v2527 = vunpack.c.l.s8.bf16 %v1871
        %v2528 = vunpack.c.h.s8.bf16 %v1868
        %v2529 = vunpack.c.h.s8.bf16 %v1869
        %v2530 = vunpack.c.h.s8.bf16 %v1870
        %v2531 = vunpack.c.h.s8.bf16 %v1871
        %v2532 = vunpack.c.l.s8.bf16 %v1872
        %v2533 = vunpack.c.l.s8.bf16 %v1873
        %v2534 = vunpack.c.l.s8.bf16 %v1874
        %v2535 = vunpack.c.l.s8.bf16 %v1875
        %v2536 = vunpack.c.h.s8.bf16 %v1872
        %v2537 = vunpack.c.h.s8.bf16 %v1873
        %v2538 = vunpack.c.h.s8.bf16 %v1874
        %v2539 = vunpack.c.h.s8.bf16 %v1875
        %v2540 = vunpack.c.l.s8.bf16 %v1876
        %v2541 = vunpack.c.l.s8.bf16 %v1877
        %v2542 = vunpack.c.l.s8.bf16 %v1878
        %v2543 = vunpack.c.l.s8.bf16 %v1879
        %v2544 = vunpack.c.h.s8.bf16 %v1876
        %v2545 = vunpack.c.h.s8.bf16 %v1877
        %v2546 = vunpack.c.h.s8.bf16 %v1878
        %v2547 = vunpack.c.h.s8.bf16 %v1879
        %v2548 = vunpack.c.l.s8.bf16 %v1880
        %v2549 = vunpack.c.l.s8.bf16 %v1881
        %v2550 = vunpack.c.l.s8.bf16 %v1882
        %v2551 = vunpack.c.l.s8.bf16 %v1883
        %v2552 = vunpack.c.h.s8.bf16 %v1880
        %v2553 = vunpack.c.h.s8.bf16 %v1881
        %v2554 = vunpack.c.h.s8.bf16 %v1882
        %v2555 = vunpack.c.h.s8.bf16 %v1883
        %v2556 = vunpack.c.l.s8.bf16 %v1884
        %v2557 = vunpack.c.l.s8.bf16 %v1885
        %v2558 = vunpack.c.l.s8.bf16 %v1886
        %v2559 = vunpack.c.l.s8.bf16 %v1887
        %v2560 = vunpack.c.h.s8.bf16 %v1884
        %v2561 = vunpack.c.h.s8.bf16 %v1885
        %v2562 = vunpack.c.h.s8.bf16 %v1886
        %v2563 = vunpack.c.h.s8.bf16 %v1887
        %v2564 = vunpack.c.l.s8.bf16 %v1888
        %v2565 = vunpack.c.l.s8.bf16 %v1889
        %v2566 = vunpack.c.l.s8.bf16 %v1890
        %v2567 = vunpack.c.l.s8.bf16 %v1891
        %v2568 = vunpack.c.h.s8.bf16 %v1888
        %v2569 = vunpack.c.h.s8.bf16 %v1889
        %v2570 = vunpack.c.h.s8.bf16 %v1890
        %v2571 = vunpack.c.h.s8.bf16 %v1891
        %v2572 = vunpack.c.l.s8.bf16 %v1892
        %v2573 = vunpack.c.l.s8.bf16 %v1893
        %v2574 = vunpack.c.l.s8.bf16 %v1894
        %v2575 = vunpack.c.l.s8.bf16 %v1895
        %v2576 = vunpack.c.h.s8.bf16 %v1892
        %v2577 = vunpack.c.h.s8.bf16 %v1893
        %v2578 = vunpack.c.h.s8.bf16 %v1894
        %v2579 = vunpack.c.h.s8.bf16 %v1895
        %v2580 = vunpack.c.l.s8.bf16 %v1896
        %v2581 = vunpack.c.l.s8.bf16 %v1897
        %v2582 = vunpack.c.l.s8.bf16 %v1898
        %v2583 = vunpack.c.l.s8.bf16 %v1899
        %v2584 = vunpack.c.h.s8.bf16 %v1896
        %v2585 = vunpack.c.h.s8.bf16 %v1897
        %v2586 = vunpack.c.h.s8.bf16 %v1898
        %v2587 = vunpack.c.h.s8.bf16 %v1899
        %v2588 = vunpack.c.l.s8.bf16 %v1900
        %v2589 = vunpack.c.l.s8.bf16 %v1901
        %v2590 = vunpack.c.l.s8.bf16 %v1902
        %v2591 = vunpack.c.l.s8.bf16 %v1903
        %v2592 = vunpack.c.h.s8.bf16 %v1900
        %v2593 = vunpack.c.h.s8.bf16 %v1901
        %v2594 = vunpack.c.h.s8.bf16 %v1902
        %v2595 = vunpack.c.h.s8.bf16 %v1903
        %v2596 = vunpack.c.l.s8.bf16 %v1904
        %v2597 = vunpack.c.l.s8.bf16 %v1905
        %v2598 = vunpack.c.l.s8.bf16 %v1906
        %v2599 = vunpack.c.l.s8.bf16 %v1907
        %v2600 = vunpack.c.h.s8.bf16 %v1904
        %v2601 = vunpack.c.h.s8.bf16 %v1905
        %v2602 = vunpack.c.h.s8.bf16 %v1906
        %v2603 = vunpack.c.h.s8.bf16 %v1907
        %v2604 = vunpack.c.l.s8.bf16 %v1908
        %v2605 = vunpack.c.l.s8.bf16 %v1909
        %v2606 = vunpack.c.l.s8.bf16 %v1910
        %v2607 = vunpack.c.l.s8.bf16 %v1911
        %v2608 = vunpack.c.h.s8.bf16 %v1908
        %v2609 = vunpack.c.h.s8.bf16 %v1909
        %v2610 = vunpack.c.h.s8.bf16 %v1910
        %v2611 = vunpack.c.h.s8.bf16 %v1911
        %v2612 = vunpack.c.l.s8.bf16 %v1912
        %v2613 = vunpack.c.l.s8.bf16 %v1913
        %v2614 = vunpack.c.l.s8.bf16 %v1914
        %v2615 = vunpack.c.l.s8.bf16 %v1915
        %v2616 = vunpack.c.h.s8.bf16 %v1912
        %v2617 = vunpack.c.h.s8.bf16 %v1913
        %v2618 = vunpack.c.h.s8.bf16 %v1914
        %v2619 = vunpack.c.h.s8.bf16 %v1915
        %v2620 = vunpack.c.l.s8.bf16 %v1916
        %v2621 = vunpack.c.l.s8.bf16 %v1917
        %v2622 = vunpack.c.l.s8.bf16 %v1918
        %v2623 = vunpack.c.l.s8.bf16 %v1919
        %v2624 = vunpack.c.h.s8.bf16 %v1916
        %v2625 = vunpack.c.h.s8.bf16 %v1917
        %v2626 = vunpack.c.h.s8.bf16 %v1918
        %v2627 = vunpack.c.h.s8.bf16 %v1919
        %v2628 = vunpack.c.l.s8.bf16 %v1920
        %v2629 = vunpack.c.l.s8.bf16 %v1921
        %v2630 = vunpack.c.l.s8.bf16 %v1922
        %v2631 = vunpack.c.l.s8.bf16 %v1923
        %v2632 = vunpack.c.h.s8.bf16 %v1920
        %v2633 = vunpack.c.h.s8.bf16 %v1921
        %v2634 = vunpack.c.h.s8.bf16 %v1922
        %v2635 = vunpack.c.h.s8.bf16 %v1923
        %v2636 = vunpack.c.l.s8.bf16 %v1924
        %v2637 = vunpack.c.l.s8.bf16 %v1925
        %v2638 = vunpack.c.l.s8.bf16 %v1926
        %v2639 = vunpack.c.l.s8.bf16 %v1927
        %v2640 = vunpack.c.h.s8.bf16 %v1924
        %v2641 = vunpack.c.h.s8.bf16 %v1925
        %v2642 = vunpack.c.h.s8.bf16 %v1926
        %v2643 = vunpack.c.h.s8.bf16 %v1927
        %v2644 = vunpack.c.l.s8.bf16 %v1928
        %v2645 = vunpack.c.l.s8.bf16 %v1929
        %v2646 = vunpack.c.l.s8.bf16 %v1930
        %v2647 = vunpack.c.l.s8.bf16 %v1931
        %v2648 = vunpack.c.h.s8.bf16 %v1928
        %v2649 = vunpack.c.h.s8.bf16 %v1929
        %v2650 = vunpack.c.h.s8.bf16 %v1930
        %v2651 = vunpack.c.h.s8.bf16 %v1931
        %v2652 = vunpack.c.l.s8.bf16 %v1932
        %v2653 = vunpack.c.l.s8.bf16 %v1933
        %v2654 = vunpack.c.l.s8.bf16 %v1934
        %v2655 = vunpack.c.l.s8.bf16 %v1935
        %v2656 = vunpack.c.h.s8.bf16 %v1932
        %v2657 = vunpack.c.h.s8.bf16 %v1933
        %v2658 = vunpack.c.h.s8.bf16 %v1934
        %v2659 = vunpack.c.h.s8.bf16 %v1935
        %v2660 = vunpack.c.l.s8.bf16 %v1936
        %v2661 = vunpack.c.l.s8.bf16 %v1937
        %v2662 = vunpack.c.l.s8.bf16 %v1938
        %v2663 = vunpack.c.l.s8.bf16 %v1939
        %v2664 = vunpack.c.h.s8.bf16 %v1936
        %v2665 = vunpack.c.h.s8.bf16 %v1937
        %v2666 = vunpack.c.h.s8.bf16 %v1938
        %v2667 = vunpack.c.h.s8.bf16 %v1939
        %v2668 = vunpack.c.l.s8.bf16 %v1940
        %v2669 = vunpack.c.l.s8.bf16 %v1941
        %v2670 = vunpack.c.l.s8.bf16 %v1942
        %v2671 = vunpack.c.l.s8.bf16 %v1943
        %v2672 = vunpack.c.h.s8.bf16 %v1940
        %v2673 = vunpack.c.h.s8.bf16 %v1941
        %v2674 = vunpack.c.h.s8.bf16 %v1942
        %v2675 = vunpack.c.h.s8.bf16 %v1943
        %v2676 = vunpack.c.l.s8.bf16 %v1944
        %v2677 = vunpack.c.l.s8.bf16 %v1945
        %v2678 = vunpack.c.l.s8.bf16 %v1946
        %v2679 = vunpack.c.l.s8.bf16 %v1947
        %v2680 = vunpack.c.h.s8.bf16 %v1944
        %v2681 = vunpack.c.h.s8.bf16 %v1945
        %v2682 = vunpack.c.h.s8.bf16 %v1946
        %v2683 = vunpack.c.h.s8.bf16 %v1947
        %v2684 = vunpack.c.l.s8.bf16 %v1948
        %v2685 = vunpack.c.l.s8.bf16 %v1949
        %v2686 = vunpack.c.l.s8.bf16 %v1950
        %v2687 = vunpack.c.l.s8.bf16 %v1951
        %v2688 = vunpack.c.h.s8.bf16 %v1948
        %v2689 = vunpack.c.h.s8.bf16 %v1949
        %v2690 = vunpack.c.h.s8.bf16 %v1950
        %v2691 = vunpack.c.h.s8.bf16 %v1951
        %v2692 = vunpack.c.l.s8.bf16 %v1952
        %v2693 = vunpack.c.l.s8.bf16 %v1953
        %v2694 = vunpack.c.l.s8.bf16 %v1954
        %v2695 = vunpack.c.l.s8.bf16 %v1955
        %v2696 = vunpack.c.h.s8.bf16 %v1952
        %v2697 = vunpack.c.h.s8.bf16 %v1953
        %v2698 = vunpack.c.h.s8.bf16 %v1954
        %v2699 = vunpack.c.h.s8.bf16 %v1955
        %v2700 = vunpack.c.l.s8.bf16 %v1956
        %v2701 = vunpack.c.l.s8.bf16 %v1957
        %v2702 = vunpack.c.l.s8.bf16 %v1958
        %v2703 = vunpack.c.l.s8.bf16 %v1959
        %v2704 = vunpack.c.h.s8.bf16 %v1956
        %v2705 = vunpack.c.h.s8.bf16 %v1957
        %v2706 = vunpack.c.h.s8.bf16 %v1958
        %v2707 = vunpack.c.h.s8.bf16 %v1959
        %v2708 = vunpack.c.l.s8.bf16 %v1960
        %v2709 = vunpack.c.l.s8.bf16 %v1961
        %v2710 = vunpack.c.l.s8.bf16 %v1962
        %v2711 = vunpack.c.l.s8.bf16 %v1963
        %v2712 = vunpack.c.h.s8.bf16 %v1960
        %v2713 = vunpack.c.h.s8.bf16 %v1961
        %v2714 = vunpack.c.h.s8.bf16 %v1962
        %v2715 = vunpack.c.h.s8.bf16 %v1963
        %v2716 = vunpack.c.l.s8.bf16 %v1964
        %v2717 = vunpack.c.l.s8.bf16 %v1965
        %v2718 = vunpack.c.l.s8.bf16 %v1966
        %v2719 = vunpack.c.l.s8.bf16 %v1967
        %v2720 = vunpack.c.h.s8.bf16 %v1964
        %v2721 = vunpack.c.h.s8.bf16 %v1965
        %v2722 = vunpack.c.h.s8.bf16 %v1966
        %v2723 = vunpack.c.h.s8.bf16 %v1967
        %v2724 = vunpack.c.l.s8.bf16 %v1968
        %v2725 = vunpack.c.l.s8.bf16 %v1969
        %v2726 = vunpack.c.l.s8.bf16 %v1970
        %v2727 = vunpack.c.l.s8.bf16 %v1971
        %v2728 = vunpack.c.h.s8.bf16 %v1968
        %v2729 = vunpack.c.h.s8.bf16 %v1969
        %v2730 = vunpack.c.h.s8.bf16 %v1970
        %v2731 = vunpack.c.h.s8.bf16 %v1971
        %v2732 = vunpack.c.l.s8.bf16 %v1972
        %v2733 = vunpack.c.l.s8.bf16 %v1973
        %v2734 = vunpack.c.l.s8.bf16 %v1974
        %v2735 = vunpack.c.l.s8.bf16 %v1975
        %v2736 = vunpack.c.h.s8.bf16 %v1972
        %v2737 = vunpack.c.h.s8.bf16 %v1973
        %v2738 = vunpack.c.h.s8.bf16 %v1974
        %v2739 = vunpack.c.h.s8.bf16 %v1975
        %v2740 = vunpack.c.l.s8.bf16 %v1976
        %v2741 = vunpack.c.l.s8.bf16 %v1977
        %v2742 = vunpack.c.l.s8.bf16 %v1978
        %v2743 = vunpack.c.l.s8.bf16 %v1979
        %v2744 = vunpack.c.h.s8.bf16 %v1976
        %v2745 = vunpack.c.h.s8.bf16 %v1977
        %v2746 = vunpack.c.h.s8.bf16 %v1978
        %v2747 = vunpack.c.h.s8.bf16 %v1979
        %v2748 = vunpack.c.l.s8.bf16 %v1980
        %v2749 = vunpack.c.l.s8.bf16 %v1981
        %v2750 = vunpack.c.l.s8.bf16 %v1982
        %v2751 = vunpack.c.l.s8.bf16 %v1983
        %v2752 = vunpack.c.h.s8.bf16 %v1980
        %v2753 = vunpack.c.h.s8.bf16 %v1981
        %v2754 = vunpack.c.h.s8.bf16 %v1982
        %v2755 = vunpack.c.h.s8.bf16 %v1983
        %v2756 = vunpack.c.l.s8.bf16 %v1984
        %v2757 = vunpack.c.l.s8.bf16 %v1985
        %v2758 = vunpack.c.l.s8.bf16 %v1986
        %v2759 = vunpack.c.l.s8.bf16 %v1987
        %v2760 = vunpack.c.h.s8.bf16 %v1984
        %v2761 = vunpack.c.h.s8.bf16 %v1985
        %v2762 = vunpack.c.h.s8.bf16 %v1986
        %v2763 = vunpack.c.h.s8.bf16 %v1987
        %v2764 = vunpack.c.l.s8.bf16 %v1988
        %v2765 = vunpack.c.l.s8.bf16 %v1989
        %v2766 = vunpack.c.l.s8.bf16 %v1990
        %v2767 = vunpack.c.l.s8.bf16 %v1991
        %v2768 = vunpack.c.h.s8.bf16 %v1988
        %v2769 = vunpack.c.h.s8.bf16 %v1989
        %v2770 = vunpack.c.h.s8.bf16 %v1990
        %v2771 = vunpack.c.h.s8.bf16 %v1991
        %v2772 = vunpack.c.l.s8.bf16 %v1992
        %v2773 = vunpack.c.l.s8.bf16 %v1993
        %v2774 = vunpack.c.l.s8.bf16 %v1994
        %v2775 = vunpack.c.l.s8.bf16 %v1995
        %v2776 = vunpack.c.h.s8.bf16 %v1992
        %v2777 = vunpack.c.h.s8.bf16 %v1993
        %v2778 = vunpack.c.h.s8.bf16 %v1994
        %v2779 = vunpack.c.h.s8.bf16 %v1995
        %v2780 = vunpack.c.l.s8.bf16 %v1996
        %v2781 = vunpack.c.l.s8.bf16 %v1997
        %v2782 = vunpack.c.l.s8.bf16 %v1998
        %v2783 = vunpack.c.l.s8.bf16 %v1999
        %v2784 = vunpack.c.h.s8.bf16 %v1996
        %v2785 = vunpack.c.h.s8.bf16 %v1997
        %v2786 = vunpack.c.h.s8.bf16 %v1998
        %v2787 = vunpack.c.h.s8.bf16 %v1999
        %v2788 = vunpack.c.l.s8.bf16 %v2000
        %v2789 = vunpack.c.l.s8.bf16 %v2001
        %v2790 = vunpack.c.l.s8.bf16 %v2002
        %v2791 = vunpack.c.l.s8.bf16 %v2003
        %v2792 = vunpack.c.h.s8.bf16 %v2000
        %v2793 = vunpack.c.h.s8.bf16 %v2001
        %v2794 = vunpack.c.h.s8.bf16 %v2002
        %v2795 = vunpack.c.h.s8.bf16 %v2003
        %v2796 = vunpack.c.l.s8.bf16 %v2004
        %v2797 = vunpack.c.l.s8.bf16 %v2005
        %v2798 = vunpack.c.l.s8.bf16 %v2006
        %v2799 = vunpack.c.l.s8.bf16 %v2007
        %v2800 = vunpack.c.h.s8.bf16 %v2004
        %v2801 = vunpack.c.h.s8.bf16 %v2005
        %v2802 = vunpack.c.h.s8.bf16 %v2006
        %v2803 = vunpack.c.h.s8.bf16 %v2007
        %v2804 = vunpack.c.l.s8.bf16 %v2008
        %v2805 = vunpack.c.l.s8.bf16 %v2009
        %v2806 = vunpack.c.l.s8.bf16 %v2010
        %v2807 = vunpack.c.l.s8.bf16 %v2011
        %v2808 = vunpack.c.h.s8.bf16 %v2008
        %v2809 = vunpack.c.h.s8.bf16 %v2009
        %v2810 = vunpack.c.h.s8.bf16 %v2010
        %v2811 = vunpack.c.h.s8.bf16 %v2011
        %v2812 = vunpack.c.l.s8.bf16 %v2012
        %v2813 = vunpack.c.l.s8.bf16 %v2013
        %v2814 = vunpack.c.l.s8.bf16 %v2014
        %v2815 = vunpack.c.l.s8.bf16 %v2015
        %v2816 = vunpack.c.h.s8.bf16 %v2012
        %v2817 = vunpack.c.h.s8.bf16 %v2013
        %v2818 = vunpack.c.h.s8.bf16 %v2014
        %v2819 = vunpack.c.h.s8.bf16 %v2015
        %v2820 = vunpack.c.l.s8.bf16 %v2016
        %v2821 = vunpack.c.l.s8.bf16 %v2017
        %v2822 = vunpack.c.l.s8.bf16 %v2018
        %v2823 = vunpack.c.l.s8.bf16 %v2019
        %v2824 = vunpack.c.h.s8.bf16 %v2016
        %v2825 = vunpack.c.h.s8.bf16 %v2017
        %v2826 = vunpack.c.h.s8.bf16 %v2018
        %v2827 = vunpack.c.h.s8.bf16 %v2019
        %v2828 = vunpack.c.l.s8.bf16 %v2020
        %v2829 = vunpack.c.l.s8.bf16 %v2021
        %v2830 = vunpack.c.l.s8.bf16 %v2022
        %v2831 = vunpack.c.l.s8.bf16 %v2023
        %v2832 = vunpack.c.h.s8.bf16 %v2020
        %v2833 = vunpack.c.h.s8.bf16 %v2021
        %v2834 = vunpack.c.h.s8.bf16 %v2022
        %v2835 = vunpack.c.h.s8.bf16 %v2023
        %v2836 = vunpack.c.l.s8.bf16 %v2024
        %v2837 = vunpack.c.l.s8.bf16 %v2025
        %v2838 = vunpack.c.l.s8.bf16 %v2026
        %v2839 = vunpack.c.l.s8.bf16 %v2027
        %v2840 = vunpack.c.h.s8.bf16 %v2024
        %v2841 = vunpack.c.h.s8.bf16 %v2025
        %v2842 = vunpack.c.h.s8.bf16 %v2026
        %v2843 = vunpack.c.h.s8.bf16 %v2027
        %v2844 = vunpack.c.l.s8.bf16 %v2028
        %v2845 = vunpack.c.l.s8.bf16 %v2029
        %v2846 = vunpack.c.l.s8.bf16 %v2030
        %v2847 = vunpack.c.l.s8.bf16 %v2031
        %v2848 = vunpack.c.h.s8.bf16 %v2028
        %v2849 = vunpack.c.h.s8.bf16 %v2029
        %v2850 = vunpack.c.h.s8.bf16 %v2030
        %v2851 = vunpack.c.h.s8.bf16 %v2031
        %v2852 = vunpack.c.l.s8.bf16 %v2032
        %v2853 = vunpack.c.l.s8.bf16 %v2033
        %v2854 = vunpack.c.l.s8.bf16 %v2034
        %v2855 = vunpack.c.l.s8.bf16 %v2035
        %v2856 = vunpack.c.h.s8.bf16 %v2032
        %v2857 = vunpack.c.h.s8.bf16 %v2033
        %v2858 = vunpack.c.h.s8.bf16 %v2034
        %v2859 = vunpack.c.h.s8.bf16 %v2035
        %v2860 = vunpack.c.l.s8.bf16 %v2036
        %v2861 = vunpack.c.l.s8.bf16 %v2037
        %v2862 = vunpack.c.l.s8.bf16 %v2038
        %v2863 = vunpack.c.l.s8.bf16 %v2039
        %v2864 = vunpack.c.h.s8.bf16 %v2036
        %v2865 = vunpack.c.h.s8.bf16 %v2037
        %v2866 = vunpack.c.h.s8.bf16 %v2038
        %v2867 = vunpack.c.h.s8.bf16 %v2039
        %v2868 = vunpack.c.l.s8.bf16 %v2040
        %v2869 = vunpack.c.l.s8.bf16 %v2041
        %v2870 = vunpack.c.l.s8.bf16 %v2042
        %v2871 = vunpack.c.l.s8.bf16 %v2043
        %v2872 = vunpack.c.h.s8.bf16 %v2040
        %v2873 = vunpack.c.h.s8.bf16 %v2041
        %v2874 = vunpack.c.h.s8.bf16 %v2042
        %v2875 = vunpack.c.h.s8.bf16 %v2043
        %v2876 = vunpack.c.l.s8.bf16 %v2044
        %v2877 = vunpack.c.l.s8.bf16 %v2045
        %v2878 = vunpack.c.l.s8.bf16 %v2046
        %v2879 = vunpack.c.l.s8.bf16 %v2047
        %v2880 = vunpack.c.h.s8.bf16 %v2044
        %v2881 = vunpack.c.h.s8.bf16 %v2045
        %v2882 = vunpack.c.h.s8.bf16 %v2046
        %v2883 = vunpack.c.h.s8.bf16 %v2047
        %v2884 = vunpack.c.l.s8.bf16 %v2048
        %v2885 = vunpack.c.l.s8.bf16 %v2049
        %v2886 = vunpack.c.l.s8.bf16 %v2050
        %v2887 = vunpack.c.l.s8.bf16 %v2051
        %v2888 = vunpack.c.h.s8.bf16 %v2048
        %v2889 = vunpack.c.h.s8.bf16 %v2049
        %v2890 = vunpack.c.h.s8.bf16 %v2050
        %v2891 = vunpack.c.h.s8.bf16 %v2051
        %v2892 = vunpack.c.l.s8.bf16 %v2052
        %v2893 = vunpack.c.l.s8.bf16 %v2053
        %v2894 = vunpack.c.l.s8.bf16 %v2054
        %v2895 = vunpack.c.l.s8.bf16 %v2055
        %v2896 = vunpack.c.h.s8.bf16 %v2052
        %v2897 = vunpack.c.h.s8.bf16 %v2053
        %v2898 = vunpack.c.h.s8.bf16 %v2054
        %v2899 = vunpack.c.h.s8.bf16 %v2055
        %v2900 = vunpack.c.l.s8.bf16 %v2056
        %v2901 = vunpack.c.l.s8.bf16 %v2057
        %v2902 = vunpack.c.l.s8.bf16 %v2058
        %v2903 = vunpack.c.l.s8.bf16 %v2059
        %v2904 = vunpack.c.h.s8.bf16 %v2056
        %v2905 = vunpack.c.h.s8.bf16 %v2057
        %v2906 = vunpack.c.h.s8.bf16 %v2058
        %v2907 = vunpack.c.h.s8.bf16 %v2059
        %v2908 = vunpack.c.l.s8.bf16 %v2060
        %v2909 = vunpack.c.l.s8.bf16 %v2061
        %v2910 = vunpack.c.l.s8.bf16 %v2062
        %v2911 = vunpack.c.l.s8.bf16 %v2063
        %v2912 = vunpack.c.h.s8.bf16 %v2060
        %v2913 = vunpack.c.h.s8.bf16 %v2061
        %v2914 = vunpack.c.h.s8.bf16 %v2062
        %v2915 = vunpack.c.h.s8.bf16 %v2063
        %v2916 = vunpack.c.l.s8.bf16 %v2064
        %v2917 = vunpack.c.l.s8.bf16 %v2065
        %v2918 = vunpack.c.l.s8.bf16 %v2066
        %v2919 = vunpack.c.l.s8.bf16 %v2067
        %v2920 = vunpack.c.h.s8.bf16 %v2064
        %v2921 = vunpack.c.h.s8.bf16 %v2065
        %v2922 = vunpack.c.h.s8.bf16 %v2066
        %v2923 = vunpack.c.h.s8.bf16 %v2067
        %v2924 = vunpack.c.l.s8.bf16 %v2068
        %v2925 = vunpack.c.l.s8.bf16 %v2069
        %v2926 = vunpack.c.l.s8.bf16 %v2070
        %v2927 = vunpack.c.l.s8.bf16 %v2071
        %v2928 = vunpack.c.h.s8.bf16 %v2068
        %v2929 = vunpack.c.h.s8.bf16 %v2069
        %v2930 = vunpack.c.h.s8.bf16 %v2070
        %v2931 = vunpack.c.h.s8.bf16 %v2071
        %v2932 = vunpack.c.l.s8.bf16 %v2072
        %v2933 = vunpack.c.l.s8.bf16 %v2073
        %v2934 = vunpack.c.l.s8.bf16 %v2074
        %v2935 = vunpack.c.l.s8.bf16 %v2075
        %v2936 = vunpack.c.h.s8.bf16 %v2072
        %v2937 = vunpack.c.h.s8.bf16 %v2073
        %v2938 = vunpack.c.h.s8.bf16 %v2074
        %v2939 = vunpack.c.h.s8.bf16 %v2075
        %v2940 = vunpack.c.l.s8.bf16 %v2076
        %v2941 = vunpack.c.l.s8.bf16 %v2077
        %v2942 = vunpack.c.l.s8.bf16 %v2078
        %v2943 = vunpack.c.l.s8.bf16 %v2079
        %v2944 = vunpack.c.h.s8.bf16 %v2076
        %v2945 = vunpack.c.h.s8.bf16 %v2077
        %v2946 = vunpack.c.h.s8.bf16 %v2078
        %v2947 = vunpack.c.h.s8.bf16 %v2079
        %v2948 = vunpack.c.l.s8.bf16 %v2080
        %v2949 = vunpack.c.l.s8.bf16 %v2081
        %v2950 = vunpack.c.l.s8.bf16 %v2082
        %v2951 = vunpack.c.l.s8.bf16 %v2083
        %v2952 = vunpack.c.h.s8.bf16 %v2080
        %v2953 = vunpack.c.h.s8.bf16 %v2081
        %v2954 = vunpack.c.h.s8.bf16 %v2082
        %v2955 = vunpack.c.h.s8.bf16 %v2083
        %v2956 = vunpack.c.l.s8.bf16 %v2084
        %v2957 = vunpack.c.l.s8.bf16 %v2085
        %v2958 = vunpack.c.l.s8.bf16 %v2086
        %v2959 = vunpack.c.l.s8.bf16 %v2087
        %v2960 = vunpack.c.h.s8.bf16 %v2084
        %v2961 = vunpack.c.h.s8.bf16 %v2085
        %v2962 = vunpack.c.h.s8.bf16 %v2086
        %v2963 = vunpack.c.h.s8.bf16 %v2087
        %v2964 = vunpack.c.l.s8.bf16 %v2088
        %v2965 = vunpack.c.l.s8.bf16 %v2089
        %v2966 = vunpack.c.l.s8.bf16 %v2090
        %v2967 = vunpack.c.l.s8.bf16 %v2091
        %v2968 = vunpack.c.h.s8.bf16 %v2088
        %v2969 = vunpack.c.h.s8.bf16 %v2089
        %v2970 = vunpack.c.h.s8.bf16 %v2090
        %v2971 = vunpack.c.h.s8.bf16 %v2091
        %v2972 = vunpack.c.l.s8.bf16 %v2092
        %v2973 = vunpack.c.l.s8.bf16 %v2093
        %v2974 = vunpack.c.l.s8.bf16 %v2094
        %v2975 = vunpack.c.l.s8.bf16 %v2095
        %v2976 = vunpack.c.h.s8.bf16 %v2092
        %v2977 = vunpack.c.h.s8.bf16 %v2093
        %v2978 = vunpack.c.h.s8.bf16 %v2094
        %v2979 = vunpack.c.h.s8.bf16 %v2095
        %v2980 = vunpack.c.l.s8.bf16 %v2096
        %v2981 = vunpack.c.l.s8.bf16 %v2097
        %v2982 = vunpack.c.l.s8.bf16 %v2098
        %v2983 = vunpack.c.l.s8.bf16 %v2099
        %v2984 = vunpack.c.h.s8.bf16 %v2096
        %v2985 = vunpack.c.h.s8.bf16 %v2097
        %v2986 = vunpack.c.h.s8.bf16 %v2098
        %v2987 = vunpack.c.h.s8.bf16 %v2099
        %v2988 = vunpack.c.l.s8.bf16 %v2100
        %v2989 = vunpack.c.l.s8.bf16 %v2101
        %v2990 = vunpack.c.l.s8.bf16 %v2102
        %v2991 = vunpack.c.l.s8.bf16 %v2103
        %v2992 = vunpack.c.h.s8.bf16 %v2100
        %v2993 = vunpack.c.h.s8.bf16 %v2101
        %v2994 = vunpack.c.h.s8.bf16 %v2102
        %v2995 = vunpack.c.h.s8.bf16 %v2103
        %v2996 = vunpack.c.l.s8.bf16 %v2104
        %v2997 = vunpack.c.l.s8.bf16 %v2105
        %v2998 = vunpack.c.l.s8.bf16 %v2106
        %v2999 = vunpack.c.l.s8.bf16 %v2107
        %v3000 = vunpack.c.h.s8.bf16 %v2104
        %v3001 = vunpack.c.h.s8.bf16 %v2105
        %v3002 = vunpack.c.h.s8.bf16 %v2106
        %v3003 = vunpack.c.h.s8.bf16 %v2107
        %v3004 = vunpack.c.l.s8.bf16 %v2108
        %v3005 = vunpack.c.l.s8.bf16 %v2109
        %v3006 = vunpack.c.l.s8.bf16 %v2110
        %v3007 = vunpack.c.l.s8.bf16 %v2111
        %v3008 = vunpack.c.h.s8.bf16 %v2108
        %v3009 = vunpack.c.h.s8.bf16 %v2109
        %v3010 = vunpack.c.h.s8.bf16 %v2110
        %v3011 = vunpack.c.h.s8.bf16 %v2111
        %v3012 = vunpack.c.l.s8.bf16 %v2112
        %v3013 = vunpack.c.l.s8.bf16 %v2113
        %v3014 = vunpack.c.l.s8.bf16 %v2114
        %v3015 = vunpack.c.l.s8.bf16 %v2115
        %v3016 = vunpack.c.h.s8.bf16 %v2112
        %v3017 = vunpack.c.h.s8.bf16 %v2113
        %v3018 = vunpack.c.h.s8.bf16 %v2114
        %v3019 = vunpack.c.h.s8.bf16 %v2115
        %v3020 = vunpack.c.l.s8.bf16 %v2116
        %v3021 = vunpack.c.l.s8.bf16 %v2117
        %v3022 = vunpack.c.l.s8.bf16 %v2118
        %v3023 = vunpack.c.l.s8.bf16 %v2119
        %v3024 = vunpack.c.h.s8.bf16 %v2116
        %v3025 = vunpack.c.h.s8.bf16 %v2117
        %v3026 = vunpack.c.h.s8.bf16 %v2118
        %v3027 = vunpack.c.h.s8.bf16 %v2119
        %v3028 = vunpack.c.l.s8.bf16 %v2120
        %v3029 = vunpack.c.l.s8.bf16 %v2121
        %v3030 = vunpack.c.l.s8.bf16 %v2122
        %v3031 = vunpack.c.l.s8.bf16 %v2123
        %v3032 = vunpack.c.h.s8.bf16 %v2120
        %v3033 = vunpack.c.h.s8.bf16 %v2121
        %v3034 = vunpack.c.h.s8.bf16 %v2122
        %v3035 = vunpack.c.h.s8.bf16 %v2123
        %v3036 = vunpack.c.l.s8.bf16 %v2124
        %v3037 = vunpack.c.l.s8.bf16 %v2125
        %v3038 = vunpack.c.l.s8.bf16 %v2126
        %v3039 = vunpack.c.l.s8.bf16 %v2127
        %v3040 = vunpack.c.h.s8.bf16 %v2124
        %v3041 = vunpack.c.h.s8.bf16 %v2125
        %v3042 = vunpack.c.h.s8.bf16 %v2126
        %v3043 = vunpack.c.h.s8.bf16 %v2127
        %v3044 = vunpack.c.l.s8.bf16 %v2128
        %v3045 = vunpack.c.l.s8.bf16 %v2129
        %v3046 = vunpack.c.l.s8.bf16 %v2130
        %v3047 = vunpack.c.l.s8.bf16 %v2131
        %v3048 = vunpack.c.h.s8.bf16 %v2128
        %v3049 = vunpack.c.h.s8.bf16 %v2129
        %v3050 = vunpack.c.h.s8.bf16 %v2130
        %v3051 = vunpack.c.h.s8.bf16 %v2131
        %v3052 = vunpack.c.l.s8.bf16 %v2132
        %v3053 = vunpack.c.l.s8.bf16 %v2133
        %v3054 = vunpack.c.l.s8.bf16 %v2134
        %v3055 = vunpack.c.l.s8.bf16 %v2135
        %v3056 = vunpack.c.h.s8.bf16 %v2132
        %v3057 = vunpack.c.h.s8.bf16 %v2133
        %v3058 = vunpack.c.h.s8.bf16 %v2134
        %v3059 = vunpack.c.h.s8.bf16 %v2135
        %v3060 = vunpack.c.l.s8.bf16 %v2136
        %v3061 = vunpack.c.l.s8.bf16 %v2137
        %v3062 = vunpack.c.l.s8.bf16 %v2138
        %v3063 = vunpack.c.l.s8.bf16 %v2139
        %v3064 = vunpack.c.h.s8.bf16 %v2136
        %v3065 = vunpack.c.h.s8.bf16 %v2137
        %v3066 = vunpack.c.h.s8.bf16 %v2138
        %v3067 = vunpack.c.h.s8.bf16 %v2139
        %v3068 = vunpack.c.l.s8.bf16 %v2140
        %v3069 = vunpack.c.l.s8.bf16 %v2141
        %v3070 = vunpack.c.l.s8.bf16 %v2142
        %v3071 = vunpack.c.l.s8.bf16 %v2143
        %v3072 = vunpack.c.h.s8.bf16 %v2140
        %v3073 = vunpack.c.h.s8.bf16 %v2141
        %v3074 = vunpack.c.h.s8.bf16 %v2142
        %v3075 = vunpack.c.h.s8.bf16 %v2143
        %v3076 = vunpack.c.l.s8.bf16 %v2144
        %v3077 = vunpack.c.l.s8.bf16 %v2145
        %v3078 = vunpack.c.l.s8.bf16 %v2146
        %v3079 = vunpack.c.l.s8.bf16 %v2147
        %v3080 = vunpack.c.h.s8.bf16 %v2144
        %v3081 = vunpack.c.h.s8.bf16 %v2145
        %v3082 = vunpack.c.h.s8.bf16 %v2146
        %v3083 = vunpack.c.h.s8.bf16 %v2147
        %v3084 = vunpack.c.l.s8.bf16 %v2148
        %v3085 = vunpack.c.l.s8.bf16 %v2149
        %v3086 = vunpack.c.l.s8.bf16 %v2150
        %v3087 = vunpack.c.l.s8.bf16 %v2151
        %v3088 = vunpack.c.h.s8.bf16 %v2148
        %v3089 = vunpack.c.h.s8.bf16 %v2149
        %v3090 = vunpack.c.h.s8.bf16 %v2150
        %v3091 = vunpack.c.h.s8.bf16 %v2151
        %v3092 = vunpack.c.l.s8.bf16 %v2152
        %v3093 = vunpack.c.l.s8.bf16 %v2153
        %v3094 = vunpack.c.l.s8.bf16 %v2154
        %v3095 = vunpack.c.l.s8.bf16 %v2155
        %v3096 = vunpack.c.h.s8.bf16 %v2152
        %v3097 = vunpack.c.h.s8.bf16 %v2153
        %v3098 = vunpack.c.h.s8.bf16 %v2154
        %v3099 = vunpack.c.h.s8.bf16 %v2155
        %v3100 = vunpack.c.l.s8.bf16 %v2156
        %v3101 = vunpack.c.l.s8.bf16 %v2157
        %v3102 = vunpack.c.l.s8.bf16 %v2158
        %v3103 = vunpack.c.l.s8.bf16 %v2159
        %v3104 = vunpack.c.h.s8.bf16 %v2156
        %v3105 = vunpack.c.h.s8.bf16 %v2157
        %v3106 = vunpack.c.h.s8.bf16 %v2158
        %v3107 = vunpack.c.h.s8.bf16 %v2159
        %v3108 = vunpack.c.l.s8.bf16 %v2160
        %v3109 = vunpack.c.l.s8.bf16 %v2161
        %v3110 = vunpack.c.l.s8.bf16 %v2162
        %v3111 = vunpack.c.l.s8.bf16 %v2163
        %v3112 = vunpack.c.h.s8.bf16 %v2160
        %v3113 = vunpack.c.h.s8.bf16 %v2161
        %v3114 = vunpack.c.h.s8.bf16 %v2162
        %v3115 = vunpack.c.h.s8.bf16 %v2163
        %v3116 = vunpack.c.l.s8.bf16 %v2164
        %v3117 = vunpack.c.l.s8.bf16 %v2165
        %v3118 = vunpack.c.l.s8.bf16 %v2166
        %v3119 = vunpack.c.l.s8.bf16 %v2167
        %v3120 = vunpack.c.h.s8.bf16 %v2164
        %v3121 = vunpack.c.h.s8.bf16 %v2165
        %v3122 = vunpack.c.h.s8.bf16 %v2166
        %v3123 = vunpack.c.h.s8.bf16 %v2167
        %v3124 = vunpack.c.l.s8.bf16 %v2168
        %v3125 = vunpack.c.l.s8.bf16 %v2169
        %v3126 = vunpack.c.l.s8.bf16 %v2170
        %v3127 = vunpack.c.l.s8.bf16 %v2171
        %v3128 = vunpack.c.h.s8.bf16 %v2168
        %v3129 = vunpack.c.h.s8.bf16 %v2169
        %v3130 = vunpack.c.h.s8.bf16 %v2170
        %v3131 = vunpack.c.h.s8.bf16 %v2171
        %v3132 = vunpack.c.l.s8.bf16 %v2172
        %v3133 = vunpack.c.l.s8.bf16 %v2173
        %v3134 = vunpack.c.l.s8.bf16 %v2174
        %v3135 = vunpack.c.l.s8.bf16 %v2175
        %v3136 = vunpack.c.h.s8.bf16 %v2172
        %v3137 = vunpack.c.h.s8.bf16 %v2173
        %v3138 = vunpack.c.h.s8.bf16 %v2174
        %v3139 = vunpack.c.h.s8.bf16 %v2175
        %v3140 = vunpack.c.l.s8.bf16 %v2176
        %v3141 = vunpack.c.l.s8.bf16 %v2177
        %v3142 = vunpack.c.l.s8.bf16 %v2178
        %v3143 = vunpack.c.l.s8.bf16 %v2179
        %v3144 = vunpack.c.h.s8.bf16 %v2176
        %v3145 = vunpack.c.h.s8.bf16 %v2177
        %v3146 = vunpack.c.h.s8.bf16 %v2178
        %v3147 = vunpack.c.h.s8.bf16 %v2179
        %v3148 = vunpack.c.l.s8.bf16 %v2180
        %v3149 = vunpack.c.l.s8.bf16 %v2181
        %v3150 = vunpack.c.l.s8.bf16 %v2182
        %v3151 = vunpack.c.l.s8.bf16 %v2183
        %v3152 = vunpack.c.h.s8.bf16 %v2180
        %v3153 = vunpack.c.h.s8.bf16 %v2181
        %v3154 = vunpack.c.h.s8.bf16 %v2182
        %v3155 = vunpack.c.h.s8.bf16 %v2183
        %v3156 = vunpack.c.l.s8.bf16 %v2184
        %v3157 = vunpack.c.l.s8.bf16 %v2185
        %v3158 = vunpack.c.l.s8.bf16 %v2186
        %v3159 = vunpack.c.l.s8.bf16 %v2187
        %v3160 = vunpack.c.h.s8.bf16 %v2184
        %v3161 = vunpack.c.h.s8.bf16 %v2185
        %v3162 = vunpack.c.h.s8.bf16 %v2186
        %v3163 = vunpack.c.h.s8.bf16 %v2187
        %v3164 = vunpack.c.l.s8.bf16 %v2188
        %v3165 = vunpack.c.l.s8.bf16 %v2189
        %v3166 = vunpack.c.l.s8.bf16 %v2190
        %v3167 = vunpack.c.l.s8.bf16 %v2191
        %v3168 = vunpack.c.h.s8.bf16 %v2188
        %v3169 = vunpack.c.h.s8.bf16 %v2189
        %v3170 = vunpack.c.h.s8.bf16 %v2190
        %v3171 = vunpack.c.h.s8.bf16 %v2191
        %v3172 = vunpack.c.l.s8.bf16 %v2192
        %v3173 = vunpack.c.l.s8.bf16 %v2193
        %v3174 = vunpack.c.l.s8.bf16 %v2194
        %v3175 = vunpack.c.l.s8.bf16 %v2195
        %v3176 = vunpack.c.h.s8.bf16 %v2192
        %v3177 = vunpack.c.h.s8.bf16 %v2193
        %v3178 = vunpack.c.h.s8.bf16 %v2194
        %v3179 = vunpack.c.h.s8.bf16 %v2195
        %v3180 = vunpack.c.l.s8.bf16 %v2196
        %v3181 = vunpack.c.l.s8.bf16 %v2197
        %v3182 = vunpack.c.l.s8.bf16 %v2198
        %v3183 = vunpack.c.l.s8.bf16 %v2199
        %v3184 = vunpack.c.h.s8.bf16 %v2196
        %v3185 = vunpack.c.h.s8.bf16 %v2197
        %v3186 = vunpack.c.h.s8.bf16 %v2198
        %v3187 = vunpack.c.h.s8.bf16 %v2199
        %v3188 = vunpack.c.l.s8.bf16 %v2200
        %v3189 = vunpack.c.l.s8.bf16 %v2201
        %v3190 = vunpack.c.l.s8.bf16 %v2202
        %v3191 = vunpack.c.l.s8.bf16 %v2203
        %v3192 = vunpack.c.h.s8.bf16 %v2200
        %v3193 = vunpack.c.h.s8.bf16 %v2201
        %v3194 = vunpack.c.h.s8.bf16 %v2202
        %v3195 = vunpack.c.h.s8.bf16 %v2203
        %v3196 = vunpack.c.l.s8.bf16 %v2204
        %v3197 = vunpack.c.l.s8.bf16 %v2205
        %v3198 = vunpack.c.l.s8.bf16 %v2206
        %v3199 = vunpack.c.l.s8.bf16 %v2207
        %v3200 = vunpack.c.h.s8.bf16 %v2204
        %v3201 = vunpack.c.h.s8.bf16 %v2205
        %v3202 = vunpack.c.h.s8.bf16 %v2206
        %v3203 = vunpack.c.h.s8.bf16 %v2207
        %v3204 = vunpack.c.l.s8.bf16 %v2208
        %v3205 = vunpack.c.l.s8.bf16 %v2209
        %v3206 = vunpack.c.l.s8.bf16 %v2210
        %v3207 = vunpack.c.l.s8.bf16 %v2211
        %v3208 = vunpack.c.h.s8.bf16 %v2208
        %v3209 = vunpack.c.h.s8.bf16 %v2209
        %v3210 = vunpack.c.h.s8.bf16 %v2210
        %v3211 = vunpack.c.h.s8.bf16 %v2211
        %v3212 = vunpack.c.l.s8.bf16 %v2212
        %v3213 = vunpack.c.l.s8.bf16 %v2213
        %v3214 = vunpack.c.l.s8.bf16 %v2214
        %v3215 = vunpack.c.l.s8.bf16 %v2215
        %v3216 = vunpack.c.h.s8.bf16 %v2212
        %v3217 = vunpack.c.h.s8.bf16 %v2213
        %v3218 = vunpack.c.h.s8.bf16 %v2214
        %v3219 = vunpack.c.h.s8.bf16 %v2215
        %v3220 = vunpack.c.l.s8.bf16 %v2216
        %v3221 = vunpack.c.l.s8.bf16 %v2217
        %v3222 = vunpack.c.l.s8.bf16 %v2218
        %v3223 = vunpack.c.l.s8.bf16 %v2219
        %v3224 = vunpack.c.h.s8.bf16 %v2216
        %v3225 = vunpack.c.h.s8.bf16 %v2217
        %v3226 = vunpack.c.h.s8.bf16 %v2218
        %v3227 = vunpack.c.h.s8.bf16 %v2219
        %v3228 = vunpack.c.l.s8.bf16 %v2220
        %v3229 = vunpack.c.l.s8.bf16 %v2221
        %v3230 = vunpack.c.l.s8.bf16 %v2222
        %v3231 = vunpack.c.l.s8.bf16 %v2223
        %v3232 = vunpack.c.h.s8.bf16 %v2220
        %v3233 = vunpack.c.h.s8.bf16 %v2221
        %v3234 = vunpack.c.h.s8.bf16 %v2222
        %v3235 = vunpack.c.h.s8.bf16 %v2223
        %v3236 = vunpack.c.l.s8.bf16 %v2224
        %v3237 = vunpack.c.l.s8.bf16 %v2225
        %v3238 = vunpack.c.l.s8.bf16 %v2226
        %v3239 = vunpack.c.l.s8.bf16 %v2227
        %v3240 = vunpack.c.h.s8.bf16 %v2224
        %v3241 = vunpack.c.h.s8.bf16 %v2225
        %v3242 = vunpack.c.h.s8.bf16 %v2226
        %v3243 = vunpack.c.h.s8.bf16 %v2227
        %v3244 = vunpack.c.l.s8.bf16 %v2228
        %v3245 = vunpack.c.l.s8.bf16 %v2229
        %v3246 = vunpack.c.l.s8.bf16 %v2230
        %v3247 = vunpack.c.l.s8.bf16 %v2231
        %v3248 = vunpack.c.h.s8.bf16 %v2228
        %v3249 = vunpack.c.h.s8.bf16 %v2229
        %v3250 = vunpack.c.h.s8.bf16 %v2230
        %v3251 = vunpack.c.h.s8.bf16 %v2231
        %v3252 = vunpack.c.l.s8.bf16 %v2232
        %v3253 = vunpack.c.l.s8.bf16 %v2233
        %v3254 = vunpack.c.l.s8.bf16 %v2234
        %v3255 = vunpack.c.l.s8.bf16 %v2235
        %v3256 = vunpack.c.h.s8.bf16 %v2232
        %v3257 = vunpack.c.h.s8.bf16 %v2233
        %v3258 = vunpack.c.h.s8.bf16 %v2234
        %v3259 = vunpack.c.h.s8.bf16 %v2235
        %v3260 = vunpack.c.l.s8.bf16 %v2236
        %v3261 = vunpack.c.l.s8.bf16 %v2237
        %v3262 = vunpack.c.l.s8.bf16 %v2238
        %v3263 = vunpack.c.l.s8.bf16 %v2239
        %v3264 = vunpack.c.h.s8.bf16 %v2236
        %v3265 = vunpack.c.h.s8.bf16 %v2237
        %v3266 = vunpack.c.h.s8.bf16 %v2238
        %v3267 = vunpack.c.h.s8.bf16 %v2239
        %v3268 = vunpack.c.l.s8.bf16 %v2240
        %v3269 = vunpack.c.l.s8.bf16 %v2241
        %v3270 = vunpack.c.l.s8.bf16 %v2242
        %v3271 = vunpack.c.l.s8.bf16 %v2243
        %v3272 = vunpack.c.h.s8.bf16 %v2240
        %v3273 = vunpack.c.h.s8.bf16 %v2241
        %v3274 = vunpack.c.h.s8.bf16 %v2242
        %v3275 = vunpack.c.h.s8.bf16 %v2243
        %v3276 = vunpack.c.l.s8.bf16 %v2244
        %v3277 = vunpack.c.l.s8.bf16 %v2245
        %v3278 = vunpack.c.l.s8.bf16 %v2246
        %v3279 = vunpack.c.l.s8.bf16 %v2247
        %v3280 = vunpack.c.h.s8.bf16 %v2244
        %v3281 = vunpack.c.h.s8.bf16 %v2245
        %v3282 = vunpack.c.h.s8.bf16 %v2246
        %v3283 = vunpack.c.h.s8.bf16 %v2247
        %v3284 = vunpack.c.l.s8.bf16 %v2248
        %v3285 = vunpack.c.l.s8.bf16 %v2249
        %v3286 = vunpack.c.l.s8.bf16 %v2250
        %v3287 = vunpack.c.l.s8.bf16 %v2251
        %v3288 = vunpack.c.h.s8.bf16 %v2248
        %v3289 = vunpack.c.h.s8.bf16 %v2249
        %v3290 = vunpack.c.h.s8.bf16 %v2250
        %v3291 = vunpack.c.h.s8.bf16 %v2251
        %v3292 = vunpack.c.l.s8.bf16 %v2252
        %v3293 = vunpack.c.l.s8.bf16 %v2253
        %v3294 = vunpack.c.l.s8.bf16 %v2254
        %v3295 = vunpack.c.l.s8.bf16 %v2255
        %v3296 = vunpack.c.h.s8.bf16 %v2252
        %v3297 = vunpack.c.h.s8.bf16 %v2253
        %v3298 = vunpack.c.h.s8.bf16 %v2254
        %v3299 = vunpack.c.h.s8.bf16 %v2255
        %v3300 = vunpack.c.l.s8.bf16 %v2256
        %v3301 = vunpack.c.l.s8.bf16 %v2257
        %v3302 = vunpack.c.l.s8.bf16 %v2258
        %v3303 = vunpack.c.l.s8.bf16 %v2259
        %v3304 = vunpack.c.h.s8.bf16 %v2256
        %v3305 = vunpack.c.h.s8.bf16 %v2257
        %v3306 = vunpack.c.h.s8.bf16 %v2258
        %v3307 = vunpack.c.h.s8.bf16 %v2259
        %v3308 = vunpack.c.l.s8.bf16 %v2260
        %v3309 = vunpack.c.l.s8.bf16 %v2261
        %v3310 = vunpack.c.l.s8.bf16 %v2262
        %v3311 = vunpack.c.l.s8.bf16 %v2263
        %v3312 = vunpack.c.h.s8.bf16 %v2260
        %v3313 = vunpack.c.h.s8.bf16 %v2261
        %v3314 = vunpack.c.h.s8.bf16 %v2262
        %v3315 = vunpack.c.h.s8.bf16 %v2263
        %v3316 = vunpack.c.l.s8.bf16 %v2264
        %v3317 = vunpack.c.l.s8.bf16 %v2265
        %v3318 = vunpack.c.l.s8.bf16 %v2266
        %v3319 = vunpack.c.l.s8.bf16 %v2267
        %v3320 = vunpack.c.h.s8.bf16 %v2264
        %v3321 = vunpack.c.h.s8.bf16 %v2265
        %v3322 = vunpack.c.h.s8.bf16 %v2266
        %v3323 = vunpack.c.h.s8.bf16 %v2267
        %v3324 = vunpack.c.l.s8.bf16 %v2268
        %v3325 = vunpack.c.l.s8.bf16 %v2269
        %v3326 = vunpack.c.l.s8.bf16 %v2270
        %v3327 = vunpack.c.l.s8.bf16 %v2271
        %v3328 = vunpack.c.h.s8.bf16 %v2268
        %v3329 = vunpack.c.h.s8.bf16 %v2269
        %v3330 = vunpack.c.h.s8.bf16 %v2270
        %v3331 = vunpack.c.h.s8.bf16 %v2271
        %v3332 = vunpack.c.l.s8.bf16 %v2272
        %v3333 = vunpack.c.l.s8.bf16 %v2273
        %v3334 = vunpack.c.l.s8.bf16 %v2274
        %v3335 = vunpack.c.l.s8.bf16 %v2275
        %v3336 = vunpack.c.h.s8.bf16 %v2272
        %v3337 = vunpack.c.h.s8.bf16 %v2273
        %v3338 = vunpack.c.h.s8.bf16 %v2274
        %v3339 = vunpack.c.h.s8.bf16 %v2275
        %v3340 = vunpack.c.l.s8.bf16 %v2276
        %v3341 = vunpack.c.l.s8.bf16 %v2277
        %v3342 = vunpack.c.l.s8.bf16 %v2278
        %v3343 = vunpack.c.l.s8.bf16 %v2279
        %v3344 = vunpack.c.h.s8.bf16 %v2276
        %v3345 = vunpack.c.h.s8.bf16 %v2277
        %v3346 = vunpack.c.h.s8.bf16 %v2278
        %v3347 = vunpack.c.h.s8.bf16 %v2279
        %v3348 = vunpack.c.l.s8.bf16 %v2280
        %v3349 = vunpack.c.l.s8.bf16 %v2281
        %v3350 = vunpack.c.l.s8.bf16 %v2282
        %v3351 = vunpack.c.l.s8.bf16 %v2283
        %v3352 = vunpack.c.h.s8.bf16 %v2280
        %v3353 = vunpack.c.h.s8.bf16 %v2281
        %v3354 = vunpack.c.h.s8.bf16 %v2282
        %v3355 = vunpack.c.h.s8.bf16 %v2283
        %v3356 = vunpack.c.l.s8.bf16 %v2284
        %v3357 = vunpack.c.l.s8.bf16 %v2285
        %v3358 = vunpack.c.l.s8.bf16 %v2286
        %v3359 = vunpack.c.l.s8.bf16 %v2287
        %v3360 = vunpack.c.h.s8.bf16 %v2284
        %v3361 = vunpack.c.h.s8.bf16 %v2285
        %v3362 = vunpack.c.h.s8.bf16 %v2286
        %v3363 = vunpack.c.h.s8.bf16 %v2287
        %v3364 = vunpack.c.l.s8.bf16 %v2288
        %v3365 = vunpack.c.l.s8.bf16 %v2289
        %v3366 = vunpack.c.l.s8.bf16 %v2290
        %v3367 = vunpack.c.l.s8.bf16 %v2291
        %v3368 = vunpack.c.h.s8.bf16 %v2288
        %v3369 = vunpack.c.h.s8.bf16 %v2289
        %v3370 = vunpack.c.h.s8.bf16 %v2290
        %v3371 = vunpack.c.h.s8.bf16 %v2291
        %v3372 = vunpack.c.l.s8.bf16 %v2292
        %v3373 = vunpack.c.l.s8.bf16 %v2293
        %v3374 = vunpack.c.l.s8.bf16 %v2294
        %v3375 = vunpack.c.l.s8.bf16 %v2295
        %v3376 = vunpack.c.h.s8.bf16 %v2292
        %v3377 = vunpack.c.h.s8.bf16 %v2293
        %v3378 = vunpack.c.h.s8.bf16 %v2294
        %v3379 = vunpack.c.h.s8.bf16 %v2295
        %v3380 = vunpack.c.l.s8.bf16 %v2296
        %v3381 = vunpack.c.l.s8.bf16 %v2297
        %v3382 = vunpack.c.l.s8.bf16 %v2298
        %v3383 = vunpack.c.l.s8.bf16 %v2299
        %v3384 = vunpack.c.h.s8.bf16 %v2296
        %v3385 = vunpack.c.h.s8.bf16 %v2297
        %v3386 = vunpack.c.h.s8.bf16 %v2298
        %v3387 = vunpack.c.h.s8.bf16 %v2299
        %v3388 = vunpack.c.l.s8.bf16 %v2300
        %v3389 = vunpack.c.l.s8.bf16 %v2301
        %v3390 = vunpack.c.l.s8.bf16 %v2302
        %v3391 = vunpack.c.l.s8.bf16 %v2303
        %v3392 = vunpack.c.h.s8.bf16 %v2300
        %v3393 = vunpack.c.h.s8.bf16 %v2301
        %v3394 = vunpack.c.h.s8.bf16 %v2302
        %v3395 = vunpack.c.h.s8.bf16 %v2303
        %v3396 = vunpack.c.l.s8.bf16 %v2304
        %v3397 = vunpack.c.l.s8.bf16 %v2305
        %v3398 = vunpack.c.l.s8.bf16 %v2306
        %v3399 = vunpack.c.l.s8.bf16 %v2307
        %v3400 = vunpack.c.h.s8.bf16 %v2304
        %v3401 = vunpack.c.h.s8.bf16 %v2305
        %v3402 = vunpack.c.h.s8.bf16 %v2306
        %v3403 = vunpack.c.h.s8.bf16 %v2307
        %v3404 = vunpack.c.l.s8.bf16 %v2308
        %v3405 = vunpack.c.l.s8.bf16 %v2309
        %v3406 = vunpack.c.l.s8.bf16 %v2310
        %v3407 = vunpack.c.l.s8.bf16 %v2311
        %v3408 = vunpack.c.h.s8.bf16 %v2308
        %v3409 = vunpack.c.h.s8.bf16 %v2309
        %v3410 = vunpack.c.h.s8.bf16 %v2310
        %v3411 = vunpack.c.h.s8.bf16 %v2311
        %v3412 = vunpack.c.l.s8.bf16 %v2312
        %v3413 = vunpack.c.l.s8.bf16 %v2313
        %v3414 = vunpack.c.l.s8.bf16 %v2314
        %v3415 = vunpack.c.l.s8.bf16 %v2315
        %v3416 = vunpack.c.h.s8.bf16 %v2312
        %v3417 = vunpack.c.h.s8.bf16 %v2313
        %v3418 = vunpack.c.h.s8.bf16 %v2314
        %v3419 = vunpack.c.h.s8.bf16 %v2315
        %v3420 = vunpack.c.l.s8.bf16 %v2316
        %v3421 = vunpack.c.l.s8.bf16 %v2317
        %v3422 = vunpack.c.l.s8.bf16 %v2318
        %v3423 = vunpack.c.l.s8.bf16 %v2319
        %v3424 = vunpack.c.h.s8.bf16 %v2316
        %v3425 = vunpack.c.h.s8.bf16 %v2317
        %v3426 = vunpack.c.h.s8.bf16 %v2318
        %v3427 = vunpack.c.h.s8.bf16 %v2319
        %v3428 = vunpack.c.l.s8.bf16 %v2320
        %v3429 = vunpack.c.l.s8.bf16 %v2321
        %v3430 = vunpack.c.l.s8.bf16 %v2322
        %v3431 = vunpack.c.l.s8.bf16 %v2323
        %v3432 = vunpack.c.h.s8.bf16 %v2320
        %v3433 = vunpack.c.h.s8.bf16 %v2321
        %v3434 = vunpack.c.h.s8.bf16 %v2322
        %v3435 = vunpack.c.h.s8.bf16 %v2323
        %v3436 = vunpack.c.l.s8.bf16 %v2324
        %v3437 = vunpack.c.l.s8.bf16 %v2325
        %v3438 = vunpack.c.l.s8.bf16 %v2326
        %v3439 = vunpack.c.l.s8.bf16 %v2327
        %v3440 = vunpack.c.h.s8.bf16 %v2324
        %v3441 = vunpack.c.h.s8.bf16 %v2325
        %v3442 = vunpack.c.h.s8.bf16 %v2326
        %v3443 = vunpack.c.h.s8.bf16 %v2327
        %v3444 = vunpack.c.l.s8.bf16 %v2328
        %v3445 = vunpack.c.l.s8.bf16 %v2329
        %v3446 = vunpack.c.l.s8.bf16 %v2330
        %v3447 = vunpack.c.l.s8.bf16 %v2331
        %v3448 = vunpack.c.h.s8.bf16 %v2328
        %v3449 = vunpack.c.h.s8.bf16 %v2329
        %v3450 = vunpack.c.h.s8.bf16 %v2330
        %v3451 = vunpack.c.h.s8.bf16 %v2331
        %v3452 = vunpack.c.l.s8.bf16 %v2332
        %v3453 = vunpack.c.l.s8.bf16 %v2333
        %v3454 = vunpack.c.l.s8.bf16 %v2334
        %v3455 = vunpack.c.l.s8.bf16 %v2335
        %v3456 = vunpack.c.h.s8.bf16 %v2332
        %v3457 = vunpack.c.h.s8.bf16 %v2333
        %v3458 = vunpack.c.h.s8.bf16 %v2334
        %v3459 = vunpack.c.h.s8.bf16 %v2335
        %v3460 = vunpack.c.l.s8.bf16 %v2336
        %v3461 = vunpack.c.l.s8.bf16 %v2337
        %v3462 = vunpack.c.l.s8.bf16 %v2338
        %v3463 = vunpack.c.l.s8.bf16 %v2339
        %v3464 = vunpack.c.h.s8.bf16 %v2336
        %v3465 = vunpack.c.h.s8.bf16 %v2337
        %v3466 = vunpack.c.h.s8.bf16 %v2338
        %v3467 = vunpack.c.h.s8.bf16 %v2339
        %v3468 = vunpack.c.l.s8.bf16 %v2340
        %v3469 = vunpack.c.l.s8.bf16 %v2341
        %v3470 = vunpack.c.l.s8.bf16 %v2342
        %v3471 = vunpack.c.l.s8.bf16 %v2343
        %v3472 = vunpack.c.h.s8.bf16 %v2340
        %v3473 = vunpack.c.h.s8.bf16 %v2341
        %v3474 = vunpack.c.h.s8.bf16 %v2342
        %v3475 = vunpack.c.h.s8.bf16 %v2343
        %v3476 = vunpack.c.l.s8.bf16 %v2344
        %v3477 = vunpack.c.l.s8.bf16 %v2345
        %v3478 = vunpack.c.l.s8.bf16 %v2346
        %v3479 = vunpack.c.l.s8.bf16 %v2347
        %v3480 = vunpack.c.h.s8.bf16 %v2344
        %v3481 = vunpack.c.h.s8.bf16 %v2345
        %v3482 = vunpack.c.h.s8.bf16 %v2346
        %v3483 = vunpack.c.h.s8.bf16 %v2347
        %v3484 = vunpack.c.l.s8.bf16 %v2348
        %v3485 = vunpack.c.l.s8.bf16 %v2349
        %v3486 = vunpack.c.l.s8.bf16 %v2350
        %v3487 = vunpack.c.l.s8.bf16 %v2351
        %v3488 = vunpack.c.h.s8.bf16 %v2348
        %v3489 = vunpack.c.h.s8.bf16 %v2349
        %v3490 = vunpack.c.h.s8.bf16 %v2350
        %v3491 = vunpack.c.h.s8.bf16 %v2351
        %v3492 = vunpack.c.l.s8.bf16 %v2352
        %v3493 = vunpack.c.l.s8.bf16 %v2353
        %v3494 = vunpack.c.l.s8.bf16 %v2354
        %v3495 = vunpack.c.l.s8.bf16 %v2355
        %v3496 = vunpack.c.h.s8.bf16 %v2352
        %v3497 = vunpack.c.h.s8.bf16 %v2353
        %v3498 = vunpack.c.h.s8.bf16 %v2354
        %v3499 = vunpack.c.h.s8.bf16 %v2355
        %v3500 = vunpack.c.l.s8.bf16 %v2356
        %v3501 = vunpack.c.l.s8.bf16 %v2357
        %v3502 = vunpack.c.l.s8.bf16 %v2358
        %v3503 = vunpack.c.l.s8.bf16 %v2359
        %v3504 = vunpack.c.h.s8.bf16 %v2356
        %v3505 = vunpack.c.h.s8.bf16 %v2357
        %v3506 = vunpack.c.h.s8.bf16 %v2358
        %v3507 = vunpack.c.h.s8.bf16 %v2359
        %v3508 = vunpack.c.l.s8.bf16 %v2360
        %v3509 = vunpack.c.l.s8.bf16 %v2361
        %v3510 = vunpack.c.l.s8.bf16 %v2362
        %v3511 = vunpack.c.l.s8.bf16 %v2363
        %v3512 = vunpack.c.h.s8.bf16 %v2360
        %v3513 = vunpack.c.h.s8.bf16 %v2361
        %v3514 = vunpack.c.h.s8.bf16 %v2362
        %v3515 = vunpack.c.h.s8.bf16 %v2363
        %v3516 = vunpack.c.l.s8.bf16 %v2364
        %v3517 = vunpack.c.l.s8.bf16 %v2365
        %v3518 = vunpack.c.l.s8.bf16 %v2366
        %v3519 = vunpack.c.l.s8.bf16 %v2367
        %v3520 = vunpack.c.h.s8.bf16 %v2364
        %v3521 = vunpack.c.h.s8.bf16 %v2365
        %v3522 = vunpack.c.h.s8.bf16 %v2366
        %v3523 = vunpack.c.h.s8.bf16 %v2367
        %v3524 = vunpack.c.l.s8.bf16 %v2368
        %v3525 = vunpack.c.l.s8.bf16 %v2369
        %v3526 = vunpack.c.l.s8.bf16 %v2370
        %v3527 = vunpack.c.l.s8.bf16 %v2371
        %v3528 = vunpack.c.h.s8.bf16 %v2368
        %v3529 = vunpack.c.h.s8.bf16 %v2369
        %v3530 = vunpack.c.h.s8.bf16 %v2370
        %v3531 = vunpack.c.h.s8.bf16 %v2371
        %v3532 = vunpack.c.l.s8.bf16 %v2372
        %v3533 = vunpack.c.l.s8.bf16 %v2373
        %v3534 = vunpack.c.l.s8.bf16 %v2374
        %v3535 = vunpack.c.l.s8.bf16 %v2375
        %v3536 = vunpack.c.h.s8.bf16 %v2372
        %v3537 = vunpack.c.h.s8.bf16 %v2373
        %v3538 = vunpack.c.h.s8.bf16 %v2374
        %v3539 = vunpack.c.h.s8.bf16 %v2375
        %v3540 = vunpack.c.l.s8.bf16 %v2376
        %v3541 = vunpack.c.l.s8.bf16 %v2377
        %v3542 = vunpack.c.l.s8.bf16 %v2378
        %v3543 = vunpack.c.l.s8.bf16 %v2379
        %v3544 = vunpack.c.h.s8.bf16 %v2376
        %v3545 = vunpack.c.h.s8.bf16 %v2377
        %v3546 = vunpack.c.h.s8.bf16 %v2378
        %v3547 = vunpack.c.h.s8.bf16 %v2379
        %v3548 = vunpack.c.l.s8.bf16 %v2380
        %v3549 = vunpack.c.l.s8.bf16 %v2381
        %v3550 = vunpack.c.l.s8.bf16 %v2382
        %v3551 = vunpack.c.l.s8.bf16 %v2383
        %v3552 = vunpack.c.h.s8.bf16 %v2380
        %v3553 = vunpack.c.h.s8.bf16 %v2381
        %v3554 = vunpack.c.h.s8.bf16 %v2382
        %v3555 = vunpack.c.h.s8.bf16 %v2383
        %v3556 = vunpack.c.l.s8.bf16 %v2384
        %v3557 = vunpack.c.l.s8.bf16 %v2385
        %v3558 = vunpack.c.l.s8.bf16 %v2386
        %v3559 = vunpack.c.l.s8.bf16 %v2387
        %v3560 = vunpack.c.h.s8.bf16 %v2384
        %v3561 = vunpack.c.h.s8.bf16 %v2385
        %v3562 = vunpack.c.h.s8.bf16 %v2386
        %v3563 = vunpack.c.h.s8.bf16 %v2387
        %v3564 = vunpack.c.l.s8.bf16 %v2388
        %v3565 = vunpack.c.l.s8.bf16 %v2389
        %v3566 = vunpack.c.l.s8.bf16 %v2390
        %v3567 = vunpack.c.l.s8.bf16 %v2391
        %v3568 = vunpack.c.h.s8.bf16 %v2388
        %v3569 = vunpack.c.h.s8.bf16 %v2389
        %v3570 = vunpack.c.h.s8.bf16 %v2390
        %v3571 = vunpack.c.h.s8.bf16 %v2391
        %v3572 = vunpack.c.l.s8.bf16 %v2392
        %v3573 = vunpack.c.l.s8.bf16 %v2393
        %v3574 = vunpack.c.l.s8.bf16 %v2394
        %v3575 = vunpack.c.l.s8.bf16 %v2395
        %v3576 = vunpack.c.h.s8.bf16 %v2392
        %v3577 = vunpack.c.h.s8.bf16 %v2393
        %v3578 = vunpack.c.h.s8.bf16 %v2394
        %v3579 = vunpack.c.h.s8.bf16 %v2395
        %v3580 = vunpack.c.l.s8.bf16 %v2396
        %v3581 = vunpack.c.l.s8.bf16 %v2397
        %v3582 = vunpack.c.l.s8.bf16 %v2398
        %v3583 = vunpack.c.l.s8.bf16 %v2399
        %v3584 = vunpack.c.h.s8.bf16 %v2396
        %v3585 = vunpack.c.h.s8.bf16 %v2397
        %v3586 = vunpack.c.h.s8.bf16 %v2398
        %v3587 = vunpack.c.h.s8.bf16 %v2399
        %v3588 = vunpack.c.l.s8.bf16 %v2400
        %v3589 = vunpack.c.l.s8.bf16 %v2401
        %v3590 = vunpack.c.l.s8.bf16 %v2402
        %v3591 = vunpack.c.l.s8.bf16 %v2403
        %v3592 = vunpack.c.h.s8.bf16 %v2400
        %v3593 = vunpack.c.h.s8.bf16 %v2401
        %v3594 = vunpack.c.h.s8.bf16 %v2402
        %v3595 = vunpack.c.h.s8.bf16 %v2403
        %v3596 = vunpack.c.l.s8.bf16 %v2404
        %v3597 = vunpack.c.l.s8.bf16 %v2405
        %v3598 = vunpack.c.l.s8.bf16 %v2406
        %v3599 = vunpack.c.l.s8.bf16 %v2407
        %v3600 = vunpack.c.h.s8.bf16 %v2404
        %v3601 = vunpack.c.h.s8.bf16 %v2405
        %v3602 = vunpack.c.h.s8.bf16 %v2406
        %v3603 = vunpack.c.h.s8.bf16 %v2407
        %v3604 = vunpack.c.l.s8.bf16 %v2408
        %v3605 = vunpack.c.l.s8.bf16 %v2409
        %v3606 = vunpack.c.l.s8.bf16 %v2410
        %v3607 = vunpack.c.l.s8.bf16 %v2411
        %v3608 = vunpack.c.h.s8.bf16 %v2408
        %v3609 = vunpack.c.h.s8.bf16 %v2409
        %v3610 = vunpack.c.h.s8.bf16 %v2410
        %v3611 = vunpack.c.h.s8.bf16 %v2411
        %v3612 = vunpack.c.l.s8.bf16 %v2412
        %v3613 = vunpack.c.l.s8.bf16 %v2413
        %v3614 = vunpack.c.l.s8.bf16 %v2414
        %v3615 = vunpack.c.l.s8.bf16 %v2415
        %v3616 = vunpack.c.h.s8.bf16 %v2412
        %v3617 = vunpack.c.h.s8.bf16 %v2413
        %v3618 = vunpack.c.h.s8.bf16 %v2414
        %v3619 = vunpack.c.h.s8.bf16 %v2415
        %v3620 = vunpack.c.l.s8.bf16 %v2416
        %v3621 = vunpack.c.l.s8.bf16 %v2417
        %v3622 = vunpack.c.l.s8.bf16 %v2418
        %v3623 = vunpack.c.l.s8.bf16 %v2419
        %v3624 = vunpack.c.h.s8.bf16 %v2416
        %v3625 = vunpack.c.h.s8.bf16 %v2417
        %v3626 = vunpack.c.h.s8.bf16 %v2418
        %v3627 = vunpack.c.h.s8.bf16 %v2419
        %v3628 = vunpack.c.l.s8.bf16 %v2420
        %v3629 = vunpack.c.l.s8.bf16 %v2421
        %v3630 = vunpack.c.l.s8.bf16 %v2422
        %v3631 = vunpack.c.l.s8.bf16 %v2423
        %v3632 = vunpack.c.h.s8.bf16 %v2420
        %v3633 = vunpack.c.h.s8.bf16 %v2421
        %v3634 = vunpack.c.h.s8.bf16 %v2422
        %v3635 = vunpack.c.h.s8.bf16 %v2423
        %v3636 = vunpack.c.l.s8.bf16 %v2424
        %v3637 = vunpack.c.l.s8.bf16 %v2425
        %v3638 = vunpack.c.l.s8.bf16 %v2426
        %v3639 = vunpack.c.l.s8.bf16 %v2427
        %v3640 = vunpack.c.h.s8.bf16 %v2424
        %v3641 = vunpack.c.h.s8.bf16 %v2425
        %v3642 = vunpack.c.h.s8.bf16 %v2426
        %v3643 = vunpack.c.h.s8.bf16 %v2427
        %v3644 = vunpack.c.l.s8.bf16 %v2428
        %v3645 = vunpack.c.l.s8.bf16 %v2429
        %v3646 = vunpack.c.l.s8.bf16 %v2430
        %v3647 = vunpack.c.l.s8.bf16 %v2431
        %v3648 = vunpack.c.h.s8.bf16 %v2428
        %v3649 = vunpack.c.h.s8.bf16 %v2429
        %v3650 = vunpack.c.h.s8.bf16 %v2430
        %v3651 = vunpack.c.h.s8.bf16 %v2431
        %v3652 = vunpack.c.l.s8.bf16 %v2432
        %v3653 = vunpack.c.l.s8.bf16 %v2433
        %v3654 = vunpack.c.l.s8.bf16 %v2434
        %v3655 = vunpack.c.l.s8.bf16 %v2435
        %v3656 = vunpack.c.h.s8.bf16 %v2432
        %v3657 = vunpack.c.h.s8.bf16 %v2433
        %v3658 = vunpack.c.h.s8.bf16 %v2434
        %v3659 = vunpack.c.h.s8.bf16 %v2435
        %v3660 = vunpack.c.l.s8.bf16 %v2436
        %v3661 = vunpack.c.l.s8.bf16 %v2437
        %v3662 = vunpack.c.l.s8.bf16 %v2438
        %v3663 = vunpack.c.l.s8.bf16 %v2439
        %v3664 = vunpack.c.h.s8.bf16 %v2436
        %v3665 = vunpack.c.h.s8.bf16 %v2437
        %v3666 = vunpack.c.h.s8.bf16 %v2438
        %v3667 = vunpack.c.h.s8.bf16 %v2439
        %v3668 = vunpack.c.l.s8.bf16 %v2440
        %v3669 = vunpack.c.l.s8.bf16 %v2441
        %v3670 = vunpack.c.l.s8.bf16 %v2442
        %v3671 = vunpack.c.l.s8.bf16 %v2443
        %v3672 = vunpack.c.h.s8.bf16 %v2440
        %v3673 = vunpack.c.h.s8.bf16 %v2441
        %v3674 = vunpack.c.h.s8.bf16 %v2442
        %v3675 = vunpack.c.h.s8.bf16 %v2443
        %v3676 = vunpack.c.l.s8.bf16 %v2444
        %v3677 = vunpack.c.l.s8.bf16 %v2445
        %v3678 = vunpack.c.l.s8.bf16 %v2446
        %v3679 = vunpack.c.l.s8.bf16 %v2447
        %v3680 = vunpack.c.h.s8.bf16 %v2444
        %v3681 = vunpack.c.h.s8.bf16 %v2445
        %v3682 = vunpack.c.h.s8.bf16 %v2446
        %v3683 = vunpack.c.h.s8.bf16 %v2447
        %v3684 = vunpack.c.l.s8.bf16 %v2448
        %v3685 = vunpack.c.l.s8.bf16 %v2449
        %v3686 = vunpack.c.l.s8.bf16 %v2450
        %v3687 = vunpack.c.l.s8.bf16 %v2451
        %v3688 = vunpack.c.h.s8.bf16 %v2448
        %v3689 = vunpack.c.h.s8.bf16 %v2449
        %v3690 = vunpack.c.h.s8.bf16 %v2450
        %v3691 = vunpack.c.h.s8.bf16 %v2451
        %v3692 = vunpack.c.l.s8.bf16 %v2452
        %v3693 = vunpack.c.l.s8.bf16 %v2453
        %v3694 = vunpack.c.l.s8.bf16 %v2454
        %v3695 = vunpack.c.l.s8.bf16 %v2455
        %v3696 = vunpack.c.h.s8.bf16 %v2452
        %v3697 = vunpack.c.h.s8.bf16 %v2453
        %v3698 = vunpack.c.h.s8.bf16 %v2454
        %v3699 = vunpack.c.h.s8.bf16 %v2455
        %v3700 = vunpack.c.l.s8.bf16 %v2456
        %v3701 = vunpack.c.l.s8.bf16 %v2457
        %v3702 = vunpack.c.l.s8.bf16 %v2458
        %v3703 = vunpack.c.l.s8.bf16 %v2459
        %v3704 = vunpack.c.h.s8.bf16 %v2456
        %v3705 = vunpack.c.h.s8.bf16 %v2457
        %v3706 = vunpack.c.h.s8.bf16 %v2458
        %v3707 = vunpack.c.h.s8.bf16 %v2459
        %v3708 = vunpack.c.l.s8.bf16 %v2460
        %v3709 = vunpack.c.l.s8.bf16 %v2461
        %v3710 = vunpack.c.l.s8.bf16 %v2462
        %v3711 = vunpack.c.l.s8.bf16 %v2463
        %v3712 = vunpack.c.h.s8.bf16 %v2460
        %v3713 = vunpack.c.h.s8.bf16 %v2461
        %v3714 = vunpack.c.h.s8.bf16 %v2462
        %v3715 = vunpack.c.h.s8.bf16 %v2463
        %v3716 = vunpack.c.l.s8.bf16 %v2464
        %v3717 = vunpack.c.l.s8.bf16 %v2465
        %v3718 = vunpack.c.l.s8.bf16 %v2466
        %v3719 = vunpack.c.l.s8.bf16 %v2467
        %v3720 = vunpack.c.h.s8.bf16 %v2464
        %v3721 = vunpack.c.h.s8.bf16 %v2465
        %v3722 = vunpack.c.h.s8.bf16 %v2466
        %v3723 = vunpack.c.h.s8.bf16 %v2467
        %v3724 = vunpack.c.l.s8.bf16 %v2468
        %v3725 = vunpack.c.l.s8.bf16 %v2469
        %v3726 = vunpack.c.l.s8.bf16 %v2470
        %v3727 = vunpack.c.l.s8.bf16 %v2471
        %v3728 = vunpack.c.h.s8.bf16 %v2468
        %v3729 = vunpack.c.h.s8.bf16 %v2469
        %v3730 = vunpack.c.h.s8.bf16 %v2470
        %v3731 = vunpack.c.h.s8.bf16 %v2471
        %v3732 = vunpack.c.l.s8.bf16 %v2472
        %v3733 = vunpack.c.l.s8.bf16 %v2473
        %v3734 = vunpack.c.l.s8.bf16 %v2474
        %v3735 = vunpack.c.l.s8.bf16 %v2475
        %v3736 = vunpack.c.h.s8.bf16 %v2472
        %v3737 = vunpack.c.h.s8.bf16 %v2473
        %v3738 = vunpack.c.h.s8.bf16 %v2474
        %v3739 = vunpack.c.h.s8.bf16 %v2475
        %v3740 = vunpack.c.l.s8.bf16 %v2476
        %v3741 = vunpack.c.l.s8.bf16 %v2477
        %v3742 = vunpack.c.l.s8.bf16 %v2478
        %v3743 = vunpack.c.l.s8.bf16 %v2479
        %v3744 = vunpack.c.h.s8.bf16 %v2476
        %v3745 = vunpack.c.h.s8.bf16 %v2477
        %v3746 = vunpack.c.h.s8.bf16 %v2478
        %v3747 = vunpack.c.h.s8.bf16 %v2479
        %v3748 = vunpack.c.l.s8.bf16 %v2480
        %v3749 = vunpack.c.l.s8.bf16 %v2481
        %v3750 = vunpack.c.l.s8.bf16 %v2482
        %v3751 = vunpack.c.l.s8.bf16 %v2483
        %v3752 = vunpack.c.h.s8.bf16 %v2480
        %v3753 = vunpack.c.h.s8.bf16 %v2481
        %v3754 = vunpack.c.h.s8.bf16 %v2482
        %v3755 = vunpack.c.h.s8.bf16 %v2483
        %v3756 = vunpack.c.l.s8.bf16 %v2484
        %v3757 = vunpack.c.l.s8.bf16 %v2485
        %v3758 = vunpack.c.l.s8.bf16 %v2486
        %v3759 = vunpack.c.l.s8.bf16 %v2487
        %v3760 = vunpack.c.h.s8.bf16 %v2484
        %v3761 = vunpack.c.h.s8.bf16 %v2485
        %v3762 = vunpack.c.h.s8.bf16 %v2486
        %v3763 = vunpack.c.h.s8.bf16 %v2487
        %v3764 = vunpack.c.l.s8.bf16 %v2488
        %v3765 = vunpack.c.l.s8.bf16 %v2489
        %v3766 = vunpack.c.l.s8.bf16 %v2490
        %v3767 = vunpack.c.l.s8.bf16 %v2491
        %v3768 = vunpack.c.h.s8.bf16 %v2488
        %v3769 = vunpack.c.h.s8.bf16 %v2489
        %v3770 = vunpack.c.h.s8.bf16 %v2490
        %v3771 = vunpack.c.h.s8.bf16 %v2491
        %3772 = vmatprep.subr.bf16.mxu0 %v2521
        %3773 = vmatpush1.bf16.msra.mxu0 %v2520
        %3774 = vmatprep.subr.bf16.mxu0 %v2517
        %3775 = vmatpush1.bf16.msra.mxu0 %v2516
        %3776 = vmatprep.subr.bf16.mxu0 %v2513
        %3777 = vmatpush1.bf16.msra.mxu0 %v2512
        %3778 = vmatprep.subr.bf16.mxu0 %v2509
        %3779 = vmatpush1.bf16.msra.mxu0 %v2508
        %3780 = vmatprep.subr.bf16.mxu0 %v2505
        %3781 = vmatpush1.bf16.msra.mxu0 %v2504
        %3782 = vmatprep.subr.bf16.mxu0 %v2501
        %3783 = vmatpush1.bf16.msra.mxu0 %v2500
        %3784 = vmatprep.subr.bf16.mxu0 %v2497
        %3785 = vmatpush1.bf16.msra.mxu0 %v2496
        %3786 = vmatprep.subr.bf16.mxu0 %v2493
        %3787 = vmatpush1.bf16.msra.mxu0 %v2492
        %3788 = vmatprep.subr.bf16.mxu0 %v2553
        %3789 = vmatpush2.bf16.msra.mxu0 %v2552
        %3790 = vmatprep.subr.bf16.mxu0 %v2549
        %3791 = vmatpush2.bf16.msra.mxu0 %v2548
        %3792 = vmatprep.subr.bf16.mxu0 %v2545
        %3793 = vmatpush2.bf16.msra.mxu0 %v2544
        %3794 = vmatprep.subr.bf16.mxu0 %v2541
        %3795 = vmatpush2.bf16.msra.mxu0 %v2540
        %3796 = vmatprep.subr.bf16.mxu0 %v2537
        %3797 = vmatpush2.bf16.msra.mxu0 %v2536
        %3798 = vmatprep.subr.bf16.mxu0 %v2533
        %3799 = vmatpush2.bf16.msra.mxu0 %v2532
        %3800 = vmatprep.subr.bf16.mxu0 %v2529
        %3801 = vmatpush2.bf16.msra.mxu0 %v2528
        %3802 = vmatprep.subr.bf16.mxu0 %v2525
        %3803 = vmatpush2.bf16.msra.mxu0 %v2524
        %3804 = vmatprep.mubr.bf16.mxu0 %v1813
        %3805 = vmatmul.mubr.bf16.gmra.mxu0 %v1812
        %v3806 = vpop.f32.mrf.mxu0
        %v3807 = vadd.f32 0.0, %v3806
        %v3808 = vpop.f32.mrf.mxu0
        %v3809 = vadd.f32 0.0, %v3808
        %v3810 = vpop.f32.mrf.mxu0
        %v3811 = vpop.f32.mrf.mxu0
        %3812 = vdwg.mxu0
        %3813 = vmatprep.subr.bf16.mxu0 %v2585
        %3814 = vmatpush1.bf16.msra.mxu0 %v2584
        %3815 = vmatprep.subr.bf16.mxu0 %v2581
        %3816 = vmatpush1.bf16.msra.mxu0 %v2580
        %3817 = vmatprep.subr.bf16.mxu0 %v2577
        %3818 = vmatpush1.bf16.msra.mxu0 %v2576
        %3819 = vmatprep.subr.bf16.mxu0 %v2573
        %3820 = vmatpush1.bf16.msra.mxu0 %v2572
        %3821 = vmatprep.subr.bf16.mxu0 %v2569
        %3822 = vmatpush1.bf16.msra.mxu0 %v2568
        %3823 = vmatprep.subr.bf16.mxu0 %v2565
        %3824 = vmatpush1.bf16.msra.mxu0 %v2564
        %3825 = vmatprep.subr.bf16.mxu0 %v2561
        %3826 = vmatpush1.bf16.msra.mxu0 %v2560
        %3827 = vmatprep.subr.bf16.mxu0 %v2557
        %3828 = vmatpush1.bf16.msra.mxu0 %v2556
        %3829 = vmatprep.subr.bf16.mxu0 %v2617
        %3830 = vmatpush2.bf16.msra.mxu0 %v2616
        %3831 = vmatprep.subr.bf16.mxu0 %v2613
        %3832 = vmatpush2.bf16.msra.mxu0 %v2612
        %3833 = vmatprep.subr.bf16.mxu0 %v2609
        %3834 = vmatpush2.bf16.msra.mxu0 %v2608
        %3835 = vmatprep.subr.bf16.mxu0 %v2605
        %3836 = vmatpush2.bf16.msra.mxu0 %v2604
        %3837 = vmatprep.subr.bf16.mxu0 %v2601
        %3838 = vmatpush2.bf16.msra.mxu0 %v2600
        %3839 = vmatprep.subr.bf16.mxu0 %v2597
        %3840 = vmatpush2.bf16.msra.mxu0 %v2596
        %3841 = vmatprep.subr.bf16.mxu0 %v2593
        %3842 = vmatpush2.bf16.msra.mxu0 %v2592
        %3843 = vmatprep.subr.bf16.mxu0 %v2589
        %3844 = vmatpush2.bf16.msra.mxu0 %v2588
        %3845 = vmatprep.mubr.bf16.mxu0 %v1815
        %3846 = vmatmul.mubr.bf16.gmra.mxu0 %v1814
        %v3847 = vpop.f32.mrf.mxu0
        %v3848 = vadd.f32 %v3807, %v3847
        %v3849 = vpop.f32.mrf.mxu0
        %v3850 = vadd.f32 %v3809, %v3849
        %v3851 = vpop.f32.mrf.mxu0
        %v3852 = vpop.f32.mrf.mxu0
        %3853 = vdwg.mxu0
        %3854 = vmatprep.subr.bf16.mxu0 %v2649
        %3855 = vmatpush1.bf16.msra.mxu0 %v2648
        %3856 = vmatprep.subr.bf16.mxu0 %v2645
        %3857 = vmatpush1.bf16.msra.mxu0 %v2644
        %3858 = vmatprep.subr.bf16.mxu0 %v2641
        %3859 = vmatpush1.bf16.msra.mxu0 %v2640
        %3860 = vmatprep.subr.bf16.mxu0 %v2637
        %3861 = vmatpush1.bf16.msra.mxu0 %v2636
        %3862 = vmatprep.subr.bf16.mxu0 %v2633
        %3863 = vmatpush1.bf16.msra.mxu0 %v2632
        %3864 = vmatprep.subr.bf16.mxu0 %v2629
        %3865 = vmatpush1.bf16.msra.mxu0 %v2628
        %3866 = vmatprep.subr.bf16.mxu0 %v2625
        %3867 = vmatpush1.bf16.msra.mxu0 %v2624
        %3868 = vmatprep.subr.bf16.mxu0 %v2621
        %3869 = vmatpush1.bf16.msra.mxu0 %v2620
        %3870 = vmatprep.subr.bf16.mxu0 %v2681
        %3871 = vmatpush2.bf16.msra.mxu0 %v2680
        %3872 = vmatprep.subr.bf16.mxu0 %v2677
        %3873 = vmatpush2.bf16.msra.mxu0 %v2676
        %3874 = vmatprep.subr.bf16.mxu0 %v2673
        %3875 = vmatpush2.bf16.msra.mxu0 %v2672
        %3876 = vmatprep.subr.bf16.mxu0 %v2669
        %3877 = vmatpush2.bf16.msra.mxu0 %v2668
        %3878 = vmatprep.subr.bf16.mxu0 %v2665
        %3879 = vmatpush2.bf16.msra.mxu0 %v2664
        %3880 = vmatprep.subr.bf16.mxu0 %v2661
        %3881 = vmatpush2.bf16.msra.mxu0 %v2660
        %3882 = vmatprep.subr.bf16.mxu0 %v2657
        %3883 = vmatpush2.bf16.msra.mxu0 %v2656
        %3884 = vmatprep.subr.bf16.mxu0 %v2653
        %3885 = vmatpush2.bf16.msra.mxu0 %v2652
        %3886 = vmatprep.mubr.bf16.mxu0 %v1817
        %3887 = vmatmul.mubr.bf16.gmra.mxu0 %v1816
        %v3888 = vpop.f32.mrf.mxu0
        %v3889 = vadd.f32 %v3848, %v3888
        %v3890 = vpop.f32.mrf.mxu0
        %v3891 = vadd.f32 %v3850, %v3890
        %v3892 = vpop.f32.mrf.mxu0
        %v3893 = vpop.f32.mrf.mxu0
        %3894 = vdwg.mxu0
        %3895 = vmatprep.subr.bf16.mxu0 %v2713
        %3896 = vmatpush1.bf16.msra.mxu0 %v2712
        %3897 = vmatprep.subr.bf16.mxu0 %v2709
        %3898 = vmatpush1.bf16.msra.mxu0 %v2708
        %3899 = vmatprep.subr.bf16.mxu0 %v2705
        %3900 = vmatpush1.bf16.msra.mxu0 %v2704
        %3901 = vmatprep.subr.bf16.mxu0 %v2701
        %3902 = vmatpush1.bf16.msra.mxu0 %v2700
        %3903 = vmatprep.subr.bf16.mxu0 %v2697
        %3904 = vmatpush1.bf16.msra.mxu0 %v2696
        %3905 = vmatprep.subr.bf16.mxu0 %v2693
        %3906 = vmatpush1.bf16.msra.mxu0 %v2692
        %3907 = vmatprep.subr.bf16.mxu0 %v2689
        %3908 = vmatpush1.bf16.msra.mxu0 %v2688
        %3909 = vmatprep.subr.bf16.mxu0 %v2685
        %3910 = vmatpush1.bf16.msra.mxu0 %v2684
        %3911 = vmatprep.subr.bf16.mxu0 %v2745
        %3912 = vmatpush2.bf16.msra.mxu0 %v2744
        %3913 = vmatprep.subr.bf16.mxu0 %v2741
        %3914 = vmatpush2.bf16.msra.mxu0 %v2740
        %3915 = vmatprep.subr.bf16.mxu0 %v2737
        %3916 = vmatpush2.bf16.msra.mxu0 %v2736
        %3917 = vmatprep.subr.bf16.mxu0 %v2733
        %3918 = vmatpush2.bf16.msra.mxu0 %v2732
        %3919 = vmatprep.subr.bf16.mxu0 %v2729
        %3920 = vmatpush2.bf16.msra.mxu0 %v2728
        %3921 = vmatprep.subr.bf16.mxu0 %v2725
        %3922 = vmatpush2.bf16.msra.mxu0 %v2724
        %3923 = vmatprep.subr.bf16.mxu0 %v2721
        %3924 = vmatpush2.bf16.msra.mxu0 %v2720
        %3925 = vmatprep.subr.bf16.mxu0 %v2717
        %3926 = vmatpush2.bf16.msra.mxu0 %v2716
        %3927 = vmatprep.mubr.bf16.mxu0 %v1819
        %3928 = vmatmul.mubr.bf16.gmra.mxu0 %v1818
        %v3929 = vpop.f32.mrf.mxu0
        %v3930 = vadd.f32 %v3889, %v3929
        %v3931 = vpop.f32.mrf.mxu0
        %v3932 = vadd.f32 %v3891, %v3931
        %v3933 = vpop.f32.mrf.mxu0
        %v3934 = vpop.f32.mrf.mxu0
        %3935 = vdwg.mxu0
        %3936 = vmatprep.subr.bf16.mxu0 %v2777
        %3937 = vmatpush1.bf16.msra.mxu0 %v2776
        %3938 = vmatprep.subr.bf16.mxu0 %v2773
        %3939 = vmatpush1.bf16.msra.mxu0 %v2772
        %3940 = vmatprep.subr.bf16.mxu0 %v2769
        %3941 = vmatpush1.bf16.msra.mxu0 %v2768
        %3942 = vmatprep.subr.bf16.mxu0 %v2765
        %3943 = vmatpush1.bf16.msra.mxu0 %v2764
        %3944 = vmatprep.subr.bf16.mxu0 %v2761
        %3945 = vmatpush1.bf16.msra.mxu0 %v2760
        %3946 = vmatprep.subr.bf16.mxu0 %v2757
        %3947 = vmatpush1.bf16.msra.mxu0 %v2756
        %3948 = vmatprep.subr.bf16.mxu0 %v2753
        %3949 = vmatpush1.bf16.msra.mxu0 %v2752
        %3950 = vmatprep.subr.bf16.mxu0 %v2749
        %3951 = vmatpush1.bf16.msra.mxu0 %v2748
        %3952 = vmatprep.subr.bf16.mxu0 %v2809
        %3953 = vmatpush2.bf16.msra.mxu0 %v2808
        %3954 = vmatprep.subr.bf16.mxu0 %v2805
        %3955 = vmatpush2.bf16.msra.mxu0 %v2804
        %3956 = vmatprep.subr.bf16.mxu0 %v2801
        %3957 = vmatpush2.bf16.msra.mxu0 %v2800
        %3958 = vmatprep.subr.bf16.mxu0 %v2797
        %3959 = vmatpush2.bf16.msra.mxu0 %v2796
        %3960 = vmatprep.subr.bf16.mxu0 %v2793
        %3961 = vmatpush2.bf16.msra.mxu0 %v2792
        %3962 = vmatprep.subr.bf16.mxu0 %v2789
        %3963 = vmatpush2.bf16.msra.mxu0 %v2788
        %3964 = vmatprep.subr.bf16.mxu0 %v2785
        %3965 = vmatpush2.bf16.msra.mxu0 %v2784
        %3966 = vmatprep.subr.bf16.mxu0 %v2781
        %3967 = vmatpush2.bf16.msra.mxu0 %v2780
        %3968 = vmatprep.mubr.bf16.mxu0 %v1821
        %3969 = vmatmul.mubr.bf16.gmra.mxu0 %v1820
        %v3970 = vpop.f32.mrf.mxu0
        %v3971 = vadd.f32 %v3930, %v3970
        %v3972 = vpop.f32.mrf.mxu0
        %v3973 = vadd.f32 %v3932, %v3972
        %v3974 = vpop.f32.mrf.mxu0
        %v3975 = vpop.f32.mrf.mxu0
        %3976 = vdwg.mxu0
        %3977 = vmatprep.subr.bf16.mxu0 %v2841
        %3978 = vmatpush1.bf16.msra.mxu0 %v2840
        %3979 = vmatprep.subr.bf16.mxu0 %v2837
        %3980 = vmatpush1.bf16.msra.mxu0 %v2836
        %3981 = vmatprep.subr.bf16.mxu0 %v2833
        %3982 = vmatpush1.bf16.msra.mxu0 %v2832
        %3983 = vmatprep.subr.bf16.mxu0 %v2829
        %3984 = vmatpush1.bf16.msra.mxu0 %v2828
        %3985 = vmatprep.subr.bf16.mxu0 %v2825
        %3986 = vmatpush1.bf16.msra.mxu0 %v2824
        %3987 = vmatprep.subr.bf16.mxu0 %v2821
        %3988 = vmatpush1.bf16.msra.mxu0 %v2820
        %3989 = vmatprep.subr.bf16.mxu0 %v2817
        %3990 = vmatpush1.bf16.msra.mxu0 %v2816
        %3991 = vmatprep.subr.bf16.mxu0 %v2813
        %3992 = vmatpush1.bf16.msra.mxu0 %v2812
        %3993 = vmatprep.subr.bf16.mxu0 %v2873
        %3994 = vmatpush2.bf16.msra.mxu0 %v2872
        %3995 = vmatprep.subr.bf16.mxu0 %v2869
        %3996 = vmatpush2.bf16.msra.mxu0 %v2868
        %3997 = vmatprep.subr.bf16.mxu0 %v2865
        %3998 = vmatpush2.bf16.msra.mxu0 %v2864
        %3999 = vmatprep.subr.bf16.mxu0 %v2861
        %4000 = vmatpush2.bf16.msra.mxu0 %v2860
        %4001 = vmatprep.subr.bf16.mxu0 %v2857
        %4002 = vmatpush2.bf16.msra.mxu0 %v2856
        %4003 = vmatprep.subr.bf16.mxu0 %v2853
        %4004 = vmatpush2.bf16.msra.mxu0 %v2852
        %4005 = vmatprep.subr.bf16.mxu0 %v2849
        %4006 = vmatpush2.bf16.msra.mxu0 %v2848
        %4007 = vmatprep.subr.bf16.mxu0 %v2845
        %4008 = vmatpush2.bf16.msra.mxu0 %v2844
        %4009 = vmatprep.mubr.bf16.mxu0 %v1823
        %4010 = vmatmul.mubr.bf16.gmra.mxu0 %v1822
        %v4011 = vpop.f32.mrf.mxu0
        %v4012 = vadd.f32 %v3971, %v4011
        %v4013 = vpop.f32.mrf.mxu0
        %v4014 = vadd.f32 %v3973, %v4013
        %v4015 = vpop.f32.mrf.mxu0
        %v4016 = vpop.f32.mrf.mxu0
        %4017 = vdwg.mxu0
        %4018 = vmatprep.subr.bf16.mxu0 %v2905
        %4019 = vmatpush1.bf16.msra.mxu0 %v2904
        %4020 = vmatprep.subr.bf16.mxu0 %v2901
        %4021 = vmatpush1.bf16.msra.mxu0 %v2900
        %4022 = vmatprep.subr.bf16.mxu0 %v2897
        %4023 = vmatpush1.bf16.msra.mxu0 %v2896
        %4024 = vmatprep.subr.bf16.mxu0 %v2893
        %4025 = vmatpush1.bf16.msra.mxu0 %v2892
        %4026 = vmatprep.subr.bf16.mxu0 %v2889
        %4027 = vmatpush1.bf16.msra.mxu0 %v2888
        %4028 = vmatprep.subr.bf16.mxu0 %v2885
        %4029 = vmatpush1.bf16.msra.mxu0 %v2884
        %4030 = vmatprep.subr.bf16.mxu0 %v2881
        %4031 = vmatpush1.bf16.msra.mxu0 %v2880
        %4032 = vmatprep.subr.bf16.mxu0 %v2877
        %4033 = vmatpush1.bf16.msra.mxu0 %v2876
        %4034 = vmatprep.subr.bf16.mxu0 %v2937
        %4035 = vmatpush2.bf16.msra.mxu0 %v2936
        %4036 = vmatprep.subr.bf16.mxu0 %v2933
        %4037 = vmatpush2.bf16.msra.mxu0 %v2932
        %4038 = vmatprep.subr.bf16.mxu0 %v2929
        %4039 = vmatpush2.bf16.msra.mxu0 %v2928
        %4040 = vmatprep.subr.bf16.mxu0 %v2925
        %4041 = vmatpush2.bf16.msra.mxu0 %v2924
        %4042 = vmatprep.subr.bf16.mxu0 %v2921
        %4043 = vmatpush2.bf16.msra.mxu0 %v2920
        %4044 = vmatprep.subr.bf16.mxu0 %v2917
        %4045 = vmatpush2.bf16.msra.mxu0 %v2916
        %4046 = vmatprep.subr.bf16.mxu0 %v2913
        %4047 = vmatpush2.bf16.msra.mxu0 %v2912
        %4048 = vmatprep.subr.bf16.mxu0 %v2909
        %4049 = vmatpush2.bf16.msra.mxu0 %v2908
        %4050 = vmatprep.mubr.bf16.mxu0 %v1825
        %4051 = vmatmul.mubr.bf16.gmra.mxu0 %v1824
        %v4052 = vpop.f32.mrf.mxu0
        %v4053 = vadd.f32 %v4012, %v4052
        %v4054 = vpop.f32.mrf.mxu0
        %v4055 = vadd.f32 %v4014, %v4054
        %v4056 = vpop.f32.mrf.mxu0
        %v4057 = vpop.f32.mrf.mxu0
        %4058 = vdwg.mxu0
        %4059 = vmatprep.subr.bf16.mxu0 %v2969
        %4060 = vmatpush1.bf16.msra.mxu0 %v2968
        %4061 = vmatprep.subr.bf16.mxu0 %v2965
        %4062 = vmatpush1.bf16.msra.mxu0 %v2964
        %4063 = vmatprep.subr.bf16.mxu0 %v2961
        %4064 = vmatpush1.bf16.msra.mxu0 %v2960
        %4065 = vmatprep.subr.bf16.mxu0 %v2957
        %4066 = vmatpush1.bf16.msra.mxu0 %v2956
        %4067 = vmatprep.subr.bf16.mxu0 %v2953
        %4068 = vmatpush1.bf16.msra.mxu0 %v2952
        %4069 = vmatprep.subr.bf16.mxu0 %v2949
        %4070 = vmatpush1.bf16.msra.mxu0 %v2948
        %4071 = vmatprep.subr.bf16.mxu0 %v2945
        %4072 = vmatpush1.bf16.msra.mxu0 %v2944
        %4073 = vmatprep.subr.bf16.mxu0 %v2941
        %4074 = vmatpush1.bf16.msra.mxu0 %v2940
        %4075 = vmatprep.subr.bf16.mxu0 %v3001
        %4076 = vmatpush2.bf16.msra.mxu0 %v3000
        %4077 = vmatprep.subr.bf16.mxu0 %v2997
        %4078 = vmatpush2.bf16.msra.mxu0 %v2996
        %4079 = vmatprep.subr.bf16.mxu0 %v2993
        %4080 = vmatpush2.bf16.msra.mxu0 %v2992
        %4081 = vmatprep.subr.bf16.mxu0 %v2989
        %4082 = vmatpush2.bf16.msra.mxu0 %v2988
        %4083 = vmatprep.subr.bf16.mxu0 %v2985
        %4084 = vmatpush2.bf16.msra.mxu0 %v2984
        %4085 = vmatprep.subr.bf16.mxu0 %v2981
        %4086 = vmatpush2.bf16.msra.mxu0 %v2980
        %4087 = vmatprep.subr.bf16.mxu0 %v2977
        %4088 = vmatpush2.bf16.msra.mxu0 %v2976
        %4089 = vmatprep.subr.bf16.mxu0 %v2973
        %4090 = vmatpush2.bf16.msra.mxu0 %v2972
        %4091 = vmatprep.mubr.bf16.mxu0 %v1827
        %4092 = vmatmul.mubr.bf16.gmra.mxu0 %v1826
        %v4093 = vpop.f32.mrf.mxu0
        %v4094 = vadd.f32 %v4053, %v4093
        %v4095 = vpop.f32.mrf.mxu0
        %v4096 = vadd.f32 %v4055, %v4095
        %v4097 = vpop.f32.mrf.mxu0
        %v4098 = vpop.f32.mrf.mxu0
        %4099 = vdwg.mxu0
        %4100 = vmatprep.subr.bf16.mxu0 %v3033
        %4101 = vmatpush1.bf16.msra.mxu0 %v3032
        %4102 = vmatprep.subr.bf16.mxu0 %v3029
        %4103 = vmatpush1.bf16.msra.mxu0 %v3028
        %4104 = vmatprep.subr.bf16.mxu0 %v3025
        %4105 = vmatpush1.bf16.msra.mxu0 %v3024
        %4106 = vmatprep.subr.bf16.mxu0 %v3021
        %4107 = vmatpush1.bf16.msra.mxu0 %v3020
        %4108 = vmatprep.subr.bf16.mxu0 %v3017
        %4109 = vmatpush1.bf16.msra.mxu0 %v3016
        %4110 = vmatprep.subr.bf16.mxu0 %v3013
        %4111 = vmatpush1.bf16.msra.mxu0 %v3012
        %4112 = vmatprep.subr.bf16.mxu0 %v3009
        %4113 = vmatpush1.bf16.msra.mxu0 %v3008
        %4114 = vmatprep.subr.bf16.mxu0 %v3005
        %4115 = vmatpush1.bf16.msra.mxu0 %v3004
        %4116 = vmatprep.subr.bf16.mxu0 %v3065
        %4117 = vmatpush2.bf16.msra.mxu0 %v3064
        %4118 = vmatprep.subr.bf16.mxu0 %v3061
        %4119 = vmatpush2.bf16.msra.mxu0 %v3060
        %4120 = vmatprep.subr.bf16.mxu0 %v3057
        %4121 = vmatpush2.bf16.msra.mxu0 %v3056
        %4122 = vmatprep.subr.bf16.mxu0 %v3053
        %4123 = vmatpush2.bf16.msra.mxu0 %v3052
        %4124 = vmatprep.subr.bf16.mxu0 %v3049
        %4125 = vmatpush2.bf16.msra.mxu0 %v3048
        %4126 = vmatprep.subr.bf16.mxu0 %v3045
        %4127 = vmatpush2.bf16.msra.mxu0 %v3044
        %4128 = vmatprep.subr.bf16.mxu0 %v3041
        %4129 = vmatpush2.bf16.msra.mxu0 %v3040
        %4130 = vmatprep.subr.bf16.mxu0 %v3037
        %4131 = vmatpush2.bf16.msra.mxu0 %v3036
        %4132 = vmatprep.mubr.bf16.mxu0 %v1829
        %4133 = vmatmul.mubr.bf16.gmra.mxu0 %v1828
        %v4134 = vpop.f32.mrf.mxu0
        %v4135 = vadd.f32 %v4094, %v4134
        %v4136 = vpop.f32.mrf.mxu0
        %v4137 = vadd.f32 %v4096, %v4136
        %v4138 = vpop.f32.mrf.mxu0
        %v4139 = vpop.f32.mrf.mxu0
        %4140 = vdwg.mxu0
        %4141 = vmatprep.subr.bf16.mxu0 %v3097
        %4142 = vmatpush1.bf16.msra.mxu0 %v3096
        %4143 = vmatprep.subr.bf16.mxu0 %v3093
        %4144 = vmatpush1.bf16.msra.mxu0 %v3092
        %4145 = vmatprep.subr.bf16.mxu0 %v3089
        %4146 = vmatpush1.bf16.msra.mxu0 %v3088
        %4147 = vmatprep.subr.bf16.mxu0 %v3085
        %4148 = vmatpush1.bf16.msra.mxu0 %v3084
        %4149 = vmatprep.subr.bf16.mxu0 %v3081
        %4150 = vmatpush1.bf16.msra.mxu0 %v3080
        %4151 = vmatprep.subr.bf16.mxu0 %v3077
        %4152 = vmatpush1.bf16.msra.mxu0 %v3076
        %4153 = vmatprep.subr.bf16.mxu0 %v3073
        %4154 = vmatpush1.bf16.msra.mxu0 %v3072
        %4155 = vmatprep.subr.bf16.mxu0 %v3069
        %4156 = vmatpush1.bf16.msra.mxu0 %v3068
        %4157 = vmatprep.subr.bf16.mxu0 %v3129
        %4158 = vmatpush2.bf16.msra.mxu0 %v3128
        %4159 = vmatprep.subr.bf16.mxu0 %v3125
        %4160 = vmatpush2.bf16.msra.mxu0 %v3124
        %4161 = vmatprep.subr.bf16.mxu0 %v3121
        %4162 = vmatpush2.bf16.msra.mxu0 %v3120
        %4163 = vmatprep.subr.bf16.mxu0 %v3117
        %4164 = vmatpush2.bf16.msra.mxu0 %v3116
        %4165 = vmatprep.subr.bf16.mxu0 %v3113
        %4166 = vmatpush2.bf16.msra.mxu0 %v3112
        %4167 = vmatprep.subr.bf16.mxu0 %v3109
        %4168 = vmatpush2.bf16.msra.mxu0 %v3108
        %4169 = vmatprep.subr.bf16.mxu0 %v3105
        %4170 = vmatpush2.bf16.msra.mxu0 %v3104
        %4171 = vmatprep.subr.bf16.mxu0 %v3101
        %4172 = vmatpush2.bf16.msra.mxu0 %v3100
        %4173 = vmatprep.mubr.bf16.mxu0 %v1831
        %4174 = vmatmul.mubr.bf16.gmra.mxu0 %v1830
        %v4175 = vpop.f32.mrf.mxu0
        %v4176 = vadd.f32 %v4135, %v4175
        %v4177 = vpop.f32.mrf.mxu0
        %v4178 = vadd.f32 %v4137, %v4177
        %v4179 = vpop.f32.mrf.mxu0
        %v4180 = vpop.f32.mrf.mxu0
        %4181 = vdwg.mxu0
        %4182 = vmatprep.subr.bf16.mxu0 %v3161
        %4183 = vmatpush1.bf16.msra.mxu0 %v3160
        %4184 = vmatprep.subr.bf16.mxu0 %v3157
        %4185 = vmatpush1.bf16.msra.mxu0 %v3156
        %4186 = vmatprep.subr.bf16.mxu0 %v3153
        %4187 = vmatpush1.bf16.msra.mxu0 %v3152
        %4188 = vmatprep.subr.bf16.mxu0 %v3149
        %4189 = vmatpush1.bf16.msra.mxu0 %v3148
        %4190 = vmatprep.subr.bf16.mxu0 %v3145
        %4191 = vmatpush1.bf16.msra.mxu0 %v3144
        %4192 = vmatprep.subr.bf16.mxu0 %v3141
        %4193 = vmatpush1.bf16.msra.mxu0 %v3140
        %4194 = vmatprep.subr.bf16.mxu0 %v3137
        %4195 = vmatpush1.bf16.msra.mxu0 %v3136
        %4196 = vmatprep.subr.bf16.mxu0 %v3133
        %4197 = vmatpush1.bf16.msra.mxu0 %v3132
        %4198 = vmatprep.subr.bf16.mxu0 %v3193
        %4199 = vmatpush2.bf16.msra.mxu0 %v3192
        %4200 = vmatprep.subr.bf16.mxu0 %v3189
        %4201 = vmatpush2.bf16.msra.mxu0 %v3188
        %4202 = vmatprep.subr.bf16.mxu0 %v3185
        %4203 = vmatpush2.bf16.msra.mxu0 %v3184
        %4204 = vmatprep.subr.bf16.mxu0 %v3181
        %4205 = vmatpush2.bf16.msra.mxu0 %v3180
        %4206 = vmatprep.subr.bf16.mxu0 %v3177
        %4207 = vmatpush2.bf16.msra.mxu0 %v3176
        %4208 = vmatprep.subr.bf16.mxu0 %v3173
        %4209 = vmatpush2.bf16.msra.mxu0 %v3172
        %4210 = vmatprep.subr.bf16.mxu0 %v3169
        %4211 = vmatpush2.bf16.msra.mxu0 %v3168
        %4212 = vmatprep.subr.bf16.mxu0 %v3165
        %4213 = vmatpush2.bf16.msra.mxu0 %v3164
        %4214 = vmatprep.mubr.bf16.mxu0 %v1833
        %4215 = vmatmul.mubr.bf16.gmra.mxu0 %v1832
        %v4216 = vpop.f32.mrf.mxu0
        %v4217 = vadd.f32 %v4176, %v4216
        %v4218 = vpop.f32.mrf.mxu0
        %v4219 = vadd.f32 %v4178, %v4218
        %v4220 = vpop.f32.mrf.mxu0
        %v4221 = vpop.f32.mrf.mxu0
        %4222 = vdwg.mxu0
        %4223 = vmatprep.subr.bf16.mxu0 %v3225
        %4224 = vmatpush1.bf16.msra.mxu0 %v3224
        %4225 = vmatprep.subr.bf16.mxu0 %v3221
        %4226 = vmatpush1.bf16.msra.mxu0 %v3220
        %4227 = vmatprep.subr.bf16.mxu0 %v3217
        %4228 = vmatpush1.bf16.msra.mxu0 %v3216
        %4229 = vmatprep.subr.bf16.mxu0 %v3213
        %4230 = vmatpush1.bf16.msra.mxu0 %v3212
        %4231 = vmatprep.subr.bf16.mxu0 %v3209
        %4232 = vmatpush1.bf16.msra.mxu0 %v3208
        %4233 = vmatprep.subr.bf16.mxu0 %v3205
        %4234 = vmatpush1.bf16.msra.mxu0 %v3204
        %4235 = vmatprep.subr.bf16.mxu0 %v3201
        %4236 = vmatpush1.bf16.msra.mxu0 %v3200
        %4237 = vmatprep.subr.bf16.mxu0 %v3197
        %4238 = vmatpush1.bf16.msra.mxu0 %v3196
        %4239 = vmatprep.subr.bf16.mxu0 %v3257
        %4240 = vmatpush2.bf16.msra.mxu0 %v3256
        %4241 = vmatprep.subr.bf16.mxu0 %v3253
        %4242 = vmatpush2.bf16.msra.mxu0 %v3252
        %4243 = vmatprep.subr.bf16.mxu0 %v3249
        %4244 = vmatpush2.bf16.msra.mxu0 %v3248
        %4245 = vmatprep.subr.bf16.mxu0 %v3245
        %4246 = vmatpush2.bf16.msra.mxu0 %v3244
        %4247 = vmatprep.subr.bf16.mxu0 %v3241
        %4248 = vmatpush2.bf16.msra.mxu0 %v3240
        %4249 = vmatprep.subr.bf16.mxu0 %v3237
        %4250 = vmatpush2.bf16.msra.mxu0 %v3236
        %4251 = vmatprep.subr.bf16.mxu0 %v3233
        %4252 = vmatpush2.bf16.msra.mxu0 %v3232
        %4253 = vmatprep.subr.bf16.mxu0 %v3229
        %4254 = vmatpush2.bf16.msra.mxu0 %v3228
        %4255 = vmatprep.mubr.bf16.mxu0 %v1835
        %4256 = vmatmul.mubr.bf16.gmra.mxu0 %v1834
        %v4257 = vpop.f32.mrf.mxu0
        %v4258 = vadd.f32 %v4217, %v4257
        %v4259 = vpop.f32.mrf.mxu0
        %v4260 = vadd.f32 %v4219, %v4259
        %v4261 = vpop.f32.mrf.mxu0
        %v4262 = vpop.f32.mrf.mxu0
        %4263 = vdwg.mxu0
        %4264 = vmatprep.subr.bf16.mxu0 %v3289
        %4265 = vmatpush1.bf16.msra.mxu0 %v3288
        %4266 = vmatprep.subr.bf16.mxu0 %v3285
        %4267 = vmatpush1.bf16.msra.mxu0 %v3284
        %4268 = vmatprep.subr.bf16.mxu0 %v3281
        %4269 = vmatpush1.bf16.msra.mxu0 %v3280
        %4270 = vmatprep.subr.bf16.mxu0 %v3277
        %4271 = vmatpush1.bf16.msra.mxu0 %v3276
        %4272 = vmatprep.subr.bf16.mxu0 %v3273
        %4273 = vmatpush1.bf16.msra.mxu0 %v3272
        %4274 = vmatprep.subr.bf16.mxu0 %v3269
        %4275 = vmatpush1.bf16.msra.mxu0 %v3268
        %4276 = vmatprep.subr.bf16.mxu0 %v3265
        %4277 = vmatpush1.bf16.msra.mxu0 %v3264
        %4278 = vmatprep.subr.bf16.mxu0 %v3261
        %4279 = vmatpush1.bf16.msra.mxu0 %v3260
        %4280 = vmatprep.subr.bf16.mxu0 %v3321
        %4281 = vmatpush2.bf16.msra.mxu0 %v3320
        %4282 = vmatprep.subr.bf16.mxu0 %v3317
        %4283 = vmatpush2.bf16.msra.mxu0 %v3316
        %4284 = vmatprep.subr.bf16.mxu0 %v3313
        %4285 = vmatpush2.bf16.msra.mxu0 %v3312
        %4286 = vmatprep.subr.bf16.mxu0 %v3309
        %4287 = vmatpush2.bf16.msra.mxu0 %v3308
        %4288 = vmatprep.subr.bf16.mxu0 %v3305
        %4289 = vmatpush2.bf16.msra.mxu0 %v3304
        %4290 = vmatprep.subr.bf16.mxu0 %v3301
        %4291 = vmatpush2.bf16.msra.mxu0 %v3300
        %4292 = vmatprep.subr.bf16.mxu0 %v3297
        %4293 = vmatpush2.bf16.msra.mxu0 %v3296
        %4294 = vmatprep.subr.bf16.mxu0 %v3293
        %4295 = vmatpush2.bf16.msra.mxu0 %v3292
        %4296 = vmatprep.mubr.bf16.mxu0 %v1837
        %4297 = vmatmul.mubr.bf16.gmra.mxu0 %v1836
        %v4298 = vpop.f32.mrf.mxu0
        %v4299 = vadd.f32 %v4258, %v4298
        %v4300 = vpop.f32.mrf.mxu0
        %v4301 = vadd.f32 %v4260, %v4300
        %v4302 = vpop.f32.mrf.mxu0
        %v4303 = vpop.f32.mrf.mxu0
        %4304 = vdwg.mxu0
        %4305 = vmatprep.subr.bf16.mxu0 %v3353
        %4306 = vmatpush1.bf16.msra.mxu0 %v3352
        %4307 = vmatprep.subr.bf16.mxu0 %v3349
        %4308 = vmatpush1.bf16.msra.mxu0 %v3348
        %4309 = vmatprep.subr.bf16.mxu0 %v3345
        %4310 = vmatpush1.bf16.msra.mxu0 %v3344
        %4311 = vmatprep.subr.bf16.mxu0 %v3341
        %4312 = vmatpush1.bf16.msra.mxu0 %v3340
        %4313 = vmatprep.subr.bf16.mxu0 %v3337
        %4314 = vmatpush1.bf16.msra.mxu0 %v3336
        %4315 = vmatprep.subr.bf16.mxu0 %v3333
        %4316 = vmatpush1.bf16.msra.mxu0 %v3332
        %4317 = vmatprep.subr.bf16.mxu0 %v3329
        %4318 = vmatpush1.bf16.msra.mxu0 %v3328
        %4319 = vmatprep.subr.bf16.mxu0 %v3325
        %4320 = vmatpush1.bf16.msra.mxu0 %v3324
        %4321 = vmatprep.subr.bf16.mxu0 %v3385
        %4322 = vmatpush2.bf16.msra.mxu0 %v3384
        %4323 = vmatprep.subr.bf16.mxu0 %v3381
        %4324 = vmatpush2.bf16.msra.mxu0 %v3380
        %4325 = vmatprep.subr.bf16.mxu0 %v3377
        %4326 = vmatpush2.bf16.msra.mxu0 %v3376
        %4327 = vmatprep.subr.bf16.mxu0 %v3373
        %4328 = vmatpush2.bf16.msra.mxu0 %v3372
        %4329 = vmatprep.subr.bf16.mxu0 %v3369
        %4330 = vmatpush2.bf16.msra.mxu0 %v3368
        %4331 = vmatprep.subr.bf16.mxu0 %v3365
        %4332 = vmatpush2.bf16.msra.mxu0 %v3364
        %4333 = vmatprep.subr.bf16.mxu0 %v3361
        %4334 = vmatpush2.bf16.msra.mxu0 %v3360
        %4335 = vmatprep.subr.bf16.mxu0 %v3357
        %4336 = vmatpush2.bf16.msra.mxu0 %v3356
        %4337 = vmatprep.mubr.bf16.mxu0 %v1839
        %4338 = vmatmul.mubr.bf16.gmra.mxu0 %v1838
        %v4339 = vpop.f32.mrf.mxu0
        %v4340 = vadd.f32 %v4299, %v4339
        %v4341 = vpop.f32.mrf.mxu0
        %v4342 = vadd.f32 %v4301, %v4341
        %v4343 = vpop.f32.mrf.mxu0
        %v4344 = vpop.f32.mrf.mxu0
        %4345 = vdwg.mxu0
        %4346 = vmatprep.subr.bf16.mxu0 %v3417
        %4347 = vmatpush1.bf16.msra.mxu0 %v3416
        %4348 = vmatprep.subr.bf16.mxu0 %v3413
        %4349 = vmatpush1.bf16.msra.mxu0 %v3412
        %4350 = vmatprep.subr.bf16.mxu0 %v3409
        %4351 = vmatpush1.bf16.msra.mxu0 %v3408
        %4352 = vmatprep.subr.bf16.mxu0 %v3405
        %4353 = vmatpush1.bf16.msra.mxu0 %v3404
        %4354 = vmatprep.subr.bf16.mxu0 %v3401
        %4355 = vmatpush1.bf16.msra.mxu0 %v3400
        %4356 = vmatprep.subr.bf16.mxu0 %v3397
        %4357 = vmatpush1.bf16.msra.mxu0 %v3396
        %4358 = vmatprep.subr.bf16.mxu0 %v3393
        %4359 = vmatpush1.bf16.msra.mxu0 %v3392
        %4360 = vmatprep.subr.bf16.mxu0 %v3389
        %4361 = vmatpush1.bf16.msra.mxu0 %v3388
        %4362 = vmatprep.subr.bf16.mxu0 %v3449
        %4363 = vmatpush2.bf16.msra.mxu0 %v3448
        %4364 = vmatprep.subr.bf16.mxu0 %v3445
        %4365 = vmatpush2.bf16.msra.mxu0 %v3444
        %4366 = vmatprep.subr.bf16.mxu0 %v3441
        %4367 = vmatpush2.bf16.msra.mxu0 %v3440
        %4368 = vmatprep.subr.bf16.mxu0 %v3437
        %4369 = vmatpush2.bf16.msra.mxu0 %v3436
        %4370 = vmatprep.subr.bf16.mxu0 %v3433
        %4371 = vmatpush2.bf16.msra.mxu0 %v3432
        %4372 = vmatprep.subr.bf16.mxu0 %v3429
        %4373 = vmatpush2.bf16.msra.mxu0 %v3428
        %4374 = vmatprep.subr.bf16.mxu0 %v3425
        %4375 = vmatpush2.bf16.msra.mxu0 %v3424
        %4376 = vmatprep.subr.bf16.mxu0 %v3421
        %4377 = vmatpush2.bf16.msra.mxu0 %v3420
        %4378 = vmatprep.mubr.bf16.mxu0 %v1841
        %4379 = vmatmul.mubr.bf16.gmra.mxu0 %v1840
        %v4380 = vpop.f32.mrf.mxu0
        %v4381 = vadd.f32 %v4340, %v4380
        %v4382 = vpop.f32.mrf.mxu0
        %v4383 = vadd.f32 %v4342, %v4382
        %v4384 = vpop.f32.mrf.mxu0
        %v4385 = vpop.f32.mrf.mxu0
        %4386 = vdwg.mxu0
        %4387 = vmatprep.subr.bf16.mxu0 %v3481
        %4388 = vmatpush1.bf16.msra.mxu0 %v3480
        %4389 = vmatprep.subr.bf16.mxu0 %v3477
        %4390 = vmatpush1.bf16.msra.mxu0 %v3476
        %4391 = vmatprep.subr.bf16.mxu0 %v3473
        %4392 = vmatpush1.bf16.msra.mxu0 %v3472
        %4393 = vmatprep.subr.bf16.mxu0 %v3469
        %4394 = vmatpush1.bf16.msra.mxu0 %v3468
        %4395 = vmatprep.subr.bf16.mxu0 %v3465
        %4396 = vmatpush1.bf16.msra.mxu0 %v3464
        %4397 = vmatprep.subr.bf16.mxu0 %v3461
        %4398 = vmatpush1.bf16.msra.mxu0 %v3460
        %4399 = vmatprep.subr.bf16.mxu0 %v3457
        %4400 = vmatpush1.bf16.msra.mxu0 %v3456
        %4401 = vmatprep.subr.bf16.mxu0 %v3453
        %4402 = vmatpush1.bf16.msra.mxu0 %v3452
        %4403 = vmatprep.subr.bf16.mxu0 %v3513
        %4404 = vmatpush2.bf16.msra.mxu0 %v3512
        %4405 = vmatprep.subr.bf16.mxu0 %v3509
        %4406 = vmatpush2.bf16.msra.mxu0 %v3508
        %4407 = vmatprep.subr.bf16.mxu0 %v3505
        %4408 = vmatpush2.bf16.msra.mxu0 %v3504
        %4409 = vmatprep.subr.bf16.mxu0 %v3501
        %4410 = vmatpush2.bf16.msra.mxu0 %v3500
        %4411 = vmatprep.subr.bf16.mxu0 %v3497
        %4412 = vmatpush2.bf16.msra.mxu0 %v3496
        %4413 = vmatprep.subr.bf16.mxu0 %v3493
        %4414 = vmatpush2.bf16.msra.mxu0 %v3492
        %4415 = vmatprep.subr.bf16.mxu0 %v3489
        %4416 = vmatpush2.bf16.msra.mxu0 %v3488
        %4417 = vmatprep.subr.bf16.mxu0 %v3485
        %4418 = vmatpush2.bf16.msra.mxu0 %v3484
        %4419 = vmatprep.mubr.bf16.mxu0 %v1843
        %4420 = vmatmul.mubr.bf16.gmra.mxu0 %v1842
        %v4421 = vpop.f32.mrf.mxu0
        %v4422 = vadd.f32 %v4381, %v4421
        %v4423 = vpop.f32.mrf.mxu0
        %v4424 = vadd.f32 %v4383, %v4423
        %v4425 = vpop.f32.mrf.mxu0
        %v4426 = vpop.f32.mrf.mxu0
        %4427 = vdwg.mxu0
        %4428 = vmatprep.subr.bf16.mxu0 %v3545
        %4429 = vmatpush1.bf16.msra.mxu0 %v3544
        %4430 = vmatprep.subr.bf16.mxu0 %v3541
        %4431 = vmatpush1.bf16.msra.mxu0 %v3540
        %4432 = vmatprep.subr.bf16.mxu0 %v3537
        %4433 = vmatpush1.bf16.msra.mxu0 %v3536
        %4434 = vmatprep.subr.bf16.mxu0 %v3533
        %4435 = vmatpush1.bf16.msra.mxu0 %v3532
        %4436 = vmatprep.subr.bf16.mxu0 %v3529
        %4437 = vmatpush1.bf16.msra.mxu0 %v3528
        %4438 = vmatprep.subr.bf16.mxu0 %v3525
        %4439 = vmatpush1.bf16.msra.mxu0 %v3524
        %4440 = vmatprep.subr.bf16.mxu0 %v3521
        %4441 = vmatpush1.bf16.msra.mxu0 %v3520
        %4442 = vmatprep.subr.bf16.mxu0 %v3517
        %4443 = vmatpush1.bf16.msra.mxu0 %v3516
        %4444 = vmatprep.subr.bf16.mxu0 %v3577
        %4445 = vmatpush2.bf16.msra.mxu0 %v3576
        %4446 = vmatprep.subr.bf16.mxu0 %v3573
        %4447 = vmatpush2.bf16.msra.mxu0 %v3572
        %4448 = vmatprep.subr.bf16.mxu0 %v3569
        %4449 = vmatpush2.bf16.msra.mxu0 %v3568
        %4450 = vmatprep.subr.bf16.mxu0 %v3565
        %4451 = vmatpush2.bf16.msra.mxu0 %v3564
        %4452 = vmatprep.subr.bf16.mxu0 %v3561
        %4453 = vmatpush2.bf16.msra.mxu0 %v3560
        %4454 = vmatprep.subr.bf16.mxu0 %v3557
        %4455 = vmatpush2.bf16.msra.mxu0 %v3556
        %4456 = vmatprep.subr.bf16.mxu0 %v3553
        %4457 = vmatpush2.bf16.msra.mxu0 %v3552
        %4458 = vmatprep.subr.bf16.mxu0 %v3549
        %4459 = vmatpush2.bf16.msra.mxu0 %v3548
        %4460 = vmatprep.mubr.bf16.mxu0 %v1845
        %4461 = vmatmul.mubr.bf16.gmra.mxu0 %v1844
        %v4462 = vpop.f32.mrf.mxu0
        %v4463 = vadd.f32 %v4422, %v4462
        %v4464 = vpop.f32.mrf.mxu0
        %v4465 = vadd.f32 %v4424, %v4464
        %v4466 = vpop.f32.mrf.mxu0
        %v4467 = vpop.f32.mrf.mxu0
        %4468 = vdwg.mxu0
        %4469 = vmatprep.subr.bf16.mxu0 %v3609
        %4470 = vmatpush1.bf16.msra.mxu0 %v3608
        %4471 = vmatprep.subr.bf16.mxu0 %v3605
        %4472 = vmatpush1.bf16.msra.mxu0 %v3604
        %4473 = vmatprep.subr.bf16.mxu0 %v3601
        %4474 = vmatpush1.bf16.msra.mxu0 %v3600
        %4475 = vmatprep.subr.bf16.mxu0 %v3597
        %4476 = vmatpush1.bf16.msra.mxu0 %v3596
        %4477 = vmatprep.subr.bf16.mxu0 %v3593
        %4478 = vmatpush1.bf16.msra.mxu0 %v3592
        %4479 = vmatprep.subr.bf16.mxu0 %v3589
        %4480 = vmatpush1.bf16.msra.mxu0 %v3588
        %4481 = vmatprep.subr.bf16.mxu0 %v3585
        %4482 = vmatpush1.bf16.msra.mxu0 %v3584
        %4483 = vmatprep.subr.bf16.mxu0 %v3581
        %4484 = vmatpush1.bf16.msra.mxu0 %v3580
        %4485 = vmatprep.subr.bf16.mxu0 %v3641
        %4486 = vmatpush2.bf16.msra.mxu0 %v3640
        %4487 = vmatprep.subr.bf16.mxu0 %v3637
        %4488 = vmatpush2.bf16.msra.mxu0 %v3636
        %4489 = vmatprep.subr.bf16.mxu0 %v3633
        %4490 = vmatpush2.bf16.msra.mxu0 %v3632
        %4491 = vmatprep.subr.bf16.mxu0 %v3629
        %4492 = vmatpush2.bf16.msra.mxu0 %v3628
        %4493 = vmatprep.subr.bf16.mxu0 %v3625
        %4494 = vmatpush2.bf16.msra.mxu0 %v3624
        %4495 = vmatprep.subr.bf16.mxu0 %v3621
        %4496 = vmatpush2.bf16.msra.mxu0 %v3620
        %4497 = vmatprep.subr.bf16.mxu0 %v3617
        %4498 = vmatpush2.bf16.msra.mxu0 %v3616
        %4499 = vmatprep.subr.bf16.mxu0 %v3613
        %4500 = vmatpush2.bf16.msra.mxu0 %v3612
        %4501 = vmatprep.mubr.bf16.mxu0 %v1847
        %4502 = vmatmul.mubr.bf16.gmra.mxu0 %v1846
        %v4503 = vpop.f32.mrf.mxu0
        %v4504 = vadd.f32 %v4463, %v4503
        %v4505 = vpop.f32.mrf.mxu0
        %v4506 = vadd.f32 %v4465, %v4505
        %v4507 = vpop.f32.mrf.mxu0
        %v4508 = vpop.f32.mrf.mxu0
        %4509 = vdwg.mxu0
        %4510 = vmatprep.subr.bf16.mxu0 %v3673
        %4511 = vmatpush1.bf16.msra.mxu0 %v3672
        %4512 = vmatprep.subr.bf16.mxu0 %v3669
        %4513 = vmatpush1.bf16.msra.mxu0 %v3668
        %4514 = vmatprep.subr.bf16.mxu0 %v3665
        %4515 = vmatpush1.bf16.msra.mxu0 %v3664
        %4516 = vmatprep.subr.bf16.mxu0 %v3661
        %4517 = vmatpush1.bf16.msra.mxu0 %v3660
        %4518 = vmatprep.subr.bf16.mxu0 %v3657
        %4519 = vmatpush1.bf16.msra.mxu0 %v3656
        %4520 = vmatprep.subr.bf16.mxu0 %v3653
        %4521 = vmatpush1.bf16.msra.mxu0 %v3652
        %4522 = vmatprep.subr.bf16.mxu0 %v3649
        %4523 = vmatpush1.bf16.msra.mxu0 %v3648
        %4524 = vmatprep.subr.bf16.mxu0 %v3645
        %4525 = vmatpush1.bf16.msra.mxu0 %v3644
        %4526 = vmatprep.subr.bf16.mxu0 %v3705
        %4527 = vmatpush2.bf16.msra.mxu0 %v3704
        %4528 = vmatprep.subr.bf16.mxu0 %v3701
        %4529 = vmatpush2.bf16.msra.mxu0 %v3700
        %4530 = vmatprep.subr.bf16.mxu0 %v3697
        %4531 = vmatpush2.bf16.msra.mxu0 %v3696
        %4532 = vmatprep.subr.bf16.mxu0 %v3693
        %4533 = vmatpush2.bf16.msra.mxu0 %v3692
        %4534 = vmatprep.subr.bf16.mxu0 %v3689
        %4535 = vmatpush2.bf16.msra.mxu0 %v3688
        %4536 = vmatprep.subr.bf16.mxu0 %v3685
        %4537 = vmatpush2.bf16.msra.mxu0 %v3684
        %4538 = vmatprep.subr.bf16.mxu0 %v3681
        %4539 = vmatpush2.bf16.msra.mxu0 %v3680
        %4540 = vmatprep.subr.bf16.mxu0 %v3677
        %4541 = vmatpush2.bf16.msra.mxu0 %v3676
        %4542 = vmatprep.mubr.bf16.mxu0 %v1849
        %4543 = vmatmul.mubr.bf16.gmra.mxu0 %v1848
        %v4544 = vpop.f32.mrf.mxu0
        %v4545 = vadd.f32 %v4504, %v4544
        %v4546 = vpop.f32.mrf.mxu0
        %v4547 = vadd.f32 %v4506, %v4546
        %v4548 = vpop.f32.mrf.mxu0
        %v4549 = vpop.f32.mrf.mxu0
        %4550 = vdwg.mxu0
        %4551 = vmatprep.subr.bf16.mxu0 %v3737
        %4552 = vmatpush1.bf16.msra.mxu0 %v3736
        %4553 = vmatprep.subr.bf16.mxu0 %v3733
        %4554 = vmatpush1.bf16.msra.mxu0 %v3732
        %4555 = vmatprep.subr.bf16.mxu0 %v3729
        %4556 = vmatpush1.bf16.msra.mxu0 %v3728
        %4557 = vmatprep.subr.bf16.mxu0 %v3725
        %4558 = vmatpush1.bf16.msra.mxu0 %v3724
        %4559 = vmatprep.subr.bf16.mxu0 %v3721
        %4560 = vmatpush1.bf16.msra.mxu0 %v3720
        %4561 = vmatprep.subr.bf16.mxu0 %v3717
        %4562 = vmatpush1.bf16.msra.mxu0 %v3716
        %4563 = vmatprep.subr.bf16.mxu0 %v3713
        %4564 = vmatpush1.bf16.msra.mxu0 %v3712
        %4565 = vmatprep.subr.bf16.mxu0 %v3709
        %4566 = vmatpush1.bf16.msra.mxu0 %v3708
        %4567 = vmatprep.subr.bf16.mxu0 %v3769
        %4568 = vmatpush2.bf16.msra.mxu0 %v3768
        %4569 = vmatprep.subr.bf16.mxu0 %v3765
        %4570 = vmatpush2.bf16.msra.mxu0 %v3764
        %4571 = vmatprep.subr.bf16.mxu0 %v3761
        %4572 = vmatpush2.bf16.msra.mxu0 %v3760
        %4573 = vmatprep.subr.bf16.mxu0 %v3757
        %4574 = vmatpush2.bf16.msra.mxu0 %v3756
        %4575 = vmatprep.subr.bf16.mxu0 %v3753
        %4576 = vmatpush2.bf16.msra.mxu0 %v3752
        %4577 = vmatprep.subr.bf16.mxu0 %v3749
        %4578 = vmatpush2.bf16.msra.mxu0 %v3748
        %4579 = vmatprep.subr.bf16.mxu0 %v3745
        %4580 = vmatpush2.bf16.msra.mxu0 %v3744
        %4581 = vmatprep.subr.bf16.mxu0 %v3741
        %4582 = vmatpush2.bf16.msra.mxu0 %v3740
        %4583 = vmatprep.mubr.bf16.mxu0 %v1851
        %4584 = vmatmul.mubr.bf16.gmra.mxu0 %v1850
        %v4585 = vpop.f32.mrf.mxu0
        %v4586 = vadd.f32 %v4545, %v4585
        %v4587 = vpop.f32.mrf.mxu0
        %v4588 = vadd.f32 %v4547, %v4587
        %v4589 = vpop.f32.mrf.mxu0
        %v4590 = vpop.f32.mrf.mxu0
        %4591 = vdwg.mxu0
        %4592 = vmatprep.subr.bf16.mxu0 %v2523
        %4593 = vmatpush1.bf16.msra.mxu0 %v2522
        %4594 = vmatprep.subr.bf16.mxu0 %v2519
        %4595 = vmatpush1.bf16.msra.mxu0 %v2518
        %4596 = vmatprep.subr.bf16.mxu0 %v2515
        %4597 = vmatpush1.bf16.msra.mxu0 %v2514
        %4598 = vmatprep.subr.bf16.mxu0 %v2511
        %4599 = vmatpush1.bf16.msra.mxu0 %v2510
        %4600 = vmatprep.subr.bf16.mxu0 %v2507
        %4601 = vmatpush1.bf16.msra.mxu0 %v2506
        %4602 = vmatprep.subr.bf16.mxu0 %v2503
        %4603 = vmatpush1.bf16.msra.mxu0 %v2502
        %4604 = vmatprep.subr.bf16.mxu0 %v2499
        %4605 = vmatpush1.bf16.msra.mxu0 %v2498
        %4606 = vmatprep.subr.bf16.mxu0 %v2495
        %4607 = vmatpush1.bf16.msra.mxu0 %v2494
        %4608 = vmatprep.subr.bf16.mxu0 %v2555
        %4609 = vmatpush2.bf16.msra.mxu0 %v2554
        %4610 = vmatprep.subr.bf16.mxu0 %v2551
        %4611 = vmatpush2.bf16.msra.mxu0 %v2550
        %4612 = vmatprep.subr.bf16.mxu0 %v2547
        %4613 = vmatpush2.bf16.msra.mxu0 %v2546
        %4614 = vmatprep.subr.bf16.mxu0 %v2543
        %4615 = vmatpush2.bf16.msra.mxu0 %v2542
        %4616 = vmatprep.subr.bf16.mxu0 %v2539
        %4617 = vmatpush2.bf16.msra.mxu0 %v2538
        %4618 = vmatprep.subr.bf16.mxu0 %v2535
        %4619 = vmatpush2.bf16.msra.mxu0 %v2534
        %4620 = vmatprep.subr.bf16.mxu0 %v2531
        %4621 = vmatpush2.bf16.msra.mxu0 %v2530
        %4622 = vmatprep.subr.bf16.mxu0 %v2527
        %4623 = vmatpush2.bf16.msra.mxu0 %v2526
        %4624 = vmatprep.mubr.bf16.mxu0 %v1813
        %4625 = vmatmul.mubr.bf16.gmra.mxu0 %v1812
        %v4626 = vpop.f32.mrf.mxu0
        %v4627 = vadd.f32 0.0, %v4626
        %v4628 = vpop.f32.mrf.mxu0
        %v4629 = vadd.f32 0.0, %v4628
        %v4630 = vpop.f32.mrf.mxu0
        %v4631 = vpop.f32.mrf.mxu0
        %4632 = vdwg.mxu0
        %4633 = vmatprep.subr.bf16.mxu0 %v2587
        %4634 = vmatpush1.bf16.msra.mxu0 %v2586
        %4635 = vmatprep.subr.bf16.mxu0 %v2583
        %4636 = vmatpush1.bf16.msra.mxu0 %v2582
        %4637 = vmatprep.subr.bf16.mxu0 %v2579
        %4638 = vmatpush1.bf16.msra.mxu0 %v2578
        %4639 = vmatprep.subr.bf16.mxu0 %v2575
        %4640 = vmatpush1.bf16.msra.mxu0 %v2574
        %4641 = vmatprep.subr.bf16.mxu0 %v2571
        %4642 = vmatpush1.bf16.msra.mxu0 %v2570
        %4643 = vmatprep.subr.bf16.mxu0 %v2567
        %4644 = vmatpush1.bf16.msra.mxu0 %v2566
        %4645 = vmatprep.subr.bf16.mxu0 %v2563
        %4646 = vmatpush1.bf16.msra.mxu0 %v2562
        %4647 = vmatprep.subr.bf16.mxu0 %v2559
        %4648 = vmatpush1.bf16.msra.mxu0 %v2558
        %4649 = vmatprep.subr.bf16.mxu0 %v2619
        %4650 = vmatpush2.bf16.msra.mxu0 %v2618
        %4651 = vmatprep.subr.bf16.mxu0 %v2615
        %4652 = vmatpush2.bf16.msra.mxu0 %v2614
        %4653 = vmatprep.subr.bf16.mxu0 %v2611
        %4654 = vmatpush2.bf16.msra.mxu0 %v2610
        %4655 = vmatprep.subr.bf16.mxu0 %v2607
        %4656 = vmatpush2.bf16.msra.mxu0 %v2606
        %4657 = vmatprep.subr.bf16.mxu0 %v2603
        %4658 = vmatpush2.bf16.msra.mxu0 %v2602
        %4659 = vmatprep.subr.bf16.mxu0 %v2599
        %4660 = vmatpush2.bf16.msra.mxu0 %v2598
        %4661 = vmatprep.subr.bf16.mxu0 %v2595
        %4662 = vmatpush2.bf16.msra.mxu0 %v2594
        %4663 = vmatprep.subr.bf16.mxu0 %v2591
        %4664 = vmatpush2.bf16.msra.mxu0 %v2590
        %4665 = vmatprep.mubr.bf16.mxu0 %v1815
        %4666 = vmatmul.mubr.bf16.gmra.mxu0 %v1814
        %v4667 = vpop.f32.mrf.mxu0
        %v4668 = vadd.f32 %v4627, %v4667
        %v4669 = vpop.f32.mrf.mxu0
        %v4670 = vadd.f32 %v4629, %v4669
        %v4671 = vpop.f32.mrf.mxu0
        %v4672 = vpop.f32.mrf.mxu0
        %4673 = vdwg.mxu0
        %4674 = vmatprep.subr.bf16.mxu0 %v2651
        %4675 = vmatpush1.bf16.msra.mxu0 %v2650
        %4676 = vmatprep.subr.bf16.mxu0 %v2647
        %4677 = vmatpush1.bf16.msra.mxu0 %v2646
        %4678 = vmatprep.subr.bf16.mxu0 %v2643
        %4679 = vmatpush1.bf16.msra.mxu0 %v2642
        %4680 = vmatprep.subr.bf16.mxu0 %v2639
        %4681 = vmatpush1.bf16.msra.mxu0 %v2638
        %4682 = vmatprep.subr.bf16.mxu0 %v2635
        %4683 = vmatpush1.bf16.msra.mxu0 %v2634
        %4684 = vmatprep.subr.bf16.mxu0 %v2631
        %4685 = vmatpush1.bf16.msra.mxu0 %v2630
        %4686 = vmatprep.subr.bf16.mxu0 %v2627
        %4687 = vmatpush1.bf16.msra.mxu0 %v2626
        %4688 = vmatprep.subr.bf16.mxu0 %v2623
        %4689 = vmatpush1.bf16.msra.mxu0 %v2622
        %4690 = vmatprep.subr.bf16.mxu0 %v2683
        %4691 = vmatpush2.bf16.msra.mxu0 %v2682
        %4692 = vmatprep.subr.bf16.mxu0 %v2679
        %4693 = vmatpush2.bf16.msra.mxu0 %v2678
        %4694 = vmatprep.subr.bf16.mxu0 %v2675
        %4695 = vmatpush2.bf16.msra.mxu0 %v2674
        %4696 = vmatprep.subr.bf16.mxu0 %v2671
        %4697 = vmatpush2.bf16.msra.mxu0 %v2670
        %4698 = vmatprep.subr.bf16.mxu0 %v2667
        %4699 = vmatpush2.bf16.msra.mxu0 %v2666
        %4700 = vmatprep.subr.bf16.mxu0 %v2663
        %4701 = vmatpush2.bf16.msra.mxu0 %v2662
        %4702 = vmatprep.subr.bf16.mxu0 %v2659
        %4703 = vmatpush2.bf16.msra.mxu0 %v2658
        %4704 = vmatprep.subr.bf16.mxu0 %v2655
        %4705 = vmatpush2.bf16.msra.mxu0 %v2654
        %4706 = vmatprep.mubr.bf16.mxu0 %v1817
        %4707 = vmatmul.mubr.bf16.gmra.mxu0 %v1816
        %v4708 = vpop.f32.mrf.mxu0
        %v4709 = vadd.f32 %v4668, %v4708
        %v4710 = vpop.f32.mrf.mxu0
        %v4711 = vadd.f32 %v4670, %v4710
        %v4712 = vpop.f32.mrf.mxu0
        %v4713 = vpop.f32.mrf.mxu0
        %4714 = vdwg.mxu0
        %4715 = vmatprep.subr.bf16.mxu0 %v2715
        %4716 = vmatpush1.bf16.msra.mxu0 %v2714
        %4717 = vmatprep.subr.bf16.mxu0 %v2711
        %4718 = vmatpush1.bf16.msra.mxu0 %v2710
        %4719 = vmatprep.subr.bf16.mxu0 %v2707
        %4720 = vmatpush1.bf16.msra.mxu0 %v2706
        %4721 = vmatprep.subr.bf16.mxu0 %v2703
        %4722 = vmatpush1.bf16.msra.mxu0 %v2702
        %4723 = vmatprep.subr.bf16.mxu0 %v2699
        %4724 = vmatpush1.bf16.msra.mxu0 %v2698
        %4725 = vmatprep.subr.bf16.mxu0 %v2695
        %4726 = vmatpush1.bf16.msra.mxu0 %v2694
        %4727 = vmatprep.subr.bf16.mxu0 %v2691
        %4728 = vmatpush1.bf16.msra.mxu0 %v2690
        %4729 = vmatprep.subr.bf16.mxu0 %v2687
        %4730 = vmatpush1.bf16.msra.mxu0 %v2686
        %4731 = vmatprep.subr.bf16.mxu0 %v2747
        %4732 = vmatpush2.bf16.msra.mxu0 %v2746
        %4733 = vmatprep.subr.bf16.mxu0 %v2743
        %4734 = vmatpush2.bf16.msra.mxu0 %v2742
        %4735 = vmatprep.subr.bf16.mxu0 %v2739
        %4736 = vmatpush2.bf16.msra.mxu0 %v2738
        %4737 = vmatprep.subr.bf16.mxu0 %v2735
        %4738 = vmatpush2.bf16.msra.mxu0 %v2734
        %4739 = vmatprep.subr.bf16.mxu0 %v2731
        %4740 = vmatpush2.bf16.msra.mxu0 %v2730
        %4741 = vmatprep.subr.bf16.mxu0 %v2727
        %4742 = vmatpush2.bf16.msra.mxu0 %v2726
        %4743 = vmatprep.subr.bf16.mxu0 %v2723
        %4744 = vmatpush2.bf16.msra.mxu0 %v2722
        %4745 = vmatprep.subr.bf16.mxu0 %v2719
        %4746 = vmatpush2.bf16.msra.mxu0 %v2718
        %4747 = vmatprep.mubr.bf16.mxu0 %v1819
        %4748 = vmatmul.mubr.bf16.gmra.mxu0 %v1818
        %v4749 = vpop.f32.mrf.mxu0
        %v4750 = vadd.f32 %v4709, %v4749
        %v4751 = vpop.f32.mrf.mxu0
        %v4752 = vadd.f32 %v4711, %v4751
        %v4753 = vpop.f32.mrf.mxu0
        %v4754 = vpop.f32.mrf.mxu0
        %4755 = vdwg.mxu0
        %4756 = vmatprep.subr.bf16.mxu0 %v2779
        %4757 = vmatpush1.bf16.msra.mxu0 %v2778
        %4758 = vmatprep.subr.bf16.mxu0 %v2775
        %4759 = vmatpush1.bf16.msra.mxu0 %v2774
        %4760 = vmatprep.subr.bf16.mxu0 %v2771
        %4761 = vmatpush1.bf16.msra.mxu0 %v2770
        %4762 = vmatprep.subr.bf16.mxu0 %v2767
        %4763 = vmatpush1.bf16.msra.mxu0 %v2766
        %4764 = vmatprep.subr.bf16.mxu0 %v2763
        %4765 = vmatpush1.bf16.msra.mxu0 %v2762
        %4766 = vmatprep.subr.bf16.mxu0 %v2759
        %4767 = vmatpush1.bf16.msra.mxu0 %v2758
        %4768 = vmatprep.subr.bf16.mxu0 %v2755
        %4769 = vmatpush1.bf16.msra.mxu0 %v2754
        %4770 = vmatprep.subr.bf16.mxu0 %v2751
        %4771 = vmatpush1.bf16.msra.mxu0 %v2750
        %4772 = vmatprep.subr.bf16.mxu0 %v2811
        %4773 = vmatpush2.bf16.msra.mxu0 %v2810
        %4774 = vmatprep.subr.bf16.mxu0 %v2807
        %4775 = vmatpush2.bf16.msra.mxu0 %v2806
        %4776 = vmatprep.subr.bf16.mxu0 %v2803
        %4777 = vmatpush2.bf16.msra.mxu0 %v2802
        %4778 = vmatprep.subr.bf16.mxu0 %v2799
        %4779 = vmatpush2.bf16.msra.mxu0 %v2798
        %4780 = vmatprep.subr.bf16.mxu0 %v2795
        %4781 = vmatpush2.bf16.msra.mxu0 %v2794
        %4782 = vmatprep.subr.bf16.mxu0 %v2791
        %4783 = vmatpush2.bf16.msra.mxu0 %v2790
        %4784 = vmatprep.subr.bf16.mxu0 %v2787
        %4785 = vmatpush2.bf16.msra.mxu0 %v2786
        %4786 = vmatprep.subr.bf16.mxu0 %v2783
        %4787 = vmatpush2.bf16.msra.mxu0 %v2782
        %4788 = vmatprep.mubr.bf16.mxu0 %v1821
        %4789 = vmatmul.mubr.bf16.gmra.mxu0 %v1820
        %v4790 = vpop.f32.mrf.mxu0
        %v4791 = vadd.f32 %v4750, %v4790
        %v4792 = vpop.f32.mrf.mxu0
        %v4793 = vadd.f32 %v4752, %v4792
        %v4794 = vpop.f32.mrf.mxu0
        %v4795 = vpop.f32.mrf.mxu0
        %4796 = vdwg.mxu0
        %4797 = vmatprep.subr.bf16.mxu0 %v2843
        %4798 = vmatpush1.bf16.msra.mxu0 %v2842
        %4799 = vmatprep.subr.bf16.mxu0 %v2839
        %4800 = vmatpush1.bf16.msra.mxu0 %v2838
        %4801 = vmatprep.subr.bf16.mxu0 %v2835
        %4802 = vmatpush1.bf16.msra.mxu0 %v2834
        %4803 = vmatprep.subr.bf16.mxu0 %v2831
        %4804 = vmatpush1.bf16.msra.mxu0 %v2830
        %4805 = vmatprep.subr.bf16.mxu0 %v2827
        %4806 = vmatpush1.bf16.msra.mxu0 %v2826
        %4807 = vmatprep.subr.bf16.mxu0 %v2823
        %4808 = vmatpush1.bf16.msra.mxu0 %v2822
        %4809 = vmatprep.subr.bf16.mxu0 %v2819
        %4810 = vmatpush1.bf16.msra.mxu0 %v2818
        %4811 = vmatprep.subr.bf16.mxu0 %v2815
        %4812 = vmatpush1.bf16.msra.mxu0 %v2814
        %4813 = vmatprep.subr.bf16.mxu0 %v2875
        %4814 = vmatpush2.bf16.msra.mxu0 %v2874
        %4815 = vmatprep.subr.bf16.mxu0 %v2871
        %4816 = vmatpush2.bf16.msra.mxu0 %v2870
        %4817 = vmatprep.subr.bf16.mxu0 %v2867
        %4818 = vmatpush2.bf16.msra.mxu0 %v2866
        %4819 = vmatprep.subr.bf16.mxu0 %v2863
        %4820 = vmatpush2.bf16.msra.mxu0 %v2862
        %4821 = vmatprep.subr.bf16.mxu0 %v2859
        %4822 = vmatpush2.bf16.msra.mxu0 %v2858
        %4823 = vmatprep.subr.bf16.mxu0 %v2855
        %4824 = vmatpush2.bf16.msra.mxu0 %v2854
        %4825 = vmatprep.subr.bf16.mxu0 %v2851
        %4826 = vmatpush2.bf16.msra.mxu0 %v2850
        %4827 = vmatprep.subr.bf16.mxu0 %v2847
        %4828 = vmatpush2.bf16.msra.mxu0 %v2846
        %4829 = vmatprep.mubr.bf16.mxu0 %v1823
        %4830 = vmatmul.mubr.bf16.gmra.mxu0 %v1822
        %v4831 = vpop.f32.mrf.mxu0
        %v4832 = vadd.f32 %v4791, %v4831
        %v4833 = vpop.f32.mrf.mxu0
        %v4834 = vadd.f32 %v4793, %v4833
        %v4835 = vpop.f32.mrf.mxu0
        %v4836 = vpop.f32.mrf.mxu0
        %4837 = vdwg.mxu0
        %4838 = vmatprep.subr.bf16.mxu0 %v2907
        %4839 = vmatpush1.bf16.msra.mxu0 %v2906
        %4840 = vmatprep.subr.bf16.mxu0 %v2903
        %4841 = vmatpush1.bf16.msra.mxu0 %v2902
        %4842 = vmatprep.subr.bf16.mxu0 %v2899
        %4843 = vmatpush1.bf16.msra.mxu0 %v2898
        %4844 = vmatprep.subr.bf16.mxu0 %v2895
        %4845 = vmatpush1.bf16.msra.mxu0 %v2894
        %4846 = vmatprep.subr.bf16.mxu0 %v2891
        %4847 = vmatpush1.bf16.msra.mxu0 %v2890
        %4848 = vmatprep.subr.bf16.mxu0 %v2887
        %4849 = vmatpush1.bf16.msra.mxu0 %v2886
        %4850 = vmatprep.subr.bf16.mxu0 %v2883
        %4851 = vmatpush1.bf16.msra.mxu0 %v2882
        %4852 = vmatprep.subr.bf16.mxu0 %v2879
        %4853 = vmatpush1.bf16.msra.mxu0 %v2878
        %4854 = vmatprep.subr.bf16.mxu0 %v2939
        %4855 = vmatpush2.bf16.msra.mxu0 %v2938
        %4856 = vmatprep.subr.bf16.mxu0 %v2935
        %4857 = vmatpush2.bf16.msra.mxu0 %v2934
        %4858 = vmatprep.subr.bf16.mxu0 %v2931
        %4859 = vmatpush2.bf16.msra.mxu0 %v2930
        %4860 = vmatprep.subr.bf16.mxu0 %v2927
        %4861 = vmatpush2.bf16.msra.mxu0 %v2926
        %4862 = vmatprep.subr.bf16.mxu0 %v2923
        %4863 = vmatpush2.bf16.msra.mxu0 %v2922
        %4864 = vmatprep.subr.bf16.mxu0 %v2919
        %4865 = vmatpush2.bf16.msra.mxu0 %v2918
        %4866 = vmatprep.subr.bf16.mxu0 %v2915
        %4867 = vmatpush2.bf16.msra.mxu0 %v2914
        %4868 = vmatprep.subr.bf16.mxu0 %v2911
        %4869 = vmatpush2.bf16.msra.mxu0 %v2910
        %4870 = vmatprep.mubr.bf16.mxu0 %v1825
        %4871 = vmatmul.mubr.bf16.gmra.mxu0 %v1824
        %v4872 = vpop.f32.mrf.mxu0
        %v4873 = vadd.f32 %v4832, %v4872
        %v4874 = vpop.f32.mrf.mxu0
        %v4875 = vadd.f32 %v4834, %v4874
        %v4876 = vpop.f32.mrf.mxu0
        %v4877 = vpop.f32.mrf.mxu0
        %4878 = vdwg.mxu0
        %4879 = vmatprep.subr.bf16.mxu0 %v2971
        %4880 = vmatpush1.bf16.msra.mxu0 %v2970
        %4881 = vmatprep.subr.bf16.mxu0 %v2967
        %4882 = vmatpush1.bf16.msra.mxu0 %v2966
        %4883 = vmatprep.subr.bf16.mxu0 %v2963
        %4884 = vmatpush1.bf16.msra.mxu0 %v2962
        %4885 = vmatprep.subr.bf16.mxu0 %v2959
        %4886 = vmatpush1.bf16.msra.mxu0 %v2958
        %4887 = vmatprep.subr.bf16.mxu0 %v2955
        %4888 = vmatpush1.bf16.msra.mxu0 %v2954
        %4889 = vmatprep.subr.bf16.mxu0 %v2951
        %4890 = vmatpush1.bf16.msra.mxu0 %v2950
        %4891 = vmatprep.subr.bf16.mxu0 %v2947
        %4892 = vmatpush1.bf16.msra.mxu0 %v2946
        %4893 = vmatprep.subr.bf16.mxu0 %v2943
        %4894 = vmatpush1.bf16.msra.mxu0 %v2942
        %4895 = vmatprep.subr.bf16.mxu0 %v3003
        %4896 = vmatpush2.bf16.msra.mxu0 %v3002
        %4897 = vmatprep.subr.bf16.mxu0 %v2999
        %4898 = vmatpush2.bf16.msra.mxu0 %v2998
        %4899 = vmatprep.subr.bf16.mxu0 %v2995
        %4900 = vmatpush2.bf16.msra.mxu0 %v2994
        %4901 = vmatprep.subr.bf16.mxu0 %v2991
        %4902 = vmatpush2.bf16.msra.mxu0 %v2990
        %4903 = vmatprep.subr.bf16.mxu0 %v2987
        %4904 = vmatpush2.bf16.msra.mxu0 %v2986
        %4905 = vmatprep.subr.bf16.mxu0 %v2983
        %4906 = vmatpush2.bf16.msra.mxu0 %v2982
        %4907 = vmatprep.subr.bf16.mxu0 %v2979
        %4908 = vmatpush2.bf16.msra.mxu0 %v2978
        %4909 = vmatprep.subr.bf16.mxu0 %v2975
        %4910 = vmatpush2.bf16.msra.mxu0 %v2974
        %4911 = vmatprep.mubr.bf16.mxu0 %v1827
        %4912 = vmatmul.mubr.bf16.gmra.mxu0 %v1826
        %v4913 = vpop.f32.mrf.mxu0
        %v4914 = vadd.f32 %v4873, %v4913
        %v4915 = vpop.f32.mrf.mxu0
        %v4916 = vadd.f32 %v4875, %v4915
        %v4917 = vpop.f32.mrf.mxu0
        %v4918 = vpop.f32.mrf.mxu0
        %4919 = vdwg.mxu0
        %4920 = vmatprep.subr.bf16.mxu0 %v3035
        %4921 = vmatpush1.bf16.msra.mxu0 %v3034
        %4922 = vmatprep.subr.bf16.mxu0 %v3031
        %4923 = vmatpush1.bf16.msra.mxu0 %v3030
        %4924 = vmatprep.subr.bf16.mxu0 %v3027
        %4925 = vmatpush1.bf16.msra.mxu0 %v3026
        %4926 = vmatprep.subr.bf16.mxu0 %v3023
        %4927 = vmatpush1.bf16.msra.mxu0 %v3022
        %4928 = vmatprep.subr.bf16.mxu0 %v3019
        %4929 = vmatpush1.bf16.msra.mxu0 %v3018
        %4930 = vmatprep.subr.bf16.mxu0 %v3015
        %4931 = vmatpush1.bf16.msra.mxu0 %v3014
        %4932 = vmatprep.subr.bf16.mxu0 %v3011
        %4933 = vmatpush1.bf16.msra.mxu0 %v3010
        %4934 = vmatprep.subr.bf16.mxu0 %v3007
        %4935 = vmatpush1.bf16.msra.mxu0 %v3006
        %4936 = vmatprep.subr.bf16.mxu0 %v3067
        %4937 = vmatpush2.bf16.msra.mxu0 %v3066
        %4938 = vmatprep.subr.bf16.mxu0 %v3063
        %4939 = vmatpush2.bf16.msra.mxu0 %v3062
        %4940 = vmatprep.subr.bf16.mxu0 %v3059
        %4941 = vmatpush2.bf16.msra.mxu0 %v3058
        %4942 = vmatprep.subr.bf16.mxu0 %v3055
        %4943 = vmatpush2.bf16.msra.mxu0 %v3054
        %4944 = vmatprep.subr.bf16.mxu0 %v3051
        %4945 = vmatpush2.bf16.msra.mxu0 %v3050
        %4946 = vmatprep.subr.bf16.mxu0 %v3047
        %4947 = vmatpush2.bf16.msra.mxu0 %v3046
        %4948 = vmatprep.subr.bf16.mxu0 %v3043
        %4949 = vmatpush2.bf16.msra.mxu0 %v3042
        %4950 = vmatprep.subr.bf16.mxu0 %v3039
        %4951 = vmatpush2.bf16.msra.mxu0 %v3038
        %4952 = vmatprep.mubr.bf16.mxu0 %v1829
        %4953 = vmatmul.mubr.bf16.gmra.mxu0 %v1828
        %v4954 = vpop.f32.mrf.mxu0
        %v4955 = vadd.f32 %v4914, %v4954
        %v4956 = vpop.f32.mrf.mxu0
        %v4957 = vadd.f32 %v4916, %v4956
        %v4958 = vpop.f32.mrf.mxu0
        %v4959 = vpop.f32.mrf.mxu0
        %4960 = vdwg.mxu0
        %4961 = vmatprep.subr.bf16.mxu0 %v3099
        %4962 = vmatpush1.bf16.msra.mxu0 %v3098
        %4963 = vmatprep.subr.bf16.mxu0 %v3095
        %4964 = vmatpush1.bf16.msra.mxu0 %v3094
        %4965 = vmatprep.subr.bf16.mxu0 %v3091
        %4966 = vmatpush1.bf16.msra.mxu0 %v3090
        %4967 = vmatprep.subr.bf16.mxu0 %v3087
        %4968 = vmatpush1.bf16.msra.mxu0 %v3086
        %4969 = vmatprep.subr.bf16.mxu0 %v3083
        %4970 = vmatpush1.bf16.msra.mxu0 %v3082
        %4971 = vmatprep.subr.bf16.mxu0 %v3079
        %4972 = vmatpush1.bf16.msra.mxu0 %v3078
        %4973 = vmatprep.subr.bf16.mxu0 %v3075
        %4974 = vmatpush1.bf16.msra.mxu0 %v3074
        %4975 = vmatprep.subr.bf16.mxu0 %v3071
        %4976 = vmatpush1.bf16.msra.mxu0 %v3070
        %4977 = vmatprep.subr.bf16.mxu0 %v3131
        %4978 = vmatpush2.bf16.msra.mxu0 %v3130
        %4979 = vmatprep.subr.bf16.mxu0 %v3127
        %4980 = vmatpush2.bf16.msra.mxu0 %v3126
        %4981 = vmatprep.subr.bf16.mxu0 %v3123
        %4982 = vmatpush2.bf16.msra.mxu0 %v3122
        %4983 = vmatprep.subr.bf16.mxu0 %v3119
        %4984 = vmatpush2.bf16.msra.mxu0 %v3118
        %4985 = vmatprep.subr.bf16.mxu0 %v3115
        %4986 = vmatpush2.bf16.msra.mxu0 %v3114
        %4987 = vmatprep.subr.bf16.mxu0 %v3111
        %4988 = vmatpush2.bf16.msra.mxu0 %v3110
        %4989 = vmatprep.subr.bf16.mxu0 %v3107
        %4990 = vmatpush2.bf16.msra.mxu0 %v3106
        %4991 = vmatprep.subr.bf16.mxu0 %v3103
        %4992 = vmatpush2.bf16.msra.mxu0 %v3102
        %4993 = vmatprep.mubr.bf16.mxu0 %v1831
        %4994 = vmatmul.mubr.bf16.gmra.mxu0 %v1830
        %v4995 = vpop.f32.mrf.mxu0
        %v4996 = vadd.f32 %v4955, %v4995
        %v4997 = vpop.f32.mrf.mxu0
        %v4998 = vadd.f32 %v4957, %v4997
        %v4999 = vpop.f32.mrf.mxu0
        %v5000 = vpop.f32.mrf.mxu0
        %5001 = vdwg.mxu0
        %5002 = vmatprep.subr.bf16.mxu0 %v3163
        %5003 = vmatpush1.bf16.msra.mxu0 %v3162
        %5004 = vmatprep.subr.bf16.mxu0 %v3159
        %5005 = vmatpush1.bf16.msra.mxu0 %v3158
        %5006 = vmatprep.subr.bf16.mxu0 %v3155
        %5007 = vmatpush1.bf16.msra.mxu0 %v3154
        %5008 = vmatprep.subr.bf16.mxu0 %v3151
        %5009 = vmatpush1.bf16.msra.mxu0 %v3150
        %5010 = vmatprep.subr.bf16.mxu0 %v3147
        %5011 = vmatpush1.bf16.msra.mxu0 %v3146
        %5012 = vmatprep.subr.bf16.mxu0 %v3143
        %5013 = vmatpush1.bf16.msra.mxu0 %v3142
        %5014 = vmatprep.subr.bf16.mxu0 %v3139
        %5015 = vmatpush1.bf16.msra.mxu0 %v3138
        %5016 = vmatprep.subr.bf16.mxu0 %v3135
        %5017 = vmatpush1.bf16.msra.mxu0 %v3134
        %5018 = vmatprep.subr.bf16.mxu0 %v3195
        %5019 = vmatpush2.bf16.msra.mxu0 %v3194
        %5020 = vmatprep.subr.bf16.mxu0 %v3191
        %5021 = vmatpush2.bf16.msra.mxu0 %v3190
        %5022 = vmatprep.subr.bf16.mxu0 %v3187
        %5023 = vmatpush2.bf16.msra.mxu0 %v3186
        %5024 = vmatprep.subr.bf16.mxu0 %v3183
        %5025 = vmatpush2.bf16.msra.mxu0 %v3182
        %5026 = vmatprep.subr.bf16.mxu0 %v3179
        %5027 = vmatpush2.bf16.msra.mxu0 %v3178
        %5028 = vmatprep.subr.bf16.mxu0 %v3175
        %5029 = vmatpush2.bf16.msra.mxu0 %v3174
        %5030 = vmatprep.subr.bf16.mxu0 %v3171
        %5031 = vmatpush2.bf16.msra.mxu0 %v3170
        %5032 = vmatprep.subr.bf16.mxu0 %v3167
        %5033 = vmatpush2.bf16.msra.mxu0 %v3166
        %5034 = vmatprep.mubr.bf16.mxu0 %v1833
        %5035 = vmatmul.mubr.bf16.gmra.mxu0 %v1832
        %v5036 = vpop.f32.mrf.mxu0
        %v5037 = vadd.f32 %v4996, %v5036
        %v5038 = vpop.f32.mrf.mxu0
        %v5039 = vadd.f32 %v4998, %v5038
        %v5040 = vpop.f32.mrf.mxu0
        %v5041 = vpop.f32.mrf.mxu0
        %5042 = vdwg.mxu0
        %5043 = vmatprep.subr.bf16.mxu0 %v3227
        %5044 = vmatpush1.bf16.msra.mxu0 %v3226
        %5045 = vmatprep.subr.bf16.mxu0 %v3223
        %5046 = vmatpush1.bf16.msra.mxu0 %v3222
        %5047 = vmatprep.subr.bf16.mxu0 %v3219
        %5048 = vmatpush1.bf16.msra.mxu0 %v3218
        %5049 = vmatprep.subr.bf16.mxu0 %v3215
        %5050 = vmatpush1.bf16.msra.mxu0 %v3214
        %5051 = vmatprep.subr.bf16.mxu0 %v3211
        %5052 = vmatpush1.bf16.msra.mxu0 %v3210
        %5053 = vmatprep.subr.bf16.mxu0 %v3207
        %5054 = vmatpush1.bf16.msra.mxu0 %v3206
        %5055 = vmatprep.subr.bf16.mxu0 %v3203
        %5056 = vmatpush1.bf16.msra.mxu0 %v3202
        %5057 = vmatprep.subr.bf16.mxu0 %v3199
        %5058 = vmatpush1.bf16.msra.mxu0 %v3198
        %5059 = vmatprep.subr.bf16.mxu0 %v3259
        %5060 = vmatpush2.bf16.msra.mxu0 %v3258
        %5061 = vmatprep.subr.bf16.mxu0 %v3255
        %5062 = vmatpush2.bf16.msra.mxu0 %v3254
        %5063 = vmatprep.subr.bf16.mxu0 %v3251
        %5064 = vmatpush2.bf16.msra.mxu0 %v3250
        %5065 = vmatprep.subr.bf16.mxu0 %v3247
        %5066 = vmatpush2.bf16.msra.mxu0 %v3246
        %5067 = vmatprep.subr.bf16.mxu0 %v3243
        %5068 = vmatpush2.bf16.msra.mxu0 %v3242
        %5069 = vmatprep.subr.bf16.mxu0 %v3239
        %5070 = vmatpush2.bf16.msra.mxu0 %v3238
        %5071 = vmatprep.subr.bf16.mxu0 %v3235
        %5072 = vmatpush2.bf16.msra.mxu0 %v3234
        %5073 = vmatprep.subr.bf16.mxu0 %v3231
        %5074 = vmatpush2.bf16.msra.mxu0 %v3230
        %5075 = vmatprep.mubr.bf16.mxu0 %v1835
        %5076 = vmatmul.mubr.bf16.gmra.mxu0 %v1834
        %v5077 = vpop.f32.mrf.mxu0
        %v5078 = vadd.f32 %v5037, %v5077
        %v5079 = vpop.f32.mrf.mxu0
        %v5080 = vadd.f32 %v5039, %v5079
        %v5081 = vpop.f32.mrf.mxu0
        %v5082 = vpop.f32.mrf.mxu0
        %5083 = vdwg.mxu0
        %5084 = vmatprep.subr.bf16.mxu0 %v3291
        %5085 = vmatpush1.bf16.msra.mxu0 %v3290
        %5086 = vmatprep.subr.bf16.mxu0 %v3287
        %5087 = vmatpush1.bf16.msra.mxu0 %v3286
        %5088 = vmatprep.subr.bf16.mxu0 %v3283
        %5089 = vmatpush1.bf16.msra.mxu0 %v3282
        %5090 = vmatprep.subr.bf16.mxu0 %v3279
        %5091 = vmatpush1.bf16.msra.mxu0 %v3278
        %5092 = vmatprep.subr.bf16.mxu0 %v3275
        %5093 = vmatpush1.bf16.msra.mxu0 %v3274
        %5094 = vmatprep.subr.bf16.mxu0 %v3271
        %5095 = vmatpush1.bf16.msra.mxu0 %v3270
        %5096 = vmatprep.subr.bf16.mxu0 %v3267
        %5097 = vmatpush1.bf16.msra.mxu0 %v3266
        %5098 = vmatprep.subr.bf16.mxu0 %v3263
        %5099 = vmatpush1.bf16.msra.mxu0 %v3262
        %5100 = vmatprep.subr.bf16.mxu0 %v3323
        %5101 = vmatpush2.bf16.msra.mxu0 %v3322
        %5102 = vmatprep.subr.bf16.mxu0 %v3319
        %5103 = vmatpush2.bf16.msra.mxu0 %v3318
        %5104 = vmatprep.subr.bf16.mxu0 %v3315
        %5105 = vmatpush2.bf16.msra.mxu0 %v3314
        %5106 = vmatprep.subr.bf16.mxu0 %v3311
        %5107 = vmatpush2.bf16.msra.mxu0 %v3310
        %5108 = vmatprep.subr.bf16.mxu0 %v3307
        %5109 = vmatpush2.bf16.msra.mxu0 %v3306
        %5110 = vmatprep.subr.bf16.mxu0 %v3303
        %5111 = vmatpush2.bf16.msra.mxu0 %v3302
        %5112 = vmatprep.subr.bf16.mxu0 %v3299
        %5113 = vmatpush2.bf16.msra.mxu0 %v3298
        %5114 = vmatprep.subr.bf16.mxu0 %v3295
        %5115 = vmatpush2.bf16.msra.mxu0 %v3294
        %5116 = vmatprep.mubr.bf16.mxu0 %v1837
        %5117 = vmatmul.mubr.bf16.gmra.mxu0 %v1836
        %v5118 = vpop.f32.mrf.mxu0
        %v5119 = vadd.f32 %v5078, %v5118
        %v5120 = vpop.f32.mrf.mxu0
        %v5121 = vadd.f32 %v5080, %v5120
        %v5122 = vpop.f32.mrf.mxu0
        %v5123 = vpop.f32.mrf.mxu0
        %5124 = vdwg.mxu0
        %5125 = vmatprep.subr.bf16.mxu0 %v3355
        %5126 = vmatpush1.bf16.msra.mxu0 %v3354
        %5127 = vmatprep.subr.bf16.mxu0 %v3351
        %5128 = vmatpush1.bf16.msra.mxu0 %v3350
        %5129 = vmatprep.subr.bf16.mxu0 %v3347
        %5130 = vmatpush1.bf16.msra.mxu0 %v3346
        %5131 = vmatprep.subr.bf16.mxu0 %v3343
        %5132 = vmatpush1.bf16.msra.mxu0 %v3342
        %5133 = vmatprep.subr.bf16.mxu0 %v3339
        %5134 = vmatpush1.bf16.msra.mxu0 %v3338
        %5135 = vmatprep.subr.bf16.mxu0 %v3335
        %5136 = vmatpush1.bf16.msra.mxu0 %v3334
        %5137 = vmatprep.subr.bf16.mxu0 %v3331
        %5138 = vmatpush1.bf16.msra.mxu0 %v3330
        %5139 = vmatprep.subr.bf16.mxu0 %v3327
        %5140 = vmatpush1.bf16.msra.mxu0 %v3326
        %5141 = vmatprep.subr.bf16.mxu0 %v3387
        %5142 = vmatpush2.bf16.msra.mxu0 %v3386
        %5143 = vmatprep.subr.bf16.mxu0 %v3383
        %5144 = vmatpush2.bf16.msra.mxu0 %v3382
        %5145 = vmatprep.subr.bf16.mxu0 %v3379
        %5146 = vmatpush2.bf16.msra.mxu0 %v3378
        %5147 = vmatprep.subr.bf16.mxu0 %v3375
        %5148 = vmatpush2.bf16.msra.mxu0 %v3374
        %5149 = vmatprep.subr.bf16.mxu0 %v3371
        %5150 = vmatpush2.bf16.msra.mxu0 %v3370
        %5151 = vmatprep.subr.bf16.mxu0 %v3367
        %5152 = vmatpush2.bf16.msra.mxu0 %v3366
        %5153 = vmatprep.subr.bf16.mxu0 %v3363
        %5154 = vmatpush2.bf16.msra.mxu0 %v3362
        %5155 = vmatprep.subr.bf16.mxu0 %v3359
        %5156 = vmatpush2.bf16.msra.mxu0 %v3358
        %5157 = vmatprep.mubr.bf16.mxu0 %v1839
        %5158 = vmatmul.mubr.bf16.gmra.mxu0 %v1838
        %v5159 = vpop.f32.mrf.mxu0
        %v5160 = vadd.f32 %v5119, %v5159
        %v5161 = vpop.f32.mrf.mxu0
        %v5162 = vadd.f32 %v5121, %v5161
        %v5163 = vpop.f32.mrf.mxu0
        %v5164 = vpop.f32.mrf.mxu0
        %5165 = vdwg.mxu0
        %5166 = vmatprep.subr.bf16.mxu0 %v3419
        %5167 = vmatpush1.bf16.msra.mxu0 %v3418
        %5168 = vmatprep.subr.bf16.mxu0 %v3415
        %5169 = vmatpush1.bf16.msra.mxu0 %v3414
        %5170 = vmatprep.subr.bf16.mxu0 %v3411
        %5171 = vmatpush1.bf16.msra.mxu0 %v3410
        %5172 = vmatprep.subr.bf16.mxu0 %v3407
        %5173 = vmatpush1.bf16.msra.mxu0 %v3406
        %5174 = vmatprep.subr.bf16.mxu0 %v3403
        %5175 = vmatpush1.bf16.msra.mxu0 %v3402
        %5176 = vmatprep.subr.bf16.mxu0 %v3399
        %5177 = vmatpush1.bf16.msra.mxu0 %v3398
        %5178 = vmatprep.subr.bf16.mxu0 %v3395
        %5179 = vmatpush1.bf16.msra.mxu0 %v3394
        %5180 = vmatprep.subr.bf16.mxu0 %v3391
        %5181 = vmatpush1.bf16.msra.mxu0 %v3390
        %5182 = vmatprep.subr.bf16.mxu0 %v3451
        %5183 = vmatpush2.bf16.msra.mxu0 %v3450
        %5184 = vmatprep.subr.bf16.mxu0 %v3447
        %5185 = vmatpush2.bf16.msra.mxu0 %v3446
        %5186 = vmatprep.subr.bf16.mxu0 %v3443
        %5187 = vmatpush2.bf16.msra.mxu0 %v3442
        %5188 = vmatprep.subr.bf16.mxu0 %v3439
        %5189 = vmatpush2.bf16.msra.mxu0 %v3438
        %5190 = vmatprep.subr.bf16.mxu0 %v3435
        %5191 = vmatpush2.bf16.msra.mxu0 %v3434
        %5192 = vmatprep.subr.bf16.mxu0 %v3431
        %5193 = vmatpush2.bf16.msra.mxu0 %v3430
        %5194 = vmatprep.subr.bf16.mxu0 %v3427
        %5195 = vmatpush2.bf16.msra.mxu0 %v3426
        %5196 = vmatprep.subr.bf16.mxu0 %v3423
        %5197 = vmatpush2.bf16.msra.mxu0 %v3422
        %5198 = vmatprep.mubr.bf16.mxu0 %v1841
        %5199 = vmatmul.mubr.bf16.gmra.mxu0 %v1840
        %v5200 = vpop.f32.mrf.mxu0
        %v5201 = vadd.f32 %v5160, %v5200
        %v5202 = vpop.f32.mrf.mxu0
        %v5203 = vadd.f32 %v5162, %v5202
        %v5204 = vpop.f32.mrf.mxu0
        %v5205 = vpop.f32.mrf.mxu0
        %5206 = vdwg.mxu0
        %5207 = vmatprep.subr.bf16.mxu0 %v3483
        %5208 = vmatpush1.bf16.msra.mxu0 %v3482
        %5209 = vmatprep.subr.bf16.mxu0 %v3479
        %5210 = vmatpush1.bf16.msra.mxu0 %v3478
        %5211 = vmatprep.subr.bf16.mxu0 %v3475
        %5212 = vmatpush1.bf16.msra.mxu0 %v3474
        %5213 = vmatprep.subr.bf16.mxu0 %v3471
        %5214 = vmatpush1.bf16.msra.mxu0 %v3470
        %5215 = vmatprep.subr.bf16.mxu0 %v3467
        %5216 = vmatpush1.bf16.msra.mxu0 %v3466
        %5217 = vmatprep.subr.bf16.mxu0 %v3463
        %5218 = vmatpush1.bf16.msra.mxu0 %v3462
        %5219 = vmatprep.subr.bf16.mxu0 %v3459
        %5220 = vmatpush1.bf16.msra.mxu0 %v3458
        %5221 = vmatprep.subr.bf16.mxu0 %v3455
        %5222 = vmatpush1.bf16.msra.mxu0 %v3454
        %5223 = vmatprep.subr.bf16.mxu0 %v3515
        %5224 = vmatpush2.bf16.msra.mxu0 %v3514
        %5225 = vmatprep.subr.bf16.mxu0 %v3511
        %5226 = vmatpush2.bf16.msra.mxu0 %v3510
        %5227 = vmatprep.subr.bf16.mxu0 %v3507
        %5228 = vmatpush2.bf16.msra.mxu0 %v3506
        %5229 = vmatprep.subr.bf16.mxu0 %v3503
        %5230 = vmatpush2.bf16.msra.mxu0 %v3502
        %5231 = vmatprep.subr.bf16.mxu0 %v3499
        %5232 = vmatpush2.bf16.msra.mxu0 %v3498
        %5233 = vmatprep.subr.bf16.mxu0 %v3495
        %5234 = vmatpush2.bf16.msra.mxu0 %v3494
        %5235 = vmatprep.subr.bf16.mxu0 %v3491
        %5236 = vmatpush2.bf16.msra.mxu0 %v3490
        %5237 = vmatprep.subr.bf16.mxu0 %v3487
        %5238 = vmatpush2.bf16.msra.mxu0 %v3486
        %5239 = vmatprep.mubr.bf16.mxu0 %v1843
        %5240 = vmatmul.mubr.bf16.gmra.mxu0 %v1842
        %v5241 = vpop.f32.mrf.mxu0
        %v5242 = vadd.f32 %v5201, %v5241
        %v5243 = vpop.f32.mrf.mxu0
        %v5244 = vadd.f32 %v5203, %v5243
        %v5245 = vpop.f32.mrf.mxu0
        %v5246 = vpop.f32.mrf.mxu0
        %5247 = vdwg.mxu0
        %5248 = vmatprep.subr.bf16.mxu0 %v3547
        %5249 = vmatpush1.bf16.msra.mxu0 %v3546
        %5250 = vmatprep.subr.bf16.mxu0 %v3543
        %5251 = vmatpush1.bf16.msra.mxu0 %v3542
        %5252 = vmatprep.subr.bf16.mxu0 %v3539
        %5253 = vmatpush1.bf16.msra.mxu0 %v3538
        %5254 = vmatprep.subr.bf16.mxu0 %v3535
        %5255 = vmatpush1.bf16.msra.mxu0 %v3534
        %5256 = vmatprep.subr.bf16.mxu0 %v3531
        %5257 = vmatpush1.bf16.msra.mxu0 %v3530
        %5258 = vmatprep.subr.bf16.mxu0 %v3527
        %5259 = vmatpush1.bf16.msra.mxu0 %v3526
        %5260 = vmatprep.subr.bf16.mxu0 %v3523
        %5261 = vmatpush1.bf16.msra.mxu0 %v3522
        %5262 = vmatprep.subr.bf16.mxu0 %v3519
        %5263 = vmatpush1.bf16.msra.mxu0 %v3518
        %5264 = vmatprep.subr.bf16.mxu0 %v3579
        %5265 = vmatpush2.bf16.msra.mxu0 %v3578
        %5266 = vmatprep.subr.bf16.mxu0 %v3575
        %5267 = vmatpush2.bf16.msra.mxu0 %v3574
        %5268 = vmatprep.subr.bf16.mxu0 %v3571
        %5269 = vmatpush2.bf16.msra.mxu0 %v3570
        %5270 = vmatprep.subr.bf16.mxu0 %v3567
        %5271 = vmatpush2.bf16.msra.mxu0 %v3566
        %5272 = vmatprep.subr.bf16.mxu0 %v3563
        %5273 = vmatpush2.bf16.msra.mxu0 %v3562
        %5274 = vmatprep.subr.bf16.mxu0 %v3559
        %5275 = vmatpush2.bf16.msra.mxu0 %v3558
        %5276 = vmatprep.subr.bf16.mxu0 %v3555
        %5277 = vmatpush2.bf16.msra.mxu0 %v3554
        %5278 = vmatprep.subr.bf16.mxu0 %v3551
        %5279 = vmatpush2.bf16.msra.mxu0 %v3550
        %5280 = vmatprep.mubr.bf16.mxu0 %v1845
        %5281 = vmatmul.mubr.bf16.gmra.mxu0 %v1844
        %v5282 = vpop.f32.mrf.mxu0
        %v5283 = vadd.f32 %v5242, %v5282
        %v5284 = vpop.f32.mrf.mxu0
        %v5285 = vadd.f32 %v5244, %v5284
        %v5286 = vpop.f32.mrf.mxu0
        %v5287 = vpop.f32.mrf.mxu0
        %5288 = vdwg.mxu0
        %5289 = vmatprep.subr.bf16.mxu0 %v3611
        %5290 = vmatpush1.bf16.msra.mxu0 %v3610
        %5291 = vmatprep.subr.bf16.mxu0 %v3607
        %5292 = vmatpush1.bf16.msra.mxu0 %v3606
        %5293 = vmatprep.subr.bf16.mxu0 %v3603
        %5294 = vmatpush1.bf16.msra.mxu0 %v3602
        %5295 = vmatprep.subr.bf16.mxu0 %v3599
        %5296 = vmatpush1.bf16.msra.mxu0 %v3598
        %5297 = vmatprep.subr.bf16.mxu0 %v3595
        %5298 = vmatpush1.bf16.msra.mxu0 %v3594
        %5299 = vmatprep.subr.bf16.mxu0 %v3591
        %5300 = vmatpush1.bf16.msra.mxu0 %v3590
        %5301 = vmatprep.subr.bf16.mxu0 %v3587
        %5302 = vmatpush1.bf16.msra.mxu0 %v3586
        %5303 = vmatprep.subr.bf16.mxu0 %v3583
        %5304 = vmatpush1.bf16.msra.mxu0 %v3582
        %5305 = vmatprep.subr.bf16.mxu0 %v3643
        %5306 = vmatpush2.bf16.msra.mxu0 %v3642
        %5307 = vmatprep.subr.bf16.mxu0 %v3639
        %5308 = vmatpush2.bf16.msra.mxu0 %v3638
        %5309 = vmatprep.subr.bf16.mxu0 %v3635
        %5310 = vmatpush2.bf16.msra.mxu0 %v3634
        %5311 = vmatprep.subr.bf16.mxu0 %v3631
        %5312 = vmatpush2.bf16.msra.mxu0 %v3630
        %5313 = vmatprep.subr.bf16.mxu0 %v3627
        %5314 = vmatpush2.bf16.msra.mxu0 %v3626
        %5315 = vmatprep.subr.bf16.mxu0 %v3623
        %5316 = vmatpush2.bf16.msra.mxu0 %v3622
        %5317 = vmatprep.subr.bf16.mxu0 %v3619
        %5318 = vmatpush2.bf16.msra.mxu0 %v3618
        %5319 = vmatprep.subr.bf16.mxu0 %v3615
        %5320 = vmatpush2.bf16.msra.mxu0 %v3614
        %5321 = vmatprep.mubr.bf16.mxu0 %v1847
        %5322 = vmatmul.mubr.bf16.gmra.mxu0 %v1846
        %v5323 = vpop.f32.mrf.mxu0
        %v5324 = vadd.f32 %v5283, %v5323
        %v5325 = vpop.f32.mrf.mxu0
        %v5326 = vadd.f32 %v5285, %v5325
        %v5327 = vpop.f32.mrf.mxu0
        %v5328 = vpop.f32.mrf.mxu0
        %5329 = vdwg.mxu0
        %5330 = vmatprep.subr.bf16.mxu0 %v3675
        %5331 = vmatpush1.bf16.msra.mxu0 %v3674
        %5332 = vmatprep.subr.bf16.mxu0 %v3671
        %5333 = vmatpush1.bf16.msra.mxu0 %v3670
        %5334 = vmatprep.subr.bf16.mxu0 %v3667
        %5335 = vmatpush1.bf16.msra.mxu0 %v3666
        %5336 = vmatprep.subr.bf16.mxu0 %v3663
        %5337 = vmatpush1.bf16.msra.mxu0 %v3662
        %5338 = vmatprep.subr.bf16.mxu0 %v3659
        %5339 = vmatpush1.bf16.msra.mxu0 %v3658
        %5340 = vmatprep.subr.bf16.mxu0 %v3655
        %5341 = vmatpush1.bf16.msra.mxu0 %v3654
        %5342 = vmatprep.subr.bf16.mxu0 %v3651
        %5343 = vmatpush1.bf16.msra.mxu0 %v3650
        %5344 = vmatprep.subr.bf16.mxu0 %v3647
        %5345 = vmatpush1.bf16.msra.mxu0 %v3646
        %5346 = vmatprep.subr.bf16.mxu0 %v3707
        %5347 = vmatpush2.bf16.msra.mxu0 %v3706
        %5348 = vmatprep.subr.bf16.mxu0 %v3703
        %5349 = vmatpush2.bf16.msra.mxu0 %v3702
        %5350 = vmatprep.subr.bf16.mxu0 %v3699
        %5351 = vmatpush2.bf16.msra.mxu0 %v3698
        %5352 = vmatprep.subr.bf16.mxu0 %v3695
        %5353 = vmatpush2.bf16.msra.mxu0 %v3694
        %5354 = vmatprep.subr.bf16.mxu0 %v3691
        %5355 = vmatpush2.bf16.msra.mxu0 %v3690
        %5356 = vmatprep.subr.bf16.mxu0 %v3687
        %5357 = vmatpush2.bf16.msra.mxu0 %v3686
        %5358 = vmatprep.subr.bf16.mxu0 %v3683
        %5359 = vmatpush2.bf16.msra.mxu0 %v3682
        %5360 = vmatprep.subr.bf16.mxu0 %v3679
        %5361 = vmatpush2.bf16.msra.mxu0 %v3678
        %5362 = vmatprep.mubr.bf16.mxu0 %v1849
        %5363 = vmatmul.mubr.bf16.gmra.mxu0 %v1848
        %v5364 = vpop.f32.mrf.mxu0
        %v5365 = vadd.f32 %v5324, %v5364
        %v5366 = vpop.f32.mrf.mxu0
        %v5367 = vadd.f32 %v5326, %v5366
        %v5368 = vpop.f32.mrf.mxu0
        %v5369 = vpop.f32.mrf.mxu0
        %5370 = vdwg.mxu0
        %5371 = vmatprep.subr.bf16.mxu0 %v3739
        %5372 = vmatpush1.bf16.msra.mxu0 %v3738
        %5373 = vmatprep.subr.bf16.mxu0 %v3735
        %5374 = vmatpush1.bf16.msra.mxu0 %v3734
        %5375 = vmatprep.subr.bf16.mxu0 %v3731
        %5376 = vmatpush1.bf16.msra.mxu0 %v3730
        %5377 = vmatprep.subr.bf16.mxu0 %v3727
        %5378 = vmatpush1.bf16.msra.mxu0 %v3726
        %5379 = vmatprep.subr.bf16.mxu0 %v3723
        %5380 = vmatpush1.bf16.msra.mxu0 %v3722
        %5381 = vmatprep.subr.bf16.mxu0 %v3719
        %5382 = vmatpush1.bf16.msra.mxu0 %v3718
        %5383 = vmatprep.subr.bf16.mxu0 %v3715
        %5384 = vmatpush1.bf16.msra.mxu0 %v3714
        %5385 = vmatprep.subr.bf16.mxu0 %v3711
        %5386 = vmatpush1.bf16.msra.mxu0 %v3710
        %5387 = vmatprep.subr.bf16.mxu0 %v3771
        %5388 = vmatpush2.bf16.msra.mxu0 %v3770
        %5389 = vmatprep.subr.bf16.mxu0 %v3767
        %5390 = vmatpush2.bf16.msra.mxu0 %v3766
        %5391 = vmatprep.subr.bf16.mxu0 %v3763
        %5392 = vmatpush2.bf16.msra.mxu0 %v3762
        %5393 = vmatprep.subr.bf16.mxu0 %v3759
        %5394 = vmatpush2.bf16.msra.mxu0 %v3758
        %5395 = vmatprep.subr.bf16.mxu0 %v3755
        %5396 = vmatpush2.bf16.msra.mxu0 %v3754
        %5397 = vmatprep.subr.bf16.mxu0 %v3751
        %5398 = vmatpush2.bf16.msra.mxu0 %v3750
        %5399 = vmatprep.subr.bf16.mxu0 %v3747
        %5400 = vmatpush2.bf16.msra.mxu0 %v3746
        %5401 = vmatprep.subr.bf16.mxu0 %v3743
        %5402 = vmatpush2.bf16.msra.mxu0 %v3742
        %5403 = vmatprep.mubr.bf16.mxu0 %v1851
        %5404 = vmatmul.mubr.bf16.gmra.mxu0 %v1850
        %v5405 = vpop.f32.mrf.mxu0
        %v5406 = vadd.f32 %v5365, %v5405
        %v5407 = vpop.f32.mrf.mxu0
        %v5408 = vadd.f32 %v5367, %v5407
        %v5409 = vpop.f32.mrf.mxu0
        %v5410 = vpop.f32.mrf.mxu0
        %5411 = vdwg.mxu0
        %v5416 = vcombine.low %v4586, %v4588
        %v5417 = vcombine.low %v5406, %v5408
        %v5419 = vunpack.c.l.s4 1983009808
        %v5420 = vunpack.c.0.s8 %v5419
        %v5421 = vlaneseq
        %v5422 = vshrl.u32 %v5421, 7
        %v5423 = vsub.s32 %v5420, %v5422
        %v5424 = vrot.slane %v5416, %v5423
        %v5426 = vunpack.c.l.s4 1983009808
        %v5427 = vunpack.c.0.s8 %v5426
        %v5428 = vlaneseq
        %v5429 = vshrl.u32 %v5428, 7
        %v5430 = vsub.s32 %v5427, %v5429
        %v5431 = vrot.slane %v5417, %v5430
        %v5432 = vcombine.low %v5424, %v5431
        %v5434 = vadd.f32 %v1581, %v5432
        %5435 = vst [vmem:[#allocation2] sm:$0xff] %v5434
        %p5436 = scmp.eq.s32.totalorder %s20, 1
        // Predicated region
        $region64: #{cnn1d_forward.18} parent=54 // pred_check
          %p5437 = pneg %p5436
        $region65: #{cnn1d_forward.18} parent=54 // pred_check_branch
          %5439 = sbr.rel (%p5437) target = $region67
        $region66: #{cnn1d_forward.18} parent=54 // pred_region
          %v5440 = vld [vmem:[#allocation2] sm:$0xff]
          %v5441 = vld [vmem:[%s1563] sm:$0xf]
          %v5443 = vlaneseq
          %v5444 = vshrl.u32 %v5443, 7
          %v5445 = vsub.s32 0, %v5444
          %v5446 = vrot.slane %v5441, %v5445
          %v5447 = vlaneseq
          %v5448 = vshrl.u32 %v5447, 7
          %v5449 = vsub.s32 1, %v5448
          %v5450 = vrot.slane %v5441, %v5449
          %v5451 = vlaneseq
          %v5452 = vshrl.u32 %v5451, 7
          %v5453 = vsub.s32 2, %v5452
          %v5454 = vrot.slane %v5441, %v5453
          %v5455 = vlaneseq
          %v5456 = vshrl.u32 %v5455, 7
          %v5457 = vsub.s32 3, %v5456
          %v5458 = vrot.slane %v5441, %v5457
          %v5459 = vcombine.low %v5446, %v5450
          %v5460 = vcombine.low %v5454, %v5458
          %v5462 = vunpack.c.l.s4 1983009808
          %v5463 = vunpack.c.0.s8 %v5462
          %v5464 = vlaneseq
          %v5465 = vshrl.u32 %v5464, 7
          %v5466 = vsub.s32 %v5463, %v5465
          %v5467 = vrot.slane %v5459, %v5466
          %v5469 = vunpack.c.l.s4 1983009808
          %v5470 = vunpack.c.0.s8 %v5469
          %v5471 = vlaneseq
          %v5472 = vshrl.u32 %v5471, 7
          %v5473 = vsub.s32 %v5470, %v5472
          %v5474 = vrot.slane %v5460, %v5473
          %v5475 = vcombine.low %v5467, %v5474
          %v5477 = vmul.f32 %v5440, %v5475
          %v5478 = vld [vmem:[%s1568] sm:$0xf]
          %v5480 = vlaneseq
          %v5481 = vshrl.u32 %v5480, 7
          %v5482 = vsub.s32 0, %v5481
          %v5483 = vrot.slane %v5478, %v5482
          %v5484 = vlaneseq
          %v5485 = vshrl.u32 %v5484, 7
          %v5486 = vsub.s32 1, %v5485
          %v5487 = vrot.slane %v5478, %v5486
          %v5488 = vlaneseq
          %v5489 = vshrl.u32 %v5488, 7
          %v5490 = vsub.s32 2, %v5489
          %v5491 = vrot.slane %v5478, %v5490
          %v5492 = vlaneseq
          %v5493 = vshrl.u32 %v5492, 7
          %v5494 = vsub.s32 3, %v5493
          %v5495 = vrot.slane %v5478, %v5494
          %v5496 = vcombine.low %v5483, %v5487
          %v5497 = vcombine.low %v5491, %v5495
          %v5499 = vunpack.c.l.s4 1983009808
          %v5500 = vunpack.c.0.s8 %v5499
          %v5501 = vlaneseq
          %v5502 = vshrl.u32 %v5501, 7
          %v5503 = vsub.s32 %v5500, %v5502
          %v5504 = vrot.slane %v5496, %v5503
          %v5506 = vunpack.c.l.s4 1983009808
          %v5507 = vunpack.c.0.s8 %v5506
          %v5508 = vlaneseq
          %v5509 = vshrl.u32 %v5508, 7
          %v5510 = vsub.s32 %v5507, %v5509
          %v5511 = vrot.slane %v5497, %v5510
          %v5512 = vcombine.low %v5504, %v5511
          %v5514 = vadd.f32 %v5477, %v5512
          %v5515 = vmax.f32 %v5514, 0.0
          %5516 = vst [vmem:[%s1574] sm:$0xff] %v5515
        $region67: #{cnn1d_forward.18} parent=54 // pred_fallthru
          _
        %s5517 = smul.u32 4, %s19
        %p5518 = scmp.lt.s32.totalorder %s5517, 7
        %s5519 = scalar_select %p5518, %s5517, 7
        %s5520 = smul.addr %s5519, 2
        %s5521 = scalar_lea.vmem %s4, %s5520
        // Predicated region
        $region68: #{cnn1d_forward.18} parent=54 // pred_check
          %p5522 = pneg %p151
        $region69: #{cnn1d_forward.18} parent=54 // pred_check_branch
          %5524 = sbr.rel (%p5522) target = $region71
        $region70: #{cnn1d_forward.18} parent=54 // pred_region
          %s5525 = smul.u32 4, %s19
        $region71: #{cnn1d_forward.18} parent=54 // pred_fallthru
          _
      $region55: #{cnn1d_forward.18} parent=5 // pred_fallthru
        _
      %p5526 = scmp.le.s32.totalorder 2, %s10
      // Predicated region
      $region72: #{cnn1d_forward.18} parent=5 // pred_check
        %p5527 = pneg %p5526
      $region73: #{cnn1d_forward.18} parent=5 // pred_check_branch
        %5529 = sbr.rel (%p5527) target = $region75
      $region74: #{cnn1d_forward.18} parent=5 // pred_region
        %s5530 = ssub.s32 %s10, 2
        // Predicated region
        $region76: #{cnn1d_forward.18} parent=74 // pred_check
          %p5531 = pneg %p157
        $region77: #{cnn1d_forward.18} parent=74 // pred_check_branch
          %5533 = sbr.rel (%p5531) target = $region79
        $region78: #{cnn1d_forward.18} parent=74 // pred_region
          %s5534 = smul.u32 4, %s21
          %p5535 = scmp.lt.s32.totalorder %s5534, 7
          %s5536 = scalar_select %p5535, %s5534, 7
          %s5537 = smul.addr %s5536, 2
          %s5538 = scalar_lea.vmem %s4, %s5537
        $region79: #{cnn1d_forward.18} parent=74 // pred_fallthru
          _
      $region75: #{cnn1d_forward.18} parent=5 // pred_fallthru
        _
    $region6: #{cnn1d_forward.18} parent=1 // loop_footer
      %s14 = sadd.s32 1, %s10
    $region7: #{cnn1d_forward.18} parent=1 // loop_footer_branch
      %9 = sbr.rel target = $region3
    $region8: #{cnn1d_forward.18} parent=1 // loop_exit
      _

</llo_original>
